<compile_context>
chip_gen: v5e
topology: v5e:2x2
jax: 0.10.0
libtpu: 0.0.40
codegen_flags: <defaults>
</compile_context>

<pallas_src>
import jax
import jax.numpy as jnp
from jax import lax
from jax.experimental import pallas as pl
from jax.experimental.pallas import tpu as pltpu


# ----------------------------------------------------------------------------
# In-kernel helpers (traced into the single fused kernel body).
# ----------------------------------------------------------------------------
def _lstm_cell(gates, c, H):
    i = jax.nn.sigmoid(gates[:, 0 * H:1 * H])
    f = jax.nn.sigmoid(gates[:, 1 * H:2 * H])
    g = jnp.tanh(gates[:, 2 * H:3 * H])
    o = jax.nn.sigmoid(gates[:, 3 * H:4 * H])
    c_new = f * c + i * g
    h_new = o * jnp.tanh(c_new)
    return h_new, c_new


def _run_bilstm(x2d, rows, T, w_ih, w_hh, bias, H, out_ref):
    """Bidirectional LSTM over a (rows*T, D) batch-major flattened input.

    The input projection (the big matmul) is hoisted out of the recurrence:
    one (rows*T, D) @ (D, 8H) bf16 matmul with the bias folded in.  The fully
    unrolled serial loop only carries the tiny per-direction h @ W_hh matmuls.
    Forward hidden states go to out_ref[..., :H], backward to [..., H:2H]
    (already in original time order), matching torch.nn.LSTM(bidirectional).
    """
    xproj = jnp.dot(x2d.astype(jnp.bfloat16), w_ih,
                    preferred_element_type=jnp.float32) + bias       # (rows*T, 8H)
    xproj = xproj.reshape(rows, T, 8 * H)
    w_hh_f = w_hh[:, :4 * H]
    w_hh_b = w_hh[:, 4 * H:]

    h_f = c_f = h_b = c_b = jnp.zeros((rows, H), jnp.float32)
    for t in range(T):           # static T -> straight-line unrolled recurrence
        g_f = xproj[:, t, :4 * H] + jnp.dot(
            h_f.astype(jnp.bfloat16), w_hh_f, preferred_element_type=jnp.float32)
        g_b = xproj[:, T - 1 - t, 4 * H:] + jnp.dot(
            h_b.astype(jnp.bfloat16), w_hh_b, preferred_element_type=jnp.float32)
        h_f, c_f = _lstm_cell(g_f, c_f, H)
        h_b, c_b = _lstm_cell(g_b, c_b, H)
        out_ref[:, t, 0:H] = h_f
        out_ref[:, T - 1 - t, H:2 * H] = h_b


def _softmax(x):
    e = jnp.exp(x - jnp.max(x, axis=-1, keepdims=True))
    return e / jnp.sum(e, axis=-1, keepdims=True)


def _elu(x):
    # exp only on the non-positive branch (no overflow in the discarded lane).
    return jnp.where(x > 0, x, jnp.exp(jnp.minimum(x, 0.0)) - 1.0)


# ----------------------------------------------------------------------------
# The fused ESIM forward kernel.
# ----------------------------------------------------------------------------
def _esim_kernel(tok_ref, mask_p_ref, mask_h_ref, emb_ref,
                 w_ih1_ref, w_hh1_ref, b1_ref,
                 w_ih2_ref, w_hh2_ref, b2_ref,
                 mw1_ref, mb1_ref, mw2_ref, mb2_ref, mw3_ref, mb3_ref,
                 out_ref, bar_ref, v_ref):
    B, L = mask_p_ref.shape
    V, _ = emb_ref.shape
    H = w_hh1_ref.shape[0]

    # --- Level0: embedding (eval-mode embedding BN pre-folded into the table).
    # Exact one-hot matmul on the MXU: avoids a dynamic-gather lowering and
    # keeps the lookup inside the fused kernel.
    tok = tok_ref[...]                                            # (2B*L, 1) i32
    onehot = (lax.broadcasted_iota(jnp.int32, (2 * B * L, V), 1)
              == tok).astype(jnp.float32)
    x_emb = jnp.dot(onehot, emb_ref[...],
                    preferred_element_type=jnp.float32)           # (2B*L, E)

    # --- Level1: input encoding BiLSTM on stacked [p ; h] (rows = 2B).
    _run_bilstm(x_emb, 2 * B, L, w_ih1_ref[...], w_hh1_ref[...],
                b1_ref[...], H, bar_ref)
    bar = bar_ref[...]                                            # (2B, L, 2H)
    p_bar, h_bar = bar[:B], bar[B:]
    p_bf, h_bf = p_bar.astype(jnp.bfloat16), h_bar.astype(jnp.bfloat16)

    # --- Level2: local inference modeling (soft alignment), transpose-free.
    mask_p = mask_p_ref[...]                                      # (B, L) f32
    mask_h = mask_h_ref[...]
    att_ph = jnp.einsum("bpd,bhd->bph", p_bf, h_bf,
                        preferred_element_type=jnp.float32)       # (B, Lp, Lh)
    att_hp = jnp.einsum("bhd,bpd->bhp", h_bf, p_bf,
                        preferred_element_type=jnp.float32)       # (B, Lh, Lp)
    w1 = _softmax(att_ph + mask_h[:, None, :])
    w2 = _softmax(att_hp + mask_p[:, None, :])
    p_align = jnp.einsum("bph,bhd->bpd", w1.astype(jnp.bfloat16), h_bf,
                         preferred_element_type=jnp.float32)
    h_align = jnp.einsum("bhp,bpd->bhd", w2.astype(jnp.bfloat16), p_bf,
                         preferred_element_type=jnp.float32)
    p_comb = jnp.concatenate(
        [p_bar, p_align, p_bar - p_align, p_bar * p_align], axis=-1)
    h_comb = jnp.concatenate(
        [h_bar, h_align, h_bar - h_align, h_bar * h_align], axis=-1)

    # --- Level3: inference composition BiLSTM on stacked combined features.
    comb = jnp.concatenate([p_comb, h_comb], axis=0)              # (2B, L, 8H)
    _run_bilstm(comb.reshape(2 * B * L, 8 * H), 2 * B, L,
                w_ih2_ref[...], w_hh2_ref[...], b2_ref[...], H, v_ref)
    v = v_ref[...]                                                # (2B, L, 2H)
    v_p, v_h = v[:B], v[B:]

    # --- Pooling (over all positions, like the reference avg/max_pool1d).
    feat = jnp.concatenate(
        [jnp.mean(v_p, axis=1), jnp.max(v_p, axis=1),
         jnp.mean(v_h, axis=1), jnp.max(v_h, axis=1)], axis=-1)   # (B, 8H)

    # --- MLP head (eval BatchNorms folded into the Linear weights, Dropout
    #     is identity in eval mode).
    x = _elu(jnp.dot(feat, mw1_ref[...],
                     preferred_element_type=jnp.float32) + mb1_ref[...])
    x = _elu(jnp.dot(x, mw2_ref[...],
                     preferred_element_type=jnp.float32) + mb2_ref[...])
    logits = jnp.dot(x, mw3_ref[...],
                     preferred_element_type=jnp.float32) + mb3_ref[...]
    out_ref[...] = _softmax(logits)


# ----------------------------------------------------------------------------
# Wrapper: one pallas_call for the whole forward.
# ----------------------------------------------------------------------------
def esim_forward(p_seq, h_seq, params):
    B, Lp = p_seq.shape
    Lh = h_seq.shape[1]
    assert Lp == Lh, "fused kernel expects equal (padded) p/h lengths"
    L = Lp
    H = params["lstm1"]["w_hh"].shape[0]

    # Tiny input prep in XLA: stacked flat token ids + additive key masks.
    tok = jnp.concatenate([p_seq, h_seq], axis=0).reshape(
        2 * B * L, 1).astype(jnp.int32)
    mask_p = jnp.where(p_seq == 0, -1e9, 0.0).astype(jnp.float32)
    mask_h = jnp.where(h_seq == 0, -1e9, 0.0).astype(jnp.float32)

    l1, l2, mlp = params["lstm1"], params["lstm2"], params["mlp"]
    pred = pl.pallas_call(
        _esim_kernel,
        out_shape=jax.ShapeDtypeStruct((B, 3), jnp.float32),
        scratch_shapes=[
            pltpu.VMEM((2 * B, L, 2 * H), jnp.float32),   # BiLSTM1 output
            pltpu.VMEM((2 * B, L, 2 * H), jnp.float32),   # BiLSTM2 output
        ],
    )(tok, mask_p, mask_h, params["embedding"],
      l1["w_ih"], l1["w_hh"], l1["b"],
      l2["w_ih"], l2["w_hh"], l2["b"],
      mlp["w1"], mlp["b1"], mlp["w2"], mlp["b2"], mlp["w3"], mlp["b3"])
    return {"pred": pred}


# ----------------------------------------------------------------------------
# Parameter construction (deterministic, synthetic) with eval-mode BN folding.
# ----------------------------------------------------------------------------
def _nrm(key, shape, scale=0.1):
    return (jax.random.normal(key, shape) * scale).astype(jnp.float32)


def make_bn_params(dim):
    return {
        "gamma": jnp.ones((1, dim), jnp.float32),
        "beta": jnp.zeros((1, dim), jnp.float32),
        "mean": jnp.zeros((1, dim), jnp.float32),
        "var": jnp.ones((1, dim), jnp.float32),
    }


def _bn_scale_shift(bn, eps=1e-5):
    s = bn["gamma"] * jax.lax.rsqrt(bn["var"] + eps)     # (1, C)
    t = bn["beta"] - bn["mean"] * s                      # (1, C)
    return s, t


def fold_bn_linear(bn, w, b):
    """(BN(x)) @ w + b  ==  x @ w' + b'  for eval-mode BN."""
    s, t = _bn_scale_shift(bn)
    return w * jnp.reshape(s, (-1, 1)), b + jnp.dot(t, w)


def make_bilstm_params(key, d_in, hidden):
    ks = jax.random.split(key, 6)
    # Column packing: [forward gates (i,f,g,o) | backward gates (i,f,g,o)].
    w_ih = jnp.concatenate([_nrm(ks[0], (d_in, 4 * hidden)),
                            _nrm(ks[1], (d_in, 4 * hidden))],
                           axis=1).astype(jnp.bfloat16)            # (D, 8H)
    w_hh = jnp.concatenate([_nrm(ks[2], (hidden, 4 * hidden)),
                            _nrm(ks[3], (hidden, 4 * hidden))],
                           axis=1).astype(jnp.bfloat16)            # (H, 8H)
    b = jnp.concatenate([_nrm(ks[4], (1, 4 * hidden)),
                         _nrm(ks[5], (1, 4 * hidden))], axis=1)    # (1, 8H)
    return {"w_ih": w_ih, "w_hh": w_hh, "b": b}


def make_esim_params(key, num_word, hidden, embed_dim, linear_size):
    ks = jax.random.split(key, 9)

    # Embedding table with eval-mode embedding BatchNorm folded in.
    emb = _nrm(ks[0], (num_word, embed_dim), scale=1.0)
    s, t = _bn_scale_shift(make_bn_params(embed_dim))
    emb = emb * s + t

    # MLP with the three eval-mode BatchNorms folded into the Linear layers.
    w1, b1 = _nrm(ks[3], (8 * hidden, linear_size)), _nrm(ks[4], (1, linear_size))
    w2, b2 = _nrm(ks[5], (linear_size, linear_size)), _nrm(ks[6], (1, linear_size))
    w3, b3 = _nrm(ks[7], (linear_size, 3)), _nrm(ks[8], (1, 3))
    w1, b1 = fold_bn_linear(make_bn_params(8 * hidden), w1, b1)
    w2, b2 = fold_bn_linear(make_bn_params(linear_size), w2, b2)
    w3, b3 = fold_bn_linear(make_bn_params(linear_size), w3, b3)

    return {
        "embedding": emb,
        "lstm1": make_bilstm_params(ks[1], embed_dim, hidden),
        "lstm2": make_bilstm_params(ks[2], 8 * hidden, hidden),
        "mlp": {"w1": w1, "b1": b1, "w2": w2, "b2": b2, "w3": w3, "b3": b3},
    }


if __name__ == "__main__":
    num_word, hidden, embed_dim, linear_size = 50, 32, 32, 64
    B, Lp, Lh = 2, 8, 8

    key = jax.random.PRNGKey(0)
    k_params, k_p, k_h = jax.random.split(key, 3)

    params = make_esim_params(k_params, num_word, hidden, embed_dim, linear_size)

    # Token ids in [1, num_word); trailing positions are padding (id 0), with
    # at least one real token per sequence.
    p_seq = jax.random.randint(k_p, (B, Lp), 1, num_word, dtype=jnp.int32)
    h_seq = jax.random.randint(k_h, (B, Lh), 1, num_word, dtype=jnp.int32)
    p_seq = p_seq.at[:, -2:].set(0)
    h_seq = h_seq.at[:, -3:].set(0)

    out = jax.jit(esim_forward)(p_seq, h_seq, params)
    pred = jax.block_until_ready(out["pred"])

    assert pred.shape == (B, 3)
    assert bool(jnp.all(jnp.isfinite(pred)))
    assert bool(jnp.allclose(jnp.sum(pred, axis=-1), 1.0, atol=1e-5))
    print("KERNEL_OK")
</pallas_src>

<mosaic_0001>
module attributes {stable_mosaic.version = 11 : i64} {
  func.func @_esim_kernel(%arg0: memref<32x1xi32, #tpu.memory_space<vmem>>, %arg1: memref<2x8xf32, #tpu.memory_space<vmem>>, %arg2: memref<2x8xf32, #tpu.memory_space<vmem>>, %arg3: memref<50x32xf32, #tpu.memory_space<vmem>>, %arg4: memref<32x256xbf16, #tpu.memory_space<vmem>>, %arg5: memref<32x256xbf16, #tpu.memory_space<vmem>>, %arg6: memref<1x256xf32, #tpu.memory_space<vmem>>, %arg7: memref<256x256xbf16, #tpu.memory_space<vmem>>, %arg8: memref<32x256xbf16, #tpu.memory_space<vmem>>, %arg9: memref<1x256xf32, #tpu.memory_space<vmem>>, %arg10: memref<256x64xf32, #tpu.memory_space<vmem>>, %arg11: memref<1x64xf32, #tpu.memory_space<vmem>>, %arg12: memref<64x64xf32, #tpu.memory_space<vmem>>, %arg13: memref<1x64xf32, #tpu.memory_space<vmem>>, %arg14: memref<64x3xf32, #tpu.memory_space<vmem>>, %arg15: memref<1x3xf32, #tpu.memory_space<vmem>>, %arg16: memref<2x3xf32, #tpu.memory_space<vmem>>, %arg17: memref<4x8x64xf32, #tpu.memory_space<vmem>>, %arg18: memref<4x8x64xf32, #tpu.memory_space<vmem>>) attributes {dimension_semantics = [], scalar_prefetch = 0 : i64, scratch_operands = 2 : i64, tpu.core_type = #tpu.core_type<tc>} {
    %c0 = arith.constant 0 : index
    %c0_0 = arith.constant 0 : index
    %0 = vector.load %arg0[%c0, %c0_0] : memref<32x1xi32, #tpu.memory_space<vmem>>, vector<32x1xi32>
    %1 = tpu.iota {dimensions = array<i32: 1>} : vector<32x50xi32>
    %2 = vector.broadcast %0 : vector<32x1xi32> to vector<32x50xi32>
    %3 = arith.cmpi eq, %1, %2 : vector<32x50xi32>
    %4 = arith.extui %3 : vector<32x50xi1> to vector<32x50xi32>
    %5 = arith.sitofp %4 : vector<32x50xi32> to vector<32x50xf32>
    %c0_1 = arith.constant 0 : index
    %c0_2 = arith.constant 0 : index
    %6 = vector.load %arg3[%c0_1, %c0_2] : memref<50x32xf32, #tpu.memory_space<vmem>>, vector<50x32xf32>
    %cst = arith.constant dense<0.000000e+00> : vector<32x32xf32>
    %7 = tpu.matmul %5, %6, %cst {dimension_numbers = #tpu.dot_dimension_numbers<[1], [0], [0], [1], [0, 0, 1, 1], [], []>} : vector<32x50xf32>, vector<50x32xf32>, vector<32x32xf32> -> vector<32x32xf32>
    %c0_3 = arith.constant 0 : index
    %c0_4 = arith.constant 0 : index
    %8 = vector.load %arg4[%c0_3, %c0_4] : memref<32x256xbf16, #tpu.memory_space<vmem>>, vector<32x256xbf16>
    %c0_5 = arith.constant 0 : index
    %c0_6 = arith.constant 0 : index
    %9 = vector.load %arg5[%c0_5, %c0_6] : memref<32x256xbf16, #tpu.memory_space<vmem>>, vector<32x256xbf16>
    %c0_7 = arith.constant 0 : index
    %c0_8 = arith.constant 0 : index
    %10 = vector.load %arg6[%c0_7, %c0_8] : memref<1x256xf32, #tpu.memory_space<vmem>>, vector<1x256xf32>
    %11 = arith.truncf %7 : vector<32x32xf32> to vector<32x32xbf16>
    %cst_9 = arith.constant dense<0.000000e+00> : vector<32x256xf32>
    %12 = tpu.matmul %11, %8, %cst_9 {dimension_numbers = #tpu.dot_dimension_numbers<[1], [0], [0], [1], [0, 0, 1, 1], [], []>} : vector<32x32xbf16>, vector<32x256xbf16>, vector<32x256xf32> -> vector<32x256xf32>
    %13 = vector.broadcast %10 : vector<1x256xf32> to vector<32x256xf32>
    %14 = arith.addf %12, %13 : vector<32x256xf32>
    %15 = vector.shape_cast %14 : vector<32x256xf32> to vector<4x8x256xf32>
    %16 = vector.extract_strided_slice %9 {offsets = [0, 0], sizes = [32, 128], strides = [1, 1]} : vector<32x256xbf16> to vector<32x128xbf16>
    %17 = vector.extract_strided_slice %9 {offsets = [0, 128], sizes = [32, 128], strides = [1, 1]} : vector<32x256xbf16> to vector<32x128xbf16>
    %cst_10 = arith.constant 0.000000e+00 : f32
    %18 = vector.broadcast %cst_10 : f32 to vector<4x32xf32>
    %19 = vector.extract_strided_slice %15 {offsets = [0, 0, 0], sizes = [4, 1, 128], strides = [1, 1, 1]} : vector<4x8x256xf32> to vector<4x1x128xf32>
    %20 = vector.shape_cast %19 : vector<4x1x128xf32> to vector<4x128xf32>
    %21 = arith.truncf %18 : vector<4x32xf32> to vector<4x32xbf16>
    %cst_11 = arith.constant dense<0.000000e+00> : vector<4x128xf32>
    %22 = tpu.matmul %21, %16, %cst_11 {dimension_numbers = #tpu.dot_dimension_numbers<[1], [0], [0], [1], [0, 0, 1, 1], [], []>} : vector<4x32xbf16>, vector<32x128xbf16>, vector<4x128xf32> -> vector<4x128xf32>
    %23 = arith.addf %20, %22 : vector<4x128xf32>
    %24 = vector.extract_strided_slice %15 {offsets = [0, 7, 128], sizes = [4, 1, 128], strides = [1, 1, 1]} : vector<4x8x256xf32> to vector<4x1x128xf32>
    %25 = vector.shape_cast %24 : vector<4x1x128xf32> to vector<4x128xf32>
    %26 = arith.truncf %18 : vector<4x32xf32> to vector<4x32xbf16>
    %cst_12 = arith.constant dense<0.000000e+00> : vector<4x128xf32>
    %27 = tpu.matmul %26, %17, %cst_12 {dimension_numbers = #tpu.dot_dimension_numbers<[1], [0], [0], [1], [0, 0, 1, 1], [], []>} : vector<4x32xbf16>, vector<32x128xbf16>, vector<4x128xf32> -> vector<4x128xf32>
    %28 = arith.addf %25, %27 : vector<4x128xf32>
    %29 = vector.extract_strided_slice %23 {offsets = [0, 0], sizes = [4, 32], strides = [1, 1]} : vector<4x128xf32> to vector<4x32xf32>
    %30 = arith.negf %29 : vector<4x32xf32>
    %31 = math.exp %30 : vector<4x32xf32>
    %cst_13 = arith.constant 1.000000e+00 : f32
    %32 = vector.broadcast %cst_13 : f32 to vector<4x32xf32>
    %33 = arith.addf %32, %31 : vector<4x32xf32>
    %34 = arith.divf %32, %33 : vector<4x32xf32>
    %35 = vector.extract_strided_slice %23 {offsets = [0, 32], sizes = [4, 32], strides = [1, 1]} : vector<4x128xf32> to vector<4x32xf32>
    %36 = arith.negf %35 : vector<4x32xf32>
    %37 = math.exp %36 : vector<4x32xf32>
    %cst_14 = arith.constant 1.000000e+00 : f32
    %38 = vector.broadcast %cst_14 : f32 to vector<4x32xf32>
    %39 = arith.addf %38, %37 : vector<4x32xf32>
    %40 = arith.divf %38, %39 : vector<4x32xf32>
    %41 = vector.extract_strided_slice %23 {offsets = [0, 64], sizes = [4, 32], strides = [1, 1]} : vector<4x128xf32> to vector<4x32xf32>
    %42 = math.tanh %41 : vector<4x32xf32>
    %43 = vector.extract_strided_slice %23 {offsets = [0, 96], sizes = [4, 32], strides = [1, 1]} : vector<4x128xf32> to vector<4x32xf32>
    %44 = arith.negf %43 : vector<4x32xf32>
    %45 = math.exp %44 : vector<4x32xf32>
    %cst_15 = arith.constant 1.000000e+00 : f32
    %46 = vector.broadcast %cst_15 : f32 to vector<4x32xf32>
    %47 = arith.addf %46, %45 : vector<4x32xf32>
    %48 = arith.divf %46, %47 : vector<4x32xf32>
    %49 = arith.mulf %40, %18 : vector<4x32xf32>
    %50 = arith.mulf %34, %42 : vector<4x32xf32>
    %51 = arith.addf %49, %50 : vector<4x32xf32>
    %52 = math.tanh %51 : vector<4x32xf32>
    %53 = arith.mulf %48, %52 : vector<4x32xf32>
    %54 = vector.extract_strided_slice %28 {offsets = [0, 0], sizes = [4, 32], strides = [1, 1]} : vector<4x128xf32> to vector<4x32xf32>
    %55 = arith.negf %54 : vector<4x32xf32>
    %56 = math.exp %55 : vector<4x32xf32>
    %cst_16 = arith.constant 1.000000e+00 : f32
    %57 = vector.broadcast %cst_16 : f32 to vector<4x32xf32>
    %58 = arith.addf %57, %56 : vector<4x32xf32>
    %59 = arith.divf %57, %58 : vector<4x32xf32>
    %60 = vector.extract_strided_slice %28 {offsets = [0, 32], sizes = [4, 32], strides = [1, 1]} : vector<4x128xf32> to vector<4x32xf32>
    %61 = arith.negf %60 : vector<4x32xf32>
    %62 = math.exp %61 : vector<4x32xf32>
    %cst_17 = arith.constant 1.000000e+00 : f32
    %63 = vector.broadcast %cst_17 : f32 to vector<4x32xf32>
    %64 = arith.addf %63, %62 : vector<4x32xf32>
    %65 = arith.divf %63, %64 : vector<4x32xf32>
    %66 = vector.extract_strided_slice %28 {offsets = [0, 64], sizes = [4, 32], strides = [1, 1]} : vector<4x128xf32> to vector<4x32xf32>
    %67 = math.tanh %66 : vector<4x32xf32>
    %68 = vector.extract_strided_slice %28 {offsets = [0, 96], sizes = [4, 32], strides = [1, 1]} : vector<4x128xf32> to vector<4x32xf32>
    %69 = arith.negf %68 : vector<4x32xf32>
    %70 = math.exp %69 : vector<4x32xf32>
    %cst_18 = arith.constant 1.000000e+00 : f32
    %71 = vector.broadcast %cst_18 : f32 to vector<4x32xf32>
    %72 = arith.addf %71, %70 : vector<4x32xf32>
    %73 = arith.divf %71, %72 : vector<4x32xf32>
    %74 = arith.mulf %65, %18 : vector<4x32xf32>
    %75 = arith.mulf %59, %67 : vector<4x32xf32>
    %76 = arith.addf %74, %75 : vector<4x32xf32>
    %77 = math.tanh %76 : vector<4x32xf32>
    %78 = arith.mulf %73, %77 : vector<4x32xf32>
    %c0_19 = arith.constant 0 : index
    %c0_20 = arith.constant 0 : index
    %c0_21 = arith.constant 0 : index
    %79 = vector.load %arg17[%c0_19, %c0_20, %c0_21] : memref<4x8x64xf32, #tpu.memory_space<vmem>>, vector<4x1x32xf32>
    %80 = vector.shape_cast %79 : vector<4x1x32xf32> to vector<4x32xf32>
    %81 = vector.shape_cast %53 : vector<4x32xf32> to vector<4x1x32xf32>
    tpu.vector_store %arg17[%c0_19, %c0_20, %c0_21], %81 {strides = array<i32>} : memref<4x8x64xf32, #tpu.memory_space<vmem>>, vector<4x1x32xf32>,
    %c0_22 = arith.constant 0 : index
    %c7 = arith.constant 7 : index
    %c32 = arith.constant 32 : index
    %82 = vector.load %arg17[%c0_22, %c7, %c32] : memref<4x8x64xf32, #tpu.memory_space<vmem>>, vector<4x1x32xf32>
    %83 = vector.shape_cast %82 : vector<4x1x32xf32> to vector<4x32xf32>
    %84 = vector.shape_cast %78 : vector<4x32xf32> to vector<4x1x32xf32>
    tpu.vector_store %arg17[%c0_22, %c7, %c32], %84 {strides = array<i32>} : memref<4x8x64xf32, #tpu.memory_space<vmem>>, vector<4x1x32xf32>,
    %85 = vector.extract_strided_slice %15 {offsets = [0, 1, 0], sizes = [4, 1, 128], strides = [1, 1, 1]} : vector<4x8x256xf32> to vector<4x1x128xf32>
    %86 = vector.shape_cast %85 : vector<4x1x128xf32> to vector<4x128xf32>
    %87 = arith.truncf %53 : vector<4x32xf32> to vector<4x32xbf16>
    %cst_23 = arith.constant dense<0.000000e+00> : vector<4x128xf32>
    %88 = tpu.matmul %87, %16, %cst_23 {dimension_numbers = #tpu.dot_dimension_numbers<[1], [0], [0], [1], [0, 0, 1, 1], [], []>} : vector<4x32xbf16>, vector<32x128xbf16>, vector<4x128xf32> -> vector<4x128xf32>
    %89 = arith.addf %86, %88 : vector<4x128xf32>
    %90 = vector.extract_strided_slice %15 {offsets = [0, 6, 128], sizes = [4, 1, 128], strides = [1, 1, 1]} : vector<4x8x256xf32> to vector<4x1x128xf32>
    %91 = vector.shape_cast %90 : vector<4x1x128xf32> to vector<4x128xf32>
    %92 = arith.truncf %78 : vector<4x32xf32> to vector<4x32xbf16>
    %cst_24 = arith.constant dense<0.000000e+00> : vector<4x128xf32>
    %93 = tpu.matmul %92, %17, %cst_24 {dimension_numbers = #tpu.dot_dimension_numbers<[1], [0], [0], [1], [0, 0, 1, 1], [], []>} : vector<4x32xbf16>, vector<32x128xbf16>, vector<4x128xf32> -> vector<4x128xf32>
    %94 = arith.addf %91, %93 : vector<4x128xf32>
    %95 = vector.extract_strided_slice %89 {offsets = [0, 0], sizes = [4, 32], strides = [1, 1]} : vector<4x128xf32> to vector<4x32xf32>
    %96 = arith.negf %95 : vector<4x32xf32>
    %97 = math.exp %96 : vector<4x32xf32>
    %cst_25 = arith.constant 1.000000e+00 : f32
    %98 = vector.broadcast %cst_25 : f32 to vector<4x32xf32>
    %99 = arith.addf %98, %97 : vector<4x32xf32>
    %100 = arith.divf %98, %99 : vector<4x32xf32>
    %101 = vector.extract_strided_slice %89 {offsets = [0, 32], sizes = [4, 32], strides = [1, 1]} : vector<4x128xf32> to vector<4x32xf32>
    %102 = arith.negf %101 : vector<4x32xf32>
    %103 = math.exp %102 : vector<4x32xf32>
    %cst_26 = arith.constant 1.000000e+00 : f32
    %104 = vector.broadcast %cst_26 : f32 to vector<4x32xf32>
    %105 = arith.addf %104, %103 : vector<4x32xf32>
    %106 = arith.divf %104, %105 : vector<4x32xf32>
    %107 = vector.extract_strided_slice %89 {offsets = [0, 64], sizes = [4, 32], strides = [1, 1]} : vector<4x128xf32> to vector<4x32xf32>
    %108 = math.tanh %107 : vector<4x32xf32>
    %109 = vector.extract_strided_slice %89 {offsets = [0, 96], sizes = [4, 32], strides = [1, 1]} : vector<4x128xf32> to vector<4x32xf32>
    %110 = arith.negf %109 : vector<4x32xf32>
    %111 = math.exp %110 : vector<4x32xf32>
    %cst_27 = arith.constant 1.000000e+00 : f32
    %112 = vector.broadcast %cst_27 : f32 to vector<4x32xf32>
    %113 = arith.addf %112, %111 : vector<4x32xf32>
    %114 = arith.divf %112, %113 : vector<4x32xf32>
    %115 = arith.mulf %106, %51 : vector<4x32xf32>
    %116 = arith.mulf %100, %108 : vector<4x32xf32>
    %117 = arith.addf %115, %116 : vector<4x32xf32>
    %118 = math.tanh %117 : vector<4x32xf32>
    %119 = arith.mulf %114, %118 : vector<4x32xf32>
    %120 = vector.extract_strided_slice %94 {offsets = [0, 0], sizes = [4, 32], strides = [1, 1]} : vector<4x128xf32> to vector<4x32xf32>
    %121 = arith.negf %120 : vector<4x32xf32>
    %122 = math.exp %121 : vector<4x32xf32>
    %cst_28 = arith.constant 1.000000e+00 : f32
    %123 = vector.broadcast %cst_28 : f32 to vector<4x32xf32>
    %124 = arith.addf %123, %122 : vector<4x32xf32>
    %125 = arith.divf %123, %124 : vector<4x32xf32>
    %126 = vector.extract_strided_slice %94 {offsets = [0, 32], sizes = [4, 32], strides = [1, 1]} : vector<4x128xf32> to vector<4x32xf32>
    %127 = arith.negf %126 : vector<4x32xf32>
    %128 = math.exp %127 : vector<4x32xf32>
    %cst_29 = arith.constant 1.000000e+00 : f32
    %129 = vector.broadcast %cst_29 : f32 to vector<4x32xf32>
    %130 = arith.addf %129, %128 : vector<4x32xf32>
    %131 = arith.divf %129, %130 : vector<4x32xf32>
    %132 = vector.extract_strided_slice %94 {offsets = [0, 64], sizes = [4, 32], strides = [1, 1]} : vector<4x128xf32> to vector<4x32xf32>
    %133 = math.tanh %132 : vector<4x32xf32>
    %134 = vector.extract_strided_slice %94 {offsets = [0, 96], sizes = [4, 32], strides = [1, 1]} : vector<4x128xf32> to vector<4x32xf32>
    %135 = arith.negf %134 : vector<4x32xf32>
    %136 = math.exp %135 : vector<4x32xf32>
    %cst_30 = arith.constant 1.000000e+00 : f32
    %137 = vector.broadcast %cst_30 : f32 to vector<4x32xf32>
    %138 = arith.addf %137, %136 : vector<4x32xf32>
    %139 = arith.divf %137, %138 : vector<4x32xf32>
    %140 = arith.mulf %131, %76 : vector<4x32xf32>
    %141 = arith.mulf %125, %133 : vector<4x32xf32>
    %142 = arith.addf %140, %141 : vector<4x32xf32>
    %143 = math.tanh %142 : vector<4x32xf32>
    %144 = arith.mulf %139, %143 : vector<4x32xf32>
    %c0_31 = arith.constant 0 : index
    %c1 = arith.constant 1 : index
    %c0_32 = arith.constant 0 : index
    %145 = vector.load %arg17[%c0_31, %c1, %c0_32] : memref<4x8x64xf32, #tpu.memory_space<vmem>>, vector<4x1x32xf32>
    %146 = vector.shape_cast %145 : vector<4x1x32xf32> to vector<4x32xf32>
    %147 = vector.shape_cast %119 : vector<4x32xf32> to vector<4x1x32xf32>
    tpu.vector_store %arg17[%c0_31, %c1, %c0_32], %147 {strides = array<i32>} : memref<4x8x64xf32, #tpu.memory_space<vmem>>, vector<4x1x32xf32>,
    %c0_33 = arith.constant 0 : index
    %c6 = arith.constant 6 : index
    %c32_34 = arith.constant 32 : index
    %148 = vector.load %arg17[%c0_33, %c6, %c32_34] : memref<4x8x64xf32, #tpu.memory_space<vmem>>, vector<4x1x32xf32>
    %149 = vector.shape_cast %148 : vector<4x1x32xf32> to vector<4x32xf32>
    %150 = vector.shape_cast %144 : vector<4x32xf32> to vector<4x1x32xf32>
    tpu.vector_store %arg17[%c0_33, %c6, %c32_34], %150 {strides = array<i32>} : memref<4x8x64xf32, #tpu.memory_space<vmem>>, vector<4x1x32xf32>,
    %151 = vector.extract_strided_slice %15 {offsets = [0, 2, 0], sizes = [4, 1, 128], strides = [1, 1, 1]} : vector<4x8x256xf32> to vector<4x1x128xf32>
    %152 = vector.shape_cast %151 : vector<4x1x128xf32> to vector<4x128xf32>
    %153 = arith.truncf %119 : vector<4x32xf32> to vector<4x32xbf16>
    %cst_35 = arith.constant dense<0.000000e+00> : vector<4x128xf32>
    %154 = tpu.matmul %153, %16, %cst_35 {dimension_numbers = #tpu.dot_dimension_numbers<[1], [0], [0], [1], [0, 0, 1, 1], [], []>} : vector<4x32xbf16>, vector<32x128xbf16>, vector<4x128xf32> -> vector<4x128xf32>
    %155 = arith.addf %152, %154 : vector<4x128xf32>
    %156 = vector.extract_strided_slice %15 {offsets = [0, 5, 128], sizes = [4, 1, 128], strides = [1, 1, 1]} : vector<4x8x256xf32> to vector<4x1x128xf32>
    %157 = vector.shape_cast %156 : vector<4x1x128xf32> to vector<4x128xf32>
    %158 = arith.truncf %144 : vector<4x32xf32> to vector<4x32xbf16>
    %cst_36 = arith.constant dense<0.000000e+00> : vector<4x128xf32>
    %159 = tpu.matmul %158, %17, %cst_36 {dimension_numbers = #tpu.dot_dimension_numbers<[1], [0], [0], [1], [0, 0, 1, 1], [], []>} : vector<4x32xbf16>, vector<32x128xbf16>, vector<4x128xf32> -> vector<4x128xf32>
    %160 = arith.addf %157, %159 : vector<4x128xf32>
    %161 = vector.extract_strided_slice %155 {offsets = [0, 0], sizes = [4, 32], strides = [1, 1]} : vector<4x128xf32> to vector<4x32xf32>
    %162 = arith.negf %161 : vector<4x32xf32>
    %163 = math.exp %162 : vector<4x32xf32>
    %cst_37 = arith.constant 1.000000e+00 : f32
    %164 = vector.broadcast %cst_37 : f32 to vector<4x32xf32>
    %165 = arith.addf %164, %163 : vector<4x32xf32>
    %166 = arith.divf %164, %165 : vector<4x32xf32>
    %167 = vector.extract_strided_slice %155 {offsets = [0, 32], sizes = [4, 32], strides = [1, 1]} : vector<4x128xf32> to vector<4x32xf32>
    %168 = arith.negf %167 : vector<4x32xf32>
    %169 = math.exp %168 : vector<4x32xf32>
    %cst_38 = arith.constant 1.000000e+00 : f32
    %170 = vector.broadcast %cst_38 : f32 to vector<4x32xf32>
    %171 = arith.addf %170, %169 : vector<4x32xf32>
    %172 = arith.divf %170, %171 : vector<4x32xf32>
    %173 = vector.extract_strided_slice %155 {offsets = [0, 64], sizes = [4, 32], strides = [1, 1]} : vector<4x128xf32> to vector<4x32xf32>
    %174 = math.tanh %173 : vector<4x32xf32>
    %175 = vector.extract_strided_slice %155 {offsets = [0, 96], sizes = [4, 32], strides = [1, 1]} : vector<4x128xf32> to vector<4x32xf32>
    %176 = arith.negf %175 : vector<4x32xf32>
    %177 = math.exp %176 : vector<4x32xf32>
    %cst_39 = arith.constant 1.000000e+00 : f32
    %178 = vector.broadcast %cst_39 : f32 to vector<4x32xf32>
    %179 = arith.addf %178, %177 : vector<4x32xf32>
    %180 = arith.divf %178, %179 : vector<4x32xf32>
    %181 = arith.mulf %172, %117 : vector<4x32xf32>
    %182 = arith.mulf %166, %174 : vector<4x32xf32>
    %183 = arith.addf %181, %182 : vector<4x32xf32>
    %184 = math.tanh %183 : vector<4x32xf32>
    %185 = arith.mulf %180, %184 : vector<4x32xf32>
    %186 = vector.extract_strided_slice %160 {offsets = [0, 0], sizes = [4, 32], strides = [1, 1]} : vector<4x128xf32> to vector<4x32xf32>
    %187 = arith.negf %186 : vector<4x32xf32>
    %188 = math.exp %187 : vector<4x32xf32>
    %cst_40 = arith.constant 1.000000e+00 : f32
    %189 = vector.broadcast %cst_40 : f32 to vector<4x32xf32>
    %190 = arith.addf %189, %188 : vector<4x32xf32>
    %191 = arith.divf %189, %190 : vector<4x32xf32>
    %192 = vector.extract_strided_slice %160 {offsets = [0, 32], sizes = [4, 32], strides = [1, 1]} : vector<4x128xf32> to vector<4x32xf32>
    %193 = arith.negf %192 : vector<4x32xf32>
    %194 = math.exp %193 : vector<4x32xf32>
    %cst_41 = arith.constant 1.000000e+00 : f32
    %195 = vector.broadcast %cst_41 : f32 to vector<4x32xf32>
    %196 = arith.addf %195, %194 : vector<4x32xf32>
    %197 = arith.divf %195, %196 : vector<4x32xf32>
    %198 = vector.extract_strided_slice %160 {offsets = [0, 64], sizes = [4, 32], strides = [1, 1]} : vector<4x128xf32> to vector<4x32xf32>
    %199 = math.tanh %198 : vector<4x32xf32>
    %200 = vector.extract_strided_slice %160 {offsets = [0, 96], sizes = [4, 32], strides = [1, 1]} : vector<4x128xf32> to vector<4x32xf32>
    %201 = arith.negf %200 : vector<4x32xf32>
    %202 = math.exp %201 : vector<4x32xf32>
    %cst_42 = arith.constant 1.000000e+00 : f32
    %203 = vector.broadcast %cst_42 : f32 to vector<4x32xf32>
    %204 = arith.addf %203, %202 : vector<4x32xf32>
    %205 = arith.divf %203, %204 : vector<4x32xf32>
    %206 = arith.mulf %197, %142 : vector<4x32xf32>
    %207 = arith.mulf %191, %199 : vector<4x32xf32>
    %208 = arith.addf %206, %207 : vector<4x32xf32>
    %209 = math.tanh %208 : vector<4x32xf32>
    %210 = arith.mulf %205, %209 : vector<4x32xf32>
    %c0_43 = arith.constant 0 : index
    %c2 = arith.constant 2 : index
    %c0_44 = arith.constant 0 : index
    %211 = vector.load %arg17[%c0_43, %c2, %c0_44] : memref<4x8x64xf32, #tpu.memory_space<vmem>>, vector<4x1x32xf32>
    %212 = vector.shape_cast %211 : vector<4x1x32xf32> to vector<4x32xf32>
    %213 = vector.shape_cast %185 : vector<4x32xf32> to vector<4x1x32xf32>
    tpu.vector_store %arg17[%c0_43, %c2, %c0_44], %213 {strides = array<i32>} : memref<4x8x64xf32, #tpu.memory_space<vmem>>, vector<4x1x32xf32>,
    %c0_45 = arith.constant 0 : index
    %c5 = arith.constant 5 : index
    %c32_46 = arith.constant 32 : index
    %214 = vector.load %arg17[%c0_45, %c5, %c32_46] : memref<4x8x64xf32, #tpu.memory_space<vmem>>, vector<4x1x32xf32>
    %215 = vector.shape_cast %214 : vector<4x1x32xf32> to vector<4x32xf32>
    %216 = vector.shape_cast %210 : vector<4x32xf32> to vector<4x1x32xf32>
    tpu.vector_store %arg17[%c0_45, %c5, %c32_46], %216 {strides = array<i32>} : memref<4x8x64xf32, #tpu.memory_space<vmem>>, vector<4x1x32xf32>,
    %217 = vector.extract_strided_slice %15 {offsets = [0, 3, 0], sizes = [4, 1, 128], strides = [1, 1, 1]} : vector<4x8x256xf32> to vector<4x1x128xf32>
    %218 = vector.shape_cast %217 : vector<4x1x128xf32> to vector<4x128xf32>
    %219 = arith.truncf %185 : vector<4x32xf32> to vector<4x32xbf16>
    %cst_47 = arith.constant dense<0.000000e+00> : vector<4x128xf32>
    %220 = tpu.matmul %219, %16, %cst_47 {dimension_numbers = #tpu.dot_dimension_numbers<[1], [0], [0], [1], [0, 0, 1, 1], [], []>} : vector<4x32xbf16>, vector<32x128xbf16>, vector<4x128xf32> -> vector<4x128xf32>
    %221 = arith.addf %218, %220 : vector<4x128xf32>
    %222 = vector.extract_strided_slice %15 {offsets = [0, 4, 128], sizes = [4, 1, 128], strides = [1, 1, 1]} : vector<4x8x256xf32> to vector<4x1x128xf32>
    %223 = vector.shape_cast %222 : vector<4x1x128xf32> to vector<4x128xf32>
    %224 = arith.truncf %210 : vector<4x32xf32> to vector<4x32xbf16>
    %cst_48 = arith.constant dense<0.000000e+00> : vector<4x128xf32>
    %225 = tpu.matmul %224, %17, %cst_48 {dimension_numbers = #tpu.dot_dimension_numbers<[1], [0], [0], [1], [0, 0, 1, 1], [], []>} : vector<4x32xbf16>, vector<32x128xbf16>, vector<4x128xf32> -> vector<4x128xf32>
    %226 = arith.addf %223, %225 : vector<4x128xf32>
    %227 = vector.extract_strided_slice %221 {offsets = [0, 0], sizes = [4, 32], strides = [1, 1]} : vector<4x128xf32> to vector<4x32xf32>
    %228 = arith.negf %227 : vector<4x32xf32>
    %229 = math.exp %228 : vector<4x32xf32>
    %cst_49 = arith.constant 1.000000e+00 : f32
    %230 = vector.broadcast %cst_49 : f32 to vector<4x32xf32>
    %231 = arith.addf %230, %229 : vector<4x32xf32>
    %232 = arith.divf %230, %231 : vector<4x32xf32>
    %233 = vector.extract_strided_slice %221 {offsets = [0, 32], sizes = [4, 32], strides = [1, 1]} : vector<4x128xf32> to vector<4x32xf32>
    %234 = arith.negf %233 : vector<4x32xf32>
    %235 = math.exp %234 : vector<4x32xf32>
    %cst_50 = arith.constant 1.000000e+00 : f32
    %236 = vector.broadcast %cst_50 : f32 to vector<4x32xf32>
    %237 = arith.addf %236, %235 : vector<4x32xf32>
    %238 = arith.divf %236, %237 : vector<4x32xf32>
    %239 = vector.extract_strided_slice %221 {offsets = [0, 64], sizes = [4, 32], strides = [1, 1]} : vector<4x128xf32> to vector<4x32xf32>
    %240 = math.tanh %239 : vector<4x32xf32>
    %241 = vector.extract_strided_slice %221 {offsets = [0, 96], sizes = [4, 32], strides = [1, 1]} : vector<4x128xf32> to vector<4x32xf32>
    %242 = arith.negf %241 : vector<4x32xf32>
    %243 = math.exp %242 : vector<4x32xf32>
    %cst_51 = arith.constant 1.000000e+00 : f32
    %244 = vector.broadcast %cst_51 : f32 to vector<4x32xf32>
    %245 = arith.addf %244, %243 : vector<4x32xf32>
    %246 = arith.divf %244, %245 : vector<4x32xf32>
    %247 = arith.mulf %238, %183 : vector<4x32xf32>
    %248 = arith.mulf %232, %240 : vector<4x32xf32>
    %249 = arith.addf %247, %248 : vector<4x32xf32>
    %250 = math.tanh %249 : vector<4x32xf32>
    %251 = arith.mulf %246, %250 : vector<4x32xf32>
    %252 = vector.extract_strided_slice %226 {offsets = [0, 0], sizes = [4, 32], strides = [1, 1]} : vector<4x128xf32> to vector<4x32xf32>
    %253 = arith.negf %252 : vector<4x32xf32>
    %254 = math.exp %253 : vector<4x32xf32>
    %cst_52 = arith.constant 1.000000e+00 : f32
    %255 = vector.broadcast %cst_52 : f32 to vector<4x32xf32>
    %256 = arith.addf %255, %254 : vector<4x32xf32>
    %257 = arith.divf %255, %256 : vector<4x32xf32>
    %258 = vector.extract_strided_slice %226 {offsets = [0, 32], sizes = [4, 32], strides = [1, 1]} : vector<4x128xf32> to vector<4x32xf32>
    %259 = arith.negf %258 : vector<4x32xf32>
    %260 = math.exp %259 : vector<4x32xf32>
    %cst_53 = arith.constant 1.000000e+00 : f32
    %261 = vector.broadcast %cst_53 : f32 to vector<4x32xf32>
    %262 = arith.addf %261, %260 : vector<4x32xf32>
    %263 = arith.divf %261, %262 : vector<4x32xf32>
    %264 = vector.extract_strided_slice %226 {offsets = [0, 64], sizes = [4, 32], strides = [1, 1]} : vector<4x128xf32> to vector<4x32xf32>
    %265 = math.tanh %264 : vector<4x32xf32>
    %266 = vector.extract_strided_slice %226 {offsets = [0, 96], sizes = [4, 32], strides = [1, 1]} : vector<4x128xf32> to vector<4x32xf32>
    %267 = arith.negf %266 : vector<4x32xf32>
    %268 = math.exp %267 : vector<4x32xf32>
    %cst_54 = arith.constant 1.000000e+00 : f32
    %269 = vector.broadcast %cst_54 : f32 to vector<4x32xf32>
    %270 = arith.addf %269, %268 : vector<4x32xf32>
    %271 = arith.divf %269, %270 : vector<4x32xf32>
    %272 = arith.mulf %263, %208 : vector<4x32xf32>
    %273 = arith.mulf %257, %265 : vector<4x32xf32>
    %274 = arith.addf %272, %273 : vector<4x32xf32>
    %275 = math.tanh %274 : vector<4x32xf32>
    %276 = arith.mulf %271, %275 : vector<4x32xf32>
    %c0_55 = arith.constant 0 : index
    %c3 = arith.constant 3 : index
    %c0_56 = arith.constant 0 : index
    %277 = vector.load %arg17[%c0_55, %c3, %c0_56] : memref<4x8x64xf32, #tpu.memory_space<vmem>>, vector<4x1x32xf32>
    %278 = vector.shape_cast %277 : vector<4x1x32xf32> to vector<4x32xf32>
    %279 = vector.shape_cast %251 : vector<4x32xf32> to vector<4x1x32xf32>
    tpu.vector_store %arg17[%c0_55, %c3, %c0_56], %279 {strides = array<i32>} : memref<4x8x64xf32, #tpu.memory_space<vmem>>, vector<4x1x32xf32>,
    %c0_57 = arith.constant 0 : index
    %c4 = arith.constant 4 : index
    %c32_58 = arith.constant 32 : index
    %280 = vector.load %arg17[%c0_57, %c4, %c32_58] : memref<4x8x64xf32, #tpu.memory_space<vmem>>, vector<4x1x32xf32>
    %281 = vector.shape_cast %280 : vector<4x1x32xf32> to vector<4x32xf32>
    %282 = vector.shape_cast %276 : vector<4x32xf32> to vector<4x1x32xf32>
    tpu.vector_store %arg17[%c0_57, %c4, %c32_58], %282 {strides = array<i32>} : memref<4x8x64xf32, #tpu.memory_space<vmem>>, vector<4x1x32xf32>,
    %283 = vector.extract_strided_slice %15 {offsets = [0, 4, 0], sizes = [4, 1, 128], strides = [1, 1, 1]} : vector<4x8x256xf32> to vector<4x1x128xf32>
    %284 = vector.shape_cast %283 : vector<4x1x128xf32> to vector<4x128xf32>
    %285 = arith.truncf %251 : vector<4x32xf32> to vector<4x32xbf16>
    %cst_59 = arith.constant dense<0.000000e+00> : vector<4x128xf32>
    %286 = tpu.matmul %285, %16, %cst_59 {dimension_numbers = #tpu.dot_dimension_numbers<[1], [0], [0], [1], [0, 0, 1, 1], [], []>} : vector<4x32xbf16>, vector<32x128xbf16>, vector<4x128xf32> -> vector<4x128xf32>
    %287 = arith.addf %284, %286 : vector<4x128xf32>
    %288 = vector.extract_strided_slice %15 {offsets = [0, 3, 128], sizes = [4, 1, 128], strides = [1, 1, 1]} : vector<4x8x256xf32> to vector<4x1x128xf32>
    %289 = vector.shape_cast %288 : vector<4x1x128xf32> to vector<4x128xf32>
    %290 = arith.truncf %276 : vector<4x32xf32> to vector<4x32xbf16>
    %cst_60 = arith.constant dense<0.000000e+00> : vector<4x128xf32>
    %291 = tpu.matmul %290, %17, %cst_60 {dimension_numbers = #tpu.dot_dimension_numbers<[1], [0], [0], [1], [0, 0, 1, 1], [], []>} : vector<4x32xbf16>, vector<32x128xbf16>, vector<4x128xf32> -> vector<4x128xf32>
    %292 = arith.addf %289, %291 : vector<4x128xf32>
    %293 = vector.extract_strided_slice %287 {offsets = [0, 0], sizes = [4, 32], strides = [1, 1]} : vector<4x128xf32> to vector<4x32xf32>
    %294 = arith.negf %293 : vector<4x32xf32>
    %295 = math.exp %294 : vector<4x32xf32>
    %cst_61 = arith.constant 1.000000e+00 : f32
    %296 = vector.broadcast %cst_61 : f32 to vector<4x32xf32>
    %297 = arith.addf %296, %295 : vector<4x32xf32>
    %298 = arith.divf %296, %297 : vector<4x32xf32>
    %299 = vector.extract_strided_slice %287 {offsets = [0, 32], sizes = [4, 32], strides = [1, 1]} : vector<4x128xf32> to vector<4x32xf32>
    %300 = arith.negf %299 : vector<4x32xf32>
    %301 = math.exp %300 : vector<4x32xf32>
    %cst_62 = arith.constant 1.000000e+00 : f32
    %302 = vector.broadcast %cst_62 : f32 to vector<4x32xf32>
    %303 = arith.addf %302, %301 : vector<4x32xf32>
    %304 = arith.divf %302, %303 : vector<4x32xf32>
    %305 = vector.extract_strided_slice %287 {offsets = [0, 64], sizes = [4, 32], strides = [1, 1]} : vector<4x128xf32> to vector<4x32xf32>
    %306 = math.tanh %305 : vector<4x32xf32>
    %307 = vector.extract_strided_slice %287 {offsets = [0, 96], sizes = [4, 32], strides = [1, 1]} : vector<4x128xf32> to vector<4x32xf32>
    %308 = arith.negf %307 : vector<4x32xf32>
    %309 = math.exp %308 : vector<4x32xf32>
    %cst_63 = arith.constant 1.000000e+00 : f32
    %310 = vector.broadcast %cst_63 : f32 to vector<4x32xf32>
    %311 = arith.addf %310, %309 : vector<4x32xf32>
    %312 = arith.divf %310, %311 : vector<4x32xf32>
    %313 = arith.mulf %304, %249 : vector<4x32xf32>
    %314 = arith.mulf %298, %306 : vector<4x32xf32>
    %315 = arith.addf %313, %314 : vector<4x32xf32>
    %316 = math.tanh %315 : vector<4x32xf32>
    %317 = arith.mulf %312, %316 : vector<4x32xf32>
    %318 = vector.extract_strided_slice %292 {offsets = [0, 0], sizes = [4, 32], strides = [1, 1]} : vector<4x128xf32> to vector<4x32xf32>
    %319 = arith.negf %318 : vector<4x32xf32>
    %320 = math.exp %319 : vector<4x32xf32>
    %cst_64 = arith.constant 1.000000e+00 : f32
    %321 = vector.broadcast %cst_64 : f32 to vector<4x32xf32>
    %322 = arith.addf %321, %320 : vector<4x32xf32>
    %323 = arith.divf %321, %322 : vector<4x32xf32>
    %324 = vector.extract_strided_slice %292 {offsets = [0, 32], sizes = [4, 32], strides = [1, 1]} : vector<4x128xf32> to vector<4x32xf32>
    %325 = arith.negf %324 : vector<4x32xf32>
    %326 = math.exp %325 : vector<4x32xf32>
    %cst_65 = arith.constant 1.000000e+00 : f32
    %327 = vector.broadcast %cst_65 : f32 to vector<4x32xf32>
    %328 = arith.addf %327, %326 : vector<4x32xf32>
    %329 = arith.divf %327, %328 : vector<4x32xf32>
    %330 = vector.extract_strided_slice %292 {offsets = [0, 64], sizes = [4, 32], strides = [1, 1]} : vector<4x128xf32> to vector<4x32xf32>
    %331 = math.tanh %330 : vector<4x32xf32>
    %332 = vector.extract_strided_slice %292 {offsets = [0, 96], sizes = [4, 32], strides = [1, 1]} : vector<4x128xf32> to vector<4x32xf32>
    %333 = arith.negf %332 : vector<4x32xf32>
    %334 = math.exp %333 : vector<4x32xf32>
    %cst_66 = arith.constant 1.000000e+00 : f32
    %335 = vector.broadcast %cst_66 : f32 to vector<4x32xf32>
    %336 = arith.addf %335, %334 : vector<4x32xf32>
    %337 = arith.divf %335, %336 : vector<4x32xf32>
    %338 = arith.mulf %329, %274 : vector<4x32xf32>
    %339 = arith.mulf %323, %331 : vector<4x32xf32>
    %340 = arith.addf %338, %339 : vector<4x32xf32>
    %341 = math.tanh %340 : vector<4x32xf32>
    %342 = arith.mulf %337, %341 : vector<4x32xf32>
    %c0_67 = arith.constant 0 : index
    %c4_68 = arith.constant 4 : index
    %c0_69 = arith.constant 0 : index
    %343 = vector.load %arg17[%c0_67, %c4_68, %c0_69] : memref<4x8x64xf32, #tpu.memory_space<vmem>>, vector<4x1x32xf32>
    %344 = vector.shape_cast %343 : vector<4x1x32xf32> to vector<4x32xf32>
    %345 = vector.shape_cast %317 : vector<4x32xf32> to vector<4x1x32xf32>
    tpu.vector_store %arg17[%c0_67, %c4_68, %c0_69], %345 {strides = array<i32>} : memref<4x8x64xf32, #tpu.memory_space<vmem>>, vector<4x1x32xf32>,
    %c0_70 = arith.constant 0 : index
    %c3_71 = arith.constant 3 : index
    %c32_72 = arith.constant 32 : index
    %346 = vector.load %arg17[%c0_70, %c3_71, %c32_72] : memref<4x8x64xf32, #tpu.memory_space<vmem>>, vector<4x1x32xf32>
    %347 = vector.shape_cast %346 : vector<4x1x32xf32> to vector<4x32xf32>
    %348 = vector.shape_cast %342 : vector<4x32xf32> to vector<4x1x32xf32>
    tpu.vector_store %arg17[%c0_70, %c3_71, %c32_72], %348 {strides = array<i32>} : memref<4x8x64xf32, #tpu.memory_space<vmem>>, vector<4x1x32xf32>,
    %349 = vector.extract_strided_slice %15 {offsets = [0, 5, 0], sizes = [4, 1, 128], strides = [1, 1, 1]} : vector<4x8x256xf32> to vector<4x1x128xf32>
    %350 = vector.shape_cast %349 : vector<4x1x128xf32> to vector<4x128xf32>
    %351 = arith.truncf %317 : vector<4x32xf32> to vector<4x32xbf16>
    %cst_73 = arith.constant dense<0.000000e+00> : vector<4x128xf32>
    %352 = tpu.matmul %351, %16, %cst_73 {dimension_numbers = #tpu.dot_dimension_numbers<[1], [0], [0], [1], [0, 0, 1, 1], [], []>} : vector<4x32xbf16>, vector<32x128xbf16>, vector<4x128xf32> -> vector<4x128xf32>
    %353 = arith.addf %350, %352 : vector<4x128xf32>
    %354 = vector.extract_strided_slice %15 {offsets = [0, 2, 128], sizes = [4, 1, 128], strides = [1, 1, 1]} : vector<4x8x256xf32> to vector<4x1x128xf32>
    %355 = vector.shape_cast %354 : vector<4x1x128xf32> to vector<4x128xf32>
    %356 = arith.truncf %342 : vector<4x32xf32> to vector<4x32xbf16>
    %cst_74 = arith.constant dense<0.000000e+00> : vector<4x128xf32>
    %357 = tpu.matmul %356, %17, %cst_74 {dimension_numbers = #tpu.dot_dimension_numbers<[1], [0], [0], [1], [0, 0, 1, 1], [], []>} : vector<4x32xbf16>, vector<32x128xbf16>, vector<4x128xf32> -> vector<4x128xf32>
    %358 = arith.addf %355, %357 : vector<4x128xf32>
    %359 = vector.extract_strided_slice %353 {offsets = [0, 0], sizes = [4, 32], strides = [1, 1]} : vector<4x128xf32> to vector<4x32xf32>
    %360 = arith.negf %359 : vector<4x32xf32>
    %361 = math.exp %360 : vector<4x32xf32>
    %cst_75 = arith.constant 1.000000e+00 : f32
    %362 = vector.broadcast %cst_75 : f32 to vector<4x32xf32>
    %363 = arith.addf %362, %361 : vector<4x32xf32>
    %364 = arith.divf %362, %363 : vector<4x32xf32>
    %365 = vector.extract_strided_slice %353 {offsets = [0, 32], sizes = [4, 32], strides = [1, 1]} : vector<4x128xf32> to vector<4x32xf32>
    %366 = arith.negf %365 : vector<4x32xf32>
    %367 = math.exp %366 : vector<4x32xf32>
    %cst_76 = arith.constant 1.000000e+00 : f32
    %368 = vector.broadcast %cst_76 : f32 to vector<4x32xf32>
    %369 = arith.addf %368, %367 : vector<4x32xf32>
    %370 = arith.divf %368, %369 : vector<4x32xf32>
    %371 = vector.extract_strided_slice %353 {offsets = [0, 64], sizes = [4, 32], strides = [1, 1]} : vector<4x128xf32> to vector<4x32xf32>
    %372 = math.tanh %371 : vector<4x32xf32>
    %373 = vector.extract_strided_slice %353 {offsets = [0, 96], sizes = [4, 32], strides = [1, 1]} : vector<4x128xf32> to vector<4x32xf32>
    %374 = arith.negf %373 : vector<4x32xf32>
    %375 = math.exp %374 : vector<4x32xf32>
    %cst_77 = arith.constant 1.000000e+00 : f32
    %376 = vector.broadcast %cst_77 : f32 to vector<4x32xf32>
    %377 = arith.addf %376, %375 : vector<4x32xf32>
    %378 = arith.divf %376, %377 : vector<4x32xf32>
    %379 = arith.mulf %370, %315 : vector<4x32xf32>
    %380 = arith.mulf %364, %372 : vector<4x32xf32>
    %381 = arith.addf %379, %380 : vector<4x32xf32>
    %382 = math.tanh %381 : vector<4x32xf32>
    %383 = arith.mulf %378, %382 : vector<4x32xf32>
    %384 = vector.extract_strided_slice %358 {offsets = [0, 0], sizes = [4, 32], strides = [1, 1]} : vector<4x128xf32> to vector<4x32xf32>
    %385 = arith.negf %384 : vector<4x32xf32>
    %386 = math.exp %385 : vector<4x32xf32>
    %cst_78 = arith.constant 1.000000e+00 : f32
    %387 = vector.broadcast %cst_78 : f32 to vector<4x32xf32>
    %388 = arith.addf %387, %386 : vector<4x32xf32>
    %389 = arith.divf %387, %388 : vector<4x32xf32>
    %390 = vector.extract_strided_slice %358 {offsets = [0, 32], sizes = [4, 32], strides = [1, 1]} : vector<4x128xf32> to vector<4x32xf32>
    %391 = arith.negf %390 : vector<4x32xf32>
    %392 = math.exp %391 : vector<4x32xf32>
    %cst_79 = arith.constant 1.000000e+00 : f32
    %393 = vector.broadcast %cst_79 : f32 to vector<4x32xf32>
    %394 = arith.addf %393, %392 : vector<4x32xf32>
    %395 = arith.divf %393, %394 : vector<4x32xf32>
    %396 = vector.extract_strided_slice %358 {offsets = [0, 64], sizes = [4, 32], strides = [1, 1]} : vector<4x128xf32> to vector<4x32xf32>
    %397 = math.tanh %396 : vector<4x32xf32>
    %398 = vector.extract_strided_slice %358 {offsets = [0, 96], sizes = [4, 32], strides = [1, 1]} : vector<4x128xf32> to vector<4x32xf32>
    %399 = arith.negf %398 : vector<4x32xf32>
    %400 = math.exp %399 : vector<4x32xf32>
    %cst_80 = arith.constant 1.000000e+00 : f32
    %401 = vector.broadcast %cst_80 : f32 to vector<4x32xf32>
    %402 = arith.addf %401, %400 : vector<4x32xf32>
    %403 = arith.divf %401, %402 : vector<4x32xf32>
    %404 = arith.mulf %395, %340 : vector<4x32xf32>
    %405 = arith.mulf %389, %397 : vector<4x32xf32>
    %406 = arith.addf %404, %405 : vector<4x32xf32>
    %407 = math.tanh %406 : vector<4x32xf32>
    %408 = arith.mulf %403, %407 : vector<4x32xf32>
    %c0_81 = arith.constant 0 : index
    %c5_82 = arith.constant 5 : index
    %c0_83 = arith.constant 0 : index
    %409 = vector.load %arg17[%c0_81, %c5_82, %c0_83] : memref<4x8x64xf32, #tpu.memory_space<vmem>>, vector<4x1x32xf32>
    %410 = vector.shape_cast %409 : vector<4x1x32xf32> to vector<4x32xf32>
    %411 = vector.shape_cast %383 : vector<4x32xf32> to vector<4x1x32xf32>
    tpu.vector_store %arg17[%c0_81, %c5_82, %c0_83], %411 {strides = array<i32>} : memref<4x8x64xf32, #tpu.memory_space<vmem>>, vector<4x1x32xf32>,
    %c0_84 = arith.constant 0 : index
    %c2_85 = arith.constant 2 : index
    %c32_86 = arith.constant 32 : index
    %412 = vector.load %arg17[%c0_84, %c2_85, %c32_86] : memref<4x8x64xf32, #tpu.memory_space<vmem>>, vector<4x1x32xf32>
    %413 = vector.shape_cast %412 : vector<4x1x32xf32> to vector<4x32xf32>
    %414 = vector.shape_cast %408 : vector<4x32xf32> to vector<4x1x32xf32>
    tpu.vector_store %arg17[%c0_84, %c2_85, %c32_86], %414 {strides = array<i32>} : memref<4x8x64xf32, #tpu.memory_space<vmem>>, vector<4x1x32xf32>,
    %415 = vector.extract_strided_slice %15 {offsets = [0, 6, 0], sizes = [4, 1, 128], strides = [1, 1, 1]} : vector<4x8x256xf32> to vector<4x1x128xf32>
    %416 = vector.shape_cast %415 : vector<4x1x128xf32> to vector<4x128xf32>
    %417 = arith.truncf %383 : vector<4x32xf32> to vector<4x32xbf16>
    %cst_87 = arith.constant dense<0.000000e+00> : vector<4x128xf32>
    %418 = tpu.matmul %417, %16, %cst_87 {dimension_numbers = #tpu.dot_dimension_numbers<[1], [0], [0], [1], [0, 0, 1, 1], [], []>} : vector<4x32xbf16>, vector<32x128xbf16>, vector<4x128xf32> -> vector<4x128xf32>
    %419 = arith.addf %416, %418 : vector<4x128xf32>
    %420 = vector.extract_strided_slice %15 {offsets = [0, 1, 128], sizes = [4, 1, 128], strides = [1, 1, 1]} : vector<4x8x256xf32> to vector<4x1x128xf32>
    %421 = vector.shape_cast %420 : vector<4x1x128xf32> to vector<4x128xf32>
    %422 = arith.truncf %408 : vector<4x32xf32> to vector<4x32xbf16>
    %cst_88 = arith.constant dense<0.000000e+00> : vector<4x128xf32>
    %423 = tpu.matmul %422, %17, %cst_88 {dimension_numbers = #tpu.dot_dimension_numbers<[1], [0], [0], [1], [0, 0, 1, 1], [], []>} : vector<4x32xbf16>, vector<32x128xbf16>, vector<4x128xf32> -> vector<4x128xf32>
    %424 = arith.addf %421, %423 : vector<4x128xf32>
    %425 = vector.extract_strided_slice %419 {offsets = [0, 0], sizes = [4, 32], strides = [1, 1]} : vector<4x128xf32> to vector<4x32xf32>
    %426 = arith.negf %425 : vector<4x32xf32>
    %427 = math.exp %426 : vector<4x32xf32>
    %cst_89 = arith.constant 1.000000e+00 : f32
    %428 = vector.broadcast %cst_89 : f32 to vector<4x32xf32>
    %429 = arith.addf %428, %427 : vector<4x32xf32>
    %430 = arith.divf %428, %429 : vector<4x32xf32>
    %431 = vector.extract_strided_slice %419 {offsets = [0, 32], sizes = [4, 32], strides = [1, 1]} : vector<4x128xf32> to vector<4x32xf32>
    %432 = arith.negf %431 : vector<4x32xf32>
    %433 = math.exp %432 : vector<4x32xf32>
    %cst_90 = arith.constant 1.000000e+00 : f32
    %434 = vector.broadcast %cst_90 : f32 to vector<4x32xf32>
    %435 = arith.addf %434, %433 : vector<4x32xf32>
    %436 = arith.divf %434, %435 : vector<4x32xf32>
    %437 = vector.extract_strided_slice %419 {offsets = [0, 64], sizes = [4, 32], strides = [1, 1]} : vector<4x128xf32> to vector<4x32xf32>
    %438 = math.tanh %437 : vector<4x32xf32>
    %439 = vector.extract_strided_slice %419 {offsets = [0, 96], sizes = [4, 32], strides = [1, 1]} : vector<4x128xf32> to vector<4x32xf32>
    %440 = arith.negf %439 : vector<4x32xf32>
    %441 = math.exp %440 : vector<4x32xf32>
    %cst_91 = arith.constant 1.000000e+00 : f32
    %442 = vector.broadcast %cst_91 : f32 to vector<4x32xf32>
    %443 = arith.addf %442, %441 : vector<4x32xf32>
    %444 = arith.divf %442, %443 : vector<4x32xf32>
    %445 = arith.mulf %436, %381 : vector<4x32xf32>
    %446 = arith.mulf %430, %438 : vector<4x32xf32>
    %447 = arith.addf %445, %446 : vector<4x32xf32>
    %448 = math.tanh %447 : vector<4x32xf32>
    %449 = arith.mulf %444, %448 : vector<4x32xf32>
    %450 = vector.extract_strided_slice %424 {offsets = [0, 0], sizes = [4, 32], strides = [1, 1]} : vector<4x128xf32> to vector<4x32xf32>
    %451 = arith.negf %450 : vector<4x32xf32>
    %452 = math.exp %451 : vector<4x32xf32>
    %cst_92 = arith.constant 1.000000e+00 : f32
    %453 = vector.broadcast %cst_92 : f32 to vector<4x32xf32>
    %454 = arith.addf %453, %452 : vector<4x32xf32>
    %455 = arith.divf %453, %454 : vector<4x32xf32>
    %456 = vector.extract_strided_slice %424 {offsets = [0, 32], sizes = [4, 32], strides = [1, 1]} : vector<4x128xf32> to vector<4x32xf32>
    %457 = arith.negf %456 : vector<4x32xf32>
    %458 = math.exp %457 : vector<4x32xf32>
    %cst_93 = arith.constant 1.000000e+00 : f32
    %459 = vector.broadcast %cst_93 : f32 to vector<4x32xf32>
    %460 = arith.addf %459, %458 : vector<4x32xf32>
    %461 = arith.divf %459, %460 : vector<4x32xf32>
    %462 = vector.extract_strided_slice %424 {offsets = [0, 64], sizes = [4, 32], strides = [1, 1]} : vector<4x128xf32> to vector<4x32xf32>
    %463 = math.tanh %462 : vector<4x32xf32>
    %464 = vector.extract_strided_slice %424 {offsets = [0, 96], sizes = [4, 32], strides = [1, 1]} : vector<4x128xf32> to vector<4x32xf32>
    %465 = arith.negf %464 : vector<4x32xf32>
    %466 = math.exp %465 : vector<4x32xf32>
    %cst_94 = arith.constant 1.000000e+00 : f32
    %467 = vector.broadcast %cst_94 : f32 to vector<4x32xf32>
    %468 = arith.addf %467, %466 : vector<4x32xf32>
    %469 = arith.divf %467, %468 : vector<4x32xf32>
    %470 = arith.mulf %461, %406 : vector<4x32xf32>
    %471 = arith.mulf %455, %463 : vector<4x32xf32>
    %472 = arith.addf %470, %471 : vector<4x32xf32>
    %473 = math.tanh %472 : vector<4x32xf32>
    %474 = arith.mulf %469, %473 : vector<4x32xf32>
    %c0_95 = arith.constant 0 : index
    %c6_96 = arith.constant 6 : index
    %c0_97 = arith.constant 0 : index
    %475 = vector.load %arg17[%c0_95, %c6_96, %c0_97] : memref<4x8x64xf32, #tpu.memory_space<vmem>>, vector<4x1x32xf32>
    %476 = vector.shape_cast %475 : vector<4x1x32xf32> to vector<4x32xf32>
    %477 = vector.shape_cast %449 : vector<4x32xf32> to vector<4x1x32xf32>
    tpu.vector_store %arg17[%c0_95, %c6_96, %c0_97], %477 {strides = array<i32>} : memref<4x8x64xf32, #tpu.memory_space<vmem>>, vector<4x1x32xf32>,
    %c0_98 = arith.constant 0 : index
    %c1_99 = arith.constant 1 : index
    %c32_100 = arith.constant 32 : index
    %478 = vector.load %arg17[%c0_98, %c1_99, %c32_100] : memref<4x8x64xf32, #tpu.memory_space<vmem>>, vector<4x1x32xf32>
    %479 = vector.shape_cast %478 : vector<4x1x32xf32> to vector<4x32xf32>
    %480 = vector.shape_cast %474 : vector<4x32xf32> to vector<4x1x32xf32>
    tpu.vector_store %arg17[%c0_98, %c1_99, %c32_100], %480 {strides = array<i32>} : memref<4x8x64xf32, #tpu.memory_space<vmem>>, vector<4x1x32xf32>,
    %481 = vector.extract_strided_slice %15 {offsets = [0, 7, 0], sizes = [4, 1, 128], strides = [1, 1, 1]} : vector<4x8x256xf32> to vector<4x1x128xf32>
    %482 = vector.shape_cast %481 : vector<4x1x128xf32> to vector<4x128xf32>
    %483 = arith.truncf %449 : vector<4x32xf32> to vector<4x32xbf16>
    %cst_101 = arith.constant dense<0.000000e+00> : vector<4x128xf32>
    %484 = tpu.matmul %483, %16, %cst_101 {dimension_numbers = #tpu.dot_dimension_numbers<[1], [0], [0], [1], [0, 0, 1, 1], [], []>} : vector<4x32xbf16>, vector<32x128xbf16>, vector<4x128xf32> -> vector<4x128xf32>
    %485 = arith.addf %482, %484 : vector<4x128xf32>
    %486 = vector.extract_strided_slice %15 {offsets = [0, 0, 128], sizes = [4, 1, 128], strides = [1, 1, 1]} : vector<4x8x256xf32> to vector<4x1x128xf32>
    %487 = vector.shape_cast %486 : vector<4x1x128xf32> to vector<4x128xf32>
    %488 = arith.truncf %474 : vector<4x32xf32> to vector<4x32xbf16>
    %cst_102 = arith.constant dense<0.000000e+00> : vector<4x128xf32>
    %489 = tpu.matmul %488, %17, %cst_102 {dimension_numbers = #tpu.dot_dimension_numbers<[1], [0], [0], [1], [0, 0, 1, 1], [], []>} : vector<4x32xbf16>, vector<32x128xbf16>, vector<4x128xf32> -> vector<4x128xf32>
    %490 = arith.addf %487, %489 : vector<4x128xf32>
    %491 = vector.extract_strided_slice %485 {offsets = [0, 0], sizes = [4, 32], strides = [1, 1]} : vector<4x128xf32> to vector<4x32xf32>
    %492 = arith.negf %491 : vector<4x32xf32>
    %493 = math.exp %492 : vector<4x32xf32>
    %cst_103 = arith.constant 1.000000e+00 : f32
    %494 = vector.broadcast %cst_103 : f32 to vector<4x32xf32>
    %495 = arith.addf %494, %493 : vector<4x32xf32>
    %496 = arith.divf %494, %495 : vector<4x32xf32>
    %497 = vector.extract_strided_slice %485 {offsets = [0, 32], sizes = [4, 32], strides = [1, 1]} : vector<4x128xf32> to vector<4x32xf32>
    %498 = arith.negf %497 : vector<4x32xf32>
    %499 = math.exp %498 : vector<4x32xf32>
    %cst_104 = arith.constant 1.000000e+00 : f32
    %500 = vector.broadcast %cst_104 : f32 to vector<4x32xf32>
    %501 = arith.addf %500, %499 : vector<4x32xf32>
    %502 = arith.divf %500, %501 : vector<4x32xf32>
    %503 = vector.extract_strided_slice %485 {offsets = [0, 64], sizes = [4, 32], strides = [1, 1]} : vector<4x128xf32> to vector<4x32xf32>
    %504 = math.tanh %503 : vector<4x32xf32>
    %505 = vector.extract_strided_slice %485 {offsets = [0, 96], sizes = [4, 32], strides = [1, 1]} : vector<4x128xf32> to vector<4x32xf32>
    %506 = arith.negf %505 : vector<4x32xf32>
    %507 = math.exp %506 : vector<4x32xf32>
    %cst_105 = arith.constant 1.000000e+00 : f32
    %508 = vector.broadcast %cst_105 : f32 to vector<4x32xf32>
    %509 = arith.addf %508, %507 : vector<4x32xf32>
    %510 = arith.divf %508, %509 : vector<4x32xf32>
    %511 = arith.mulf %502, %447 : vector<4x32xf32>
    %512 = arith.mulf %496, %504 : vector<4x32xf32>
    %513 = arith.addf %511, %512 : vector<4x32xf32>
    %514 = math.tanh %513 : vector<4x32xf32>
    %515 = arith.mulf %510, %514 : vector<4x32xf32>
    %516 = vector.extract_strided_slice %490 {offsets = [0, 0], sizes = [4, 32], strides = [1, 1]} : vector<4x128xf32> to vector<4x32xf32>
    %517 = arith.negf %516 : vector<4x32xf32>
    %518 = math.exp %517 : vector<4x32xf32>
    %cst_106 = arith.constant 1.000000e+00 : f32
    %519 = vector.broadcast %cst_106 : f32 to vector<4x32xf32>
    %520 = arith.addf %519, %518 : vector<4x32xf32>
    %521 = arith.divf %519, %520 : vector<4x32xf32>
    %522 = vector.extract_strided_slice %490 {offsets = [0, 32], sizes = [4, 32], strides = [1, 1]} : vector<4x128xf32> to vector<4x32xf32>
    %523 = arith.negf %522 : vector<4x32xf32>
    %524 = math.exp %523 : vector<4x32xf32>
    %cst_107 = arith.constant 1.000000e+00 : f32
    %525 = vector.broadcast %cst_107 : f32 to vector<4x32xf32>
    %526 = arith.addf %525, %524 : vector<4x32xf32>
    %527 = arith.divf %525, %526 : vector<4x32xf32>
    %528 = vector.extract_strided_slice %490 {offsets = [0, 64], sizes = [4, 32], strides = [1, 1]} : vector<4x128xf32> to vector<4x32xf32>
    %529 = math.tanh %528 : vector<4x32xf32>
    %530 = vector.extract_strided_slice %490 {offsets = [0, 96], sizes = [4, 32], strides = [1, 1]} : vector<4x128xf32> to vector<4x32xf32>
    %531 = arith.negf %530 : vector<4x32xf32>
    %532 = math.exp %531 : vector<4x32xf32>
    %cst_108 = arith.constant 1.000000e+00 : f32
    %533 = vector.broadcast %cst_108 : f32 to vector<4x32xf32>
    %534 = arith.addf %533, %532 : vector<4x32xf32>
    %535 = arith.divf %533, %534 : vector<4x32xf32>
    %536 = arith.mulf %527, %472 : vector<4x32xf32>
    %537 = arith.mulf %521, %529 : vector<4x32xf32>
    %538 = arith.addf %536, %537 : vector<4x32xf32>
    %539 = math.tanh %538 : vector<4x32xf32>
    %540 = arith.mulf %535, %539 : vector<4x32xf32>
    %c0_109 = arith.constant 0 : index
    %c7_110 = arith.constant 7 : index
    %c0_111 = arith.constant 0 : index
    %541 = vector.load %arg17[%c0_109, %c7_110, %c0_111] : memref<4x8x64xf32, #tpu.memory_space<vmem>>, vector<4x1x32xf32>
    %542 = vector.shape_cast %541 : vector<4x1x32xf32> to vector<4x32xf32>
    %543 = vector.shape_cast %515 : vector<4x32xf32> to vector<4x1x32xf32>
    tpu.vector_store %arg17[%c0_109, %c7_110, %c0_111], %543 {strides = array<i32>} : memref<4x8x64xf32, #tpu.memory_space<vmem>>, vector<4x1x32xf32>,
    %c0_112 = arith.constant 0 : index
    %c0_113 = arith.constant 0 : index
    %c32_114 = arith.constant 32 : index
    %544 = vector.load %arg17[%c0_112, %c0_113, %c32_114] : memref<4x8x64xf32, #tpu.memory_space<vmem>>, vector<4x1x32xf32>
    %545 = vector.shape_cast %544 : vector<4x1x32xf32> to vector<4x32xf32>
    %546 = vector.shape_cast %540 : vector<4x32xf32> to vector<4x1x32xf32>
    tpu.vector_store %arg17[%c0_112, %c0_113, %c32_114], %546 {strides = array<i32>} : memref<4x8x64xf32, #tpu.memory_space<vmem>>, vector<4x1x32xf32>,
    %c0_115 = arith.constant 0 : index
    %c0_116 = arith.constant 0 : index
    %c0_117 = arith.constant 0 : index
    %547 = vector.load %arg17[%c0_115, %c0_116, %c0_117] : memref<4x8x64xf32, #tpu.memory_space<vmem>>, vector<4x8x64xf32>
    %548 = vector.extract_strided_slice %547 {offsets = [0, 0, 0], sizes = [2, 8, 64], strides = [1, 1, 1]} : vector<4x8x64xf32> to vector<2x8x64xf32>
    %549 = vector.extract_strided_slice %547 {offsets = [2, 0, 0], sizes = [2, 8, 64], strides = [1, 1, 1]} : vector<4x8x64xf32> to vector<2x8x64xf32>
    %550 = arith.truncf %548 : vector<2x8x64xf32> to vector<2x8x64xbf16>
    %551 = arith.truncf %549 : vector<2x8x64xf32> to vector<2x8x64xbf16>
    %c0_118 = arith.constant 0 : index
    %c0_119 = arith.constant 0 : index
    %552 = vector.load %arg1[%c0_118, %c0_119] : memref<2x8xf32, #tpu.memory_space<vmem>>, vector<2x8xf32>
    %c0_120 = arith.constant 0 : index
    %c0_121 = arith.constant 0 : index
    %553 = vector.load %arg2[%c0_120, %c0_121] : memref<2x8xf32, #tpu.memory_space<vmem>>, vector<2x8xf32>
    "tpu.trace_start"() <{level = 10 : i32, message = "bpd,bhd->bph"}> : () -> ()
    %cst_122 = arith.constant dense<0.000000e+00> : vector<2x8x8xf32>
    %554 = tpu.matmul %550, %551, %cst_122 {dimension_numbers = #tpu.dot_dimension_numbers<[2], [2], [1], [1], [0, 0, 0, 1, 1, 1], [0], [0]>} : vector<2x8x64xbf16>, vector<2x8x64xbf16>, vector<2x8x8xf32> -> vector<2x8x8xf32>
    "tpu.trace_stop"() : () -> ()
    "tpu.trace_start"() <{level = 10 : i32, message = "bhd,bpd->bhp"}> : () -> ()
    %cst_123 = arith.constant dense<0.000000e+00> : vector<2x8x8xf32>
    %555 = tpu.matmul %551, %550, %cst_123 {dimension_numbers = #tpu.dot_dimension_numbers<[2], [2], [1], [1], [0, 0, 0, 1, 1, 1], [0], [0]>} : vector<2x8x64xbf16>, vector<2x8x64xbf16>, vector<2x8x8xf32> -> vector<2x8x8xf32>
    "tpu.trace_stop"() : () -> ()
    %556 = vector.shape_cast %553 : vector<2x8xf32> to vector<2x1x8xf32>
    %557 = vector.broadcast %556 : vector<2x1x8xf32> to vector<2x8x8xf32>
    %558 = arith.addf %554, %557 : vector<2x8x8xf32>
    %cst_124 = arith.constant dense<0xFF800000> : vector<2x8xf32>
    %559 = vector.multi_reduction <maximumf>, %558, %cst_124 [2] : vector<2x8x8xf32> to vector<2x8xf32>
    %560 = vector.shape_cast %559 : vector<2x8xf32> to vector<2x8x1xf32>
    %561 = vector.broadcast %560 : vector<2x8x1xf32> to vector<2x8x8xf32>
    %562 = arith.subf %558, %561 : vector<2x8x8xf32>
    %563 = math.exp %562 : vector<2x8x8xf32>
    %cst_125 = arith.constant dense<0.000000e+00> : vector<2x8xf32>
    %564 = vector.multi_reduction <add>, %563, %cst_125 [2] : vector<2x8x8xf32> to vector<2x8xf32>
    %565 = vector.shape_cast %564 : vector<2x8xf32> to vector<2x8x1xf32>
    %566 = vector.broadcast %565 : vector<2x8x1xf32> to vector<2x8x8xf32>
    %567 = arith.divf %563, %566 : vector<2x8x8xf32>
    %568 = vector.shape_cast %552 : vector<2x8xf32> to vector<2x1x8xf32>
    %569 = vector.broadcast %568 : vector<2x1x8xf32> to vector<2x8x8xf32>
    %570 = arith.addf %555, %569 : vector<2x8x8xf32>
    %cst_126 = arith.constant dense<0xFF800000> : vector<2x8xf32>
    %571 = vector.multi_reduction <maximumf>, %570, %cst_126 [2] : vector<2x8x8xf32> to vector<2x8xf32>
    %572 = vector.shape_cast %571 : vector<2x8xf32> to vector<2x8x1xf32>
    %573 = vector.broadcast %572 : vector<2x8x1xf32> to vector<2x8x8xf32>
    %574 = arith.subf %570, %573 : vector<2x8x8xf32>
    %575 = math.exp %574 : vector<2x8x8xf32>
    %cst_127 = arith.constant dense<0.000000e+00> : vector<2x8xf32>
    %576 = vector.multi_reduction <add>, %575, %cst_127 [2] : vector<2x8x8xf32> to vector<2x8xf32>
    %577 = vector.shape_cast %576 : vector<2x8xf32> to vector<2x8x1xf32>
    %578 = vector.broadcast %577 : vector<2x8x1xf32> to vector<2x8x8xf32>
    %579 = arith.divf %575, %578 : vector<2x8x8xf32>
    %580 = arith.truncf %567 : vector<2x8x8xf32> to vector<2x8x8xbf16>
    "tpu.trace_start"() <{level = 10 : i32, message = "bph,bhd->bpd"}> : () -> ()
    %cst_128 = arith.constant dense<0.000000e+00> : vector<2x8x64xf32>
    %581 = tpu.matmul %580, %551, %cst_128 {dimension_numbers = #tpu.dot_dimension_numbers<[2], [1], [1], [2], [0, 0, 0, 1, 1, 2], [0], [0]>} : vector<2x8x8xbf16>, vector<2x8x64xbf16>, vector<2x8x64xf32> -> vector<2x8x64xf32>
    "tpu.trace_stop"() : () -> ()
    %582 = arith.truncf %579 : vector<2x8x8xf32> to vector<2x8x8xbf16>
    "tpu.trace_start"() <{level = 10 : i32, message = "bhp,bpd->bhd"}> : () -> ()
    %cst_129 = arith.constant dense<0.000000e+00> : vector<2x8x64xf32>
    %583 = tpu.matmul %582, %550, %cst_129 {dimension_numbers = #tpu.dot_dimension_numbers<[2], [1], [1], [2], [0, 0, 0, 1, 1, 2], [0], [0]>} : vector<2x8x8xbf16>, vector<2x8x64xbf16>, vector<2x8x64xf32> -> vector<2x8x64xf32>
    "tpu.trace_stop"() : () -> ()
    %584 = arith.subf %548, %581 : vector<2x8x64xf32>
    %585 = arith.mulf %548, %581 : vector<2x8x64xf32>
    %586 = tpu.concatenate %548, %581, %584, %585 in 2 : vector<2x8x64xf32>, vector<2x8x64xf32>, vector<2x8x64xf32>, vector<2x8x64xf32> -> vector<2x8x256xf32>
    %587 = arith.subf %549, %583 : vector<2x8x64xf32>
    %588 = arith.mulf %549, %583 : vector<2x8x64xf32>
    %589 = tpu.concatenate %549, %583, %587, %588 in 2 : vector<2x8x64xf32>, vector<2x8x64xf32>, vector<2x8x64xf32>, vector<2x8x64xf32> -> vector<2x8x256xf32>
    %590 = tpu.concatenate %586, %589 in 0 : vector<2x8x256xf32>, vector<2x8x256xf32> -> vector<4x8x256xf32>
    %591 = vector.shape_cast %590 : vector<4x8x256xf32> to vector<32x256xf32>
    %c0_130 = arith.constant 0 : index
    %c0_131 = arith.constant 0 : index
    %592 = vector.load %arg7[%c0_130, %c0_131] : memref<256x256xbf16, #tpu.memory_space<vmem>>, vector<256x256xbf16>
    %c0_132 = arith.constant 0 : index
    %c0_133 = arith.constant 0 : index
    %593 = vector.load %arg8[%c0_132, %c0_133] : memref<32x256xbf16, #tpu.memory_space<vmem>>, vector<32x256xbf16>
    %c0_134 = arith.constant 0 : index
    %c0_135 = arith.constant 0 : index
    %594 = vector.load %arg9[%c0_134, %c0_135] : memref<1x256xf32, #tpu.memory_space<vmem>>, vector<1x256xf32>
    %595 = arith.truncf %591 : vector<32x256xf32> to vector<32x256xbf16>
    %cst_136 = arith.constant dense<0.000000e+00> : vector<32x256xf32>
    %596 = tpu.matmul %595, %592, %cst_136 {dimension_numbers = #tpu.dot_dimension_numbers<[1], [0], [0], [1], [0, 0, 1, 1], [], []>} : vector<32x256xbf16>, vector<256x256xbf16>, vector<32x256xf32> -> vector<32x256xf32>
    %597 = vector.broadcast %594 : vector<1x256xf32> to vector<32x256xf32>
    %598 = arith.addf %596, %597 : vector<32x256xf32>
    %599 = vector.shape_cast %598 : vector<32x256xf32> to vector<4x8x256xf32>
    %600 = vector.extract_strided_slice %593 {offsets = [0, 0], sizes = [32, 128], strides = [1, 1]} : vector<32x256xbf16> to vector<32x128xbf16>
    %601 = vector.extract_strided_slice %593 {offsets = [0, 128], sizes = [32, 128], strides = [1, 1]} : vector<32x256xbf16> to vector<32x128xbf16>
    %cst_137 = arith.constant 0.000000e+00 : f32
    %602 = vector.broadcast %cst_137 : f32 to vector<4x32xf32>
    %603 = vector.extract_strided_slice %599 {offsets = [0, 0, 0], sizes = [4, 1, 128], strides = [1, 1, 1]} : vector<4x8x256xf32> to vector<4x1x128xf32>
    %604 = vector.shape_cast %603 : vector<4x1x128xf32> to vector<4x128xf32>
    %605 = arith.truncf %602 : vector<4x32xf32> to vector<4x32xbf16>
    %cst_138 = arith.constant dense<0.000000e+00> : vector<4x128xf32>
    %606 = tpu.matmul %605, %600, %cst_138 {dimension_numbers = #tpu.dot_dimension_numbers<[1], [0], [0], [1], [0, 0, 1, 1], [], []>} : vector<4x32xbf16>, vector<32x128xbf16>, vector<4x128xf32> -> vector<4x128xf32>
    %607 = arith.addf %604, %606 : vector<4x128xf32>
    %608 = vector.extract_strided_slice %599 {offsets = [0, 7, 128], sizes = [4, 1, 128], strides = [1, 1, 1]} : vector<4x8x256xf32> to vector<4x1x128xf32>
    %609 = vector.shape_cast %608 : vector<4x1x128xf32> to vector<4x128xf32>
    %610 = arith.truncf %602 : vector<4x32xf32> to vector<4x32xbf16>
    %cst_139 = arith.constant dense<0.000000e+00> : vector<4x128xf32>
    %611 = tpu.matmul %610, %601, %cst_139 {dimension_numbers = #tpu.dot_dimension_numbers<[1], [0], [0], [1], [0, 0, 1, 1], [], []>} : vector<4x32xbf16>, vector<32x128xbf16>, vector<4x128xf32> -> vector<4x128xf32>
    %612 = arith.addf %609, %611 : vector<4x128xf32>
    %613 = vector.extract_strided_slice %607 {offsets = [0, 0], sizes = [4, 32], strides = [1, 1]} : vector<4x128xf32> to vector<4x32xf32>
    %614 = arith.negf %613 : vector<4x32xf32>
    %615 = math.exp %614 : vector<4x32xf32>
    %cst_140 = arith.constant 1.000000e+00 : f32
    %616 = vector.broadcast %cst_140 : f32 to vector<4x32xf32>
    %617 = arith.addf %616, %615 : vector<4x32xf32>
    %618 = arith.divf %616, %617 : vector<4x32xf32>
    %619 = vector.extract_strided_slice %607 {offsets = [0, 32], sizes = [4, 32], strides = [1, 1]} : vector<4x128xf32> to vector<4x32xf32>
    %620 = arith.negf %619 : vector<4x32xf32>
    %621 = math.exp %620 : vector<4x32xf32>
    %cst_141 = arith.constant 1.000000e+00 : f32
    %622 = vector.broadcast %cst_141 : f32 to vector<4x32xf32>
    %623 = arith.addf %622, %621 : vector<4x32xf32>
    %624 = arith.divf %622, %623 : vector<4x32xf32>
    %625 = vector.extract_strided_slice %607 {offsets = [0, 64], sizes = [4, 32], strides = [1, 1]} : vector<4x128xf32> to vector<4x32xf32>
    %626 = math.tanh %625 : vector<4x32xf32>
    %627 = vector.extract_strided_slice %607 {offsets = [0, 96], sizes = [4, 32], strides = [1, 1]} : vector<4x128xf32> to vector<4x32xf32>
    %628 = arith.negf %627 : vector<4x32xf32>
    %629 = math.exp %628 : vector<4x32xf32>
    %cst_142 = arith.constant 1.000000e+00 : f32
    %630 = vector.broadcast %cst_142 : f32 to vector<4x32xf32>
    %631 = arith.addf %630, %629 : vector<4x32xf32>
    %632 = arith.divf %630, %631 : vector<4x32xf32>
    %633 = arith.mulf %624, %602 : vector<4x32xf32>
    %634 = arith.mulf %618, %626 : vector<4x32xf32>
    %635 = arith.addf %633, %634 : vector<4x32xf32>
    %636 = math.tanh %635 : vector<4x32xf32>
    %637 = arith.mulf %632, %636 : vector<4x32xf32>
    %638 = vector.extract_strided_slice %612 {offsets = [0, 0], sizes = [4, 32], strides = [1, 1]} : vector<4x128xf32> to vector<4x32xf32>
    %639 = arith.negf %638 : vector<4x32xf32>
    %640 = math.exp %639 : vector<4x32xf32>
    %cst_143 = arith.constant 1.000000e+00 : f32
    %641 = vector.broadcast %cst_143 : f32 to vector<4x32xf32>
    %642 = arith.addf %641, %640 : vector<4x32xf32>
    %643 = arith.divf %641, %642 : vector<4x32xf32>
    %644 = vector.extract_strided_slice %612 {offsets = [0, 32], sizes = [4, 32], strides = [1, 1]} : vector<4x128xf32> to vector<4x32xf32>
    %645 = arith.negf %644 : vector<4x32xf32>
    %646 = math.exp %645 : vector<4x32xf32>
    %cst_144 = arith.constant 1.000000e+00 : f32
    %647 = vector.broadcast %cst_144 : f32 to vector<4x32xf32>
    %648 = arith.addf %647, %646 : vector<4x32xf32>
    %649 = arith.divf %647, %648 : vector<4x32xf32>
    %650 = vector.extract_strided_slice %612 {offsets = [0, 64], sizes = [4, 32], strides = [1, 1]} : vector<4x128xf32> to vector<4x32xf32>
    %651 = math.tanh %650 : vector<4x32xf32>
    %652 = vector.extract_strided_slice %612 {offsets = [0, 96], sizes = [4, 32], strides = [1, 1]} : vector<4x128xf32> to vector<4x32xf32>
    %653 = arith.negf %652 : vector<4x32xf32>
    %654 = math.exp %653 : vector<4x32xf32>
    %cst_145 = arith.constant 1.000000e+00 : f32
    %655 = vector.broadcast %cst_145 : f32 to vector<4x32xf32>
    %656 = arith.addf %655, %654 : vector<4x32xf32>
    %657 = arith.divf %655, %656 : vector<4x32xf32>
    %658 = arith.mulf %649, %602 : vector<4x32xf32>
    %659 = arith.mulf %643, %651 : vector<4x32xf32>
    %660 = arith.addf %658, %659 : vector<4x32xf32>
    %661 = math.tanh %660 : vector<4x32xf32>
    %662 = arith.mulf %657, %661 : vector<4x32xf32>
    %c0_146 = arith.constant 0 : index
    %c0_147 = arith.constant 0 : index
    %c0_148 = arith.constant 0 : index
    %663 = vector.load %arg18[%c0_146, %c0_147, %c0_148] : memref<4x8x64xf32, #tpu.memory_space<vmem>>, vector<4x1x32xf32>
    %664 = vector.shape_cast %663 : vector<4x1x32xf32> to vector<4x32xf32>
    %665 = vector.shape_cast %637 : vector<4x32xf32> to vector<4x1x32xf32>
    tpu.vector_store %arg18[%c0_146, %c0_147, %c0_148], %665 {strides = array<i32>} : memref<4x8x64xf32, #tpu.memory_space<vmem>>, vector<4x1x32xf32>,
    %c0_149 = arith.constant 0 : index
    %c7_150 = arith.constant 7 : index
    %c32_151 = arith.constant 32 : index
    %666 = vector.load %arg18[%c0_149, %c7_150, %c32_151] : memref<4x8x64xf32, #tpu.memory_space<vmem>>, vector<4x1x32xf32>
    %667 = vector.shape_cast %666 : vector<4x1x32xf32> to vector<4x32xf32>
    %668 = vector.shape_cast %662 : vector<4x32xf32> to vector<4x1x32xf32>
    tpu.vector_store %arg18[%c0_149, %c7_150, %c32_151], %668 {strides = array<i32>} : memref<4x8x64xf32, #tpu.memory_space<vmem>>, vector<4x1x32xf32>,
    %669 = vector.extract_strided_slice %599 {offsets = [0, 1, 0], sizes = [4, 1, 128], strides = [1, 1, 1]} : vector<4x8x256xf32> to vector<4x1x128xf32>
    %670 = vector.shape_cast %669 : vector<4x1x128xf32> to vector<4x128xf32>
    %671 = arith.truncf %637 : vector<4x32xf32> to vector<4x32xbf16>
    %cst_152 = arith.constant dense<0.000000e+00> : vector<4x128xf32>
    %672 = tpu.matmul %671, %600, %cst_152 {dimension_numbers = #tpu.dot_dimension_numbers<[1], [0], [0], [1], [0, 0, 1, 1], [], []>} : vector<4x32xbf16>, vector<32x128xbf16>, vector<4x128xf32> -> vector<4x128xf32>
    %673 = arith.addf %670, %672 : vector<4x128xf32>
    %674 = vector.extract_strided_slice %599 {offsets = [0, 6, 128], sizes = [4, 1, 128], strides = [1, 1, 1]} : vector<4x8x256xf32> to vector<4x1x128xf32>
    %675 = vector.shape_cast %674 : vector<4x1x128xf32> to vector<4x128xf32>
    %676 = arith.truncf %662 : vector<4x32xf32> to vector<4x32xbf16>
    %cst_153 = arith.constant dense<0.000000e+00> : vector<4x128xf32>
    %677 = tpu.matmul %676, %601, %cst_153 {dimension_numbers = #tpu.dot_dimension_numbers<[1], [0], [0], [1], [0, 0, 1, 1], [], []>} : vector<4x32xbf16>, vector<32x128xbf16>, vector<4x128xf32> -> vector<4x128xf32>
    %678 = arith.addf %675, %677 : vector<4x128xf32>
    %679 = vector.extract_strided_slice %673 {offsets = [0, 0], sizes = [4, 32], strides = [1, 1]} : vector<4x128xf32> to vector<4x32xf32>
    %680 = arith.negf %679 : vector<4x32xf32>
    %681 = math.exp %680 : vector<4x32xf32>
    %cst_154 = arith.constant 1.000000e+00 : f32
    %682 = vector.broadcast %cst_154 : f32 to vector<4x32xf32>
    %683 = arith.addf %682, %681 : vector<4x32xf32>
    %684 = arith.divf %682, %683 : vector<4x32xf32>
    %685 = vector.extract_strided_slice %673 {offsets = [0, 32], sizes = [4, 32], strides = [1, 1]} : vector<4x128xf32> to vector<4x32xf32>
    %686 = arith.negf %685 : vector<4x32xf32>
    %687 = math.exp %686 : vector<4x32xf32>
    %cst_155 = arith.constant 1.000000e+00 : f32
    %688 = vector.broadcast %cst_155 : f32 to vector<4x32xf32>
    %689 = arith.addf %688, %687 : vector<4x32xf32>
    %690 = arith.divf %688, %689 : vector<4x32xf32>
    %691 = vector.extract_strided_slice %673 {offsets = [0, 64], sizes = [4, 32], strides = [1, 1]} : vector<4x128xf32> to vector<4x32xf32>
    %692 = math.tanh %691 : vector<4x32xf32>
    %693 = vector.extract_strided_slice %673 {offsets = [0, 96], sizes = [4, 32], strides = [1, 1]} : vector<4x128xf32> to vector<4x32xf32>
    %694 = arith.negf %693 : vector<4x32xf32>
    %695 = math.exp %694 : vector<4x32xf32>
    %cst_156 = arith.constant 1.000000e+00 : f32
    %696 = vector.broadcast %cst_156 : f32 to vector<4x32xf32>
    %697 = arith.addf %696, %695 : vector<4x32xf32>
    %698 = arith.divf %696, %697 : vector<4x32xf32>
    %699 = arith.mulf %690, %635 : vector<4x32xf32>
    %700 = arith.mulf %684, %692 : vector<4x32xf32>
    %701 = arith.addf %699, %700 : vector<4x32xf32>
    %702 = math.tanh %701 : vector<4x32xf32>
    %703 = arith.mulf %698, %702 : vector<4x32xf32>
    %704 = vector.extract_strided_slice %678 {offsets = [0, 0], sizes = [4, 32], strides = [1, 1]} : vector<4x128xf32> to vector<4x32xf32>
    %705 = arith.negf %704 : vector<4x32xf32>
    %706 = math.exp %705 : vector<4x32xf32>
    %cst_157 = arith.constant 1.000000e+00 : f32
    %707 = vector.broadcast %cst_157 : f32 to vector<4x32xf32>
    %708 = arith.addf %707, %706 : vector<4x32xf32>
    %709 = arith.divf %707, %708 : vector<4x32xf32>
    %710 = vector.extract_strided_slice %678 {offsets = [0, 32], sizes = [4, 32], strides = [1, 1]} : vector<4x128xf32> to vector<4x32xf32>
    %711 = arith.negf %710 : vector<4x32xf32>
    %712 = math.exp %711 : vector<4x32xf32>
    %cst_158 = arith.constant 1.000000e+00 : f32
    %713 = vector.broadcast %cst_158 : f32 to vector<4x32xf32>
    %714 = arith.addf %713, %712 : vector<4x32xf32>
    %715 = arith.divf %713, %714 : vector<4x32xf32>
    %716 = vector.extract_strided_slice %678 {offsets = [0, 64], sizes = [4, 32], strides = [1, 1]} : vector<4x128xf32> to vector<4x32xf32>
    %717 = math.tanh %716 : vector<4x32xf32>
    %718 = vector.extract_strided_slice %678 {offsets = [0, 96], sizes = [4, 32], strides = [1, 1]} : vector<4x128xf32> to vector<4x32xf32>
    %719 = arith.negf %718 : vector<4x32xf32>
    %720 = math.exp %719 : vector<4x32xf32>
    %cst_159 = arith.constant 1.000000e+00 : f32
    %721 = vector.broadcast %cst_159 : f32 to vector<4x32xf32>
    %722 = arith.addf %721, %720 : vector<4x32xf32>
    %723 = arith.divf %721, %722 : vector<4x32xf32>
    %724 = arith.mulf %715, %660 : vector<4x32xf32>
    %725 = arith.mulf %709, %717 : vector<4x32xf32>
    %726 = arith.addf %724, %725 : vector<4x32xf32>
    %727 = math.tanh %726 : vector<4x32xf32>
    %728 = arith.mulf %723, %727 : vector<4x32xf32>
    %c0_160 = arith.constant 0 : index
    %c1_161 = arith.constant 1 : index
    %c0_162 = arith.constant 0 : index
    %729 = vector.load %arg18[%c0_160, %c1_161, %c0_162] : memref<4x8x64xf32, #tpu.memory_space<vmem>>, vector<4x1x32xf32>
    %730 = vector.shape_cast %729 : vector<4x1x32xf32> to vector<4x32xf32>
    %731 = vector.shape_cast %703 : vector<4x32xf32> to vector<4x1x32xf32>
    tpu.vector_store %arg18[%c0_160, %c1_161, %c0_162], %731 {strides = array<i32>} : memref<4x8x64xf32, #tpu.memory_space<vmem>>, vector<4x1x32xf32>,
    %c0_163 = arith.constant 0 : index
    %c6_164 = arith.constant 6 : index
    %c32_165 = arith.constant 32 : index
    %732 = vector.load %arg18[%c0_163, %c6_164, %c32_165] : memref<4x8x64xf32, #tpu.memory_space<vmem>>, vector<4x1x32xf32>
    %733 = vector.shape_cast %732 : vector<4x1x32xf32> to vector<4x32xf32>
    %734 = vector.shape_cast %728 : vector<4x32xf32> to vector<4x1x32xf32>
    tpu.vector_store %arg18[%c0_163, %c6_164, %c32_165], %734 {strides = array<i32>} : memref<4x8x64xf32, #tpu.memory_space<vmem>>, vector<4x1x32xf32>,
    %735 = vector.extract_strided_slice %599 {offsets = [0, 2, 0], sizes = [4, 1, 128], strides = [1, 1, 1]} : vector<4x8x256xf32> to vector<4x1x128xf32>
    %736 = vector.shape_cast %735 : vector<4x1x128xf32> to vector<4x128xf32>
    %737 = arith.truncf %703 : vector<4x32xf32> to vector<4x32xbf16>
    %cst_166 = arith.constant dense<0.000000e+00> : vector<4x128xf32>
    %738 = tpu.matmul %737, %600, %cst_166 {dimension_numbers = #tpu.dot_dimension_numbers<[1], [0], [0], [1], [0, 0, 1, 1], [], []>} : vector<4x32xbf16>, vector<32x128xbf16>, vector<4x128xf32> -> vector<4x128xf32>
    %739 = arith.addf %736, %738 : vector<4x128xf32>
    %740 = vector.extract_strided_slice %599 {offsets = [0, 5, 128], sizes = [4, 1, 128], strides = [1, 1, 1]} : vector<4x8x256xf32> to vector<4x1x128xf32>
    %741 = vector.shape_cast %740 : vector<4x1x128xf32> to vector<4x128xf32>
    %742 = arith.truncf %728 : vector<4x32xf32> to vector<4x32xbf16>
    %cst_167 = arith.constant dense<0.000000e+00> : vector<4x128xf32>
    %743 = tpu.matmul %742, %601, %cst_167 {dimension_numbers = #tpu.dot_dimension_numbers<[1], [0], [0], [1], [0, 0, 1, 1], [], []>} : vector<4x32xbf16>, vector<32x128xbf16>, vector<4x128xf32> -> vector<4x128xf32>
    %744 = arith.addf %741, %743 : vector<4x128xf32>
    %745 = vector.extract_strided_slice %739 {offsets = [0, 0], sizes = [4, 32], strides = [1, 1]} : vector<4x128xf32> to vector<4x32xf32>
    %746 = arith.negf %745 : vector<4x32xf32>
    %747 = math.exp %746 : vector<4x32xf32>
    %cst_168 = arith.constant 1.000000e+00 : f32
    %748 = vector.broadcast %cst_168 : f32 to vector<4x32xf32>
    %749 = arith.addf %748, %747 : vector<4x32xf32>
    %750 = arith.divf %748, %749 : vector<4x32xf32>
    %751 = vector.extract_strided_slice %739 {offsets = [0, 32], sizes = [4, 32], strides = [1, 1]} : vector<4x128xf32> to vector<4x32xf32>
    %752 = arith.negf %751 : vector<4x32xf32>
    %753 = math.exp %752 : vector<4x32xf32>
    %cst_169 = arith.constant 1.000000e+00 : f32
    %754 = vector.broadcast %cst_169 : f32 to vector<4x32xf32>
    %755 = arith.addf %754, %753 : vector<4x32xf32>
    %756 = arith.divf %754, %755 : vector<4x32xf32>
    %757 = vector.extract_strided_slice %739 {offsets = [0, 64], sizes = [4, 32], strides = [1, 1]} : vector<4x128xf32> to vector<4x32xf32>
    %758 = math.tanh %757 : vector<4x32xf32>
    %759 = vector.extract_strided_slice %739 {offsets = [0, 96], sizes = [4, 32], strides = [1, 1]} : vector<4x128xf32> to vector<4x32xf32>
    %760 = arith.negf %759 : vector<4x32xf32>
    %761 = math.exp %760 : vector<4x32xf32>
    %cst_170 = arith.constant 1.000000e+00 : f32
    %762 = vector.broadcast %cst_170 : f32 to vector<4x32xf32>
    %763 = arith.addf %762, %761 : vector<4x32xf32>
    %764 = arith.divf %762, %763 : vector<4x32xf32>
    %765 = arith.mulf %756, %701 : vector<4x32xf32>
    %766 = arith.mulf %750, %758 : vector<4x32xf32>
    %767 = arith.addf %765, %766 : vector<4x32xf32>
    %768 = math.tanh %767 : vector<4x32xf32>
    %769 = arith.mulf %764, %768 : vector<4x32xf32>
    %770 = vector.extract_strided_slice %744 {offsets = [0, 0], sizes = [4, 32], strides = [1, 1]} : vector<4x128xf32> to vector<4x32xf32>
    %771 = arith.negf %770 : vector<4x32xf32>
    %772 = math.exp %771 : vector<4x32xf32>
    %cst_171 = arith.constant 1.000000e+00 : f32
    %773 = vector.broadcast %cst_171 : f32 to vector<4x32xf32>
    %774 = arith.addf %773, %772 : vector<4x32xf32>
    %775 = arith.divf %773, %774 : vector<4x32xf32>
    %776 = vector.extract_strided_slice %744 {offsets = [0, 32], sizes = [4, 32], strides = [1, 1]} : vector<4x128xf32> to vector<4x32xf32>
    %777 = arith.negf %776 : vector<4x32xf32>
    %778 = math.exp %777 : vector<4x32xf32>
    %cst_172 = arith.constant 1.000000e+00 : f32
    %779 = vector.broadcast %cst_172 : f32 to vector<4x32xf32>
    %780 = arith.addf %779, %778 : vector<4x32xf32>
    %781 = arith.divf %779, %780 : vector<4x32xf32>
    %782 = vector.extract_strided_slice %744 {offsets = [0, 64], sizes = [4, 32], strides = [1, 1]} : vector<4x128xf32> to vector<4x32xf32>
    %783 = math.tanh %782 : vector<4x32xf32>
    %784 = vector.extract_strided_slice %744 {offsets = [0, 96], sizes = [4, 32], strides = [1, 1]} : vector<4x128xf32> to vector<4x32xf32>
    %785 = arith.negf %784 : vector<4x32xf32>
    %786 = math.exp %785 : vector<4x32xf32>
    %cst_173 = arith.constant 1.000000e+00 : f32
    %787 = vector.broadcast %cst_173 : f32 to vector<4x32xf32>
    %788 = arith.addf %787, %786 : vector<4x32xf32>
    %789 = arith.divf %787, %788 : vector<4x32xf32>
    %790 = arith.mulf %781, %726 : vector<4x32xf32>
    %791 = arith.mulf %775, %783 : vector<4x32xf32>
    %792 = arith.addf %790, %791 : vector<4x32xf32>
    %793 = math.tanh %792 : vector<4x32xf32>
    %794 = arith.mulf %789, %793 : vector<4x32xf32>
    %c0_174 = arith.constant 0 : index
    %c2_175 = arith.constant 2 : index
    %c0_176 = arith.constant 0 : index
    %795 = vector.load %arg18[%c0_174, %c2_175, %c0_176] : memref<4x8x64xf32, #tpu.memory_space<vmem>>, vector<4x1x32xf32>
    %796 = vector.shape_cast %795 : vector<4x1x32xf32> to vector<4x32xf32>
    %797 = vector.shape_cast %769 : vector<4x32xf32> to vector<4x1x32xf32>
    tpu.vector_store %arg18[%c0_174, %c2_175, %c0_176], %797 {strides = array<i32>} : memref<4x8x64xf32, #tpu.memory_space<vmem>>, vector<4x1x32xf32>,
    %c0_177 = arith.constant 0 : index
    %c5_178 = arith.constant 5 : index
    %c32_179 = arith.constant 32 : index
    %798 = vector.load %arg18[%c0_177, %c5_178, %c32_179] : memref<4x8x64xf32, #tpu.memory_space<vmem>>, vector<4x1x32xf32>
    %799 = vector.shape_cast %798 : vector<4x1x32xf32> to vector<4x32xf32>
    %800 = vector.shape_cast %794 : vector<4x32xf32> to vector<4x1x32xf32>
    tpu.vector_store %arg18[%c0_177, %c5_178, %c32_179], %800 {strides = array<i32>} : memref<4x8x64xf32, #tpu.memory_space<vmem>>, vector<4x1x32xf32>,
    %801 = vector.extract_strided_slice %599 {offsets = [0, 3, 0], sizes = [4, 1, 128], strides = [1, 1, 1]} : vector<4x8x256xf32> to vector<4x1x128xf32>
    %802 = vector.shape_cast %801 : vector<4x1x128xf32> to vector<4x128xf32>
    %803 = arith.truncf %769 : vector<4x32xf32> to vector<4x32xbf16>
    %cst_180 = arith.constant dense<0.000000e+00> : vector<4x128xf32>
    %804 = tpu.matmul %803, %600, %cst_180 {dimension_numbers = #tpu.dot_dimension_numbers<[1], [0], [0], [1], [0, 0, 1, 1], [], []>} : vector<4x32xbf16>, vector<32x128xbf16>, vector<4x128xf32> -> vector<4x128xf32>
    %805 = arith.addf %802, %804 : vector<4x128xf32>
    %806 = vector.extract_strided_slice %599 {offsets = [0, 4, 128], sizes = [4, 1, 128], strides = [1, 1, 1]} : vector<4x8x256xf32> to vector<4x1x128xf32>
    %807 = vector.shape_cast %806 : vector<4x1x128xf32> to vector<4x128xf32>
    %808 = arith.truncf %794 : vector<4x32xf32> to vector<4x32xbf16>
    %cst_181 = arith.constant dense<0.000000e+00> : vector<4x128xf32>
    %809 = tpu.matmul %808, %601, %cst_181 {dimension_numbers = #tpu.dot_dimension_numbers<[1], [0], [0], [1], [0, 0, 1, 1], [], []>} : vector<4x32xbf16>, vector<32x128xbf16>, vector<4x128xf32> -> vector<4x128xf32>
    %810 = arith.addf %807, %809 : vector<4x128xf32>
    %811 = vector.extract_strided_slice %805 {offsets = [0, 0], sizes = [4, 32], strides = [1, 1]} : vector<4x128xf32> to vector<4x32xf32>
    %812 = arith.negf %811 : vector<4x32xf32>
    %813 = math.exp %812 : vector<4x32xf32>
    %cst_182 = arith.constant 1.000000e+00 : f32
    %814 = vector.broadcast %cst_182 : f32 to vector<4x32xf32>
    %815 = arith.addf %814, %813 : vector<4x32xf32>
    %816 = arith.divf %814, %815 : vector<4x32xf32>
    %817 = vector.extract_strided_slice %805 {offsets = [0, 32], sizes = [4, 32], strides = [1, 1]} : vector<4x128xf32> to vector<4x32xf32>
    %818 = arith.negf %817 : vector<4x32xf32>
    %819 = math.exp %818 : vector<4x32xf32>
    %cst_183 = arith.constant 1.000000e+00 : f32
    %820 = vector.broadcast %cst_183 : f32 to vector<4x32xf32>
    %821 = arith.addf %820, %819 : vector<4x32xf32>
    %822 = arith.divf %820, %821 : vector<4x32xf32>
    %823 = vector.extract_strided_slice %805 {offsets = [0, 64], sizes = [4, 32], strides = [1, 1]} : vector<4x128xf32> to vector<4x32xf32>
    %824 = math.tanh %823 : vector<4x32xf32>
    %825 = vector.extract_strided_slice %805 {offsets = [0, 96], sizes = [4, 32], strides = [1, 1]} : vector<4x128xf32> to vector<4x32xf32>
    %826 = arith.negf %825 : vector<4x32xf32>
    %827 = math.exp %826 : vector<4x32xf32>
    %cst_184 = arith.constant 1.000000e+00 : f32
    %828 = vector.broadcast %cst_184 : f32 to vector<4x32xf32>
    %829 = arith.addf %828, %827 : vector<4x32xf32>
    %830 = arith.divf %828, %829 : vector<4x32xf32>
    %831 = arith.mulf %822, %767 : vector<4x32xf32>
    %832 = arith.mulf %816, %824 : vector<4x32xf32>
    %833 = arith.addf %831, %832 : vector<4x32xf32>
    %834 = math.tanh %833 : vector<4x32xf32>
    %835 = arith.mulf %830, %834 : vector<4x32xf32>
    %836 = vector.extract_strided_slice %810 {offsets = [0, 0], sizes = [4, 32], strides = [1, 1]} : vector<4x128xf32> to vector<4x32xf32>
    %837 = arith.negf %836 : vector<4x32xf32>
    %838 = math.exp %837 : vector<4x32xf32>
    %cst_185 = arith.constant 1.000000e+00 : f32
    %839 = vector.broadcast %cst_185 : f32 to vector<4x32xf32>
    %840 = arith.addf %839, %838 : vector<4x32xf32>
    %841 = arith.divf %839, %840 : vector<4x32xf32>
    %842 = vector.extract_strided_slice %810 {offsets = [0, 32], sizes = [4, 32], strides = [1, 1]} : vector<4x128xf32> to vector<4x32xf32>
    %843 = arith.negf %842 : vector<4x32xf32>
    %844 = math.exp %843 : vector<4x32xf32>
    %cst_186 = arith.constant 1.000000e+00 : f32
    %845 = vector.broadcast %cst_186 : f32 to vector<4x32xf32>
    %846 = arith.addf %845, %844 : vector<4x32xf32>
    %847 = arith.divf %845, %846 : vector<4x32xf32>
    %848 = vector.extract_strided_slice %810 {offsets = [0, 64], sizes = [4, 32], strides = [1, 1]} : vector<4x128xf32> to vector<4x32xf32>
    %849 = math.tanh %848 : vector<4x32xf32>
    %850 = vector.extract_strided_slice %810 {offsets = [0, 96], sizes = [4, 32], strides = [1, 1]} : vector<4x128xf32> to vector<4x32xf32>
    %851 = arith.negf %850 : vector<4x32xf32>
    %852 = math.exp %851 : vector<4x32xf32>
    %cst_187 = arith.constant 1.000000e+00 : f32
    %853 = vector.broadcast %cst_187 : f32 to vector<4x32xf32>
    %854 = arith.addf %853, %852 : vector<4x32xf32>
    %855 = arith.divf %853, %854 : vector<4x32xf32>
    %856 = arith.mulf %847, %792 : vector<4x32xf32>
    %857 = arith.mulf %841, %849 : vector<4x32xf32>
    %858 = arith.addf %856, %857 : vector<4x32xf32>
    %859 = math.tanh %858 : vector<4x32xf32>
    %860 = arith.mulf %855, %859 : vector<4x32xf32>
    %c0_188 = arith.constant 0 : index
    %c3_189 = arith.constant 3 : index
    %c0_190 = arith.constant 0 : index
    %861 = vector.load %arg18[%c0_188, %c3_189, %c0_190] : memref<4x8x64xf32, #tpu.memory_space<vmem>>, vector<4x1x32xf32>
    %862 = vector.shape_cast %861 : vector<4x1x32xf32> to vector<4x32xf32>
    %863 = vector.shape_cast %835 : vector<4x32xf32> to vector<4x1x32xf32>
    tpu.vector_store %arg18[%c0_188, %c3_189, %c0_190], %863 {strides = array<i32>} : memref<4x8x64xf32, #tpu.memory_space<vmem>>, vector<4x1x32xf32>,
    %c0_191 = arith.constant 0 : index
    %c4_192 = arith.constant 4 : index
    %c32_193 = arith.constant 32 : index
    %864 = vector.load %arg18[%c0_191, %c4_192, %c32_193] : memref<4x8x64xf32, #tpu.memory_space<vmem>>, vector<4x1x32xf32>
    %865 = vector.shape_cast %864 : vector<4x1x32xf32> to vector<4x32xf32>
    %866 = vector.shape_cast %860 : vector<4x32xf32> to vector<4x1x32xf32>
    tpu.vector_store %arg18[%c0_191, %c4_192, %c32_193], %866 {strides = array<i32>} : memref<4x8x64xf32, #tpu.memory_space<vmem>>, vector<4x1x32xf32>,
    %867 = vector.extract_strided_slice %599 {offsets = [0, 4, 0], sizes = [4, 1, 128], strides = [1, 1, 1]} : vector<4x8x256xf32> to vector<4x1x128xf32>
    %868 = vector.shape_cast %867 : vector<4x1x128xf32> to vector<4x128xf32>
    %869 = arith.truncf %835 : vector<4x32xf32> to vector<4x32xbf16>
    %cst_194 = arith.constant dense<0.000000e+00> : vector<4x128xf32>
    %870 = tpu.matmul %869, %600, %cst_194 {dimension_numbers = #tpu.dot_dimension_numbers<[1], [0], [0], [1], [0, 0, 1, 1], [], []>} : vector<4x32xbf16>, vector<32x128xbf16>, vector<4x128xf32> -> vector<4x128xf32>
    %871 = arith.addf %868, %870 : vector<4x128xf32>
    %872 = vector.extract_strided_slice %599 {offsets = [0, 3, 128], sizes = [4, 1, 128], strides = [1, 1, 1]} : vector<4x8x256xf32> to vector<4x1x128xf32>
    %873 = vector.shape_cast %872 : vector<4x1x128xf32> to vector<4x128xf32>
    %874 = arith.truncf %860 : vector<4x32xf32> to vector<4x32xbf16>
    %cst_195 = arith.constant dense<0.000000e+00> : vector<4x128xf32>
    %875 = tpu.matmul %874, %601, %cst_195 {dimension_numbers = #tpu.dot_dimension_numbers<[1], [0], [0], [1], [0, 0, 1, 1], [], []>} : vector<4x32xbf16>, vector<32x128xbf16>, vector<4x128xf32> -> vector<4x128xf32>
    %876 = arith.addf %873, %875 : vector<4x128xf32>
    %877 = vector.extract_strided_slice %871 {offsets = [0, 0], sizes = [4, 32], strides = [1, 1]} : vector<4x128xf32> to vector<4x32xf32>
    %878 = arith.negf %877 : vector<4x32xf32>
    %879 = math.exp %878 : vector<4x32xf32>
    %cst_196 = arith.constant 1.000000e+00 : f32
    %880 = vector.broadcast %cst_196 : f32 to vector<4x32xf32>
    %881 = arith.addf %880, %879 : vector<4x32xf32>
    %882 = arith.divf %880, %881 : vector<4x32xf32>
    %883 = vector.extract_strided_slice %871 {offsets = [0, 32], sizes = [4, 32], strides = [1, 1]} : vector<4x128xf32> to vector<4x32xf32>
    %884 = arith.negf %883 : vector<4x32xf32>
    %885 = math.exp %884 : vector<4x32xf32>
    %cst_197 = arith.constant 1.000000e+00 : f32
    %886 = vector.broadcast %cst_197 : f32 to vector<4x32xf32>
    %887 = arith.addf %886, %885 : vector<4x32xf32>
    %888 = arith.divf %886, %887 : vector<4x32xf32>
    %889 = vector.extract_strided_slice %871 {offsets = [0, 64], sizes = [4, 32], strides = [1, 1]} : vector<4x128xf32> to vector<4x32xf32>
    %890 = math.tanh %889 : vector<4x32xf32>
    %891 = vector.extract_strided_slice %871 {offsets = [0, 96], sizes = [4, 32], strides = [1, 1]} : vector<4x128xf32> to vector<4x32xf32>
    %892 = arith.negf %891 : vector<4x32xf32>
    %893 = math.exp %892 : vector<4x32xf32>
    %cst_198 = arith.constant 1.000000e+00 : f32
    %894 = vector.broadcast %cst_198 : f32 to vector<4x32xf32>
    %895 = arith.addf %894, %893 : vector<4x32xf32>
    %896 = arith.divf %894, %895 : vector<4x32xf32>
    %897 = arith.mulf %888, %833 : vector<4x32xf32>
    %898 = arith.mulf %882, %890 : vector<4x32xf32>
    %899 = arith.addf %897, %898 : vector<4x32xf32>
    %900 = math.tanh %899 : vector<4x32xf32>
    %901 = arith.mulf %896, %900 : vector<4x32xf32>
    %902 = vector.extract_strided_slice %876 {offsets = [0, 0], sizes = [4, 32], strides = [1, 1]} : vector<4x128xf32> to vector<4x32xf32>
    %903 = arith.negf %902 : vector<4x32xf32>
    %904 = math.exp %903 : vector<4x32xf32>
    %cst_199 = arith.constant 1.000000e+00 : f32
    %905 = vector.broadcast %cst_199 : f32 to vector<4x32xf32>
    %906 = arith.addf %905, %904 : vector<4x32xf32>
    %907 = arith.divf %905, %906 : vector<4x32xf32>
    %908 = vector.extract_strided_slice %876 {offsets = [0, 32], sizes = [4, 32], strides = [1, 1]} : vector<4x128xf32> to vector<4x32xf32>
    %909 = arith.negf %908 : vector<4x32xf32>
    %910 = math.exp %909 : vector<4x32xf32>
    %cst_200 = arith.constant 1.000000e+00 : f32
    %911 = vector.broadcast %cst_200 : f32 to vector<4x32xf32>
    %912 = arith.addf %911, %910 : vector<4x32xf32>
    %913 = arith.divf %911, %912 : vector<4x32xf32>
    %914 = vector.extract_strided_slice %876 {offsets = [0, 64], sizes = [4, 32], strides = [1, 1]} : vector<4x128xf32> to vector<4x32xf32>
    %915 = math.tanh %914 : vector<4x32xf32>
    %916 = vector.extract_strided_slice %876 {offsets = [0, 96], sizes = [4, 32], strides = [1, 1]} : vector<4x128xf32> to vector<4x32xf32>
    %917 = arith.negf %916 : vector<4x32xf32>
    %918 = math.exp %917 : vector<4x32xf32>
    %cst_201 = arith.constant 1.000000e+00 : f32
    %919 = vector.broadcast %cst_201 : f32 to vector<4x32xf32>
    %920 = arith.addf %919, %918 : vector<4x32xf32>
    %921 = arith.divf %919, %920 : vector<4x32xf32>
    %922 = arith.mulf %913, %858 : vector<4x32xf32>
    %923 = arith.mulf %907, %915 : vector<4x32xf32>
    %924 = arith.addf %922, %923 : vector<4x32xf32>
    %925 = math.tanh %924 : vector<4x32xf32>
    %926 = arith.mulf %921, %925 : vector<4x32xf32>
    %c0_202 = arith.constant 0 : index
    %c4_203 = arith.constant 4 : index
    %c0_204 = arith.constant 0 : index
    %927 = vector.load %arg18[%c0_202, %c4_203, %c0_204] : memref<4x8x64xf32, #tpu.memory_space<vmem>>, vector<4x1x32xf32>
    %928 = vector.shape_cast %927 : vector<4x1x32xf32> to vector<4x32xf32>
    %929 = vector.shape_cast %901 : vector<4x32xf32> to vector<4x1x32xf32>
    tpu.vector_store %arg18[%c0_202, %c4_203, %c0_204], %929 {strides = array<i32>} : memref<4x8x64xf32, #tpu.memory_space<vmem>>, vector<4x1x32xf32>,
    %c0_205 = arith.constant 0 : index
    %c3_206 = arith.constant 3 : index
    %c32_207 = arith.constant 32 : index
    %930 = vector.load %arg18[%c0_205, %c3_206, %c32_207] : memref<4x8x64xf32, #tpu.memory_space<vmem>>, vector<4x1x32xf32>
    %931 = vector.shape_cast %930 : vector<4x1x32xf32> to vector<4x32xf32>
    %932 = vector.shape_cast %926 : vector<4x32xf32> to vector<4x1x32xf32>
    tpu.vector_store %arg18[%c0_205, %c3_206, %c32_207], %932 {strides = array<i32>} : memref<4x8x64xf32, #tpu.memory_space<vmem>>, vector<4x1x32xf32>,
    %933 = vector.extract_strided_slice %599 {offsets = [0, 5, 0], sizes = [4, 1, 128], strides = [1, 1, 1]} : vector<4x8x256xf32> to vector<4x1x128xf32>
    %934 = vector.shape_cast %933 : vector<4x1x128xf32> to vector<4x128xf32>
    %935 = arith.truncf %901 : vector<4x32xf32> to vector<4x32xbf16>
    %cst_208 = arith.constant dense<0.000000e+00> : vector<4x128xf32>
    %936 = tpu.matmul %935, %600, %cst_208 {dimension_numbers = #tpu.dot_dimension_numbers<[1], [0], [0], [1], [0, 0, 1, 1], [], []>} : vector<4x32xbf16>, vector<32x128xbf16>, vector<4x128xf32> -> vector<4x128xf32>
    %937 = arith.addf %934, %936 : vector<4x128xf32>
    %938 = vector.extract_strided_slice %599 {offsets = [0, 2, 128], sizes = [4, 1, 128], strides = [1, 1, 1]} : vector<4x8x256xf32> to vector<4x1x128xf32>
    %939 = vector.shape_cast %938 : vector<4x1x128xf32> to vector<4x128xf32>
    %940 = arith.truncf %926 : vector<4x32xf32> to vector<4x32xbf16>
    %cst_209 = arith.constant dense<0.000000e+00> : vector<4x128xf32>
    %941 = tpu.matmul %940, %601, %cst_209 {dimension_numbers = #tpu.dot_dimension_numbers<[1], [0], [0], [1], [0, 0, 1, 1], [], []>} : vector<4x32xbf16>, vector<32x128xbf16>, vector<4x128xf32> -> vector<4x128xf32>
    %942 = arith.addf %939, %941 : vector<4x128xf32>
    %943 = vector.extract_strided_slice %937 {offsets = [0, 0], sizes = [4, 32], strides = [1, 1]} : vector<4x128xf32> to vector<4x32xf32>
    %944 = arith.negf %943 : vector<4x32xf32>
    %945 = math.exp %944 : vector<4x32xf32>
    %cst_210 = arith.constant 1.000000e+00 : f32
    %946 = vector.broadcast %cst_210 : f32 to vector<4x32xf32>
    %947 = arith.addf %946, %945 : vector<4x32xf32>
    %948 = arith.divf %946, %947 : vector<4x32xf32>
    %949 = vector.extract_strided_slice %937 {offsets = [0, 32], sizes = [4, 32], strides = [1, 1]} : vector<4x128xf32> to vector<4x32xf32>
    %950 = arith.negf %949 : vector<4x32xf32>
    %951 = math.exp %950 : vector<4x32xf32>
    %cst_211 = arith.constant 1.000000e+00 : f32
    %952 = vector.broadcast %cst_211 : f32 to vector<4x32xf32>
    %953 = arith.addf %952, %951 : vector<4x32xf32>
    %954 = arith.divf %952, %953 : vector<4x32xf32>
    %955 = vector.extract_strided_slice %937 {offsets = [0, 64], sizes = [4, 32], strides = [1, 1]} : vector<4x128xf32> to vector<4x32xf32>
    %956 = math.tanh %955 : vector<4x32xf32>
    %957 = vector.extract_strided_slice %937 {offsets = [0, 96], sizes = [4, 32], strides = [1, 1]} : vector<4x128xf32> to vector<4x32xf32>
    %958 = arith.negf %957 : vector<4x32xf32>
    %959 = math.exp %958 : vector<4x32xf32>
    %cst_212 = arith.constant 1.000000e+00 : f32
    %960 = vector.broadcast %cst_212 : f32 to vector<4x32xf32>
    %961 = arith.addf %960, %959 : vector<4x32xf32>
    %962 = arith.divf %960, %961 : vector<4x32xf32>
    %963 = arith.mulf %954, %899 : vector<4x32xf32>
    %964 = arith.mulf %948, %956 : vector<4x32xf32>
    %965 = arith.addf %963, %964 : vector<4x32xf32>
    %966 = math.tanh %965 : vector<4x32xf32>
    %967 = arith.mulf %962, %966 : vector<4x32xf32>
    %968 = vector.extract_strided_slice %942 {offsets = [0, 0], sizes = [4, 32], strides = [1, 1]} : vector<4x128xf32> to vector<4x32xf32>
    %969 = arith.negf %968 : vector<4x32xf32>
    %970 = math.exp %969 : vector<4x32xf32>
    %cst_213 = arith.constant 1.000000e+00 : f32
    %971 = vector.broadcast %cst_213 : f32 to vector<4x32xf32>
    %972 = arith.addf %971, %970 : vector<4x32xf32>
    %973 = arith.divf %971, %972 : vector<4x32xf32>
    %974 = vector.extract_strided_slice %942 {offsets = [0, 32], sizes = [4, 32], strides = [1, 1]} : vector<4x128xf32> to vector<4x32xf32>
    %975 = arith.negf %974 : vector<4x32xf32>
    %976 = math.exp %975 : vector<4x32xf32>
    %cst_214 = arith.constant 1.000000e+00 : f32
    %977 = vector.broadcast %cst_214 : f32 to vector<4x32xf32>
    %978 = arith.addf %977, %976 : vector<4x32xf32>
    %979 = arith.divf %977, %978 : vector<4x32xf32>
    %980 = vector.extract_strided_slice %942 {offsets = [0, 64], sizes = [4, 32], strides = [1, 1]} : vector<4x128xf32> to vector<4x32xf32>
    %981 = math.tanh %980 : vector<4x32xf32>
    %982 = vector.extract_strided_slice %942 {offsets = [0, 96], sizes = [4, 32], strides = [1, 1]} : vector<4x128xf32> to vector<4x32xf32>
    %983 = arith.negf %982 : vector<4x32xf32>
    %984 = math.exp %983 : vector<4x32xf32>
    %cst_215 = arith.constant 1.000000e+00 : f32
    %985 = vector.broadcast %cst_215 : f32 to vector<4x32xf32>
    %986 = arith.addf %985, %984 : vector<4x32xf32>
    %987 = arith.divf %985, %986 : vector<4x32xf32>
    %988 = arith.mulf %979, %924 : vector<4x32xf32>
    %989 = arith.mulf %973, %981 : vector<4x32xf32>
    %990 = arith.addf %988, %989 : vector<4x32xf32>
    %991 = math.tanh %990 : vector<4x32xf32>
    %992 = arith.mulf %987, %991 : vector<4x32xf32>
    %c0_216 = arith.constant 0 : index
    %c5_217 = arith.constant 5 : index
    %c0_218 = arith.constant 0 : index
    %993 = vector.load %arg18[%c0_216, %c5_217, %c0_218] : memref<4x8x64xf32, #tpu.memory_space<vmem>>, vector<4x1x32xf32>
    %994 = vector.shape_cast %993 : vector<4x1x32xf32> to vector<4x32xf32>
    %995 = vector.shape_cast %967 : vector<4x32xf32> to vector<4x1x32xf32>
    tpu.vector_store %arg18[%c0_216, %c5_217, %c0_218], %995 {strides = array<i32>} : memref<4x8x64xf32, #tpu.memory_space<vmem>>, vector<4x1x32xf32>,
    %c0_219 = arith.constant 0 : index
    %c2_220 = arith.constant 2 : index
    %c32_221 = arith.constant 32 : index
    %996 = vector.load %arg18[%c0_219, %c2_220, %c32_221] : memref<4x8x64xf32, #tpu.memory_space<vmem>>, vector<4x1x32xf32>
    %997 = vector.shape_cast %996 : vector<4x1x32xf32> to vector<4x32xf32>
    %998 = vector.shape_cast %992 : vector<4x32xf32> to vector<4x1x32xf32>
    tpu.vector_store %arg18[%c0_219, %c2_220, %c32_221], %998 {strides = array<i32>} : memref<4x8x64xf32, #tpu.memory_space<vmem>>, vector<4x1x32xf32>,
    %999 = vector.extract_strided_slice %599 {offsets = [0, 6, 0], sizes = [4, 1, 128], strides = [1, 1, 1]} : vector<4x8x256xf32> to vector<4x1x128xf32>
    %1000 = vector.shape_cast %999 : vector<4x1x128xf32> to vector<4x128xf32>
    %1001 = arith.truncf %967 : vector<4x32xf32> to vector<4x32xbf16>
    %cst_222 = arith.constant dense<0.000000e+00> : vector<4x128xf32>
    %1002 = tpu.matmul %1001, %600, %cst_222 {dimension_numbers = #tpu.dot_dimension_numbers<[1], [0], [0], [1], [0, 0, 1, 1], [], []>} : vector<4x32xbf16>, vector<32x128xbf16>, vector<4x128xf32> -> vector<4x128xf32>
    %1003 = arith.addf %1000, %1002 : vector<4x128xf32>
    %1004 = vector.extract_strided_slice %599 {offsets = [0, 1, 128], sizes = [4, 1, 128], strides = [1, 1, 1]} : vector<4x8x256xf32> to vector<4x1x128xf32>
    %1005 = vector.shape_cast %1004 : vector<4x1x128xf32> to vector<4x128xf32>
    %1006 = arith.truncf %992 : vector<4x32xf32> to vector<4x32xbf16>
    %cst_223 = arith.constant dense<0.000000e+00> : vector<4x128xf32>
    %1007 = tpu.matmul %1006, %601, %cst_223 {dimension_numbers = #tpu.dot_dimension_numbers<[1], [0], [0], [1], [0, 0, 1, 1], [], []>} : vector<4x32xbf16>, vector<32x128xbf16>, vector<4x128xf32> -> vector<4x128xf32>
    %1008 = arith.addf %1005, %1007 : vector<4x128xf32>
    %1009 = vector.extract_strided_slice %1003 {offsets = [0, 0], sizes = [4, 32], strides = [1, 1]} : vector<4x128xf32> to vector<4x32xf32>
    %1010 = arith.negf %1009 : vector<4x32xf32>
    %1011 = math.exp %1010 : vector<4x32xf32>
    %cst_224 = arith.constant 1.000000e+00 : f32
    %1012 = vector.broadcast %cst_224 : f32 to vector<4x32xf32>
    %1013 = arith.addf %1012, %1011 : vector<4x32xf32>
    %1014 = arith.divf %1012, %1013 : vector<4x32xf32>
    %1015 = vector.extract_strided_slice %1003 {offsets = [0, 32], sizes = [4, 32], strides = [1, 1]} : vector<4x128xf32> to vector<4x32xf32>
    %1016 = arith.negf %1015 : vector<4x32xf32>
    %1017 = math.exp %1016 : vector<4x32xf32>
    %cst_225 = arith.constant 1.000000e+00 : f32
    %1018 = vector.broadcast %cst_225 : f32 to vector<4x32xf32>
    %1019 = arith.addf %1018, %1017 : vector<4x32xf32>
    %1020 = arith.divf %1018, %1019 : vector<4x32xf32>
    %1021 = vector.extract_strided_slice %1003 {offsets = [0, 64], sizes = [4, 32], strides = [1, 1]} : vector<4x128xf32> to vector<4x32xf32>
    %1022 = math.tanh %1021 : vector<4x32xf32>
    %1023 = vector.extract_strided_slice %1003 {offsets = [0, 96], sizes = [4, 32], strides = [1, 1]} : vector<4x128xf32> to vector<4x32xf32>
    %1024 = arith.negf %1023 : vector<4x32xf32>
    %1025 = math.exp %1024 : vector<4x32xf32>
    %cst_226 = arith.constant 1.000000e+00 : f32
    %1026 = vector.broadcast %cst_226 : f32 to vector<4x32xf32>
    %1027 = arith.addf %1026, %1025 : vector<4x32xf32>
    %1028 = arith.divf %1026, %1027 : vector<4x32xf32>
    %1029 = arith.mulf %1020, %965 : vector<4x32xf32>
    %1030 = arith.mulf %1014, %1022 : vector<4x32xf32>
    %1031 = arith.addf %1029, %1030 : vector<4x32xf32>
    %1032 = math.tanh %1031 : vector<4x32xf32>
    %1033 = arith.mulf %1028, %1032 : vector<4x32xf32>
    %1034 = vector.extract_strided_slice %1008 {offsets = [0, 0], sizes = [4, 32], strides = [1, 1]} : vector<4x128xf32> to vector<4x32xf32>
    %1035 = arith.negf %1034 : vector<4x32xf32>
    %1036 = math.exp %1035 : vector<4x32xf32>
    %cst_227 = arith.constant 1.000000e+00 : f32
    %1037 = vector.broadcast %cst_227 : f32 to vector<4x32xf32>
    %1038 = arith.addf %1037, %1036 : vector<4x32xf32>
    %1039 = arith.divf %1037, %1038 : vector<4x32xf32>
    %1040 = vector.extract_strided_slice %1008 {offsets = [0, 32], sizes = [4, 32], strides = [1, 1]} : vector<4x128xf32> to vector<4x32xf32>
    %1041 = arith.negf %1040 : vector<4x32xf32>
    %1042 = math.exp %1041 : vector<4x32xf32>
    %cst_228 = arith.constant 1.000000e+00 : f32
    %1043 = vector.broadcast %cst_228 : f32 to vector<4x32xf32>
    %1044 = arith.addf %1043, %1042 : vector<4x32xf32>
    %1045 = arith.divf %1043, %1044 : vector<4x32xf32>
    %1046 = vector.extract_strided_slice %1008 {offsets = [0, 64], sizes = [4, 32], strides = [1, 1]} : vector<4x128xf32> to vector<4x32xf32>
    %1047 = math.tanh %1046 : vector<4x32xf32>
    %1048 = vector.extract_strided_slice %1008 {offsets = [0, 96], sizes = [4, 32], strides = [1, 1]} : vector<4x128xf32> to vector<4x32xf32>
    %1049 = arith.negf %1048 : vector<4x32xf32>
    %1050 = math.exp %1049 : vector<4x32xf32>
    %cst_229 = arith.constant 1.000000e+00 : f32
    %1051 = vector.broadcast %cst_229 : f32 to vector<4x32xf32>
    %1052 = arith.addf %1051, %1050 : vector<4x32xf32>
    %1053 = arith.divf %1051, %1052 : vector<4x32xf32>
    %1054 = arith.mulf %1045, %990 : vector<4x32xf32>
    %1055 = arith.mulf %1039, %1047 : vector<4x32xf32>
    %1056 = arith.addf %1054, %1055 : vector<4x32xf32>
    %1057 = math.tanh %1056 : vector<4x32xf32>
    %1058 = arith.mulf %1053, %1057 : vector<4x32xf32>
    %c0_230 = arith.constant 0 : index
    %c6_231 = arith.constant 6 : index
    %c0_232 = arith.constant 0 : index
    %1059 = vector.load %arg18[%c0_230, %c6_231, %c0_232] : memref<4x8x64xf32, #tpu.memory_space<vmem>>, vector<4x1x32xf32>
    %1060 = vector.shape_cast %1059 : vector<4x1x32xf32> to vector<4x32xf32>
    %1061 = vector.shape_cast %1033 : vector<4x32xf32> to vector<4x1x32xf32>
    tpu.vector_store %arg18[%c0_230, %c6_231, %c0_232], %1061 {strides = array<i32>} : memref<4x8x64xf32, #tpu.memory_space<vmem>>, vector<4x1x32xf32>,
    %c0_233 = arith.constant 0 : index
    %c1_234 = arith.constant 1 : index
    %c32_235 = arith.constant 32 : index
    %1062 = vector.load %arg18[%c0_233, %c1_234, %c32_235] : memref<4x8x64xf32, #tpu.memory_space<vmem>>, vector<4x1x32xf32>
    %1063 = vector.shape_cast %1062 : vector<4x1x32xf32> to vector<4x32xf32>
    %1064 = vector.shape_cast %1058 : vector<4x32xf32> to vector<4x1x32xf32>
    tpu.vector_store %arg18[%c0_233, %c1_234, %c32_235], %1064 {strides = array<i32>} : memref<4x8x64xf32, #tpu.memory_space<vmem>>, vector<4x1x32xf32>,
    %1065 = vector.extract_strided_slice %599 {offsets = [0, 7, 0], sizes = [4, 1, 128], strides = [1, 1, 1]} : vector<4x8x256xf32> to vector<4x1x128xf32>
    %1066 = vector.shape_cast %1065 : vector<4x1x128xf32> to vector<4x128xf32>
    %1067 = arith.truncf %1033 : vector<4x32xf32> to vector<4x32xbf16>
    %cst_236 = arith.constant dense<0.000000e+00> : vector<4x128xf32>
    %1068 = tpu.matmul %1067, %600, %cst_236 {dimension_numbers = #tpu.dot_dimension_numbers<[1], [0], [0], [1], [0, 0, 1, 1], [], []>} : vector<4x32xbf16>, vector<32x128xbf16>, vector<4x128xf32> -> vector<4x128xf32>
    %1069 = arith.addf %1066, %1068 : vector<4x128xf32>
    %1070 = vector.extract_strided_slice %599 {offsets = [0, 0, 128], sizes = [4, 1, 128], strides = [1, 1, 1]} : vector<4x8x256xf32> to vector<4x1x128xf32>
    %1071 = vector.shape_cast %1070 : vector<4x1x128xf32> to vector<4x128xf32>
    %1072 = arith.truncf %1058 : vector<4x32xf32> to vector<4x32xbf16>
    %cst_237 = arith.constant dense<0.000000e+00> : vector<4x128xf32>
    %1073 = tpu.matmul %1072, %601, %cst_237 {dimension_numbers = #tpu.dot_dimension_numbers<[1], [0], [0], [1], [0, 0, 1, 1], [], []>} : vector<4x32xbf16>, vector<32x128xbf16>, vector<4x128xf32> -> vector<4x128xf32>
    %1074 = arith.addf %1071, %1073 : vector<4x128xf32>
    %1075 = vector.extract_strided_slice %1069 {offsets = [0, 0], sizes = [4, 32], strides = [1, 1]} : vector<4x128xf32> to vector<4x32xf32>
    %1076 = arith.negf %1075 : vector<4x32xf32>
    %1077 = math.exp %1076 : vector<4x32xf32>
    %cst_238 = arith.constant 1.000000e+00 : f32
    %1078 = vector.broadcast %cst_238 : f32 to vector<4x32xf32>
    %1079 = arith.addf %1078, %1077 : vector<4x32xf32>
    %1080 = arith.divf %1078, %1079 : vector<4x32xf32>
    %1081 = vector.extract_strided_slice %1069 {offsets = [0, 32], sizes = [4, 32], strides = [1, 1]} : vector<4x128xf32> to vector<4x32xf32>
    %1082 = arith.negf %1081 : vector<4x32xf32>
    %1083 = math.exp %1082 : vector<4x32xf32>
    %cst_239 = arith.constant 1.000000e+00 : f32
    %1084 = vector.broadcast %cst_239 : f32 to vector<4x32xf32>
    %1085 = arith.addf %1084, %1083 : vector<4x32xf32>
    %1086 = arith.divf %1084, %1085 : vector<4x32xf32>
    %1087 = vector.extract_strided_slice %1069 {offsets = [0, 64], sizes = [4, 32], strides = [1, 1]} : vector<4x128xf32> to vector<4x32xf32>
    %1088 = math.tanh %1087 : vector<4x32xf32>
    %1089 = vector.extract_strided_slice %1069 {offsets = [0, 96], sizes = [4, 32], strides = [1, 1]} : vector<4x128xf32> to vector<4x32xf32>
    %1090 = arith.negf %1089 : vector<4x32xf32>
    %1091 = math.exp %1090 : vector<4x32xf32>
    %cst_240 = arith.constant 1.000000e+00 : f32
    %1092 = vector.broadcast %cst_240 : f32 to vector<4x32xf32>
    %1093 = arith.addf %1092, %1091 : vector<4x32xf32>
    %1094 = arith.divf %1092, %1093 : vector<4x32xf32>
    %1095 = arith.mulf %1086, %1031 : vector<4x32xf32>
    %1096 = arith.mulf %1080, %1088 : vector<4x32xf32>
    %1097 = arith.addf %1095, %1096 : vector<4x32xf32>
    %1098 = math.tanh %1097 : vector<4x32xf32>
    %1099 = arith.mulf %1094, %1098 : vector<4x32xf32>
    %1100 = vector.extract_strided_slice %1074 {offsets = [0, 0], sizes = [4, 32], strides = [1, 1]} : vector<4x128xf32> to vector<4x32xf32>
    %1101 = arith.negf %1100 : vector<4x32xf32>
    %1102 = math.exp %1101 : vector<4x32xf32>
    %cst_241 = arith.constant 1.000000e+00 : f32
    %1103 = vector.broadcast %cst_241 : f32 to vector<4x32xf32>
    %1104 = arith.addf %1103, %1102 : vector<4x32xf32>
    %1105 = arith.divf %1103, %1104 : vector<4x32xf32>
    %1106 = vector.extract_strided_slice %1074 {offsets = [0, 32], sizes = [4, 32], strides = [1, 1]} : vector<4x128xf32> to vector<4x32xf32>
    %1107 = arith.negf %1106 : vector<4x32xf32>
    %1108 = math.exp %1107 : vector<4x32xf32>
    %cst_242 = arith.constant 1.000000e+00 : f32
    %1109 = vector.broadcast %cst_242 : f32 to vector<4x32xf32>
    %1110 = arith.addf %1109, %1108 : vector<4x32xf32>
    %1111 = arith.divf %1109, %1110 : vector<4x32xf32>
    %1112 = vector.extract_strided_slice %1074 {offsets = [0, 64], sizes = [4, 32], strides = [1, 1]} : vector<4x128xf32> to vector<4x32xf32>
    %1113 = math.tanh %1112 : vector<4x32xf32>
    %1114 = vector.extract_strided_slice %1074 {offsets = [0, 96], sizes = [4, 32], strides = [1, 1]} : vector<4x128xf32> to vector<4x32xf32>
    %1115 = arith.negf %1114 : vector<4x32xf32>
    %1116 = math.exp %1115 : vector<4x32xf32>
    %cst_243 = arith.constant 1.000000e+00 : f32
    %1117 = vector.broadcast %cst_243 : f32 to vector<4x32xf32>
    %1118 = arith.addf %1117, %1116 : vector<4x32xf32>
    %1119 = arith.divf %1117, %1118 : vector<4x32xf32>
    %1120 = arith.mulf %1111, %1056 : vector<4x32xf32>
    %1121 = arith.mulf %1105, %1113 : vector<4x32xf32>
    %1122 = arith.addf %1120, %1121 : vector<4x32xf32>
    %1123 = math.tanh %1122 : vector<4x32xf32>
    %1124 = arith.mulf %1119, %1123 : vector<4x32xf32>
    %c0_244 = arith.constant 0 : index
    %c7_245 = arith.constant 7 : index
    %c0_246 = arith.constant 0 : index
    %1125 = vector.load %arg18[%c0_244, %c7_245, %c0_246] : memref<4x8x64xf32, #tpu.memory_space<vmem>>, vector<4x1x32xf32>
    %1126 = vector.shape_cast %1125 : vector<4x1x32xf32> to vector<4x32xf32>
    %1127 = vector.shape_cast %1099 : vector<4x32xf32> to vector<4x1x32xf32>
    tpu.vector_store %arg18[%c0_244, %c7_245, %c0_246], %1127 {strides = array<i32>} : memref<4x8x64xf32, #tpu.memory_space<vmem>>, vector<4x1x32xf32>,
    %c0_247 = arith.constant 0 : index
    %c0_248 = arith.constant 0 : index
    %c32_249 = arith.constant 32 : index
    %1128 = vector.load %arg18[%c0_247, %c0_248, %c32_249] : memref<4x8x64xf32, #tpu.memory_space<vmem>>, vector<4x1x32xf32>
    %1129 = vector.shape_cast %1128 : vector<4x1x32xf32> to vector<4x32xf32>
    %1130 = vector.shape_cast %1124 : vector<4x32xf32> to vector<4x1x32xf32>
    tpu.vector_store %arg18[%c0_247, %c0_248, %c32_249], %1130 {strides = array<i32>} : memref<4x8x64xf32, #tpu.memory_space<vmem>>, vector<4x1x32xf32>,
    %c0_250 = arith.constant 0 : index
    %c0_251 = arith.constant 0 : index
    %c0_252 = arith.constant 0 : index
    %1131 = vector.load %arg18[%c0_250, %c0_251, %c0_252] : memref<4x8x64xf32, #tpu.memory_space<vmem>>, vector<4x8x64xf32>
    %1132 = vector.extract_strided_slice %1131 {offsets = [0, 0, 0], sizes = [2, 8, 64], strides = [1, 1, 1]} : vector<4x8x64xf32> to vector<2x8x64xf32>
    %1133 = vector.extract_strided_slice %1131 {offsets = [2, 0, 0], sizes = [2, 8, 64], strides = [1, 1, 1]} : vector<4x8x64xf32> to vector<2x8x64xf32>
    %cst_253 = arith.constant dense<0.000000e+00> : vector<2x64xf32>
    %1134 = vector.multi_reduction <add>, %1132, %cst_253 [1] : vector<2x8x64xf32> to vector<2x64xf32>
    %cst_254 = arith.constant 8.000000e+00 : f32
    %1135 = vector.broadcast %cst_254 : f32 to vector<2x64xf32>
    %1136 = arith.divf %1134, %1135 : vector<2x64xf32>
    %cst_255 = arith.constant dense<0xFF800000> : vector<2x64xf32>
    %1137 = vector.multi_reduction <maximumf>, %1132, %cst_255 [1] : vector<2x8x64xf32> to vector<2x64xf32>
    %cst_256 = arith.constant dense<0.000000e+00> : vector<2x64xf32>
    %1138 = vector.multi_reduction <add>, %1133, %cst_256 [1] : vector<2x8x64xf32> to vector<2x64xf32>
    %cst_257 = arith.constant 8.000000e+00 : f32
    %1139 = vector.broadcast %cst_257 : f32 to vector<2x64xf32>
    %1140 = arith.divf %1138, %1139 : vector<2x64xf32>
    %cst_258 = arith.constant dense<0xFF800000> : vector<2x64xf32>
    %1141 = vector.multi_reduction <maximumf>, %1133, %cst_258 [1] : vector<2x8x64xf32> to vector<2x64xf32>
    %1142 = tpu.concatenate %1136, %1137, %1140, %1141 in 1 : vector<2x64xf32>, vector<2x64xf32>, vector<2x64xf32>, vector<2x64xf32> -> vector<2x256xf32>
    %c0_259 = arith.constant 0 : index
    %c0_260 = arith.constant 0 : index
    %1143 = vector.load %arg10[%c0_259, %c0_260] : memref<256x64xf32, #tpu.memory_space<vmem>>, vector<256x64xf32>
    %cst_261 = arith.constant dense<0.000000e+00> : vector<2x64xf32>
    %1144 = tpu.matmul %1142, %1143, %cst_261 {dimension_numbers = #tpu.dot_dimension_numbers<[1], [0], [0], [1], [0, 0, 1, 1], [], []>} : vector<2x256xf32>, vector<256x64xf32>, vector<2x64xf32> -> vector<2x64xf32>
    %c0_262 = arith.constant 0 : index
    %c0_263 = arith.constant 0 : index
    %1145 = vector.load %arg11[%c0_262, %c0_263] : memref<1x64xf32, #tpu.memory_space<vmem>>, vector<1x64xf32>
    %1146 = vector.broadcast %1145 : vector<1x64xf32> to vector<2x64xf32>
    %1147 = arith.addf %1144, %1146 : vector<2x64xf32>
    %cst_264 = arith.constant 0.000000e+00 : f32
    %1148 = vector.broadcast %cst_264 : f32 to vector<2x64xf32>
    %1149 = arith.cmpf ogt, %1147, %1148 : vector<2x64xf32>
    %cst_265 = arith.constant 0.000000e+00 : f32
    %1150 = vector.broadcast %cst_265 : f32 to vector<2x64xf32>
    %1151 = arith.minimumf %1147, %1150 : vector<2x64xf32>
    %1152 = math.exp %1151 : vector<2x64xf32>
    %cst_266 = arith.constant 1.000000e+00 : f32
    %1153 = vector.broadcast %cst_266 : f32 to vector<2x64xf32>
    %1154 = arith.subf %1152, %1153 : vector<2x64xf32>
    %1155 = arith.select %1149, %1147, %1154 : vector<2x64xi1>, vector<2x64xf32>
    %c0_267 = arith.constant 0 : index
    %c0_268 = arith.constant 0 : index
    %1156 = vector.load %arg12[%c0_267, %c0_268] : memref<64x64xf32, #tpu.memory_space<vmem>>, vector<64x64xf32>
    %cst_269 = arith.constant dense<0.000000e+00> : vector<2x64xf32>
    %1157 = tpu.matmul %1155, %1156, %cst_269 {dimension_numbers = #tpu.dot_dimension_numbers<[1], [0], [0], [1], [0, 0, 1, 1], [], []>} : vector<2x64xf32>, vector<64x64xf32>, vector<2x64xf32> -> vector<2x64xf32>
    %c0_270 = arith.constant 0 : index
    %c0_271 = arith.constant 0 : index
    %1158 = vector.load %arg13[%c0_270, %c0_271] : memref<1x64xf32, #tpu.memory_space<vmem>>, vector<1x64xf32>
    %1159 = vector.broadcast %1158 : vector<1x64xf32> to vector<2x64xf32>
    %1160 = arith.addf %1157, %1159 : vector<2x64xf32>
    %cst_272 = arith.constant 0.000000e+00 : f32
    %1161 = vector.broadcast %cst_272 : f32 to vector<2x64xf32>
    %1162 = arith.cmpf ogt, %1160, %1161 : vector<2x64xf32>
    %cst_273 = arith.constant 0.000000e+00 : f32
    %1163 = vector.broadcast %cst_273 : f32 to vector<2x64xf32>
    %1164 = arith.minimumf %1160, %1163 : vector<2x64xf32>
    %1165 = math.exp %1164 : vector<2x64xf32>
    %cst_274 = arith.constant 1.000000e+00 : f32
    %1166 = vector.broadcast %cst_274 : f32 to vector<2x64xf32>
    %1167 = arith.subf %1165, %1166 : vector<2x64xf32>
    %1168 = arith.select %1162, %1160, %1167 : vector<2x64xi1>, vector<2x64xf32>
    %c0_275 = arith.constant 0 : index
    %c0_276 = arith.constant 0 : index
    %1169 = vector.load %arg14[%c0_275, %c0_276] : memref<64x3xf32, #tpu.memory_space<vmem>>, vector<64x3xf32>
    %cst_277 = arith.constant dense<0.000000e+00> : vector<2x3xf32>
    %1170 = tpu.matmul %1168, %1169, %cst_277 {dimension_numbers = #tpu.dot_dimension_numbers<[1], [0], [0], [1], [0, 0, 1, 1], [], []>} : vector<2x64xf32>, vector<64x3xf32>, vector<2x3xf32> -> vector<2x3xf32>
    %c0_278 = arith.constant 0 : index
    %c0_279 = arith.constant 0 : index
    %1171 = vector.load %arg15[%c0_278, %c0_279] : memref<1x3xf32, #tpu.memory_space<vmem>>, vector<1x3xf32>
    %1172 = vector.broadcast %1171 : vector<1x3xf32> to vector<2x3xf32>
    %1173 = arith.addf %1170, %1172 : vector<2x3xf32>
    %cst_280 = arith.constant dense<0xFF800000> : vector<2xf32>
    %1174 = vector.multi_reduction <maximumf>, %1173, %cst_280 [1] : vector<2x3xf32> to vector<2xf32>
    %1175 = vector.shape_cast %1174 : vector<2xf32> to vector<2x1xf32>
    %1176 = vector.broadcast %1175 : vector<2x1xf32> to vector<2x3xf32>
    %1177 = arith.subf %1173, %1176 : vector<2x3xf32>
    %1178 = math.exp %1177 : vector<2x3xf32>
    %cst_281 = arith.constant dense<0.000000e+00> : vector<2xf32>
    %1179 = vector.multi_reduction <add>, %1178, %cst_281 [1] : vector<2x3xf32> to vector<2xf32>
    %1180 = vector.shape_cast %1179 : vector<2xf32> to vector<2x1xf32>
    %1181 = vector.broadcast %1180 : vector<2x1xf32> to vector<2x3xf32>
    %1182 = arith.divf %1178, %1181 : vector<2x3xf32>
    %c0_282 = arith.constant 0 : index
    %c0_283 = arith.constant 0 : index
    %1183 = vector.load %arg16[%c0_282, %c0_283] : memref<2x3xf32, #tpu.memory_space<vmem>>, vector<2x3xf32>
    tpu.vector_store %arg16[%c0_282, %c0_283], %1182 {strides = array<i32>} : memref<2x3xf32, #tpu.memory_space<vmem>>, vector<2x3xf32>,
    return
  }
}

</mosaic_0001>

<llo_original>
// kernel: esim_forward.1
$region0: #{esim_forward.1}
  #allocation0 [shape = 'u32[]', space=smem, size = 0x4, offset = 0x4, fixed_abs, tag = 'smem constant byte address 0x4 - core index']
  #allocation1 [shape = 'u32[72,128]{1,0:T(1,128)}', space=vmem, size = 0x9000, scoped, tag = 'internal scratch']
  #allocation2 [shape = 'f32[4,8,64]{2,1,0:T(8,128)}', space=vmem, size = 0x4000, scoped, tag = 'scratch operand']
  #allocation3 [shape = 'f32[4,8,64]{2,1,0:T(8,128)}', space=vmem, size = 0x4000, scoped, tag = 'scratch operand']
  %s0 = inlined_call_operand.vmem [shape: s32[32,1], index: 0, kind: input, shape index: {}]
  %s1 = inlined_call_operand.vmem [shape: f32[2,8], index: 1, kind: input, shape index: {}]
  %s2 = inlined_call_operand.vmem [shape: f32[2,8], index: 2, kind: input, shape index: {}]
  %s3 = inlined_call_operand.vmem [shape: f32[50,32], index: 3, kind: input, shape index: {}]
  %s4 = inlined_call_operand.vmem [shape: bf16[32,256], index: 4, kind: input, shape index: {}]
  %s5 = inlined_call_operand.vmem [shape: bf16[32,256], index: 5, kind: input, shape index: {}]
  %s6 = inlined_call_operand.vmem [shape: f32[1,256], index: 6, kind: input, shape index: {}]
  %s7 = inlined_call_operand.vmem [shape: bf16[256,256], index: 7, kind: input, shape index: {}]
  %s8 = inlined_call_operand.vmem [shape: bf16[32,256], index: 8, kind: input, shape index: {}]
  %s9 = inlined_call_operand.vmem [shape: f32[1,256], index: 9, kind: input, shape index: {}]
  %s10 = inlined_call_operand.vmem [shape: f32[256,64], index: 10, kind: input, shape index: {}]
  %s11 = inlined_call_operand.vmem [shape: f32[1,64], index: 11, kind: input, shape index: {}]
  %s12 = inlined_call_operand.vmem [shape: f32[64,64], index: 12, kind: input, shape index: {}]
  %s13 = inlined_call_operand.vmem [shape: f32[1,64], index: 13, kind: input, shape index: {}]
  %s14 = inlined_call_operand.vmem [shape: f32[64,3], index: 14, kind: input, shape index: {}]
  %s15 = inlined_call_operand.vmem [shape: f32[1,3], index: 15, kind: input, shape index: {}]
  %s16 = inlined_call_operand.hbm [shape: f32[2,3], index: 16, kind: output, shape index: {}]
  %s17 = sld [smem:[#allocation0]]
  $region74: #{esim_forward.1} parent=0
    _
  %s19 = ssub.s32 1, %s17
  %s20 = scalar_select 0, %s19, %s17
  $region1: #{esim_forward.1} parent=0
    #allocation4 [shape = 'u8[1024]{0}', space=vmem, size = 0x400, scoped, tag = 'output window, operand 0, single buffered']
    #allocation5 [shape = 's32[1]{0}', space=sflag, size = 0x4, scoped, tag = 'scoped memory for esim_forward.1']
    %21 = vsyncpa [#allocation5], 0
    // Predicated region
    $region2: #{esim_forward.1} parent=1 // pred_check
      _
    $region3: #{esim_forward.1} parent=1 // pred_check_branch
      %23 = sbr.rel (0) target = $region5
    $region4: #{esim_forward.1} parent=1 // pred_region
      _
    $region5: #{esim_forward.1} parent=1 // pred_fallthru
      _
    // Predicated region
    $region6: #{esim_forward.1} parent=1 // pred_check
      _
    $region7: #{esim_forward.1} parent=1 // pred_check_branch
      %25 = sbr.rel (0) target = $region9
    $region8: #{esim_forward.1} parent=1 // pred_region
      _
    $region9: #{esim_forward.1} parent=1 // pred_fallthru
      _
    // Predicated region
    $region10: #{esim_forward.1} parent=1 // pred_check
      _
    $region11: #{esim_forward.1} parent=1 // pred_check_branch
      %27 = sbr.rel (0) target = $region13
    $region12: #{esim_forward.1} parent=1 // pred_region
      _
    $region13: #{esim_forward.1} parent=1 // pred_fallthru
      _
    // Predicated region
    $region14: #{esim_forward.1} parent=1 // pred_check
      _
    $region15: #{esim_forward.1} parent=1 // pred_check_branch
      %29 = sbr.rel (0) target = $region17
    $region16: #{esim_forward.1} parent=1 // pred_region
      _
    $region17: #{esim_forward.1} parent=1 // pred_fallthru
      _
    // Predicated region
    $region18: #{esim_forward.1} parent=1 // pred_check
      _
    $region19: #{esim_forward.1} parent=1 // pred_check_branch
      %31 = sbr.rel (0) target = $region21
    $region20: #{esim_forward.1} parent=1 // pred_region
      _
    $region21: #{esim_forward.1} parent=1 // pred_fallthru
      _
    // Predicated region
    $region22: #{esim_forward.1} parent=1 // pred_check
      _
    $region23: #{esim_forward.1} parent=1 // pred_check_branch
      %33 = sbr.rel (0) target = $region25
    $region24: #{esim_forward.1} parent=1 // pred_region
      _
    $region25: #{esim_forward.1} parent=1 // pred_fallthru
      _
    // Predicated region
    $region26: #{esim_forward.1} parent=1 // pred_check
      _
    $region27: #{esim_forward.1} parent=1 // pred_check_branch
      %35 = sbr.rel (0) target = $region29
    $region28: #{esim_forward.1} parent=1 // pred_region
      _
    $region29: #{esim_forward.1} parent=1 // pred_fallthru
      _
    // Predicated region
    $region30: #{esim_forward.1} parent=1 // pred_check
      _
    $region31: #{esim_forward.1} parent=1 // pred_check_branch
      %37 = sbr.rel (0) target = $region33
    $region32: #{esim_forward.1} parent=1 // pred_region
      _
    $region33: #{esim_forward.1} parent=1 // pred_fallthru
      _
    // Predicated region
    $region34: #{esim_forward.1} parent=1 // pred_check
      _
    $region35: #{esim_forward.1} parent=1 // pred_check_branch
      %39 = sbr.rel (0) target = $region37
    $region36: #{esim_forward.1} parent=1 // pred_region
      _
    $region37: #{esim_forward.1} parent=1 // pred_fallthru
      _
    // Predicated region
    $region38: #{esim_forward.1} parent=1 // pred_check
      _
    $region39: #{esim_forward.1} parent=1 // pred_check_branch
      %41 = sbr.rel (0) target = $region41
    $region40: #{esim_forward.1} parent=1 // pred_region
      _
    $region41: #{esim_forward.1} parent=1 // pred_fallthru
      _
    // Predicated region
    $region42: #{esim_forward.1} parent=1 // pred_check
      _
    $region43: #{esim_forward.1} parent=1 // pred_check_branch
      %43 = sbr.rel (0) target = $region45
    $region44: #{esim_forward.1} parent=1 // pred_region
      _
    $region45: #{esim_forward.1} parent=1 // pred_fallthru
      _
    // Predicated region
    $region46: #{esim_forward.1} parent=1 // pred_check
      _
    $region47: #{esim_forward.1} parent=1 // pred_check_branch
      %45 = sbr.rel (0) target = $region49
    $region48: #{esim_forward.1} parent=1 // pred_region
      _
    $region49: #{esim_forward.1} parent=1 // pred_fallthru
      _
    // Predicated region
    $region50: #{esim_forward.1} parent=1 // pred_check
      _
    $region51: #{esim_forward.1} parent=1 // pred_check_branch
      %47 = sbr.rel (0) target = $region53
    $region52: #{esim_forward.1} parent=1 // pred_region
      _
    $region53: #{esim_forward.1} parent=1 // pred_fallthru
      _
    // Predicated region
    $region54: #{esim_forward.1} parent=1 // pred_check
      _
    $region55: #{esim_forward.1} parent=1 // pred_check_branch
      %49 = sbr.rel (0) target = $region57
    $region56: #{esim_forward.1} parent=1 // pred_region
      _
    $region57: #{esim_forward.1} parent=1 // pred_fallthru
      _
    // Predicated region
    $region58: #{esim_forward.1} parent=1 // pred_check
      _
    $region59: #{esim_forward.1} parent=1 // pred_check_branch
      %51 = sbr.rel (0) target = $region61
    $region60: #{esim_forward.1} parent=1 // pred_region
      _
    $region61: #{esim_forward.1} parent=1 // pred_fallthru
      _
    // Predicated region
    $region62: #{esim_forward.1} parent=1 // pred_check
      _
    $region63: #{esim_forward.1} parent=1 // pred_check_branch
      %53 = sbr.rel (0) target = $region65
    $region64: #{esim_forward.1} parent=1 // pred_region
      _
    $region65: #{esim_forward.1} parent=1 // pred_fallthru
      _
    %v55 = vld [vmem:[%s0] sm:$0xff]
    %v56 = vld [vmem:[%s0 + $0x8] sm:$0xff]
    %v57 = vld [vmem:[%s0 + $0x10] sm:$0xff]
    %v58 = vld [vmem:[%s0 + $0x18] sm:$0xff]
    %v59 = vlaneseq
    %v60 = vand.u32 %v59, 127
    %61 = vset.pattern.permute.xlu0 0
    %62 = vperm.xlu0 %61, %v55
    %v63 = vpop.permute.xlu0 %62
    %64 = vset.pattern.permute.xlu0 0
    %65 = vperm.xlu0 %64, %v56
    %v66 = vpop.permute.xlu0 %65
    %67 = vset.pattern.permute.xlu0 0
    %68 = vperm.xlu0 %67, %v57
    %v69 = vpop.permute.xlu0 %68
    %70 = vset.pattern.permute.xlu0 0
    %71 = vperm.xlu0 %70, %v58
    %v72 = vpop.permute.xlu0 %71
    %vm73 = vcmp.eq.s32.totalorder %v60, %v63
    %vm74 = vcmp.eq.s32.totalorder %v60, %v66
    %vm75 = vcmp.eq.s32.totalorder %v60, %v69
    %vm76 = vcmp.eq.s32.totalorder %v60, %v72
    %v77 = vsel %vm73, 1, 0
    %v78 = vsel %vm74, 1, 0
    %v79 = vsel %vm75, 1, 0
    %v80 = vsel %vm76, 1, 0
    %v81 = vcvt.s32.f32 %v77
    %v82 = vcvt.s32.f32 %v78
    %v83 = vcvt.s32.f32 %v79
    %v84 = vcvt.s32.f32 %v80
    %v85 = vld [vmem:[%s3] sm:$0xff]
    %v86 = vld [vmem:[%s3 + $0x8] sm:$0xff]
    %v87 = vld [vmem:[%s3 + $0x10] sm:$0xff]
    %v88 = vld [vmem:[%s3 + $0x18] sm:$0xff]
    %v89 = vld [vmem:[%s3 + $0x20] sm:$0xff]
    %v90 = vld [vmem:[%s3 + $0x28] sm:$0xff]
    %v91 = vld [vmem:[%s3 + $0x30] sm:$0x3]
    %vm92 = vcmask 408576
    %v94 = vsel %vm92, %v81, 0
    %v97 = vsel %vm92, %v82, 0
    %v100 = vsel %vm92, %v83, 0
    %v103 = vsel %vm92, %v84, 0
    %vm105 = vcmask 1041408
    %v107 = vsel %vm105, %v91, 0
    %109 = vmatpush.msra.mxu0 0.0
    %110 = vmatpush.msra.mxu0 0.0
    %111 = vmatpush.msra.mxu0 0.0
    %112 = vmatpush.msra.mxu0 0.0
    %113 = vmatpush.msra.mxu0 0.0
    %114 = vmatpush.msra.mxu0 0.0
    %115 = vmatpush.msra.mxu0 0.0
    %116 = vmatpush.msra.mxu0 0.0
    %117 = vmatpush.msra.mxu0 0.0
    %118 = vmatpush.msra.mxu0 %v107
    %119 = vmatpush.msra.mxu0 %v90
    %120 = vmatpush.msra.mxu0 %v89
    %121 = vmatpush.msra.mxu0 %v88
    %122 = vmatpush.msra.mxu0 %v87
    %123 = vmatpush.msra.mxu0 %v86
    %124 = vmatpush.msra.mxu0 %v85
    %125 = vmatmul.f32.gmra.mxu0 %v94
    %v126 = vpop.f32.mrf.mxu0
    %v127 = vadd.f32 0.0, %v126
    %128 = vmatmul.f32.gmra.mxu0 %v97
    %v129 = vpop.f32.mrf.mxu0
    %v130 = vadd.f32 0.0, %v129
    %131 = vmatmul.f32.gmra.mxu0 %v100
    %v132 = vpop.f32.mrf.mxu0
    %v133 = vadd.f32 0.0, %v132
    %134 = vmatmul.f32.gmra.mxu0 %v103
    %v135 = vpop.f32.mrf.mxu0
    %v136 = vadd.f32 0.0, %v135
    %137 = vdwg.mxu0
    %v138 = vld [vmem:[%s4] sm:$0xff]
    %v139 = vld [vmem:[%s4 + $0x8] sm:$0xff]
    %v140 = vld [vmem:[%s4 + $0x10] sm:$0xff]
    %v141 = vld [vmem:[%s4 + $0x18] sm:$0xff]
    %v142 = vld [vmem:[%s5] sm:$0xff]
    %v143 = vld [vmem:[%s5 + $0x8] sm:$0xff]
    %v144 = vld [vmem:[%s5 + $0x10] sm:$0xff]
    %v145 = vld [vmem:[%s5 + $0x18] sm:$0xff]
    %v146 = vld [vmem:[%s6] sm:$0x3]
    %v147 = vpack.c.bf16 %v130, %v127
    %v148 = vpack.c.bf16 %v136, %v133
    %v150 = vperm.slane %v146, 0
    %v151 = vperm.slane %v146, 1
    %v158 = vunpack.c.l.b16 %v138
    %v159 = vunpack.c.h.b16 %v138
    %v160 = vunpack.c.l.b16 %v139
    %v161 = vunpack.c.h.b16 %v139
    %v162 = vunpack.c.l.b16 %v140
    %v163 = vunpack.c.h.b16 %v140
    %v164 = vunpack.c.l.b16 %v141
    %v165 = vunpack.c.h.b16 %v141
    %v166 = vpack.c.b16 %v160, %v158
    %v167 = vpack.c.b16 %v161, %v159
    %v168 = vpack.c.b16 %v164, %v162
    %v169 = vpack.c.b16 %v165, %v163
    %vm174 = vcmask 261120
    %v176 = vsel %vm174, %v147, 0
    %v179 = vsel %vm174, %v148, 0
    %181 = vmatpush.bf16.msra.mxu0 0
    %182 = vmatpush.bf16.msra.mxu0 0
    %183 = vmatpush.bf16.msra.mxu0 0
    %184 = vmatpush.bf16.msra.mxu0 0
    %185 = vmatpush.bf16.msra.mxu0 0
    %186 = vmatpush.bf16.msra.mxu0 0
    %187 = vmatpush.bf16.msra.mxu0 %v168
    %188 = vmatpush.bf16.msra.mxu0 %v166
    %189 = vmatmul.bf16.gmra.mxu0 %v176
    %v190 = vpop.f32.mrf.mxu0
    %v191 = vadd.f32 %v150, %v190
    %v192 = vpop.f32.mrf.mxu0
    %v193 = vadd.f32 %v150, %v192
    %194 = vmatmul.bf16.gmra.mxu0 %v179
    %v195 = vpop.f32.mrf.mxu0
    %v196 = vadd.f32 %v150, %v195
    %v197 = vpop.f32.mrf.mxu0
    %v198 = vadd.f32 %v150, %v197
    %199 = vdwg.mxu0
    %200 = vmatpush.bf16.msra.mxu0 0
    %201 = vmatpush.bf16.msra.mxu0 0
    %202 = vmatpush.bf16.msra.mxu0 0
    %203 = vmatpush.bf16.msra.mxu0 0
    %204 = vmatpush.bf16.msra.mxu0 0
    %205 = vmatpush.bf16.msra.mxu0 0
    %206 = vmatpush.bf16.msra.mxu0 %v169
    %207 = vmatpush.bf16.msra.mxu0 %v167
    %208 = vmatmul.bf16.gmra.mxu0 %v176
    %v209 = vpop.f32.mrf.mxu0
    %v210 = vadd.f32 %v151, %v209
    %v211 = vpop.f32.mrf.mxu0
    %v212 = vadd.f32 %v151, %v211
    %213 = vmatmul.bf16.gmra.mxu0 %v179
    %v214 = vpop.f32.mrf.mxu0
    %v215 = vadd.f32 %v151, %v214
    %v216 = vpop.f32.mrf.mxu0
    %v217 = vadd.f32 %v151, %v216
    %218 = vdwg.mxu0
    %v223 = vunpack.c.l.b16 %v142
    %v224 = vunpack.c.l.b16 %v143
    %v225 = vunpack.c.l.b16 %v144
    %v226 = vunpack.c.l.b16 %v145
    %v227 = vpack.c.b16 %v224, %v223
    %v228 = vpack.c.b16 %v226, %v225
    %v232 = vsel %vm174, 0, 0
    %234 = vmatpush.bf16.msra.mxu0 0
    %235 = vmatpush.bf16.msra.mxu0 0
    %236 = vmatpush.bf16.msra.mxu0 0
    %237 = vmatpush.bf16.msra.mxu0 0
    %238 = vmatpush.bf16.msra.mxu0 0
    %239 = vmatpush.bf16.msra.mxu0 0
    %240 = vmatpush.bf16.msra.mxu0 %v228
    %241 = vmatpush.bf16.msra.mxu0 %v227
    %242 = vmatmul.bf16.gmra.mxu0 %v232
    %v243 = vpop.f32.mrf.mxu0
    %v244 = vadd.f32 0.0, %v243
    %v245 = vpop.f32.mrf.mxu0
    %246 = vdwg.mxu0
    %v248 = vrot.slane %v244, 1
    %v249 = vrot.slane %v244, 2
    %v250 = vrot.slane %v244, 3
    %v255 = vadd.f32 %v191, %v244
    %v256 = vadd.f32 %v193, %v248
    %v257 = vadd.f32 %v196, %v249
    %v258 = vadd.f32 %v198, %v250
    %v259 = vunpack.c.h.b16 %v142
    %v260 = vunpack.c.h.b16 %v143
    %v261 = vunpack.c.h.b16 %v144
    %v262 = vunpack.c.h.b16 %v145
    %v263 = vpack.c.b16 %v260, %v259
    %v264 = vpack.c.b16 %v262, %v261
    %267 = vmatpush.bf16.msra.mxu0 0
    %268 = vmatpush.bf16.msra.mxu0 0
    %269 = vmatpush.bf16.msra.mxu0 0
    %270 = vmatpush.bf16.msra.mxu0 0
    %271 = vmatpush.bf16.msra.mxu0 0
    %272 = vmatpush.bf16.msra.mxu0 0
    %273 = vmatpush.bf16.msra.mxu0 %v264
    %274 = vmatpush.bf16.msra.mxu0 %v263
    %275 = vmatmul.bf16.gmra.mxu0 %v232
    %v276 = vpop.f32.mrf.mxu0
    %v277 = vadd.f32 0.0, %v276
    %v278 = vpop.f32.mrf.mxu0
    %279 = vdwg.mxu0
    %v281 = vrot.slane %v277, 1
    %v282 = vrot.slane %v277, 2
    %v283 = vrot.slane %v277, 3
    %v284 = vrot.slane %v277, 4
    %v289 = vadd.f32 %v210, %v281
    %v290 = vadd.f32 %v212, %v282
    %v291 = vadd.f32 %v215, %v283
    %v292 = vadd.f32 %v217, %v284
    %v293 = vxor.u32 %v255, 2147483648
    %v294 = vxor.u32 %v256, 2147483648
    %v295 = vxor.u32 %v257, 2147483648
    %v296 = vxor.u32 %v258, 2147483648
    %v297 = vmul.f32 %v293, 1.442695
    %v298 = vpow.pop %v297
    %v299 = vmul.f32 %v294, 1.442695
    %v300 = vpow.pop %v299
    %v301 = vmul.f32 %v295, 1.442695
    %v302 = vpow.pop %v301
    %v303 = vmul.f32 %v296, 1.442695
    %v304 = vpow.pop %v303
    %v305 = vadd.f32 %v298, 1.0
    %v306 = vadd.f32 %v300, 1.0
    %v307 = vadd.f32 %v302, 1.0
    %v308 = vadd.f32 %v304, 1.0
    %v309 = vrcp.pop %v305
    %v310 = vmul.f32 %v305, %v309
    %v311 = vsub.f32 1.0, %v310
    %v312 = vmul.f32 %v309, %v311
    %v313 = vadd.f32 %v309, %v312
    %vm314 = vweird.f32 %v305
    %vm315 = vweird.f32 %v309
    %vm316 = vmor %vm314, %vm315
    %v317 = vsel %vm316, %v309, %v313
    %v318 = vand.u32 2147483647, %v305
    %vm319 = vcmp.eq.f32.partialorder %v318, 8.507059e+37
    %v320 = vand.u32 %v305, 2147483648
    %v321 = vor.u32 1.1754944e-38, %v320
    %v322 = vsel %vm319, %v321, %v317
    %v323 = vmul.f32 1.0, %v322
    %v324 = vrcp.pop %v306
    %v325 = vmul.f32 %v306, %v324
    %v326 = vsub.f32 1.0, %v325
    %v327 = vmul.f32 %v324, %v326
    %v328 = vadd.f32 %v324, %v327
    %vm329 = vweird.f32 %v306
    %vm330 = vweird.f32 %v324
    %vm331 = vmor %vm329, %vm330
    %v332 = vsel %vm331, %v324, %v328
    %v333 = vand.u32 2147483647, %v306
    %vm334 = vcmp.eq.f32.partialorder %v333, 8.507059e+37
    %v335 = vand.u32 %v306, 2147483648
    %v336 = vor.u32 1.1754944e-38, %v335
    %v337 = vsel %vm334, %v336, %v332
    %v338 = vmul.f32 1.0, %v337
    %v339 = vrcp.pop %v307
    %v340 = vmul.f32 %v307, %v339
    %v341 = vsub.f32 1.0, %v340
    %v342 = vmul.f32 %v339, %v341
    %v343 = vadd.f32 %v339, %v342
    %vm344 = vweird.f32 %v307
    %vm345 = vweird.f32 %v339
    %vm346 = vmor %vm344, %vm345
    %v347 = vsel %vm346, %v339, %v343
    %v348 = vand.u32 2147483647, %v307
    %vm349 = vcmp.eq.f32.partialorder %v348, 8.507059e+37
    %v350 = vand.u32 %v307, 2147483648
    %v351 = vor.u32 1.1754944e-38, %v350
    %v352 = vsel %vm349, %v351, %v347
    %v353 = vmul.f32 1.0, %v352
    %v354 = vrcp.pop %v308
    %v355 = vmul.f32 %v308, %v354
    %v356 = vsub.f32 1.0, %v355
    %v357 = vmul.f32 %v354, %v356
    %v358 = vadd.f32 %v354, %v357
    %vm359 = vweird.f32 %v308
    %vm360 = vweird.f32 %v354
    %vm361 = vmor %vm359, %vm360
    %v362 = vsel %vm361, %v354, %v358
    %v363 = vand.u32 2147483647, %v308
    %vm364 = vcmp.eq.f32.partialorder %v363, 8.507059e+37
    %v365 = vand.u32 %v308, 2147483648
    %v366 = vor.u32 1.1754944e-38, %v365
    %v367 = vsel %vm364, %v366, %v362
    %v368 = vmul.f32 1.0, %v367
    %v369 = vtanh.pop %v255
    %v370 = vtanh.pop %v256
    %v371 = vtanh.pop %v257
    %v372 = vtanh.pop %v258
    %v373 = vmul.f32 %v323, 0.0
    %v374 = vmul.f32 %v338, 0.0
    %v375 = vmul.f32 %v353, 0.0
    %v376 = vmul.f32 %v368, 0.0
    %381 = vrot.lane.b32.xlu0 %v369, 64
    %v382 = vpop.permute.xlu0 %381
    %383 = vrot.lane.b32.xlu0 %v370, 64
    %v384 = vpop.permute.xlu0 %383
    %385 = vrot.lane.b32.xlu0 %v371, 64
    %v386 = vpop.permute.xlu0 %385
    %387 = vrot.lane.b32.xlu0 %v372, 64
    %v388 = vpop.permute.xlu0 %387
    %v393 = vmul.f32 %v323, %v382
    %v394 = vmul.f32 %v338, %v384
    %v395 = vmul.f32 %v353, %v386
    %v396 = vmul.f32 %v368, %v388
    %401 = vrot.lane.b32.xlu0 %v393, 32
    %v402 = vpop.permute.xlu0 %401
    %403 = vrot.lane.b32.xlu0 %v394, 32
    %v404 = vpop.permute.xlu0 %403
    %405 = vrot.lane.b32.xlu0 %v395, 32
    %v406 = vpop.permute.xlu0 %405
    %407 = vrot.lane.b32.xlu0 %v396, 32
    %v408 = vpop.permute.xlu0 %407
    %v413 = vadd.f32 %v373, %v402
    %v414 = vadd.f32 %v374, %v404
    %v415 = vadd.f32 %v375, %v406
    %v416 = vadd.f32 %v376, %v408
    %v417 = vtanh.pop %v413
    %v418 = vtanh.pop %v414
    %v419 = vtanh.pop %v415
    %v420 = vtanh.pop %v416
    %425 = vrot.lane.b32.xlu0 %v417, 64
    %v426 = vpop.permute.xlu0 %425
    %427 = vrot.lane.b32.xlu0 %v418, 64
    %v428 = vpop.permute.xlu0 %427
    %429 = vrot.lane.b32.xlu0 %v419, 64
    %v430 = vpop.permute.xlu0 %429
    %431 = vrot.lane.b32.xlu0 %v420, 64
    %v432 = vpop.permute.xlu0 %431
    %v437 = vmul.f32 %v323, %v426
    %v438 = vmul.f32 %v338, %v428
    %v439 = vmul.f32 %v353, %v430
    %v440 = vmul.f32 %v368, %v432
    %v441 = vxor.u32 %v289, 2147483648
    %v442 = vxor.u32 %v290, 2147483648
    %v443 = vxor.u32 %v291, 2147483648
    %v444 = vxor.u32 %v292, 2147483648
    %v445 = vmul.f32 %v441, 1.442695
    %v446 = vpow.pop %v445
    %v447 = vmul.f32 %v442, 1.442695
    %v448 = vpow.pop %v447
    %v449 = vmul.f32 %v443, 1.442695
    %v450 = vpow.pop %v449
    %v451 = vmul.f32 %v444, 1.442695
    %v452 = vpow.pop %v451
    %v453 = vadd.f32 %v446, 1.0
    %v454 = vadd.f32 %v448, 1.0
    %v455 = vadd.f32 %v450, 1.0
    %v456 = vadd.f32 %v452, 1.0
    %v457 = vrcp.pop %v453
    %v458 = vmul.f32 %v453, %v457
    %v459 = vsub.f32 1.0, %v458
    %v460 = vmul.f32 %v457, %v459
    %v461 = vadd.f32 %v457, %v460
    %vm462 = vweird.f32 %v453
    %vm463 = vweird.f32 %v457
    %vm464 = vmor %vm462, %vm463
    %v465 = vsel %vm464, %v457, %v461
    %v466 = vand.u32 2147483647, %v453
    %vm467 = vcmp.eq.f32.partialorder %v466, 8.507059e+37
    %v468 = vand.u32 %v453, 2147483648
    %v469 = vor.u32 1.1754944e-38, %v468
    %v470 = vsel %vm467, %v469, %v465
    %v471 = vmul.f32 1.0, %v470
    %v472 = vrcp.pop %v454
    %v473 = vmul.f32 %v454, %v472
    %v474 = vsub.f32 1.0, %v473
    %v475 = vmul.f32 %v472, %v474
    %v476 = vadd.f32 %v472, %v475
    %vm477 = vweird.f32 %v454
    %vm478 = vweird.f32 %v472
    %vm479 = vmor %vm477, %vm478
    %v480 = vsel %vm479, %v472, %v476
    %v481 = vand.u32 2147483647, %v454
    %vm482 = vcmp.eq.f32.partialorder %v481, 8.507059e+37
    %v483 = vand.u32 %v454, 2147483648
    %v484 = vor.u32 1.1754944e-38, %v483
    %v485 = vsel %vm482, %v484, %v480
    %v486 = vmul.f32 1.0, %v485
    %v487 = vrcp.pop %v455
    %v488 = vmul.f32 %v455, %v487
    %v489 = vsub.f32 1.0, %v488
    %v490 = vmul.f32 %v487, %v489
    %v491 = vadd.f32 %v487, %v490
    %vm492 = vweird.f32 %v455
    %vm493 = vweird.f32 %v487
    %vm494 = vmor %vm492, %vm493
    %v495 = vsel %vm494, %v487, %v491
    %v496 = vand.u32 2147483647, %v455
    %vm497 = vcmp.eq.f32.partialorder %v496, 8.507059e+37
    %v498 = vand.u32 %v455, 2147483648
    %v499 = vor.u32 1.1754944e-38, %v498
    %v500 = vsel %vm497, %v499, %v495
    %v501 = vmul.f32 1.0, %v500
    %v502 = vrcp.pop %v456
    %v503 = vmul.f32 %v456, %v502
    %v504 = vsub.f32 1.0, %v503
    %v505 = vmul.f32 %v502, %v504
    %v506 = vadd.f32 %v502, %v505
    %vm507 = vweird.f32 %v456
    %vm508 = vweird.f32 %v502
    %vm509 = vmor %vm507, %vm508
    %v510 = vsel %vm509, %v502, %v506
    %v511 = vand.u32 2147483647, %v456
    %vm512 = vcmp.eq.f32.partialorder %v511, 8.507059e+37
    %v513 = vand.u32 %v456, 2147483648
    %v514 = vor.u32 1.1754944e-38, %v513
    %v515 = vsel %vm512, %v514, %v510
    %v516 = vmul.f32 1.0, %v515
    %v517 = vtanh.pop %v289
    %v518 = vtanh.pop %v290
    %v519 = vtanh.pop %v291
    %v520 = vtanh.pop %v292
    %v521 = vmul.f32 %v471, 0.0
    %v522 = vmul.f32 %v486, 0.0
    %v523 = vmul.f32 %v501, 0.0
    %v524 = vmul.f32 %v516, 0.0
    %529 = vrot.lane.b32.xlu0 %v517, 64
    %v530 = vpop.permute.xlu0 %529
    %531 = vrot.lane.b32.xlu0 %v518, 64
    %v532 = vpop.permute.xlu0 %531
    %533 = vrot.lane.b32.xlu0 %v519, 64
    %v534 = vpop.permute.xlu0 %533
    %535 = vrot.lane.b32.xlu0 %v520, 64
    %v536 = vpop.permute.xlu0 %535
    %v541 = vmul.f32 %v471, %v530
    %v542 = vmul.f32 %v486, %v532
    %v543 = vmul.f32 %v501, %v534
    %v544 = vmul.f32 %v516, %v536
    %549 = vrot.lane.b32.xlu0 %v541, 32
    %v550 = vpop.permute.xlu0 %549
    %551 = vrot.lane.b32.xlu0 %v542, 32
    %v552 = vpop.permute.xlu0 %551
    %553 = vrot.lane.b32.xlu0 %v543, 32
    %v554 = vpop.permute.xlu0 %553
    %555 = vrot.lane.b32.xlu0 %v544, 32
    %v556 = vpop.permute.xlu0 %555
    %v561 = vadd.f32 %v521, %v550
    %v562 = vadd.f32 %v522, %v552
    %v563 = vadd.f32 %v523, %v554
    %v564 = vadd.f32 %v524, %v556
    %v565 = vtanh.pop %v561
    %v566 = vtanh.pop %v562
    %v567 = vtanh.pop %v563
    %v568 = vtanh.pop %v564
    %573 = vrot.lane.b32.xlu0 %v565, 64
    %v574 = vpop.permute.xlu0 %573
    %575 = vrot.lane.b32.xlu0 %v566, 64
    %v576 = vpop.permute.xlu0 %575
    %577 = vrot.lane.b32.xlu0 %v567, 64
    %v578 = vpop.permute.xlu0 %577
    %579 = vrot.lane.b32.xlu0 %v568, 64
    %v580 = vpop.permute.xlu0 %579
    %v585 = vmul.f32 %v471, %v574
    %v586 = vmul.f32 %v486, %v576
    %v587 = vmul.f32 %v501, %v578
    %v588 = vmul.f32 %v516, %v580
    %593 = vrot.lane.b32.xlu0 %v437, 32
    %v594 = vpop.permute.xlu0 %593
    %595 = vrot.lane.b32.xlu0 %v438, 32
    %v596 = vpop.permute.xlu0 %595
    %597 = vrot.lane.b32.xlu0 %v439, 32
    %v598 = vpop.permute.xlu0 %597
    %599 = vrot.lane.b32.xlu0 %v440, 32
    %v600 = vpop.permute.xlu0 %599
    %vm605 = vcmask 253952
    %606 = vst.msk [vmem:[#allocation2] sm:$0x1] %vm605, %v594
    %607 = vst.msk [vmem:[#allocation2 + $0x8] sm:$0x1] %vm605, %v596
    %608 = vst.msk [vmem:[#allocation2 + $0x10] sm:$0x1] %vm605, %v598
    %609 = vst.msk [vmem:[#allocation2 + $0x18] sm:$0x1] %vm605, %v600
    %614 = vrot.lane.b32.xlu0 %v585, 64
    %v615 = vpop.permute.xlu0 %614
    %616 = vrot.lane.b32.xlu0 %v586, 64
    %v617 = vpop.permute.xlu0 %616
    %618 = vrot.lane.b32.xlu0 %v587, 64
    %v619 = vpop.permute.xlu0 %618
    %620 = vrot.lane.b32.xlu0 %v588, 64
    %v621 = vpop.permute.xlu0 %620
    %vm626 = vcmask 523527
    %627 = vst.msk [vmem:[#allocation2] sm:$0x80] %vm626, %v615
    %628 = vst.msk [vmem:[#allocation2 + $0x8] sm:$0x80] %vm626, %v617
    %629 = vst.msk [vmem:[#allocation2 + $0x10] sm:$0x80] %vm626, %v619
    %630 = vst.msk [vmem:[#allocation2 + $0x18] sm:$0x80] %vm626, %v621
    %v631 = vpack.c.bf16 %v437, %v437
    %v632 = vpack.c.bf16 %v438, %v438
    %v633 = vpack.c.bf16 %v439, %v439
    %v634 = vpack.c.bf16 %v440, %v440
    %v639 = vunpack.c.l.b16 %v631
    %v640 = vunpack.c.l.b16 %v632
    %v641 = vunpack.c.l.b16 %v633
    %v642 = vunpack.c.l.b16 %v634
    %v643 = vrot.slane %v640, 7
    %vm644 = vcmask 1041409
    %v645 = vsel %vm644, %v643, %v639
    %v646 = vrot.slane %v641, 6
    %vm647 = vcmask 1042434
    %v648 = vsel %vm647, %v646, %v645
    %v649 = vrot.slane %v642, 5
    %vm650 = vcmask 1043459
    %v651 = vsel %vm650, %v649, %v648
    %v652 = vpack.c.b16 %v651, %v651
    %653 = vrot.lane.b32.xlu0 %v652, 32
    %v654 = vpop.permute.xlu0 %653
    %v656 = vsel %vm174, %v654, 0
    %658 = vmatpush.bf16.msra.mxu0 0
    %659 = vmatpush.bf16.msra.mxu0 0
    %660 = vmatpush.bf16.msra.mxu0 0
    %661 = vmatpush.bf16.msra.mxu0 0
    %662 = vmatpush.bf16.msra.mxu0 0
    %663 = vmatpush.bf16.msra.mxu0 0
    %664 = vmatpush.bf16.msra.mxu0 %v228
    %665 = vmatpush.bf16.msra.mxu0 %v227
    %666 = vmatmul.bf16.gmra.mxu0 %v656
    %v667 = vpop.f32.mrf.mxu0
    %v668 = vadd.f32 0.0, %v667
    %v669 = vpop.f32.mrf.mxu0
    %670 = vdwg.mxu0
    %v672 = vrot.slane %v668, 7
    %v673 = vrot.slane %v668, 1
    %v674 = vrot.slane %v668, 2
    %v679 = vadd.f32 %v191, %v672
    %v680 = vadd.f32 %v193, %v668
    %v681 = vadd.f32 %v196, %v673
    %v682 = vadd.f32 %v198, %v674
    %v683 = vpack.c.bf16 %v585, %v585
    %v684 = vpack.c.bf16 %v586, %v586
    %v685 = vpack.c.bf16 %v587, %v587
    %v686 = vpack.c.bf16 %v588, %v588
    %v691 = vunpack.c.l.b16 %v683
    %v692 = vunpack.c.l.b16 %v684
    %v693 = vunpack.c.l.b16 %v685
    %v694 = vunpack.c.l.b16 %v686
    %v695 = vrot.slane %v691, 7
    %v696 = vrot.slane %v692, 6
    %v697 = vsel %vm644, %v696, %v695
    %v698 = vrot.slane %v693, 5
    %v699 = vsel %vm647, %v698, %v697
    %v700 = vrot.slane %v694, 4
    %v701 = vsel %vm650, %v700, %v699
    %v702 = vpack.c.b16 %v701, %v701
    %703 = vrot.lane.b32.xlu0 %v702, 32
    %v704 = vpop.permute.xlu0 %703
    %v706 = vsel %vm174, %v704, 0
    %708 = vmatpush.bf16.msra.mxu0 0
    %709 = vmatpush.bf16.msra.mxu0 0
    %710 = vmatpush.bf16.msra.mxu0 0
    %711 = vmatpush.bf16.msra.mxu0 0
    %712 = vmatpush.bf16.msra.mxu0 0
    %713 = vmatpush.bf16.msra.mxu0 0
    %714 = vmatpush.bf16.msra.mxu0 %v264
    %715 = vmatpush.bf16.msra.mxu0 %v263
    %716 = vmatmul.bf16.gmra.mxu0 %v706
    %v717 = vpop.f32.mrf.mxu0
    %v718 = vadd.f32 0.0, %v717
    %v719 = vpop.f32.mrf.mxu0
    %720 = vdwg.mxu0
    %v722 = vrot.slane %v718, 2
    %v723 = vrot.slane %v718, 3
    %v724 = vrot.slane %v718, 4
    %v725 = vrot.slane %v718, 5
    %v730 = vadd.f32 %v210, %v722
    %v731 = vadd.f32 %v212, %v723
    %v732 = vadd.f32 %v215, %v724
    %v733 = vadd.f32 %v217, %v725
    %v734 = vxor.u32 %v679, 2147483648
    %v735 = vxor.u32 %v680, 2147483648
    %v736 = vxor.u32 %v681, 2147483648
    %v737 = vxor.u32 %v682, 2147483648
    %v738 = vmul.f32 %v734, 1.442695
    %v739 = vpow.pop %v738
    %v740 = vmul.f32 %v735, 1.442695
    %v741 = vpow.pop %v740
    %v742 = vmul.f32 %v736, 1.442695
    %v743 = vpow.pop %v742
    %v744 = vmul.f32 %v737, 1.442695
    %v745 = vpow.pop %v744
    %v746 = vadd.f32 %v739, 1.0
    %v747 = vadd.f32 %v741, 1.0
    %v748 = vadd.f32 %v743, 1.0
    %v749 = vadd.f32 %v745, 1.0
    %v750 = vrcp.pop %v746
    %v751 = vmul.f32 %v746, %v750
    %v752 = vsub.f32 1.0, %v751
    %v753 = vmul.f32 %v750, %v752
    %v754 = vadd.f32 %v750, %v753
    %vm755 = vweird.f32 %v746
    %vm756 = vweird.f32 %v750
    %vm757 = vmor %vm755, %vm756
    %v758 = vsel %vm757, %v750, %v754
    %v759 = vand.u32 2147483647, %v746
    %vm760 = vcmp.eq.f32.partialorder %v759, 8.507059e+37
    %v761 = vand.u32 %v746, 2147483648
    %v762 = vor.u32 1.1754944e-38, %v761
    %v763 = vsel %vm760, %v762, %v758
    %v764 = vmul.f32 1.0, %v763
    %v765 = vrcp.pop %v747
    %v766 = vmul.f32 %v747, %v765
    %v767 = vsub.f32 1.0, %v766
    %v768 = vmul.f32 %v765, %v767
    %v769 = vadd.f32 %v765, %v768
    %vm770 = vweird.f32 %v747
    %vm771 = vweird.f32 %v765
    %vm772 = vmor %vm770, %vm771
    %v773 = vsel %vm772, %v765, %v769
    %v774 = vand.u32 2147483647, %v747
    %vm775 = vcmp.eq.f32.partialorder %v774, 8.507059e+37
    %v776 = vand.u32 %v747, 2147483648
    %v777 = vor.u32 1.1754944e-38, %v776
    %v778 = vsel %vm775, %v777, %v773
    %v779 = vmul.f32 1.0, %v778
    %v780 = vrcp.pop %v748
    %v781 = vmul.f32 %v748, %v780
    %v782 = vsub.f32 1.0, %v781
    %v783 = vmul.f32 %v780, %v782
    %v784 = vadd.f32 %v780, %v783
    %vm785 = vweird.f32 %v748
    %vm786 = vweird.f32 %v780
    %vm787 = vmor %vm785, %vm786
    %v788 = vsel %vm787, %v780, %v784
    %v789 = vand.u32 2147483647, %v748
    %vm790 = vcmp.eq.f32.partialorder %v789, 8.507059e+37
    %v791 = vand.u32 %v748, 2147483648
    %v792 = vor.u32 1.1754944e-38, %v791
    %v793 = vsel %vm790, %v792, %v788
    %v794 = vmul.f32 1.0, %v793
    %v795 = vrcp.pop %v749
    %v796 = vmul.f32 %v749, %v795
    %v797 = vsub.f32 1.0, %v796
    %v798 = vmul.f32 %v795, %v797
    %v799 = vadd.f32 %v795, %v798
    %vm800 = vweird.f32 %v749
    %vm801 = vweird.f32 %v795
    %vm802 = vmor %vm800, %vm801
    %v803 = vsel %vm802, %v795, %v799
    %v804 = vand.u32 2147483647, %v749
    %vm805 = vcmp.eq.f32.partialorder %v804, 8.507059e+37
    %v806 = vand.u32 %v749, 2147483648
    %v807 = vor.u32 1.1754944e-38, %v806
    %v808 = vsel %vm805, %v807, %v803
    %v809 = vmul.f32 1.0, %v808
    %v810 = vtanh.pop %v679
    %v811 = vtanh.pop %v680
    %v812 = vtanh.pop %v681
    %v813 = vtanh.pop %v682
    %v818 = vrot.slane %v413, 7
    %v819 = vrot.slane %v414, 7
    %v820 = vrot.slane %v415, 7
    %v821 = vrot.slane %v416, 7
    %v826 = vmul.f32 %v764, %v818
    %v827 = vmul.f32 %v779, %v819
    %v828 = vmul.f32 %v794, %v820
    %v829 = vmul.f32 %v809, %v821
    %834 = vrot.lane.b32.xlu0 %v810, 64
    %v835 = vpop.permute.xlu0 %834
    %836 = vrot.lane.b32.xlu0 %v811, 64
    %v837 = vpop.permute.xlu0 %836
    %838 = vrot.lane.b32.xlu0 %v812, 64
    %v839 = vpop.permute.xlu0 %838
    %840 = vrot.lane.b32.xlu0 %v813, 64
    %v841 = vpop.permute.xlu0 %840
    %v846 = vmul.f32 %v764, %v835
    %v847 = vmul.f32 %v779, %v837
    %v848 = vmul.f32 %v794, %v839
    %v849 = vmul.f32 %v809, %v841
    %854 = vrot.lane.b32.xlu0 %v846, 32
    %v855 = vpop.permute.xlu0 %854
    %856 = vrot.lane.b32.xlu0 %v847, 32
    %v857 = vpop.permute.xlu0 %856
    %858 = vrot.lane.b32.xlu0 %v848, 32
    %v859 = vpop.permute.xlu0 %858
    %860 = vrot.lane.b32.xlu0 %v849, 32
    %v861 = vpop.permute.xlu0 %860
    %v866 = vadd.f32 %v826, %v855
    %v867 = vadd.f32 %v827, %v857
    %v868 = vadd.f32 %v828, %v859
    %v869 = vadd.f32 %v829, %v861
    %v870 = vtanh.pop %v866
    %v871 = vtanh.pop %v867
    %v872 = vtanh.pop %v868
    %v873 = vtanh.pop %v869
    %878 = vrot.lane.b32.xlu0 %v870, 64
    %v879 = vpop.permute.xlu0 %878
    %880 = vrot.lane.b32.xlu0 %v871, 64
    %v881 = vpop.permute.xlu0 %880
    %882 = vrot.lane.b32.xlu0 %v872, 64
    %v883 = vpop.permute.xlu0 %882
    %884 = vrot.lane.b32.xlu0 %v873, 64
    %v885 = vpop.permute.xlu0 %884
    %v890 = vmul.f32 %v764, %v879
    %v891 = vmul.f32 %v779, %v881
    %v892 = vmul.f32 %v794, %v883
    %v893 = vmul.f32 %v809, %v885
    %v894 = vxor.u32 %v730, 2147483648
    %v895 = vxor.u32 %v731, 2147483648
    %v896 = vxor.u32 %v732, 2147483648
    %v897 = vxor.u32 %v733, 2147483648
    %v898 = vmul.f32 %v894, 1.442695
    %v899 = vpow.pop %v898
    %v900 = vmul.f32 %v895, 1.442695
    %v901 = vpow.pop %v900
    %v902 = vmul.f32 %v896, 1.442695
    %v903 = vpow.pop %v902
    %v904 = vmul.f32 %v897, 1.442695
    %v905 = vpow.pop %v904
    %v906 = vadd.f32 %v899, 1.0
    %v907 = vadd.f32 %v901, 1.0
    %v908 = vadd.f32 %v903, 1.0
    %v909 = vadd.f32 %v905, 1.0
    %v910 = vrcp.pop %v906
    %v911 = vmul.f32 %v906, %v910
    %v912 = vsub.f32 1.0, %v911
    %v913 = vmul.f32 %v910, %v912
    %v914 = vadd.f32 %v910, %v913
    %vm915 = vweird.f32 %v906
    %vm916 = vweird.f32 %v910
    %vm917 = vmor %vm915, %vm916
    %v918 = vsel %vm917, %v910, %v914
    %v919 = vand.u32 2147483647, %v906
    %vm920 = vcmp.eq.f32.partialorder %v919, 8.507059e+37
    %v921 = vand.u32 %v906, 2147483648
    %v922 = vor.u32 1.1754944e-38, %v921
    %v923 = vsel %vm920, %v922, %v918
    %v924 = vmul.f32 1.0, %v923
    %v925 = vrcp.pop %v907
    %v926 = vmul.f32 %v907, %v925
    %v927 = vsub.f32 1.0, %v926
    %v928 = vmul.f32 %v925, %v927
    %v929 = vadd.f32 %v925, %v928
    %vm930 = vweird.f32 %v907
    %vm931 = vweird.f32 %v925
    %vm932 = vmor %vm930, %vm931
    %v933 = vsel %vm932, %v925, %v929
    %v934 = vand.u32 2147483647, %v907
    %vm935 = vcmp.eq.f32.partialorder %v934, 8.507059e+37
    %v936 = vand.u32 %v907, 2147483648
    %v937 = vor.u32 1.1754944e-38, %v936
    %v938 = vsel %vm935, %v937, %v933
    %v939 = vmul.f32 1.0, %v938
    %v940 = vrcp.pop %v908
    %v941 = vmul.f32 %v908, %v940
    %v942 = vsub.f32 1.0, %v941
    %v943 = vmul.f32 %v940, %v942
    %v944 = vadd.f32 %v940, %v943
    %vm945 = vweird.f32 %v908
    %vm946 = vweird.f32 %v940
    %vm947 = vmor %vm945, %vm946
    %v948 = vsel %vm947, %v940, %v944
    %v949 = vand.u32 2147483647, %v908
    %vm950 = vcmp.eq.f32.partialorder %v949, 8.507059e+37
    %v951 = vand.u32 %v908, 2147483648
    %v952 = vor.u32 1.1754944e-38, %v951
    %v953 = vsel %vm950, %v952, %v948
    %v954 = vmul.f32 1.0, %v953
    %v955 = vrcp.pop %v909
    %v956 = vmul.f32 %v909, %v955
    %v957 = vsub.f32 1.0, %v956
    %v958 = vmul.f32 %v955, %v957
    %v959 = vadd.f32 %v955, %v958
    %vm960 = vweird.f32 %v909
    %vm961 = vweird.f32 %v955
    %vm962 = vmor %vm960, %vm961
    %v963 = vsel %vm962, %v955, %v959
    %v964 = vand.u32 2147483647, %v909
    %vm965 = vcmp.eq.f32.partialorder %v964, 8.507059e+37
    %v966 = vand.u32 %v909, 2147483648
    %v967 = vor.u32 1.1754944e-38, %v966
    %v968 = vsel %vm965, %v967, %v963
    %v969 = vmul.f32 1.0, %v968
    %v970 = vtanh.pop %v730
    %v971 = vtanh.pop %v731
    %v972 = vtanh.pop %v732
    %v973 = vtanh.pop %v733
    %v978 = vrot.slane %v561, 1
    %v979 = vrot.slane %v562, 1
    %v980 = vrot.slane %v563, 1
    %v981 = vrot.slane %v564, 1
    %v986 = vmul.f32 %v924, %v978
    %v987 = vmul.f32 %v939, %v979
    %v988 = vmul.f32 %v954, %v980
    %v989 = vmul.f32 %v969, %v981
    %994 = vrot.lane.b32.xlu0 %v970, 64
    %v995 = vpop.permute.xlu0 %994
    %996 = vrot.lane.b32.xlu0 %v971, 64
    %v997 = vpop.permute.xlu0 %996
    %998 = vrot.lane.b32.xlu0 %v972, 64
    %v999 = vpop.permute.xlu0 %998
    %1000 = vrot.lane.b32.xlu0 %v973, 64
    %v1001 = vpop.permute.xlu0 %1000
    %v1006 = vmul.f32 %v924, %v995
    %v1007 = vmul.f32 %v939, %v997
    %v1008 = vmul.f32 %v954, %v999
    %v1009 = vmul.f32 %v969, %v1001
    %1014 = vrot.lane.b32.xlu0 %v1006, 32
    %v1015 = vpop.permute.xlu0 %1014
    %1016 = vrot.lane.b32.xlu0 %v1007, 32
    %v1017 = vpop.permute.xlu0 %1016
    %1018 = vrot.lane.b32.xlu0 %v1008, 32
    %v1019 = vpop.permute.xlu0 %1018
    %1020 = vrot.lane.b32.xlu0 %v1009, 32
    %v1021 = vpop.permute.xlu0 %1020
    %v1026 = vadd.f32 %v986, %v1015
    %v1027 = vadd.f32 %v987, %v1017
    %v1028 = vadd.f32 %v988, %v1019
    %v1029 = vadd.f32 %v989, %v1021
    %v1030 = vtanh.pop %v1026
    %v1031 = vtanh.pop %v1027
    %v1032 = vtanh.pop %v1028
    %v1033 = vtanh.pop %v1029
    %1038 = vrot.lane.b32.xlu0 %v1030, 64
    %v1039 = vpop.permute.xlu0 %1038
    %1040 = vrot.lane.b32.xlu0 %v1031, 64
    %v1041 = vpop.permute.xlu0 %1040
    %1042 = vrot.lane.b32.xlu0 %v1032, 64
    %v1043 = vpop.permute.xlu0 %1042
    %1044 = vrot.lane.b32.xlu0 %v1033, 64
    %v1045 = vpop.permute.xlu0 %1044
    %v1050 = vmul.f32 %v924, %v1039
    %v1051 = vmul.f32 %v939, %v1041
    %v1052 = vmul.f32 %v954, %v1043
    %v1053 = vmul.f32 %v969, %v1045
    %1058 = vrot.lane.b32.xlu0 %v890, 32
    %v1059 = vpop.permute.xlu0 %1058
    %1060 = vrot.lane.b32.xlu0 %v891, 32
    %v1061 = vpop.permute.xlu0 %1060
    %1062 = vrot.lane.b32.xlu0 %v892, 32
    %v1063 = vpop.permute.xlu0 %1062
    %1064 = vrot.lane.b32.xlu0 %v893, 32
    %v1065 = vpop.permute.xlu0 %1064
    %vm1070 = vcmask 254977
    %1071 = vst.msk [vmem:[#allocation2] sm:$0x2] %vm1070, %v1059
    %1072 = vst.msk [vmem:[#allocation2 + $0x8] sm:$0x2] %vm1070, %v1061
    %1073 = vst.msk [vmem:[#allocation2 + $0x10] sm:$0x2] %vm1070, %v1063
    %1074 = vst.msk [vmem:[#allocation2 + $0x18] sm:$0x2] %vm1070, %v1065
    %1079 = vrot.lane.b32.xlu0 %v1050, 64
    %v1080 = vpop.permute.xlu0 %1079
    %1081 = vrot.lane.b32.xlu0 %v1051, 64
    %v1082 = vpop.permute.xlu0 %1081
    %1083 = vrot.lane.b32.xlu0 %v1052, 64
    %v1084 = vpop.permute.xlu0 %1083
    %1085 = vrot.lane.b32.xlu0 %v1053, 64
    %v1086 = vpop.permute.xlu0 %1085
    %vm1091 = vcmask 522502
    %1092 = vst.msk [vmem:[#allocation2] sm:$0x40] %vm1091, %v1080
    %1093 = vst.msk [vmem:[#allocation2 + $0x8] sm:$0x40] %vm1091, %v1082
    %1094 = vst.msk [vmem:[#allocation2 + $0x10] sm:$0x40] %vm1091, %v1084
    %1095 = vst.msk [vmem:[#allocation2 + $0x18] sm:$0x40] %vm1091, %v1086
    %v1096 = vpack.c.bf16 %v890, %v890
    %v1097 = vpack.c.bf16 %v891, %v891
    %v1098 = vpack.c.bf16 %v892, %v892
    %v1099 = vpack.c.bf16 %v893, %v893
    %v1104 = vunpack.c.l.b16 %v1096
    %v1105 = vunpack.c.l.b16 %v1097
    %v1106 = vunpack.c.l.b16 %v1098
    %v1107 = vunpack.c.l.b16 %v1099
    %v1108 = vrot.slane %v1104, 1
    %v1109 = vsel %vm644, %v1105, %v1108
    %v1110 = vrot.slane %v1106, 7
    %v1111 = vsel %vm647, %v1110, %v1109
    %v1112 = vrot.slane %v1107, 6
    %v1113 = vsel %vm650, %v1112, %v1111
    %v1114 = vpack.c.b16 %v1113, %v1113
    %1115 = vrot.lane.b32.xlu0 %v1114, 32
    %v1116 = vpop.permute.xlu0 %1115
    %v1118 = vsel %vm174, %v1116, 0
    %1120 = vmatpush.bf16.msra.mxu0 0
    %1121 = vmatpush.bf16.msra.mxu0 0
    %1122 = vmatpush.bf16.msra.mxu0 0
    %1123 = vmatpush.bf16.msra.mxu0 0
    %1124 = vmatpush.bf16.msra.mxu0 0
    %1125 = vmatpush.bf16.msra.mxu0 0
    %1126 = vmatpush.bf16.msra.mxu0 %v228
    %1127 = vmatpush.bf16.msra.mxu0 %v227
    %1128 = vmatmul.bf16.gmra.mxu0 %v1118
    %v1129 = vpop.f32.mrf.mxu0
    %v1130 = vadd.f32 0.0, %v1129
    %v1131 = vpop.f32.mrf.mxu0
    %1132 = vdwg.mxu0
    %v1134 = vrot.slane %v1130, 6
    %v1135 = vrot.slane %v1130, 7
    %v1136 = vrot.slane %v1130, 1
    %v1141 = vadd.f32 %v191, %v1134
    %v1142 = vadd.f32 %v193, %v1135
    %v1143 = vadd.f32 %v196, %v1130
    %v1144 = vadd.f32 %v198, %v1136
    %v1145 = vpack.c.bf16 %v1050, %v1050
    %v1146 = vpack.c.bf16 %v1051, %v1051
    %v1147 = vpack.c.bf16 %v1052, %v1052
    %v1148 = vpack.c.bf16 %v1053, %v1053
    %v1153 = vunpack.c.l.b16 %v1145
    %v1154 = vunpack.c.l.b16 %v1146
    %v1155 = vunpack.c.l.b16 %v1147
    %v1156 = vunpack.c.l.b16 %v1148
    %v1157 = vrot.slane %v1153, 6
    %v1158 = vrot.slane %v1154, 5
    %v1159 = vsel %vm644, %v1158, %v1157
    %v1160 = vrot.slane %v1155, 4
    %v1161 = vsel %vm647, %v1160, %v1159
    %v1162 = vrot.slane %v1156, 3
    %v1163 = vsel %vm650, %v1162, %v1161
    %v1164 = vpack.c.b16 %v1163, %v1163
    %1165 = vrot.lane.b32.xlu0 %v1164, 32
    %v1166 = vpop.permute.xlu0 %1165
    %v1168 = vsel %vm174, %v1166, 0
    %1170 = vmatpush.bf16.msra.mxu0 0
    %1171 = vmatpush.bf16.msra.mxu0 0
    %1172 = vmatpush.bf16.msra.mxu0 0
    %1173 = vmatpush.bf16.msra.mxu0 0
    %1174 = vmatpush.bf16.msra.mxu0 0
    %1175 = vmatpush.bf16.msra.mxu0 0
    %1176 = vmatpush.bf16.msra.mxu0 %v264
    %1177 = vmatpush.bf16.msra.mxu0 %v263
    %1178 = vmatmul.bf16.gmra.mxu0 %v1168
    %v1179 = vpop.f32.mrf.mxu0
    %v1180 = vadd.f32 0.0, %v1179
    %v1181 = vpop.f32.mrf.mxu0
    %1182 = vdwg.mxu0
    %v1184 = vrot.slane %v1180, 3
    %v1185 = vrot.slane %v1180, 4
    %v1186 = vrot.slane %v1180, 5
    %v1187 = vrot.slane %v1180, 6
    %v1192 = vadd.f32 %v210, %v1184
    %v1193 = vadd.f32 %v212, %v1185
    %v1194 = vadd.f32 %v215, %v1186
    %v1195 = vadd.f32 %v217, %v1187
    %v1196 = vxor.u32 %v1141, 2147483648
    %v1197 = vxor.u32 %v1142, 2147483648
    %v1198 = vxor.u32 %v1143, 2147483648
    %v1199 = vxor.u32 %v1144, 2147483648
    %v1200 = vmul.f32 %v1196, 1.442695
    %v1201 = vpow.pop %v1200
    %v1202 = vmul.f32 %v1197, 1.442695
    %v1203 = vpow.pop %v1202
    %v1204 = vmul.f32 %v1198, 1.442695
    %v1205 = vpow.pop %v1204
    %v1206 = vmul.f32 %v1199, 1.442695
    %v1207 = vpow.pop %v1206
    %v1208 = vadd.f32 %v1201, 1.0
    %v1209 = vadd.f32 %v1203, 1.0
    %v1210 = vadd.f32 %v1205, 1.0
    %v1211 = vadd.f32 %v1207, 1.0
    %v1212 = vrcp.pop %v1208
    %v1213 = vmul.f32 %v1208, %v1212
    %v1214 = vsub.f32 1.0, %v1213
    %v1215 = vmul.f32 %v1212, %v1214
    %v1216 = vadd.f32 %v1212, %v1215
    %vm1217 = vweird.f32 %v1208
    %vm1218 = vweird.f32 %v1212
    %vm1219 = vmor %vm1217, %vm1218
    %v1220 = vsel %vm1219, %v1212, %v1216
    %v1221 = vand.u32 2147483647, %v1208
    %vm1222 = vcmp.eq.f32.partialorder %v1221, 8.507059e+37
    %v1223 = vand.u32 %v1208, 2147483648
    %v1224 = vor.u32 1.1754944e-38, %v1223
    %v1225 = vsel %vm1222, %v1224, %v1220
    %v1226 = vmul.f32 1.0, %v1225
    %v1227 = vrcp.pop %v1209
    %v1228 = vmul.f32 %v1209, %v1227
    %v1229 = vsub.f32 1.0, %v1228
    %v1230 = vmul.f32 %v1227, %v1229
    %v1231 = vadd.f32 %v1227, %v1230
    %vm1232 = vweird.f32 %v1209
    %vm1233 = vweird.f32 %v1227
    %vm1234 = vmor %vm1232, %vm1233
    %v1235 = vsel %vm1234, %v1227, %v1231
    %v1236 = vand.u32 2147483647, %v1209
    %vm1237 = vcmp.eq.f32.partialorder %v1236, 8.507059e+37
    %v1238 = vand.u32 %v1209, 2147483648
    %v1239 = vor.u32 1.1754944e-38, %v1238
    %v1240 = vsel %vm1237, %v1239, %v1235
    %v1241 = vmul.f32 1.0, %v1240
    %v1242 = vrcp.pop %v1210
    %v1243 = vmul.f32 %v1210, %v1242
    %v1244 = vsub.f32 1.0, %v1243
    %v1245 = vmul.f32 %v1242, %v1244
    %v1246 = vadd.f32 %v1242, %v1245
    %vm1247 = vweird.f32 %v1210
    %vm1248 = vweird.f32 %v1242
    %vm1249 = vmor %vm1247, %vm1248
    %v1250 = vsel %vm1249, %v1242, %v1246
    %v1251 = vand.u32 2147483647, %v1210
    %vm1252 = vcmp.eq.f32.partialorder %v1251, 8.507059e+37
    %v1253 = vand.u32 %v1210, 2147483648
    %v1254 = vor.u32 1.1754944e-38, %v1253
    %v1255 = vsel %vm1252, %v1254, %v1250
    %v1256 = vmul.f32 1.0, %v1255
    %v1257 = vrcp.pop %v1211
    %v1258 = vmul.f32 %v1211, %v1257
    %v1259 = vsub.f32 1.0, %v1258
    %v1260 = vmul.f32 %v1257, %v1259
    %v1261 = vadd.f32 %v1257, %v1260
    %vm1262 = vweird.f32 %v1211
    %vm1263 = vweird.f32 %v1257
    %vm1264 = vmor %vm1262, %vm1263
    %v1265 = vsel %vm1264, %v1257, %v1261
    %v1266 = vand.u32 2147483647, %v1211
    %vm1267 = vcmp.eq.f32.partialorder %v1266, 8.507059e+37
    %v1268 = vand.u32 %v1211, 2147483648
    %v1269 = vor.u32 1.1754944e-38, %v1268
    %v1270 = vsel %vm1267, %v1269, %v1265
    %v1271 = vmul.f32 1.0, %v1270
    %v1272 = vtanh.pop %v1141
    %v1273 = vtanh.pop %v1142
    %v1274 = vtanh.pop %v1143
    %v1275 = vtanh.pop %v1144
    %v1280 = vrot.slane %v866, 7
    %v1281 = vrot.slane %v867, 7
    %v1282 = vrot.slane %v868, 7
    %v1283 = vrot.slane %v869, 7
    %v1288 = vmul.f32 %v1226, %v1280
    %v1289 = vmul.f32 %v1241, %v1281
    %v1290 = vmul.f32 %v1256, %v1282
    %v1291 = vmul.f32 %v1271, %v1283
    %1296 = vrot.lane.b32.xlu0 %v1272, 64
    %v1297 = vpop.permute.xlu0 %1296
    %1298 = vrot.lane.b32.xlu0 %v1273, 64
    %v1299 = vpop.permute.xlu0 %1298
    %1300 = vrot.lane.b32.xlu0 %v1274, 64
    %v1301 = vpop.permute.xlu0 %1300
    %1302 = vrot.lane.b32.xlu0 %v1275, 64
    %v1303 = vpop.permute.xlu0 %1302
    %v1308 = vmul.f32 %v1226, %v1297
    %v1309 = vmul.f32 %v1241, %v1299
    %v1310 = vmul.f32 %v1256, %v1301
    %v1311 = vmul.f32 %v1271, %v1303
    %1316 = vrot.lane.b32.xlu0 %v1308, 32
    %v1317 = vpop.permute.xlu0 %1316
    %1318 = vrot.lane.b32.xlu0 %v1309, 32
    %v1319 = vpop.permute.xlu0 %1318
    %1320 = vrot.lane.b32.xlu0 %v1310, 32
    %v1321 = vpop.permute.xlu0 %1320
    %1322 = vrot.lane.b32.xlu0 %v1311, 32
    %v1323 = vpop.permute.xlu0 %1322
    %v1328 = vadd.f32 %v1288, %v1317
    %v1329 = vadd.f32 %v1289, %v1319
    %v1330 = vadd.f32 %v1290, %v1321
    %v1331 = vadd.f32 %v1291, %v1323
    %v1332 = vtanh.pop %v1328
    %v1333 = vtanh.pop %v1329
    %v1334 = vtanh.pop %v1330
    %v1335 = vtanh.pop %v1331
    %1340 = vrot.lane.b32.xlu0 %v1332, 64
    %v1341 = vpop.permute.xlu0 %1340
    %1342 = vrot.lane.b32.xlu0 %v1333, 64
    %v1343 = vpop.permute.xlu0 %1342
    %1344 = vrot.lane.b32.xlu0 %v1334, 64
    %v1345 = vpop.permute.xlu0 %1344
    %1346 = vrot.lane.b32.xlu0 %v1335, 64
    %v1347 = vpop.permute.xlu0 %1346
    %v1352 = vmul.f32 %v1226, %v1341
    %v1353 = vmul.f32 %v1241, %v1343
    %v1354 = vmul.f32 %v1256, %v1345
    %v1355 = vmul.f32 %v1271, %v1347
    %v1356 = vxor.u32 %v1192, 2147483648
    %v1357 = vxor.u32 %v1193, 2147483648
    %v1358 = vxor.u32 %v1194, 2147483648
    %v1359 = vxor.u32 %v1195, 2147483648
    %v1360 = vmul.f32 %v1356, 1.442695
    %v1361 = vpow.pop %v1360
    %v1362 = vmul.f32 %v1357, 1.442695
    %v1363 = vpow.pop %v1362
    %v1364 = vmul.f32 %v1358, 1.442695
    %v1365 = vpow.pop %v1364
    %v1366 = vmul.f32 %v1359, 1.442695
    %v1367 = vpow.pop %v1366
    %v1368 = vadd.f32 %v1361, 1.0
    %v1369 = vadd.f32 %v1363, 1.0
    %v1370 = vadd.f32 %v1365, 1.0
    %v1371 = vadd.f32 %v1367, 1.0
    %v1372 = vrcp.pop %v1368
    %v1373 = vmul.f32 %v1368, %v1372
    %v1374 = vsub.f32 1.0, %v1373
    %v1375 = vmul.f32 %v1372, %v1374
    %v1376 = vadd.f32 %v1372, %v1375
    %vm1377 = vweird.f32 %v1368
    %vm1378 = vweird.f32 %v1372
    %vm1379 = vmor %vm1377, %vm1378
    %v1380 = vsel %vm1379, %v1372, %v1376
    %v1381 = vand.u32 2147483647, %v1368
    %vm1382 = vcmp.eq.f32.partialorder %v1381, 8.507059e+37
    %v1383 = vand.u32 %v1368, 2147483648
    %v1384 = vor.u32 1.1754944e-38, %v1383
    %v1385 = vsel %vm1382, %v1384, %v1380
    %v1386 = vmul.f32 1.0, %v1385
    %v1387 = vrcp.pop %v1369
    %v1388 = vmul.f32 %v1369, %v1387
    %v1389 = vsub.f32 1.0, %v1388
    %v1390 = vmul.f32 %v1387, %v1389
    %v1391 = vadd.f32 %v1387, %v1390
    %vm1392 = vweird.f32 %v1369
    %vm1393 = vweird.f32 %v1387
    %vm1394 = vmor %vm1392, %vm1393
    %v1395 = vsel %vm1394, %v1387, %v1391
    %v1396 = vand.u32 2147483647, %v1369
    %vm1397 = vcmp.eq.f32.partialorder %v1396, 8.507059e+37
    %v1398 = vand.u32 %v1369, 2147483648
    %v1399 = vor.u32 1.1754944e-38, %v1398
    %v1400 = vsel %vm1397, %v1399, %v1395
    %v1401 = vmul.f32 1.0, %v1400
    %v1402 = vrcp.pop %v1370
    %v1403 = vmul.f32 %v1370, %v1402
    %v1404 = vsub.f32 1.0, %v1403
    %v1405 = vmul.f32 %v1402, %v1404
    %v1406 = vadd.f32 %v1402, %v1405
    %vm1407 = vweird.f32 %v1370
    %vm1408 = vweird.f32 %v1402
    %vm1409 = vmor %vm1407, %vm1408
    %v1410 = vsel %vm1409, %v1402, %v1406
    %v1411 = vand.u32 2147483647, %v1370
    %vm1412 = vcmp.eq.f32.partialorder %v1411, 8.507059e+37
    %v1413 = vand.u32 %v1370, 2147483648
    %v1414 = vor.u32 1.1754944e-38, %v1413
    %v1415 = vsel %vm1412, %v1414, %v1410
    %v1416 = vmul.f32 1.0, %v1415
    %v1417 = vrcp.pop %v1371
    %v1418 = vmul.f32 %v1371, %v1417
    %v1419 = vsub.f32 1.0, %v1418
    %v1420 = vmul.f32 %v1417, %v1419
    %v1421 = vadd.f32 %v1417, %v1420
    %vm1422 = vweird.f32 %v1371
    %vm1423 = vweird.f32 %v1417
    %vm1424 = vmor %vm1422, %vm1423
    %v1425 = vsel %vm1424, %v1417, %v1421
    %v1426 = vand.u32 2147483647, %v1371
    %vm1427 = vcmp.eq.f32.partialorder %v1426, 8.507059e+37
    %v1428 = vand.u32 %v1371, 2147483648
    %v1429 = vor.u32 1.1754944e-38, %v1428
    %v1430 = vsel %vm1427, %v1429, %v1425
    %v1431 = vmul.f32 1.0, %v1430
    %v1432 = vtanh.pop %v1192
    %v1433 = vtanh.pop %v1193
    %v1434 = vtanh.pop %v1194
    %v1435 = vtanh.pop %v1195
    %v1440 = vrot.slane %v1026, 1
    %v1441 = vrot.slane %v1027, 1
    %v1442 = vrot.slane %v1028, 1
    %v1443 = vrot.slane %v1029, 1
    %v1448 = vmul.f32 %v1386, %v1440
    %v1449 = vmul.f32 %v1401, %v1441
    %v1450 = vmul.f32 %v1416, %v1442
    %v1451 = vmul.f32 %v1431, %v1443
    %1456 = vrot.lane.b32.xlu0 %v1432, 64
    %v1457 = vpop.permute.xlu0 %1456
    %1458 = vrot.lane.b32.xlu0 %v1433, 64
    %v1459 = vpop.permute.xlu0 %1458
    %1460 = vrot.lane.b32.xlu0 %v1434, 64
    %v1461 = vpop.permute.xlu0 %1460
    %1462 = vrot.lane.b32.xlu0 %v1435, 64
    %v1463 = vpop.permute.xlu0 %1462
    %v1468 = vmul.f32 %v1386, %v1457
    %v1469 = vmul.f32 %v1401, %v1459
    %v1470 = vmul.f32 %v1416, %v1461
    %v1471 = vmul.f32 %v1431, %v1463
    %1476 = vrot.lane.b32.xlu0 %v1468, 32
    %v1477 = vpop.permute.xlu0 %1476
    %1478 = vrot.lane.b32.xlu0 %v1469, 32
    %v1479 = vpop.permute.xlu0 %1478
    %1480 = vrot.lane.b32.xlu0 %v1470, 32
    %v1481 = vpop.permute.xlu0 %1480
    %1482 = vrot.lane.b32.xlu0 %v1471, 32
    %v1483 = vpop.permute.xlu0 %1482
    %v1488 = vadd.f32 %v1448, %v1477
    %v1489 = vadd.f32 %v1449, %v1479
    %v1490 = vadd.f32 %v1450, %v1481
    %v1491 = vadd.f32 %v1451, %v1483
    %v1492 = vtanh.pop %v1488
    %v1493 = vtanh.pop %v1489
    %v1494 = vtanh.pop %v1490
    %v1495 = vtanh.pop %v1491
    %1500 = vrot.lane.b32.xlu0 %v1492, 64
    %v1501 = vpop.permute.xlu0 %1500
    %1502 = vrot.lane.b32.xlu0 %v1493, 64
    %v1503 = vpop.permute.xlu0 %1502
    %1504 = vrot.lane.b32.xlu0 %v1494, 64
    %v1505 = vpop.permute.xlu0 %1504
    %1506 = vrot.lane.b32.xlu0 %v1495, 64
    %v1507 = vpop.permute.xlu0 %1506
    %v1512 = vmul.f32 %v1386, %v1501
    %v1513 = vmul.f32 %v1401, %v1503
    %v1514 = vmul.f32 %v1416, %v1505
    %v1515 = vmul.f32 %v1431, %v1507
    %1520 = vrot.lane.b32.xlu0 %v1352, 32
    %v1521 = vpop.permute.xlu0 %1520
    %1522 = vrot.lane.b32.xlu0 %v1353, 32
    %v1523 = vpop.permute.xlu0 %1522
    %1524 = vrot.lane.b32.xlu0 %v1354, 32
    %v1525 = vpop.permute.xlu0 %1524
    %1526 = vrot.lane.b32.xlu0 %v1355, 32
    %v1527 = vpop.permute.xlu0 %1526
    %vm1532 = vcmask 256002
    %1533 = vst.msk [vmem:[#allocation2] sm:$0x4] %vm1532, %v1521
    %1534 = vst.msk [vmem:[#allocation2 + $0x8] sm:$0x4] %vm1532, %v1523
    %1535 = vst.msk [vmem:[#allocation2 + $0x10] sm:$0x4] %vm1532, %v1525
    %1536 = vst.msk [vmem:[#allocation2 + $0x18] sm:$0x4] %vm1532, %v1527
    %1541 = vrot.lane.b32.xlu0 %v1512, 64
    %v1542 = vpop.permute.xlu0 %1541
    %1543 = vrot.lane.b32.xlu0 %v1513, 64
    %v1544 = vpop.permute.xlu0 %1543
    %1545 = vrot.lane.b32.xlu0 %v1514, 64
    %v1546 = vpop.permute.xlu0 %1545
    %1547 = vrot.lane.b32.xlu0 %v1515, 64
    %v1548 = vpop.permute.xlu0 %1547
    %vm1553 = vcmask 521477
    %1554 = vst.msk [vmem:[#allocation2] sm:$0x20] %vm1553, %v1542
    %1555 = vst.msk [vmem:[#allocation2 + $0x8] sm:$0x20] %vm1553, %v1544
    %1556 = vst.msk [vmem:[#allocation2 + $0x10] sm:$0x20] %vm1553, %v1546
    %1557 = vst.msk [vmem:[#allocation2 + $0x18] sm:$0x20] %vm1553, %v1548
    %v1558 = vpack.c.bf16 %v1352, %v1352
    %v1559 = vpack.c.bf16 %v1353, %v1353
    %v1560 = vpack.c.bf16 %v1354, %v1354
    %v1561 = vpack.c.bf16 %v1355, %v1355
    %v1566 = vunpack.c.l.b16 %v1558
    %v1567 = vunpack.c.l.b16 %v1559
    %v1568 = vunpack.c.l.b16 %v1560
    %v1569 = vunpack.c.l.b16 %v1561
    %v1570 = vrot.slane %v1566, 2
    %v1571 = vrot.slane %v1567, 1
    %v1572 = vsel %vm644, %v1571, %v1570
    %v1573 = vsel %vm647, %v1568, %v1572
    %v1574 = vrot.slane %v1569, 7
    %v1575 = vsel %vm650, %v1574, %v1573
    %v1576 = vpack.c.b16 %v1575, %v1575
    %1577 = vrot.lane.b32.xlu0 %v1576, 32
    %v1578 = vpop.permute.xlu0 %1577
    %v1580 = vsel %vm174, %v1578, 0
    %1582 = vmatpush.bf16.msra.mxu0 0
    %1583 = vmatpush.bf16.msra.mxu0 0
    %1584 = vmatpush.bf16.msra.mxu0 0
    %1585 = vmatpush.bf16.msra.mxu0 0
    %1586 = vmatpush.bf16.msra.mxu0 0
    %1587 = vmatpush.bf16.msra.mxu0 0
    %1588 = vmatpush.bf16.msra.mxu0 %v228
    %1589 = vmatpush.bf16.msra.mxu0 %v227
    %1590 = vmatmul.bf16.gmra.mxu0 %v1580
    %v1591 = vpop.f32.mrf.mxu0
    %v1592 = vadd.f32 0.0, %v1591
    %v1593 = vpop.f32.mrf.mxu0
    %1594 = vdwg.mxu0
    %v1596 = vrot.slane %v1592, 5
    %v1597 = vrot.slane %v1592, 6
    %v1598 = vrot.slane %v1592, 7
    %v1603 = vadd.f32 %v191, %v1596
    %v1604 = vadd.f32 %v193, %v1597
    %v1605 = vadd.f32 %v196, %v1598
    %v1606 = vadd.f32 %v198, %v1592
    %v1607 = vpack.c.bf16 %v1512, %v1512
    %v1608 = vpack.c.bf16 %v1513, %v1513
    %v1609 = vpack.c.bf16 %v1514, %v1514
    %v1610 = vpack.c.bf16 %v1515, %v1515
    %v1615 = vunpack.c.l.b16 %v1607
    %v1616 = vunpack.c.l.b16 %v1608
    %v1617 = vunpack.c.l.b16 %v1609
    %v1618 = vunpack.c.l.b16 %v1610
    %v1619 = vrot.slane %v1615, 5
    %v1620 = vrot.slane %v1616, 4
    %v1621 = vsel %vm644, %v1620, %v1619
    %v1622 = vrot.slane %v1617, 3
    %v1623 = vsel %vm647, %v1622, %v1621
    %v1624 = vrot.slane %v1618, 2
    %v1625 = vsel %vm650, %v1624, %v1623
    %v1626 = vpack.c.b16 %v1625, %v1625
    %1627 = vrot.lane.b32.xlu0 %v1626, 32
    %v1628 = vpop.permute.xlu0 %1627
    %v1630 = vsel %vm174, %v1628, 0
    %1632 = vmatpush.bf16.msra.mxu0 0
    %1633 = vmatpush.bf16.msra.mxu0 0
    %1634 = vmatpush.bf16.msra.mxu0 0
    %1635 = vmatpush.bf16.msra.mxu0 0
    %1636 = vmatpush.bf16.msra.mxu0 0
    %1637 = vmatpush.bf16.msra.mxu0 0
    %1638 = vmatpush.bf16.msra.mxu0 %v264
    %1639 = vmatpush.bf16.msra.mxu0 %v263
    %1640 = vmatmul.bf16.gmra.mxu0 %v1630
    %v1641 = vpop.f32.mrf.mxu0
    %v1642 = vadd.f32 0.0, %v1641
    %v1643 = vpop.f32.mrf.mxu0
    %1644 = vdwg.mxu0
    %v1646 = vrot.slane %v1642, 4
    %v1647 = vrot.slane %v1642, 5
    %v1648 = vrot.slane %v1642, 6
    %v1649 = vrot.slane %v1642, 7
    %v1654 = vadd.f32 %v210, %v1646
    %v1655 = vadd.f32 %v212, %v1647
    %v1656 = vadd.f32 %v215, %v1648
    %v1657 = vadd.f32 %v217, %v1649
    %v1658 = vxor.u32 %v1603, 2147483648
    %v1659 = vxor.u32 %v1604, 2147483648
    %v1660 = vxor.u32 %v1605, 2147483648
    %v1661 = vxor.u32 %v1606, 2147483648
    %v1662 = vmul.f32 %v1658, 1.442695
    %v1663 = vpow.pop %v1662
    %v1664 = vmul.f32 %v1659, 1.442695
    %v1665 = vpow.pop %v1664
    %v1666 = vmul.f32 %v1660, 1.442695
    %v1667 = vpow.pop %v1666
    %v1668 = vmul.f32 %v1661, 1.442695
    %v1669 = vpow.pop %v1668
    %v1670 = vadd.f32 %v1663, 1.0
    %v1671 = vadd.f32 %v1665, 1.0
    %v1672 = vadd.f32 %v1667, 1.0
    %v1673 = vadd.f32 %v1669, 1.0
    %v1674 = vrcp.pop %v1670
    %v1675 = vmul.f32 %v1670, %v1674
    %v1676 = vsub.f32 1.0, %v1675
    %v1677 = vmul.f32 %v1674, %v1676
    %v1678 = vadd.f32 %v1674, %v1677
    %vm1679 = vweird.f32 %v1670
    %vm1680 = vweird.f32 %v1674
    %vm1681 = vmor %vm1679, %vm1680
    %v1682 = vsel %vm1681, %v1674, %v1678
    %v1683 = vand.u32 2147483647, %v1670
    %vm1684 = vcmp.eq.f32.partialorder %v1683, 8.507059e+37
    %v1685 = vand.u32 %v1670, 2147483648
    %v1686 = vor.u32 1.1754944e-38, %v1685
    %v1687 = vsel %vm1684, %v1686, %v1682
    %v1688 = vmul.f32 1.0, %v1687
    %v1689 = vrcp.pop %v1671
    %v1690 = vmul.f32 %v1671, %v1689
    %v1691 = vsub.f32 1.0, %v1690
    %v1692 = vmul.f32 %v1689, %v1691
    %v1693 = vadd.f32 %v1689, %v1692
    %vm1694 = vweird.f32 %v1671
    %vm1695 = vweird.f32 %v1689
    %vm1696 = vmor %vm1694, %vm1695
    %v1697 = vsel %vm1696, %v1689, %v1693
    %v1698 = vand.u32 2147483647, %v1671
    %vm1699 = vcmp.eq.f32.partialorder %v1698, 8.507059e+37
    %v1700 = vand.u32 %v1671, 2147483648
    %v1701 = vor.u32 1.1754944e-38, %v1700
    %v1702 = vsel %vm1699, %v1701, %v1697
    %v1703 = vmul.f32 1.0, %v1702
    %v1704 = vrcp.pop %v1672
    %v1705 = vmul.f32 %v1672, %v1704
    %v1706 = vsub.f32 1.0, %v1705
    %v1707 = vmul.f32 %v1704, %v1706
    %v1708 = vadd.f32 %v1704, %v1707
    %vm1709 = vweird.f32 %v1672
    %vm1710 = vweird.f32 %v1704
    %vm1711 = vmor %vm1709, %vm1710
    %v1712 = vsel %vm1711, %v1704, %v1708
    %v1713 = vand.u32 2147483647, %v1672
    %vm1714 = vcmp.eq.f32.partialorder %v1713, 8.507059e+37
    %v1715 = vand.u32 %v1672, 2147483648
    %v1716 = vor.u32 1.1754944e-38, %v1715
    %v1717 = vsel %vm1714, %v1716, %v1712
    %v1718 = vmul.f32 1.0, %v1717
    %v1719 = vrcp.pop %v1673
    %v1720 = vmul.f32 %v1673, %v1719
    %v1721 = vsub.f32 1.0, %v1720
    %v1722 = vmul.f32 %v1719, %v1721
    %v1723 = vadd.f32 %v1719, %v1722
    %vm1724 = vweird.f32 %v1673
    %vm1725 = vweird.f32 %v1719
    %vm1726 = vmor %vm1724, %vm1725
    %v1727 = vsel %vm1726, %v1719, %v1723
    %v1728 = vand.u32 2147483647, %v1673
    %vm1729 = vcmp.eq.f32.partialorder %v1728, 8.507059e+37
    %v1730 = vand.u32 %v1673, 2147483648
    %v1731 = vor.u32 1.1754944e-38, %v1730
    %v1732 = vsel %vm1729, %v1731, %v1727
    %v1733 = vmul.f32 1.0, %v1732
    %v1734 = vtanh.pop %v1603
    %v1735 = vtanh.pop %v1604
    %v1736 = vtanh.pop %v1605
    %v1737 = vtanh.pop %v1606
    %v1742 = vrot.slane %v1328, 7
    %v1743 = vrot.slane %v1329, 7
    %v1744 = vrot.slane %v1330, 7
    %v1745 = vrot.slane %v1331, 7
    %v1750 = vmul.f32 %v1688, %v1742
    %v1751 = vmul.f32 %v1703, %v1743
    %v1752 = vmul.f32 %v1718, %v1744
    %v1753 = vmul.f32 %v1733, %v1745
    %1758 = vrot.lane.b32.xlu0 %v1734, 64
    %v1759 = vpop.permute.xlu0 %1758
    %1760 = vrot.lane.b32.xlu0 %v1735, 64
    %v1761 = vpop.permute.xlu0 %1760
    %1762 = vrot.lane.b32.xlu0 %v1736, 64
    %v1763 = vpop.permute.xlu0 %1762
    %1764 = vrot.lane.b32.xlu0 %v1737, 64
    %v1765 = vpop.permute.xlu0 %1764
    %v1770 = vmul.f32 %v1688, %v1759
    %v1771 = vmul.f32 %v1703, %v1761
    %v1772 = vmul.f32 %v1718, %v1763
    %v1773 = vmul.f32 %v1733, %v1765
    %1778 = vrot.lane.b32.xlu0 %v1770, 32
    %v1779 = vpop.permute.xlu0 %1778
    %1780 = vrot.lane.b32.xlu0 %v1771, 32
    %v1781 = vpop.permute.xlu0 %1780
    %1782 = vrot.lane.b32.xlu0 %v1772, 32
    %v1783 = vpop.permute.xlu0 %1782
    %1784 = vrot.lane.b32.xlu0 %v1773, 32
    %v1785 = vpop.permute.xlu0 %1784
    %v1790 = vadd.f32 %v1750, %v1779
    %v1791 = vadd.f32 %v1751, %v1781
    %v1792 = vadd.f32 %v1752, %v1783
    %v1793 = vadd.f32 %v1753, %v1785
    %v1794 = vtanh.pop %v1790
    %v1795 = vtanh.pop %v1791
    %v1796 = vtanh.pop %v1792
    %v1797 = vtanh.pop %v1793
    %1802 = vrot.lane.b32.xlu0 %v1794, 64
    %v1803 = vpop.permute.xlu0 %1802
    %1804 = vrot.lane.b32.xlu0 %v1795, 64
    %v1805 = vpop.permute.xlu0 %1804
    %1806 = vrot.lane.b32.xlu0 %v1796, 64
    %v1807 = vpop.permute.xlu0 %1806
    %1808 = vrot.lane.b32.xlu0 %v1797, 64
    %v1809 = vpop.permute.xlu0 %1808
    %v1814 = vmul.f32 %v1688, %v1803
    %v1815 = vmul.f32 %v1703, %v1805
    %v1816 = vmul.f32 %v1718, %v1807
    %v1817 = vmul.f32 %v1733, %v1809
    %v1818 = vxor.u32 %v1654, 2147483648
    %v1819 = vxor.u32 %v1655, 2147483648
    %v1820 = vxor.u32 %v1656, 2147483648
    %v1821 = vxor.u32 %v1657, 2147483648
    %v1822 = vmul.f32 %v1818, 1.442695
    %v1823 = vpow.pop %v1822
    %v1824 = vmul.f32 %v1819, 1.442695
    %v1825 = vpow.pop %v1824
    %v1826 = vmul.f32 %v1820, 1.442695
    %v1827 = vpow.pop %v1826
    %v1828 = vmul.f32 %v1821, 1.442695
    %v1829 = vpow.pop %v1828
    %v1830 = vadd.f32 %v1823, 1.0
    %v1831 = vadd.f32 %v1825, 1.0
    %v1832 = vadd.f32 %v1827, 1.0
    %v1833 = vadd.f32 %v1829, 1.0
    %v1834 = vrcp.pop %v1830
    %v1835 = vmul.f32 %v1830, %v1834
    %v1836 = vsub.f32 1.0, %v1835
    %v1837 = vmul.f32 %v1834, %v1836
    %v1838 = vadd.f32 %v1834, %v1837
    %vm1839 = vweird.f32 %v1830
    %vm1840 = vweird.f32 %v1834
    %vm1841 = vmor %vm1839, %vm1840
    %v1842 = vsel %vm1841, %v1834, %v1838
    %v1843 = vand.u32 2147483647, %v1830
    %vm1844 = vcmp.eq.f32.partialorder %v1843, 8.507059e+37
    %v1845 = vand.u32 %v1830, 2147483648
    %v1846 = vor.u32 1.1754944e-38, %v1845
    %v1847 = vsel %vm1844, %v1846, %v1842
    %v1848 = vmul.f32 1.0, %v1847
    %v1849 = vrcp.pop %v1831
    %v1850 = vmul.f32 %v1831, %v1849
    %v1851 = vsub.f32 1.0, %v1850
    %v1852 = vmul.f32 %v1849, %v1851
    %v1853 = vadd.f32 %v1849, %v1852
    %vm1854 = vweird.f32 %v1831
    %vm1855 = vweird.f32 %v1849
    %vm1856 = vmor %vm1854, %vm1855
    %v1857 = vsel %vm1856, %v1849, %v1853
    %v1858 = vand.u32 2147483647, %v1831
    %vm1859 = vcmp.eq.f32.partialorder %v1858, 8.507059e+37
    %v1860 = vand.u32 %v1831, 2147483648
    %v1861 = vor.u32 1.1754944e-38, %v1860
    %v1862 = vsel %vm1859, %v1861, %v1857
    %v1863 = vmul.f32 1.0, %v1862
    %v1864 = vrcp.pop %v1832
    %v1865 = vmul.f32 %v1832, %v1864
    %v1866 = vsub.f32 1.0, %v1865
    %v1867 = vmul.f32 %v1864, %v1866
    %v1868 = vadd.f32 %v1864, %v1867
    %vm1869 = vweird.f32 %v1832
    %vm1870 = vweird.f32 %v1864
    %vm1871 = vmor %vm1869, %vm1870
    %v1872 = vsel %vm1871, %v1864, %v1868
    %v1873 = vand.u32 2147483647, %v1832
    %vm1874 = vcmp.eq.f32.partialorder %v1873, 8.507059e+37
    %v1875 = vand.u32 %v1832, 2147483648
    %v1876 = vor.u32 1.1754944e-38, %v1875
    %v1877 = vsel %vm1874, %v1876, %v1872
    %v1878 = vmul.f32 1.0, %v1877
    %v1879 = vrcp.pop %v1833
    %v1880 = vmul.f32 %v1833, %v1879
    %v1881 = vsub.f32 1.0, %v1880
    %v1882 = vmul.f32 %v1879, %v1881
    %v1883 = vadd.f32 %v1879, %v1882
    %vm1884 = vweird.f32 %v1833
    %vm1885 = vweird.f32 %v1879
    %vm1886 = vmor %vm1884, %vm1885
    %v1887 = vsel %vm1886, %v1879, %v1883
    %v1888 = vand.u32 2147483647, %v1833
    %vm1889 = vcmp.eq.f32.partialorder %v1888, 8.507059e+37
    %v1890 = vand.u32 %v1833, 2147483648
    %v1891 = vor.u32 1.1754944e-38, %v1890
    %v1892 = vsel %vm1889, %v1891, %v1887
    %v1893 = vmul.f32 1.0, %v1892
    %v1894 = vtanh.pop %v1654
    %v1895 = vtanh.pop %v1655
    %v1896 = vtanh.pop %v1656
    %v1897 = vtanh.pop %v1657
    %v1902 = vrot.slane %v1488, 1
    %v1903 = vrot.slane %v1489, 1
    %v1904 = vrot.slane %v1490, 1
    %v1905 = vrot.slane %v1491, 1
    %v1910 = vmul.f32 %v1848, %v1902
    %v1911 = vmul.f32 %v1863, %v1903
    %v1912 = vmul.f32 %v1878, %v1904
    %v1913 = vmul.f32 %v1893, %v1905
    %1918 = vrot.lane.b32.xlu0 %v1894, 64
    %v1919 = vpop.permute.xlu0 %1918
    %1920 = vrot.lane.b32.xlu0 %v1895, 64
    %v1921 = vpop.permute.xlu0 %1920
    %1922 = vrot.lane.b32.xlu0 %v1896, 64
    %v1923 = vpop.permute.xlu0 %1922
    %1924 = vrot.lane.b32.xlu0 %v1897, 64
    %v1925 = vpop.permute.xlu0 %1924
    %v1930 = vmul.f32 %v1848, %v1919
    %v1931 = vmul.f32 %v1863, %v1921
    %v1932 = vmul.f32 %v1878, %v1923
    %v1933 = vmul.f32 %v1893, %v1925
    %1938 = vrot.lane.b32.xlu0 %v1930, 32
    %v1939 = vpop.permute.xlu0 %1938
    %1940 = vrot.lane.b32.xlu0 %v1931, 32
    %v1941 = vpop.permute.xlu0 %1940
    %1942 = vrot.lane.b32.xlu0 %v1932, 32
    %v1943 = vpop.permute.xlu0 %1942
    %1944 = vrot.lane.b32.xlu0 %v1933, 32
    %v1945 = vpop.permute.xlu0 %1944
    %v1950 = vadd.f32 %v1910, %v1939
    %v1951 = vadd.f32 %v1911, %v1941
    %v1952 = vadd.f32 %v1912, %v1943
    %v1953 = vadd.f32 %v1913, %v1945
    %v1954 = vtanh.pop %v1950
    %v1955 = vtanh.pop %v1951
    %v1956 = vtanh.pop %v1952
    %v1957 = vtanh.pop %v1953
    %1962 = vrot.lane.b32.xlu0 %v1954, 64
    %v1963 = vpop.permute.xlu0 %1962
    %1964 = vrot.lane.b32.xlu0 %v1955, 64
    %v1965 = vpop.permute.xlu0 %1964
    %1966 = vrot.lane.b32.xlu0 %v1956, 64
    %v1967 = vpop.permute.xlu0 %1966
    %1968 = vrot.lane.b32.xlu0 %v1957, 64
    %v1969 = vpop.permute.xlu0 %1968
    %v1974 = vmul.f32 %v1848, %v1963
    %v1975 = vmul.f32 %v1863, %v1965
    %v1976 = vmul.f32 %v1878, %v1967
    %v1977 = vmul.f32 %v1893, %v1969
    %1982 = vrot.lane.b32.xlu0 %v1814, 32
    %v1983 = vpop.permute.xlu0 %1982
    %1984 = vrot.lane.b32.xlu0 %v1815, 32
    %v1985 = vpop.permute.xlu0 %1984
    %1986 = vrot.lane.b32.xlu0 %v1816, 32
    %v1987 = vpop.permute.xlu0 %1986
    %1988 = vrot.lane.b32.xlu0 %v1817, 32
    %v1989 = vpop.permute.xlu0 %1988
    %vm1994 = vcmask 257027
    %1995 = vst.msk [vmem:[#allocation2] sm:$0x8] %vm1994, %v1983
    %1996 = vst.msk [vmem:[#allocation2 + $0x8] sm:$0x8] %vm1994, %v1985
    %1997 = vst.msk [vmem:[#allocation2 + $0x10] sm:$0x8] %vm1994, %v1987
    %1998 = vst.msk [vmem:[#allocation2 + $0x18] sm:$0x8] %vm1994, %v1989
    %2003 = vrot.lane.b32.xlu0 %v1974, 64
    %v2004 = vpop.permute.xlu0 %2003
    %2005 = vrot.lane.b32.xlu0 %v1975, 64
    %v2006 = vpop.permute.xlu0 %2005
    %2007 = vrot.lane.b32.xlu0 %v1976, 64
    %v2008 = vpop.permute.xlu0 %2007
    %2009 = vrot.lane.b32.xlu0 %v1977, 64
    %v2010 = vpop.permute.xlu0 %2009
    %vm2015 = vcmask 520452
    %2016 = vst.msk [vmem:[#allocation2] sm:$0x10] %vm2015, %v2004
    %2017 = vst.msk [vmem:[#allocation2 + $0x8] sm:$0x10] %vm2015, %v2006
    %2018 = vst.msk [vmem:[#allocation2 + $0x10] sm:$0x10] %vm2015, %v2008
    %2019 = vst.msk [vmem:[#allocation2 + $0x18] sm:$0x10] %vm2015, %v2010
    %v2020 = vpack.c.bf16 %v1814, %v1814
    %v2021 = vpack.c.bf16 %v1815, %v1815
    %v2022 = vpack.c.bf16 %v1816, %v1816
    %v2023 = vpack.c.bf16 %v1817, %v1817
    %v2028 = vunpack.c.l.b16 %v2020
    %v2029 = vunpack.c.l.b16 %v2021
    %v2030 = vunpack.c.l.b16 %v2022
    %v2031 = vunpack.c.l.b16 %v2023
    %v2032 = vrot.slane %v2028, 3
    %v2033 = vrot.slane %v2029, 2
    %v2034 = vsel %vm644, %v2033, %v2032
    %v2035 = vrot.slane %v2030, 1
    %v2036 = vsel %vm647, %v2035, %v2034
    %v2037 = vsel %vm650, %v2031, %v2036
    %v2038 = vpack.c.b16 %v2037, %v2037
    %2039 = vrot.lane.b32.xlu0 %v2038, 32
    %v2040 = vpop.permute.xlu0 %2039
    %v2042 = vsel %vm174, %v2040, 0
    %2044 = vmatpush.bf16.msra.mxu0 0
    %2045 = vmatpush.bf16.msra.mxu0 0
    %2046 = vmatpush.bf16.msra.mxu0 0
    %2047 = vmatpush.bf16.msra.mxu0 0
    %2048 = vmatpush.bf16.msra.mxu0 0
    %2049 = vmatpush.bf16.msra.mxu0 0
    %2050 = vmatpush.bf16.msra.mxu0 %v228
    %2051 = vmatpush.bf16.msra.mxu0 %v227
    %2052 = vmatmul.bf16.gmra.mxu0 %v2042
    %v2053 = vpop.f32.mrf.mxu0
    %v2054 = vadd.f32 0.0, %v2053
    %v2055 = vpop.f32.mrf.mxu0
    %2056 = vdwg.mxu0
    %v2058 = vrot.slane %v2054, 4
    %v2059 = vrot.slane %v2054, 5
    %v2060 = vrot.slane %v2054, 6
    %v2061 = vrot.slane %v2054, 7
    %v2066 = vadd.f32 %v191, %v2058
    %v2067 = vadd.f32 %v193, %v2059
    %v2068 = vadd.f32 %v196, %v2060
    %v2069 = vadd.f32 %v198, %v2061
    %v2070 = vpack.c.bf16 %v1974, %v1974
    %v2071 = vpack.c.bf16 %v1975, %v1975
    %v2072 = vpack.c.bf16 %v1976, %v1976
    %v2073 = vpack.c.bf16 %v1977, %v1977
    %v2078 = vunpack.c.l.b16 %v2070
    %v2079 = vunpack.c.l.b16 %v2071
    %v2080 = vunpack.c.l.b16 %v2072
    %v2081 = vunpack.c.l.b16 %v2073
    %v2082 = vrot.slane %v2078, 4
    %v2083 = vrot.slane %v2079, 3
    %v2084 = vsel %vm644, %v2083, %v2082
    %v2085 = vrot.slane %v2080, 2
    %v2086 = vsel %vm647, %v2085, %v2084
    %v2087 = vrot.slane %v2081, 1
    %v2088 = vsel %vm650, %v2087, %v2086
    %v2089 = vpack.c.b16 %v2088, %v2088
    %2090 = vrot.lane.b32.xlu0 %v2089, 32
    %v2091 = vpop.permute.xlu0 %2090
    %v2093 = vsel %vm174, %v2091, 0
    %2095 = vmatpush.bf16.msra.mxu0 0
    %2096 = vmatpush.bf16.msra.mxu0 0
    %2097 = vmatpush.bf16.msra.mxu0 0
    %2098 = vmatpush.bf16.msra.mxu0 0
    %2099 = vmatpush.bf16.msra.mxu0 0
    %2100 = vmatpush.bf16.msra.mxu0 0
    %2101 = vmatpush.bf16.msra.mxu0 %v264
    %2102 = vmatpush.bf16.msra.mxu0 %v263
    %2103 = vmatmul.bf16.gmra.mxu0 %v2093
    %v2104 = vpop.f32.mrf.mxu0
    %v2105 = vadd.f32 0.0, %v2104
    %v2106 = vpop.f32.mrf.mxu0
    %2107 = vdwg.mxu0
    %v2109 = vrot.slane %v2105, 5
    %v2110 = vrot.slane %v2105, 6
    %v2111 = vrot.slane %v2105, 7
    %v2116 = vadd.f32 %v210, %v2109
    %v2117 = vadd.f32 %v212, %v2110
    %v2118 = vadd.f32 %v215, %v2111
    %v2119 = vadd.f32 %v217, %v2105
    %v2120 = vxor.u32 %v2066, 2147483648
    %v2121 = vxor.u32 %v2067, 2147483648
    %v2122 = vxor.u32 %v2068, 2147483648
    %v2123 = vxor.u32 %v2069, 2147483648
    %v2124 = vmul.f32 %v2120, 1.442695
    %v2125 = vpow.pop %v2124
    %v2126 = vmul.f32 %v2121, 1.442695
    %v2127 = vpow.pop %v2126
    %v2128 = vmul.f32 %v2122, 1.442695
    %v2129 = vpow.pop %v2128
    %v2130 = vmul.f32 %v2123, 1.442695
    %v2131 = vpow.pop %v2130
    %v2132 = vadd.f32 %v2125, 1.0
    %v2133 = vadd.f32 %v2127, 1.0
    %v2134 = vadd.f32 %v2129, 1.0
    %v2135 = vadd.f32 %v2131, 1.0
    %v2136 = vrcp.pop %v2132
    %v2137 = vmul.f32 %v2132, %v2136
    %v2138 = vsub.f32 1.0, %v2137
    %v2139 = vmul.f32 %v2136, %v2138
    %v2140 = vadd.f32 %v2136, %v2139
    %vm2141 = vweird.f32 %v2132
    %vm2142 = vweird.f32 %v2136
    %vm2143 = vmor %vm2141, %vm2142
    %v2144 = vsel %vm2143, %v2136, %v2140
    %v2145 = vand.u32 2147483647, %v2132
    %vm2146 = vcmp.eq.f32.partialorder %v2145, 8.507059e+37
    %v2147 = vand.u32 %v2132, 2147483648
    %v2148 = vor.u32 1.1754944e-38, %v2147
    %v2149 = vsel %vm2146, %v2148, %v2144
    %v2150 = vmul.f32 1.0, %v2149
    %v2151 = vrcp.pop %v2133
    %v2152 = vmul.f32 %v2133, %v2151
    %v2153 = vsub.f32 1.0, %v2152
    %v2154 = vmul.f32 %v2151, %v2153
    %v2155 = vadd.f32 %v2151, %v2154
    %vm2156 = vweird.f32 %v2133
    %vm2157 = vweird.f32 %v2151
    %vm2158 = vmor %vm2156, %vm2157
    %v2159 = vsel %vm2158, %v2151, %v2155
    %v2160 = vand.u32 2147483647, %v2133
    %vm2161 = vcmp.eq.f32.partialorder %v2160, 8.507059e+37
    %v2162 = vand.u32 %v2133, 2147483648
    %v2163 = vor.u32 1.1754944e-38, %v2162
    %v2164 = vsel %vm2161, %v2163, %v2159
    %v2165 = vmul.f32 1.0, %v2164
    %v2166 = vrcp.pop %v2134
    %v2167 = vmul.f32 %v2134, %v2166
    %v2168 = vsub.f32 1.0, %v2167
    %v2169 = vmul.f32 %v2166, %v2168
    %v2170 = vadd.f32 %v2166, %v2169
    %vm2171 = vweird.f32 %v2134
    %vm2172 = vweird.f32 %v2166
    %vm2173 = vmor %vm2171, %vm2172
    %v2174 = vsel %vm2173, %v2166, %v2170
    %v2175 = vand.u32 2147483647, %v2134
    %vm2176 = vcmp.eq.f32.partialorder %v2175, 8.507059e+37
    %v2177 = vand.u32 %v2134, 2147483648
    %v2178 = vor.u32 1.1754944e-38, %v2177
    %v2179 = vsel %vm2176, %v2178, %v2174
    %v2180 = vmul.f32 1.0, %v2179
    %v2181 = vrcp.pop %v2135
    %v2182 = vmul.f32 %v2135, %v2181
    %v2183 = vsub.f32 1.0, %v2182
    %v2184 = vmul.f32 %v2181, %v2183
    %v2185 = vadd.f32 %v2181, %v2184
    %vm2186 = vweird.f32 %v2135
    %vm2187 = vweird.f32 %v2181
    %vm2188 = vmor %vm2186, %vm2187
    %v2189 = vsel %vm2188, %v2181, %v2185
    %v2190 = vand.u32 2147483647, %v2135
    %vm2191 = vcmp.eq.f32.partialorder %v2190, 8.507059e+37
    %v2192 = vand.u32 %v2135, 2147483648
    %v2193 = vor.u32 1.1754944e-38, %v2192
    %v2194 = vsel %vm2191, %v2193, %v2189
    %v2195 = vmul.f32 1.0, %v2194
    %v2196 = vtanh.pop %v2066
    %v2197 = vtanh.pop %v2067
    %v2198 = vtanh.pop %v2068
    %v2199 = vtanh.pop %v2069
    %v2204 = vrot.slane %v1790, 7
    %v2205 = vrot.slane %v1791, 7
    %v2206 = vrot.slane %v1792, 7
    %v2207 = vrot.slane %v1793, 7
    %v2212 = vmul.f32 %v2150, %v2204
    %v2213 = vmul.f32 %v2165, %v2205
    %v2214 = vmul.f32 %v2180, %v2206
    %v2215 = vmul.f32 %v2195, %v2207
    %2220 = vrot.lane.b32.xlu0 %v2196, 64
    %v2221 = vpop.permute.xlu0 %2220
    %2222 = vrot.lane.b32.xlu0 %v2197, 64
    %v2223 = vpop.permute.xlu0 %2222
    %2224 = vrot.lane.b32.xlu0 %v2198, 64
    %v2225 = vpop.permute.xlu0 %2224
    %2226 = vrot.lane.b32.xlu0 %v2199, 64
    %v2227 = vpop.permute.xlu0 %2226
    %v2232 = vmul.f32 %v2150, %v2221
    %v2233 = vmul.f32 %v2165, %v2223
    %v2234 = vmul.f32 %v2180, %v2225
    %v2235 = vmul.f32 %v2195, %v2227
    %2240 = vrot.lane.b32.xlu0 %v2232, 32
    %v2241 = vpop.permute.xlu0 %2240
    %2242 = vrot.lane.b32.xlu0 %v2233, 32
    %v2243 = vpop.permute.xlu0 %2242
    %2244 = vrot.lane.b32.xlu0 %v2234, 32
    %v2245 = vpop.permute.xlu0 %2244
    %2246 = vrot.lane.b32.xlu0 %v2235, 32
    %v2247 = vpop.permute.xlu0 %2246
    %v2252 = vadd.f32 %v2212, %v2241
    %v2253 = vadd.f32 %v2213, %v2243
    %v2254 = vadd.f32 %v2214, %v2245
    %v2255 = vadd.f32 %v2215, %v2247
    %v2256 = vtanh.pop %v2252
    %v2257 = vtanh.pop %v2253
    %v2258 = vtanh.pop %v2254
    %v2259 = vtanh.pop %v2255
    %2264 = vrot.lane.b32.xlu0 %v2256, 64
    %v2265 = vpop.permute.xlu0 %2264
    %2266 = vrot.lane.b32.xlu0 %v2257, 64
    %v2267 = vpop.permute.xlu0 %2266
    %2268 = vrot.lane.b32.xlu0 %v2258, 64
    %v2269 = vpop.permute.xlu0 %2268
    %2270 = vrot.lane.b32.xlu0 %v2259, 64
    %v2271 = vpop.permute.xlu0 %2270
    %v2276 = vmul.f32 %v2150, %v2265
    %v2277 = vmul.f32 %v2165, %v2267
    %v2278 = vmul.f32 %v2180, %v2269
    %v2279 = vmul.f32 %v2195, %v2271
    %v2280 = vxor.u32 %v2116, 2147483648
    %v2281 = vxor.u32 %v2117, 2147483648
    %v2282 = vxor.u32 %v2118, 2147483648
    %v2283 = vxor.u32 %v2119, 2147483648
    %v2284 = vmul.f32 %v2280, 1.442695
    %v2285 = vpow.pop %v2284
    %v2286 = vmul.f32 %v2281, 1.442695
    %v2287 = vpow.pop %v2286
    %v2288 = vmul.f32 %v2282, 1.442695
    %v2289 = vpow.pop %v2288
    %v2290 = vmul.f32 %v2283, 1.442695
    %v2291 = vpow.pop %v2290
    %v2292 = vadd.f32 %v2285, 1.0
    %v2293 = vadd.f32 %v2287, 1.0
    %v2294 = vadd.f32 %v2289, 1.0
    %v2295 = vadd.f32 %v2291, 1.0
    %v2296 = vrcp.pop %v2292
    %v2297 = vmul.f32 %v2292, %v2296
    %v2298 = vsub.f32 1.0, %v2297
    %v2299 = vmul.f32 %v2296, %v2298
    %v2300 = vadd.f32 %v2296, %v2299
    %vm2301 = vweird.f32 %v2292
    %vm2302 = vweird.f32 %v2296
    %vm2303 = vmor %vm2301, %vm2302
    %v2304 = vsel %vm2303, %v2296, %v2300
    %v2305 = vand.u32 2147483647, %v2292
    %vm2306 = vcmp.eq.f32.partialorder %v2305, 8.507059e+37
    %v2307 = vand.u32 %v2292, 2147483648
    %v2308 = vor.u32 1.1754944e-38, %v2307
    %v2309 = vsel %vm2306, %v2308, %v2304
    %v2310 = vmul.f32 1.0, %v2309
    %v2311 = vrcp.pop %v2293
    %v2312 = vmul.f32 %v2293, %v2311
    %v2313 = vsub.f32 1.0, %v2312
    %v2314 = vmul.f32 %v2311, %v2313
    %v2315 = vadd.f32 %v2311, %v2314
    %vm2316 = vweird.f32 %v2293
    %vm2317 = vweird.f32 %v2311
    %vm2318 = vmor %vm2316, %vm2317
    %v2319 = vsel %vm2318, %v2311, %v2315
    %v2320 = vand.u32 2147483647, %v2293
    %vm2321 = vcmp.eq.f32.partialorder %v2320, 8.507059e+37
    %v2322 = vand.u32 %v2293, 2147483648
    %v2323 = vor.u32 1.1754944e-38, %v2322
    %v2324 = vsel %vm2321, %v2323, %v2319
    %v2325 = vmul.f32 1.0, %v2324
    %v2326 = vrcp.pop %v2294
    %v2327 = vmul.f32 %v2294, %v2326
    %v2328 = vsub.f32 1.0, %v2327
    %v2329 = vmul.f32 %v2326, %v2328
    %v2330 = vadd.f32 %v2326, %v2329
    %vm2331 = vweird.f32 %v2294
    %vm2332 = vweird.f32 %v2326
    %vm2333 = vmor %vm2331, %vm2332
    %v2334 = vsel %vm2333, %v2326, %v2330
    %v2335 = vand.u32 2147483647, %v2294
    %vm2336 = vcmp.eq.f32.partialorder %v2335, 8.507059e+37
    %v2337 = vand.u32 %v2294, 2147483648
    %v2338 = vor.u32 1.1754944e-38, %v2337
    %v2339 = vsel %vm2336, %v2338, %v2334
    %v2340 = vmul.f32 1.0, %v2339
    %v2341 = vrcp.pop %v2295
    %v2342 = vmul.f32 %v2295, %v2341
    %v2343 = vsub.f32 1.0, %v2342
    %v2344 = vmul.f32 %v2341, %v2343
    %v2345 = vadd.f32 %v2341, %v2344
    %vm2346 = vweird.f32 %v2295
    %vm2347 = vweird.f32 %v2341
    %vm2348 = vmor %vm2346, %vm2347
    %v2349 = vsel %vm2348, %v2341, %v2345
    %v2350 = vand.u32 2147483647, %v2295
    %vm2351 = vcmp.eq.f32.partialorder %v2350, 8.507059e+37
    %v2352 = vand.u32 %v2295, 2147483648
    %v2353 = vor.u32 1.1754944e-38, %v2352
    %v2354 = vsel %vm2351, %v2353, %v2349
    %v2355 = vmul.f32 1.0, %v2354
    %v2356 = vtanh.pop %v2116
    %v2357 = vtanh.pop %v2117
    %v2358 = vtanh.pop %v2118
    %v2359 = vtanh.pop %v2119
    %v2364 = vrot.slane %v1950, 1
    %v2365 = vrot.slane %v1951, 1
    %v2366 = vrot.slane %v1952, 1
    %v2367 = vrot.slane %v1953, 1
    %v2372 = vmul.f32 %v2310, %v2364
    %v2373 = vmul.f32 %v2325, %v2365
    %v2374 = vmul.f32 %v2340, %v2366
    %v2375 = vmul.f32 %v2355, %v2367
    %2380 = vrot.lane.b32.xlu0 %v2356, 64
    %v2381 = vpop.permute.xlu0 %2380
    %2382 = vrot.lane.b32.xlu0 %v2357, 64
    %v2383 = vpop.permute.xlu0 %2382
    %2384 = vrot.lane.b32.xlu0 %v2358, 64
    %v2385 = vpop.permute.xlu0 %2384
    %2386 = vrot.lane.b32.xlu0 %v2359, 64
    %v2387 = vpop.permute.xlu0 %2386
    %v2392 = vmul.f32 %v2310, %v2381
    %v2393 = vmul.f32 %v2325, %v2383
    %v2394 = vmul.f32 %v2340, %v2385
    %v2395 = vmul.f32 %v2355, %v2387
    %2400 = vrot.lane.b32.xlu0 %v2392, 32
    %v2401 = vpop.permute.xlu0 %2400
    %2402 = vrot.lane.b32.xlu0 %v2393, 32
    %v2403 = vpop.permute.xlu0 %2402
    %2404 = vrot.lane.b32.xlu0 %v2394, 32
    %v2405 = vpop.permute.xlu0 %2404
    %2406 = vrot.lane.b32.xlu0 %v2395, 32
    %v2407 = vpop.permute.xlu0 %2406
    %v2412 = vadd.f32 %v2372, %v2401
    %v2413 = vadd.f32 %v2373, %v2403
    %v2414 = vadd.f32 %v2374, %v2405
    %v2415 = vadd.f32 %v2375, %v2407
    %v2416 = vtanh.pop %v2412
    %v2417 = vtanh.pop %v2413
    %v2418 = vtanh.pop %v2414
    %v2419 = vtanh.pop %v2415
    %2424 = vrot.lane.b32.xlu0 %v2416, 64
    %v2425 = vpop.permute.xlu0 %2424
    %2426 = vrot.lane.b32.xlu0 %v2417, 64
    %v2427 = vpop.permute.xlu0 %2426
    %2428 = vrot.lane.b32.xlu0 %v2418, 64
    %v2429 = vpop.permute.xlu0 %2428
    %2430 = vrot.lane.b32.xlu0 %v2419, 64
    %v2431 = vpop.permute.xlu0 %2430
    %v2436 = vmul.f32 %v2310, %v2425
    %v2437 = vmul.f32 %v2325, %v2427
    %v2438 = vmul.f32 %v2340, %v2429
    %v2439 = vmul.f32 %v2355, %v2431
    %2444 = vrot.lane.b32.xlu0 %v2276, 32
    %v2445 = vpop.permute.xlu0 %2444
    %2446 = vrot.lane.b32.xlu0 %v2277, 32
    %v2447 = vpop.permute.xlu0 %2446
    %2448 = vrot.lane.b32.xlu0 %v2278, 32
    %v2449 = vpop.permute.xlu0 %2448
    %2450 = vrot.lane.b32.xlu0 %v2279, 32
    %v2451 = vpop.permute.xlu0 %2450
    %vm2456 = vcmask 258052
    %2457 = vst.msk [vmem:[#allocation2] sm:$0x10] %vm2456, %v2445
    %2458 = vst.msk [vmem:[#allocation2 + $0x8] sm:$0x10] %vm2456, %v2447
    %2459 = vst.msk [vmem:[#allocation2 + $0x10] sm:$0x10] %vm2456, %v2449
    %2460 = vst.msk [vmem:[#allocation2 + $0x18] sm:$0x10] %vm2456, %v2451
    %2465 = vrot.lane.b32.xlu0 %v2436, 64
    %v2466 = vpop.permute.xlu0 %2465
    %2467 = vrot.lane.b32.xlu0 %v2437, 64
    %v2468 = vpop.permute.xlu0 %2467
    %2469 = vrot.lane.b32.xlu0 %v2438, 64
    %v2470 = vpop.permute.xlu0 %2469
    %2471 = vrot.lane.b32.xlu0 %v2439, 64
    %v2472 = vpop.permute.xlu0 %2471
    %vm2477 = vcmask 519427
    %2478 = vst.msk [vmem:[#allocation2] sm:$0x8] %vm2477, %v2466
    %2479 = vst.msk [vmem:[#allocation2 + $0x8] sm:$0x8] %vm2477, %v2468
    %2480 = vst.msk [vmem:[#allocation2 + $0x10] sm:$0x8] %vm2477, %v2470
    %2481 = vst.msk [vmem:[#allocation2 + $0x18] sm:$0x8] %vm2477, %v2472
    %v2482 = vpack.c.bf16 %v2276, %v2276
    %v2483 = vpack.c.bf16 %v2277, %v2277
    %v2484 = vpack.c.bf16 %v2278, %v2278
    %v2485 = vpack.c.bf16 %v2279, %v2279
    %v2490 = vunpack.c.l.b16 %v2482
    %v2491 = vunpack.c.l.b16 %v2483
    %v2492 = vunpack.c.l.b16 %v2484
    %v2493 = vunpack.c.l.b16 %v2485
    %v2494 = vrot.slane %v2490, 4
    %v2495 = vrot.slane %v2491, 3
    %v2496 = vsel %vm644, %v2495, %v2494
    %v2497 = vrot.slane %v2492, 2
    %v2498 = vsel %vm647, %v2497, %v2496
    %v2499 = vrot.slane %v2493, 1
    %v2500 = vsel %vm650, %v2499, %v2498
    %v2501 = vpack.c.b16 %v2500, %v2500
    %2502 = vrot.lane.b32.xlu0 %v2501, 32
    %v2503 = vpop.permute.xlu0 %2502
    %v2505 = vsel %vm174, %v2503, 0
    %2507 = vmatpush.bf16.msra.mxu0 0
    %2508 = vmatpush.bf16.msra.mxu0 0
    %2509 = vmatpush.bf16.msra.mxu0 0
    %2510 = vmatpush.bf16.msra.mxu0 0
    %2511 = vmatpush.bf16.msra.mxu0 0
    %2512 = vmatpush.bf16.msra.mxu0 0
    %2513 = vmatpush.bf16.msra.mxu0 %v228
    %2514 = vmatpush.bf16.msra.mxu0 %v227
    %2515 = vmatmul.bf16.gmra.mxu0 %v2505
    %v2516 = vpop.f32.mrf.mxu0
    %v2517 = vadd.f32 0.0, %v2516
    %v2518 = vpop.f32.mrf.mxu0
    %2519 = vdwg.mxu0
    %v2521 = vrot.slane %v2517, 3
    %v2522 = vrot.slane %v2517, 4
    %v2523 = vrot.slane %v2517, 5
    %v2524 = vrot.slane %v2517, 6
    %v2529 = vadd.f32 %v191, %v2521
    %v2530 = vadd.f32 %v193, %v2522
    %v2531 = vadd.f32 %v196, %v2523
    %v2532 = vadd.f32 %v198, %v2524
    %v2533 = vpack.c.bf16 %v2436, %v2436
    %v2534 = vpack.c.bf16 %v2437, %v2437
    %v2535 = vpack.c.bf16 %v2438, %v2438
    %v2536 = vpack.c.bf16 %v2439, %v2439
    %v2541 = vunpack.c.l.b16 %v2533
    %v2542 = vunpack.c.l.b16 %v2534
    %v2543 = vunpack.c.l.b16 %v2535
    %v2544 = vunpack.c.l.b16 %v2536
    %v2545 = vrot.slane %v2541, 3
    %v2546 = vrot.slane %v2542, 2
    %v2547 = vsel %vm644, %v2546, %v2545
    %v2548 = vrot.slane %v2543, 1
    %v2549 = vsel %vm647, %v2548, %v2547
    %v2550 = vsel %vm650, %v2544, %v2549
    %v2551 = vpack.c.b16 %v2550, %v2550
    %2552 = vrot.lane.b32.xlu0 %v2551, 32
    %v2553 = vpop.permute.xlu0 %2552
    %v2555 = vsel %vm174, %v2553, 0
    %2557 = vmatpush.bf16.msra.mxu0 0
    %2558 = vmatpush.bf16.msra.mxu0 0
    %2559 = vmatpush.bf16.msra.mxu0 0
    %2560 = vmatpush.bf16.msra.mxu0 0
    %2561 = vmatpush.bf16.msra.mxu0 0
    %2562 = vmatpush.bf16.msra.mxu0 0
    %2563 = vmatpush.bf16.msra.mxu0 %v264
    %2564 = vmatpush.bf16.msra.mxu0 %v263
    %2565 = vmatmul.bf16.gmra.mxu0 %v2555
    %v2566 = vpop.f32.mrf.mxu0
    %v2567 = vadd.f32 0.0, %v2566
    %v2568 = vpop.f32.mrf.mxu0
    %2569 = vdwg.mxu0
    %v2571 = vrot.slane %v2567, 6
    %v2572 = vrot.slane %v2567, 7
    %v2573 = vrot.slane %v2567, 1
    %v2578 = vadd.f32 %v210, %v2571
    %v2579 = vadd.f32 %v212, %v2572
    %v2580 = vadd.f32 %v215, %v2567
    %v2581 = vadd.f32 %v217, %v2573
    %v2582 = vxor.u32 %v2529, 2147483648
    %v2583 = vxor.u32 %v2530, 2147483648
    %v2584 = vxor.u32 %v2531, 2147483648
    %v2585 = vxor.u32 %v2532, 2147483648
    %v2586 = vmul.f32 %v2582, 1.442695
    %v2587 = vpow.pop %v2586
    %v2588 = vmul.f32 %v2583, 1.442695
    %v2589 = vpow.pop %v2588
    %v2590 = vmul.f32 %v2584, 1.442695
    %v2591 = vpow.pop %v2590
    %v2592 = vmul.f32 %v2585, 1.442695
    %v2593 = vpow.pop %v2592
    %v2594 = vadd.f32 %v2587, 1.0
    %v2595 = vadd.f32 %v2589, 1.0
    %v2596 = vadd.f32 %v2591, 1.0
    %v2597 = vadd.f32 %v2593, 1.0
    %v2598 = vrcp.pop %v2594
    %v2599 = vmul.f32 %v2594, %v2598
    %v2600 = vsub.f32 1.0, %v2599
    %v2601 = vmul.f32 %v2598, %v2600
    %v2602 = vadd.f32 %v2598, %v2601
    %vm2603 = vweird.f32 %v2594
    %vm2604 = vweird.f32 %v2598
    %vm2605 = vmor %vm2603, %vm2604
    %v2606 = vsel %vm2605, %v2598, %v2602
    %v2607 = vand.u32 2147483647, %v2594
    %vm2608 = vcmp.eq.f32.partialorder %v2607, 8.507059e+37
    %v2609 = vand.u32 %v2594, 2147483648
    %v2610 = vor.u32 1.1754944e-38, %v2609
    %v2611 = vsel %vm2608, %v2610, %v2606
    %v2612 = vmul.f32 1.0, %v2611
    %v2613 = vrcp.pop %v2595
    %v2614 = vmul.f32 %v2595, %v2613
    %v2615 = vsub.f32 1.0, %v2614
    %v2616 = vmul.f32 %v2613, %v2615
    %v2617 = vadd.f32 %v2613, %v2616
    %vm2618 = vweird.f32 %v2595
    %vm2619 = vweird.f32 %v2613
    %vm2620 = vmor %vm2618, %vm2619
    %v2621 = vsel %vm2620, %v2613, %v2617
    %v2622 = vand.u32 2147483647, %v2595
    %vm2623 = vcmp.eq.f32.partialorder %v2622, 8.507059e+37
    %v2624 = vand.u32 %v2595, 2147483648
    %v2625 = vor.u32 1.1754944e-38, %v2624
    %v2626 = vsel %vm2623, %v2625, %v2621
    %v2627 = vmul.f32 1.0, %v2626
    %v2628 = vrcp.pop %v2596
    %v2629 = vmul.f32 %v2596, %v2628
    %v2630 = vsub.f32 1.0, %v2629
    %v2631 = vmul.f32 %v2628, %v2630
    %v2632 = vadd.f32 %v2628, %v2631
    %vm2633 = vweird.f32 %v2596
    %vm2634 = vweird.f32 %v2628
    %vm2635 = vmor %vm2633, %vm2634
    %v2636 = vsel %vm2635, %v2628, %v2632
    %v2637 = vand.u32 2147483647, %v2596
    %vm2638 = vcmp.eq.f32.partialorder %v2637, 8.507059e+37
    %v2639 = vand.u32 %v2596, 2147483648
    %v2640 = vor.u32 1.1754944e-38, %v2639
    %v2641 = vsel %vm2638, %v2640, %v2636
    %v2642 = vmul.f32 1.0, %v2641
    %v2643 = vrcp.pop %v2597
    %v2644 = vmul.f32 %v2597, %v2643
    %v2645 = vsub.f32 1.0, %v2644
    %v2646 = vmul.f32 %v2643, %v2645
    %v2647 = vadd.f32 %v2643, %v2646
    %vm2648 = vweird.f32 %v2597
    %vm2649 = vweird.f32 %v2643
    %vm2650 = vmor %vm2648, %vm2649
    %v2651 = vsel %vm2650, %v2643, %v2647
    %v2652 = vand.u32 2147483647, %v2597
    %vm2653 = vcmp.eq.f32.partialorder %v2652, 8.507059e+37
    %v2654 = vand.u32 %v2597, 2147483648
    %v2655 = vor.u32 1.1754944e-38, %v2654
    %v2656 = vsel %vm2653, %v2655, %v2651
    %v2657 = vmul.f32 1.0, %v2656
    %v2658 = vtanh.pop %v2529
    %v2659 = vtanh.pop %v2530
    %v2660 = vtanh.pop %v2531
    %v2661 = vtanh.pop %v2532
    %v2666 = vrot.slane %v2252, 7
    %v2667 = vrot.slane %v2253, 7
    %v2668 = vrot.slane %v2254, 7
    %v2669 = vrot.slane %v2255, 7
    %v2674 = vmul.f32 %v2612, %v2666
    %v2675 = vmul.f32 %v2627, %v2667
    %v2676 = vmul.f32 %v2642, %v2668
    %v2677 = vmul.f32 %v2657, %v2669
    %2682 = vrot.lane.b32.xlu0 %v2658, 64
    %v2683 = vpop.permute.xlu0 %2682
    %2684 = vrot.lane.b32.xlu0 %v2659, 64
    %v2685 = vpop.permute.xlu0 %2684
    %2686 = vrot.lane.b32.xlu0 %v2660, 64
    %v2687 = vpop.permute.xlu0 %2686
    %2688 = vrot.lane.b32.xlu0 %v2661, 64
    %v2689 = vpop.permute.xlu0 %2688
    %v2694 = vmul.f32 %v2612, %v2683
    %v2695 = vmul.f32 %v2627, %v2685
    %v2696 = vmul.f32 %v2642, %v2687
    %v2697 = vmul.f32 %v2657, %v2689
    %2702 = vrot.lane.b32.xlu0 %v2694, 32
    %v2703 = vpop.permute.xlu0 %2702
    %2704 = vrot.lane.b32.xlu0 %v2695, 32
    %v2705 = vpop.permute.xlu0 %2704
    %2706 = vrot.lane.b32.xlu0 %v2696, 32
    %v2707 = vpop.permute.xlu0 %2706
    %2708 = vrot.lane.b32.xlu0 %v2697, 32
    %v2709 = vpop.permute.xlu0 %2708
    %v2714 = vadd.f32 %v2674, %v2703
    %v2715 = vadd.f32 %v2675, %v2705
    %v2716 = vadd.f32 %v2676, %v2707
    %v2717 = vadd.f32 %v2677, %v2709
    %v2718 = vtanh.pop %v2714
    %v2719 = vtanh.pop %v2715
    %v2720 = vtanh.pop %v2716
    %v2721 = vtanh.pop %v2717
    %2726 = vrot.lane.b32.xlu0 %v2718, 64
    %v2727 = vpop.permute.xlu0 %2726
    %2728 = vrot.lane.b32.xlu0 %v2719, 64
    %v2729 = vpop.permute.xlu0 %2728
    %2730 = vrot.lane.b32.xlu0 %v2720, 64
    %v2731 = vpop.permute.xlu0 %2730
    %2732 = vrot.lane.b32.xlu0 %v2721, 64
    %v2733 = vpop.permute.xlu0 %2732
    %v2738 = vmul.f32 %v2612, %v2727
    %v2739 = vmul.f32 %v2627, %v2729
    %v2740 = vmul.f32 %v2642, %v2731
    %v2741 = vmul.f32 %v2657, %v2733
    %v2742 = vxor.u32 %v2578, 2147483648
    %v2743 = vxor.u32 %v2579, 2147483648
    %v2744 = vxor.u32 %v2580, 2147483648
    %v2745 = vxor.u32 %v2581, 2147483648
    %v2746 = vmul.f32 %v2742, 1.442695
    %v2747 = vpow.pop %v2746
    %v2748 = vmul.f32 %v2743, 1.442695
    %v2749 = vpow.pop %v2748
    %v2750 = vmul.f32 %v2744, 1.442695
    %v2751 = vpow.pop %v2750
    %v2752 = vmul.f32 %v2745, 1.442695
    %v2753 = vpow.pop %v2752
    %v2754 = vadd.f32 %v2747, 1.0
    %v2755 = vadd.f32 %v2749, 1.0
    %v2756 = vadd.f32 %v2751, 1.0
    %v2757 = vadd.f32 %v2753, 1.0
    %v2758 = vrcp.pop %v2754
    %v2759 = vmul.f32 %v2754, %v2758
    %v2760 = vsub.f32 1.0, %v2759
    %v2761 = vmul.f32 %v2758, %v2760
    %v2762 = vadd.f32 %v2758, %v2761
    %vm2763 = vweird.f32 %v2754
    %vm2764 = vweird.f32 %v2758
    %vm2765 = vmor %vm2763, %vm2764
    %v2766 = vsel %vm2765, %v2758, %v2762
    %v2767 = vand.u32 2147483647, %v2754
    %vm2768 = vcmp.eq.f32.partialorder %v2767, 8.507059e+37
    %v2769 = vand.u32 %v2754, 2147483648
    %v2770 = vor.u32 1.1754944e-38, %v2769
    %v2771 = vsel %vm2768, %v2770, %v2766
    %v2772 = vmul.f32 1.0, %v2771
    %v2773 = vrcp.pop %v2755
    %v2774 = vmul.f32 %v2755, %v2773
    %v2775 = vsub.f32 1.0, %v2774
    %v2776 = vmul.f32 %v2773, %v2775
    %v2777 = vadd.f32 %v2773, %v2776
    %vm2778 = vweird.f32 %v2755
    %vm2779 = vweird.f32 %v2773
    %vm2780 = vmor %vm2778, %vm2779
    %v2781 = vsel %vm2780, %v2773, %v2777
    %v2782 = vand.u32 2147483647, %v2755
    %vm2783 = vcmp.eq.f32.partialorder %v2782, 8.507059e+37
    %v2784 = vand.u32 %v2755, 2147483648
    %v2785 = vor.u32 1.1754944e-38, %v2784
    %v2786 = vsel %vm2783, %v2785, %v2781
    %v2787 = vmul.f32 1.0, %v2786
    %v2788 = vrcp.pop %v2756
    %v2789 = vmul.f32 %v2756, %v2788
    %v2790 = vsub.f32 1.0, %v2789
    %v2791 = vmul.f32 %v2788, %v2790
    %v2792 = vadd.f32 %v2788, %v2791
    %vm2793 = vweird.f32 %v2756
    %vm2794 = vweird.f32 %v2788
    %vm2795 = vmor %vm2793, %vm2794
    %v2796 = vsel %vm2795, %v2788, %v2792
    %v2797 = vand.u32 2147483647, %v2756
    %vm2798 = vcmp.eq.f32.partialorder %v2797, 8.507059e+37
    %v2799 = vand.u32 %v2756, 2147483648
    %v2800 = vor.u32 1.1754944e-38, %v2799
    %v2801 = vsel %vm2798, %v2800, %v2796
    %v2802 = vmul.f32 1.0, %v2801
    %v2803 = vrcp.pop %v2757
    %v2804 = vmul.f32 %v2757, %v2803
    %v2805 = vsub.f32 1.0, %v2804
    %v2806 = vmul.f32 %v2803, %v2805
    %v2807 = vadd.f32 %v2803, %v2806
    %vm2808 = vweird.f32 %v2757
    %vm2809 = vweird.f32 %v2803
    %vm2810 = vmor %vm2808, %vm2809
    %v2811 = vsel %vm2810, %v2803, %v2807
    %v2812 = vand.u32 2147483647, %v2757
    %vm2813 = vcmp.eq.f32.partialorder %v2812, 8.507059e+37
    %v2814 = vand.u32 %v2757, 2147483648
    %v2815 = vor.u32 1.1754944e-38, %v2814
    %v2816 = vsel %vm2813, %v2815, %v2811
    %v2817 = vmul.f32 1.0, %v2816
    %v2818 = vtanh.pop %v2578
    %v2819 = vtanh.pop %v2579
    %v2820 = vtanh.pop %v2580
    %v2821 = vtanh.pop %v2581
    %v2826 = vrot.slane %v2412, 1
    %v2827 = vrot.slane %v2413, 1
    %v2828 = vrot.slane %v2414, 1
    %v2829 = vrot.slane %v2415, 1
    %v2834 = vmul.f32 %v2772, %v2826
    %v2835 = vmul.f32 %v2787, %v2827
    %v2836 = vmul.f32 %v2802, %v2828
    %v2837 = vmul.f32 %v2817, %v2829
    %2842 = vrot.lane.b32.xlu0 %v2818, 64
    %v2843 = vpop.permute.xlu0 %2842
    %2844 = vrot.lane.b32.xlu0 %v2819, 64
    %v2845 = vpop.permute.xlu0 %2844
    %2846 = vrot.lane.b32.xlu0 %v2820, 64
    %v2847 = vpop.permute.xlu0 %2846
    %2848 = vrot.lane.b32.xlu0 %v2821, 64
    %v2849 = vpop.permute.xlu0 %2848
    %v2854 = vmul.f32 %v2772, %v2843
    %v2855 = vmul.f32 %v2787, %v2845
    %v2856 = vmul.f32 %v2802, %v2847
    %v2857 = vmul.f32 %v2817, %v2849
    %2862 = vrot.lane.b32.xlu0 %v2854, 32
    %v2863 = vpop.permute.xlu0 %2862
    %2864 = vrot.lane.b32.xlu0 %v2855, 32
    %v2865 = vpop.permute.xlu0 %2864
    %2866 = vrot.lane.b32.xlu0 %v2856, 32
    %v2867 = vpop.permute.xlu0 %2866
    %2868 = vrot.lane.b32.xlu0 %v2857, 32
    %v2869 = vpop.permute.xlu0 %2868
    %v2874 = vadd.f32 %v2834, %v2863
    %v2875 = vadd.f32 %v2835, %v2865
    %v2876 = vadd.f32 %v2836, %v2867
    %v2877 = vadd.f32 %v2837, %v2869
    %v2878 = vtanh.pop %v2874
    %v2879 = vtanh.pop %v2875
    %v2880 = vtanh.pop %v2876
    %v2881 = vtanh.pop %v2877
    %2886 = vrot.lane.b32.xlu0 %v2878, 64
    %v2887 = vpop.permute.xlu0 %2886
    %2888 = vrot.lane.b32.xlu0 %v2879, 64
    %v2889 = vpop.permute.xlu0 %2888
    %2890 = vrot.lane.b32.xlu0 %v2880, 64
    %v2891 = vpop.permute.xlu0 %2890
    %2892 = vrot.lane.b32.xlu0 %v2881, 64
    %v2893 = vpop.permute.xlu0 %2892
    %v2898 = vmul.f32 %v2772, %v2887
    %v2899 = vmul.f32 %v2787, %v2889
    %v2900 = vmul.f32 %v2802, %v2891
    %v2901 = vmul.f32 %v2817, %v2893
    %2906 = vrot.lane.b32.xlu0 %v2738, 32
    %v2907 = vpop.permute.xlu0 %2906
    %2908 = vrot.lane.b32.xlu0 %v2739, 32
    %v2909 = vpop.permute.xlu0 %2908
    %2910 = vrot.lane.b32.xlu0 %v2740, 32
    %v2911 = vpop.permute.xlu0 %2910
    %2912 = vrot.lane.b32.xlu0 %v2741, 32
    %v2913 = vpop.permute.xlu0 %2912
    %vm2918 = vcmask 259077
    %2919 = vst.msk [vmem:[#allocation2] sm:$0x20] %vm2918, %v2907
    %2920 = vst.msk [vmem:[#allocation2 + $0x8] sm:$0x20] %vm2918, %v2909
    %2921 = vst.msk [vmem:[#allocation2 + $0x10] sm:$0x20] %vm2918, %v2911
    %2922 = vst.msk [vmem:[#allocation2 + $0x18] sm:$0x20] %vm2918, %v2913
    %2927 = vrot.lane.b32.xlu0 %v2898, 64
    %v2928 = vpop.permute.xlu0 %2927
    %2929 = vrot.lane.b32.xlu0 %v2899, 64
    %v2930 = vpop.permute.xlu0 %2929
    %2931 = vrot.lane.b32.xlu0 %v2900, 64
    %v2932 = vpop.permute.xlu0 %2931
    %2933 = vrot.lane.b32.xlu0 %v2901, 64
    %v2934 = vpop.permute.xlu0 %2933
    %vm2939 = vcmask 518402
    %2940 = vst.msk [vmem:[#allocation2] sm:$0x4] %vm2939, %v2928
    %2941 = vst.msk [vmem:[#allocation2 + $0x8] sm:$0x4] %vm2939, %v2930
    %2942 = vst.msk [vmem:[#allocation2 + $0x10] sm:$0x4] %vm2939, %v2932
    %2943 = vst.msk [vmem:[#allocation2 + $0x18] sm:$0x4] %vm2939, %v2934
    %v2944 = vpack.c.bf16 %v2738, %v2738
    %v2945 = vpack.c.bf16 %v2739, %v2739
    %v2946 = vpack.c.bf16 %v2740, %v2740
    %v2947 = vpack.c.bf16 %v2741, %v2741
    %v2952 = vunpack.c.l.b16 %v2944
    %v2953 = vunpack.c.l.b16 %v2945
    %v2954 = vunpack.c.l.b16 %v2946
    %v2955 = vunpack.c.l.b16 %v2947
    %v2956 = vrot.slane %v2952, 5
    %v2957 = vrot.slane %v2953, 4
    %v2958 = vsel %vm644, %v2957, %v2956
    %v2959 = vrot.slane %v2954, 3
    %v2960 = vsel %vm647, %v2959, %v2958
    %v2961 = vrot.slane %v2955, 2
    %v2962 = vsel %vm650, %v2961, %v2960
    %v2963 = vpack.c.b16 %v2962, %v2962
    %2964 = vrot.lane.b32.xlu0 %v2963, 32
    %v2965 = vpop.permute.xlu0 %2964
    %v2967 = vsel %vm174, %v2965, 0
    %2969 = vmatpush.bf16.msra.mxu0 0
    %2970 = vmatpush.bf16.msra.mxu0 0
    %2971 = vmatpush.bf16.msra.mxu0 0
    %2972 = vmatpush.bf16.msra.mxu0 0
    %2973 = vmatpush.bf16.msra.mxu0 0
    %2974 = vmatpush.bf16.msra.mxu0 0
    %2975 = vmatpush.bf16.msra.mxu0 %v228
    %2976 = vmatpush.bf16.msra.mxu0 %v227
    %2977 = vmatmul.bf16.gmra.mxu0 %v2967
    %v2978 = vpop.f32.mrf.mxu0
    %v2979 = vadd.f32 0.0, %v2978
    %v2980 = vpop.f32.mrf.mxu0
    %2981 = vdwg.mxu0
    %v2983 = vrot.slane %v2979, 2
    %v2984 = vrot.slane %v2979, 3
    %v2985 = vrot.slane %v2979, 4
    %v2986 = vrot.slane %v2979, 5
    %v2991 = vadd.f32 %v191, %v2983
    %v2992 = vadd.f32 %v193, %v2984
    %v2993 = vadd.f32 %v196, %v2985
    %v2994 = vadd.f32 %v198, %v2986
    %v2995 = vpack.c.bf16 %v2898, %v2898
    %v2996 = vpack.c.bf16 %v2899, %v2899
    %v2997 = vpack.c.bf16 %v2900, %v2900
    %v2998 = vpack.c.bf16 %v2901, %v2901
    %v3003 = vunpack.c.l.b16 %v2995
    %v3004 = vunpack.c.l.b16 %v2996
    %v3005 = vunpack.c.l.b16 %v2997
    %v3006 = vunpack.c.l.b16 %v2998
    %v3007 = vrot.slane %v3003, 2
    %v3008 = vrot.slane %v3004, 1
    %v3009 = vsel %vm644, %v3008, %v3007
    %v3010 = vsel %vm647, %v3005, %v3009
    %v3011 = vrot.slane %v3006, 7
    %v3012 = vsel %vm650, %v3011, %v3010
    %v3013 = vpack.c.b16 %v3012, %v3012
    %3014 = vrot.lane.b32.xlu0 %v3013, 32
    %v3015 = vpop.permute.xlu0 %3014
    %v3017 = vsel %vm174, %v3015, 0
    %3019 = vmatpush.bf16.msra.mxu0 0
    %3020 = vmatpush.bf16.msra.mxu0 0
    %3021 = vmatpush.bf16.msra.mxu0 0
    %3022 = vmatpush.bf16.msra.mxu0 0
    %3023 = vmatpush.bf16.msra.mxu0 0
    %3024 = vmatpush.bf16.msra.mxu0 0
    %3025 = vmatpush.bf16.msra.mxu0 %v264
    %3026 = vmatpush.bf16.msra.mxu0 %v263
    %3027 = vmatmul.bf16.gmra.mxu0 %v3017
    %v3028 = vpop.f32.mrf.mxu0
    %v3029 = vadd.f32 0.0, %v3028
    %v3030 = vpop.f32.mrf.mxu0
    %3031 = vdwg.mxu0
    %v3033 = vrot.slane %v3029, 7
    %v3034 = vrot.slane %v3029, 1
    %v3035 = vrot.slane %v3029, 2
    %v3040 = vadd.f32 %v210, %v3033
    %v3041 = vadd.f32 %v212, %v3029
    %v3042 = vadd.f32 %v215, %v3034
    %v3043 = vadd.f32 %v217, %v3035
    %v3044 = vxor.u32 %v2991, 2147483648
    %v3045 = vxor.u32 %v2992, 2147483648
    %v3046 = vxor.u32 %v2993, 2147483648
    %v3047 = vxor.u32 %v2994, 2147483648
    %v3048 = vmul.f32 %v3044, 1.442695
    %v3049 = vpow.pop %v3048
    %v3050 = vmul.f32 %v3045, 1.442695
    %v3051 = vpow.pop %v3050
    %v3052 = vmul.f32 %v3046, 1.442695
    %v3053 = vpow.pop %v3052
    %v3054 = vmul.f32 %v3047, 1.442695
    %v3055 = vpow.pop %v3054
    %v3056 = vadd.f32 %v3049, 1.0
    %v3057 = vadd.f32 %v3051, 1.0
    %v3058 = vadd.f32 %v3053, 1.0
    %v3059 = vadd.f32 %v3055, 1.0
    %v3060 = vrcp.pop %v3056
    %v3061 = vmul.f32 %v3056, %v3060
    %v3062 = vsub.f32 1.0, %v3061
    %v3063 = vmul.f32 %v3060, %v3062
    %v3064 = vadd.f32 %v3060, %v3063
    %vm3065 = vweird.f32 %v3056
    %vm3066 = vweird.f32 %v3060
    %vm3067 = vmor %vm3065, %vm3066
    %v3068 = vsel %vm3067, %v3060, %v3064
    %v3069 = vand.u32 2147483647, %v3056
    %vm3070 = vcmp.eq.f32.partialorder %v3069, 8.507059e+37
    %v3071 = vand.u32 %v3056, 2147483648
    %v3072 = vor.u32 1.1754944e-38, %v3071
    %v3073 = vsel %vm3070, %v3072, %v3068
    %v3074 = vmul.f32 1.0, %v3073
    %v3075 = vrcp.pop %v3057
    %v3076 = vmul.f32 %v3057, %v3075
    %v3077 = vsub.f32 1.0, %v3076
    %v3078 = vmul.f32 %v3075, %v3077
    %v3079 = vadd.f32 %v3075, %v3078
    %vm3080 = vweird.f32 %v3057
    %vm3081 = vweird.f32 %v3075
    %vm3082 = vmor %vm3080, %vm3081
    %v3083 = vsel %vm3082, %v3075, %v3079
    %v3084 = vand.u32 2147483647, %v3057
    %vm3085 = vcmp.eq.f32.partialorder %v3084, 8.507059e+37
    %v3086 = vand.u32 %v3057, 2147483648
    %v3087 = vor.u32 1.1754944e-38, %v3086
    %v3088 = vsel %vm3085, %v3087, %v3083
    %v3089 = vmul.f32 1.0, %v3088
    %v3090 = vrcp.pop %v3058
    %v3091 = vmul.f32 %v3058, %v3090
    %v3092 = vsub.f32 1.0, %v3091
    %v3093 = vmul.f32 %v3090, %v3092
    %v3094 = vadd.f32 %v3090, %v3093
    %vm3095 = vweird.f32 %v3058
    %vm3096 = vweird.f32 %v3090
    %vm3097 = vmor %vm3095, %vm3096
    %v3098 = vsel %vm3097, %v3090, %v3094
    %v3099 = vand.u32 2147483647, %v3058
    %vm3100 = vcmp.eq.f32.partialorder %v3099, 8.507059e+37
    %v3101 = vand.u32 %v3058, 2147483648
    %v3102 = vor.u32 1.1754944e-38, %v3101
    %v3103 = vsel %vm3100, %v3102, %v3098
    %v3104 = vmul.f32 1.0, %v3103
    %v3105 = vrcp.pop %v3059
    %v3106 = vmul.f32 %v3059, %v3105
    %v3107 = vsub.f32 1.0, %v3106
    %v3108 = vmul.f32 %v3105, %v3107
    %v3109 = vadd.f32 %v3105, %v3108
    %vm3110 = vweird.f32 %v3059
    %vm3111 = vweird.f32 %v3105
    %vm3112 = vmor %vm3110, %vm3111
    %v3113 = vsel %vm3112, %v3105, %v3109
    %v3114 = vand.u32 2147483647, %v3059
    %vm3115 = vcmp.eq.f32.partialorder %v3114, 8.507059e+37
    %v3116 = vand.u32 %v3059, 2147483648
    %v3117 = vor.u32 1.1754944e-38, %v3116
    %v3118 = vsel %vm3115, %v3117, %v3113
    %v3119 = vmul.f32 1.0, %v3118
    %v3120 = vtanh.pop %v2991
    %v3121 = vtanh.pop %v2992
    %v3122 = vtanh.pop %v2993
    %v3123 = vtanh.pop %v2994
    %v3128 = vrot.slane %v2714, 7
    %v3129 = vrot.slane %v2715, 7
    %v3130 = vrot.slane %v2716, 7
    %v3131 = vrot.slane %v2717, 7
    %v3136 = vmul.f32 %v3074, %v3128
    %v3137 = vmul.f32 %v3089, %v3129
    %v3138 = vmul.f32 %v3104, %v3130
    %v3139 = vmul.f32 %v3119, %v3131
    %3144 = vrot.lane.b32.xlu0 %v3120, 64
    %v3145 = vpop.permute.xlu0 %3144
    %3146 = vrot.lane.b32.xlu0 %v3121, 64
    %v3147 = vpop.permute.xlu0 %3146
    %3148 = vrot.lane.b32.xlu0 %v3122, 64
    %v3149 = vpop.permute.xlu0 %3148
    %3150 = vrot.lane.b32.xlu0 %v3123, 64
    %v3151 = vpop.permute.xlu0 %3150
    %v3156 = vmul.f32 %v3074, %v3145
    %v3157 = vmul.f32 %v3089, %v3147
    %v3158 = vmul.f32 %v3104, %v3149
    %v3159 = vmul.f32 %v3119, %v3151
    %3164 = vrot.lane.b32.xlu0 %v3156, 32
    %v3165 = vpop.permute.xlu0 %3164
    %3166 = vrot.lane.b32.xlu0 %v3157, 32
    %v3167 = vpop.permute.xlu0 %3166
    %3168 = vrot.lane.b32.xlu0 %v3158, 32
    %v3169 = vpop.permute.xlu0 %3168
    %3170 = vrot.lane.b32.xlu0 %v3159, 32
    %v3171 = vpop.permute.xlu0 %3170
    %v3176 = vadd.f32 %v3136, %v3165
    %v3177 = vadd.f32 %v3137, %v3167
    %v3178 = vadd.f32 %v3138, %v3169
    %v3179 = vadd.f32 %v3139, %v3171
    %v3180 = vtanh.pop %v3176
    %v3181 = vtanh.pop %v3177
    %v3182 = vtanh.pop %v3178
    %v3183 = vtanh.pop %v3179
    %3188 = vrot.lane.b32.xlu0 %v3180, 64
    %v3189 = vpop.permute.xlu0 %3188
    %3190 = vrot.lane.b32.xlu0 %v3181, 64
    %v3191 = vpop.permute.xlu0 %3190
    %3192 = vrot.lane.b32.xlu0 %v3182, 64
    %v3193 = vpop.permute.xlu0 %3192
    %3194 = vrot.lane.b32.xlu0 %v3183, 64
    %v3195 = vpop.permute.xlu0 %3194
    %v3200 = vmul.f32 %v3074, %v3189
    %v3201 = vmul.f32 %v3089, %v3191
    %v3202 = vmul.f32 %v3104, %v3193
    %v3203 = vmul.f32 %v3119, %v3195
    %v3204 = vxor.u32 %v3040, 2147483648
    %v3205 = vxor.u32 %v3041, 2147483648
    %v3206 = vxor.u32 %v3042, 2147483648
    %v3207 = vxor.u32 %v3043, 2147483648
    %v3208 = vmul.f32 %v3204, 1.442695
    %v3209 = vpow.pop %v3208
    %v3210 = vmul.f32 %v3205, 1.442695
    %v3211 = vpow.pop %v3210
    %v3212 = vmul.f32 %v3206, 1.442695
    %v3213 = vpow.pop %v3212
    %v3214 = vmul.f32 %v3207, 1.442695
    %v3215 = vpow.pop %v3214
    %v3216 = vadd.f32 %v3209, 1.0
    %v3217 = vadd.f32 %v3211, 1.0
    %v3218 = vadd.f32 %v3213, 1.0
    %v3219 = vadd.f32 %v3215, 1.0
    %v3220 = vrcp.pop %v3216
    %v3221 = vmul.f32 %v3216, %v3220
    %v3222 = vsub.f32 1.0, %v3221
    %v3223 = vmul.f32 %v3220, %v3222
    %v3224 = vadd.f32 %v3220, %v3223
    %vm3225 = vweird.f32 %v3216
    %vm3226 = vweird.f32 %v3220
    %vm3227 = vmor %vm3225, %vm3226
    %v3228 = vsel %vm3227, %v3220, %v3224
    %v3229 = vand.u32 2147483647, %v3216
    %vm3230 = vcmp.eq.f32.partialorder %v3229, 8.507059e+37
    %v3231 = vand.u32 %v3216, 2147483648
    %v3232 = vor.u32 1.1754944e-38, %v3231
    %v3233 = vsel %vm3230, %v3232, %v3228
    %v3234 = vmul.f32 1.0, %v3233
    %v3235 = vrcp.pop %v3217
    %v3236 = vmul.f32 %v3217, %v3235
    %v3237 = vsub.f32 1.0, %v3236
    %v3238 = vmul.f32 %v3235, %v3237
    %v3239 = vadd.f32 %v3235, %v3238
    %vm3240 = vweird.f32 %v3217
    %vm3241 = vweird.f32 %v3235
    %vm3242 = vmor %vm3240, %vm3241
    %v3243 = vsel %vm3242, %v3235, %v3239
    %v3244 = vand.u32 2147483647, %v3217
    %vm3245 = vcmp.eq.f32.partialorder %v3244, 8.507059e+37
    %v3246 = vand.u32 %v3217, 2147483648
    %v3247 = vor.u32 1.1754944e-38, %v3246
    %v3248 = vsel %vm3245, %v3247, %v3243
    %v3249 = vmul.f32 1.0, %v3248
    %v3250 = vrcp.pop %v3218
    %v3251 = vmul.f32 %v3218, %v3250
    %v3252 = vsub.f32 1.0, %v3251
    %v3253 = vmul.f32 %v3250, %v3252
    %v3254 = vadd.f32 %v3250, %v3253
    %vm3255 = vweird.f32 %v3218
    %vm3256 = vweird.f32 %v3250
    %vm3257 = vmor %vm3255, %vm3256
    %v3258 = vsel %vm3257, %v3250, %v3254
    %v3259 = vand.u32 2147483647, %v3218
    %vm3260 = vcmp.eq.f32.partialorder %v3259, 8.507059e+37
    %v3261 = vand.u32 %v3218, 2147483648
    %v3262 = vor.u32 1.1754944e-38, %v3261
    %v3263 = vsel %vm3260, %v3262, %v3258
    %v3264 = vmul.f32 1.0, %v3263
    %v3265 = vrcp.pop %v3219
    %v3266 = vmul.f32 %v3219, %v3265
    %v3267 = vsub.f32 1.0, %v3266
    %v3268 = vmul.f32 %v3265, %v3267
    %v3269 = vadd.f32 %v3265, %v3268
    %vm3270 = vweird.f32 %v3219
    %vm3271 = vweird.f32 %v3265
    %vm3272 = vmor %vm3270, %vm3271
    %v3273 = vsel %vm3272, %v3265, %v3269
    %v3274 = vand.u32 2147483647, %v3219
    %vm3275 = vcmp.eq.f32.partialorder %v3274, 8.507059e+37
    %v3276 = vand.u32 %v3219, 2147483648
    %v3277 = vor.u32 1.1754944e-38, %v3276
    %v3278 = vsel %vm3275, %v3277, %v3273
    %v3279 = vmul.f32 1.0, %v3278
    %v3280 = vtanh.pop %v3040
    %v3281 = vtanh.pop %v3041
    %v3282 = vtanh.pop %v3042
    %v3283 = vtanh.pop %v3043
    %v3288 = vrot.slane %v2874, 1
    %v3289 = vrot.slane %v2875, 1
    %v3290 = vrot.slane %v2876, 1
    %v3291 = vrot.slane %v2877, 1
    %v3296 = vmul.f32 %v3234, %v3288
    %v3297 = vmul.f32 %v3249, %v3289
    %v3298 = vmul.f32 %v3264, %v3290
    %v3299 = vmul.f32 %v3279, %v3291
    %3304 = vrot.lane.b32.xlu0 %v3280, 64
    %v3305 = vpop.permute.xlu0 %3304
    %3306 = vrot.lane.b32.xlu0 %v3281, 64
    %v3307 = vpop.permute.xlu0 %3306
    %3308 = vrot.lane.b32.xlu0 %v3282, 64
    %v3309 = vpop.permute.xlu0 %3308
    %3310 = vrot.lane.b32.xlu0 %v3283, 64
    %v3311 = vpop.permute.xlu0 %3310
    %v3316 = vmul.f32 %v3234, %v3305
    %v3317 = vmul.f32 %v3249, %v3307
    %v3318 = vmul.f32 %v3264, %v3309
    %v3319 = vmul.f32 %v3279, %v3311
    %3324 = vrot.lane.b32.xlu0 %v3316, 32
    %v3325 = vpop.permute.xlu0 %3324
    %3326 = vrot.lane.b32.xlu0 %v3317, 32
    %v3327 = vpop.permute.xlu0 %3326
    %3328 = vrot.lane.b32.xlu0 %v3318, 32
    %v3329 = vpop.permute.xlu0 %3328
    %3330 = vrot.lane.b32.xlu0 %v3319, 32
    %v3331 = vpop.permute.xlu0 %3330
    %v3336 = vadd.f32 %v3296, %v3325
    %v3337 = vadd.f32 %v3297, %v3327
    %v3338 = vadd.f32 %v3298, %v3329
    %v3339 = vadd.f32 %v3299, %v3331
    %v3340 = vtanh.pop %v3336
    %v3341 = vtanh.pop %v3337
    %v3342 = vtanh.pop %v3338
    %v3343 = vtanh.pop %v3339
    %3348 = vrot.lane.b32.xlu0 %v3340, 64
    %v3349 = vpop.permute.xlu0 %3348
    %3350 = vrot.lane.b32.xlu0 %v3341, 64
    %v3351 = vpop.permute.xlu0 %3350
    %3352 = vrot.lane.b32.xlu0 %v3342, 64
    %v3353 = vpop.permute.xlu0 %3352
    %3354 = vrot.lane.b32.xlu0 %v3343, 64
    %v3355 = vpop.permute.xlu0 %3354
    %v3360 = vmul.f32 %v3234, %v3349
    %v3361 = vmul.f32 %v3249, %v3351
    %v3362 = vmul.f32 %v3264, %v3353
    %v3363 = vmul.f32 %v3279, %v3355
    %3368 = vrot.lane.b32.xlu0 %v3200, 32
    %v3369 = vpop.permute.xlu0 %3368
    %3370 = vrot.lane.b32.xlu0 %v3201, 32
    %v3371 = vpop.permute.xlu0 %3370
    %3372 = vrot.lane.b32.xlu0 %v3202, 32
    %v3373 = vpop.permute.xlu0 %3372
    %3374 = vrot.lane.b32.xlu0 %v3203, 32
    %v3375 = vpop.permute.xlu0 %3374
    %vm3380 = vcmask 260102
    %3381 = vst.msk [vmem:[#allocation2] sm:$0x40] %vm3380, %v3369
    %3382 = vst.msk [vmem:[#allocation2 + $0x8] sm:$0x40] %vm3380, %v3371
    %3383 = vst.msk [vmem:[#allocation2 + $0x10] sm:$0x40] %vm3380, %v3373
    %3384 = vst.msk [vmem:[#allocation2 + $0x18] sm:$0x40] %vm3380, %v3375
    %3389 = vrot.lane.b32.xlu0 %v3360, 64
    %v3390 = vpop.permute.xlu0 %3389
    %3391 = vrot.lane.b32.xlu0 %v3361, 64
    %v3392 = vpop.permute.xlu0 %3391
    %3393 = vrot.lane.b32.xlu0 %v3362, 64
    %v3394 = vpop.permute.xlu0 %3393
    %3395 = vrot.lane.b32.xlu0 %v3363, 64
    %v3396 = vpop.permute.xlu0 %3395
    %vm3401 = vcmask 517377
    %3402 = vst.msk [vmem:[#allocation2] sm:$0x2] %vm3401, %v3390
    %3403 = vst.msk [vmem:[#allocation2 + $0x8] sm:$0x2] %vm3401, %v3392
    %3404 = vst.msk [vmem:[#allocation2 + $0x10] sm:$0x2] %vm3401, %v3394
    %3405 = vst.msk [vmem:[#allocation2 + $0x18] sm:$0x2] %vm3401, %v3396
    %v3406 = vpack.c.bf16 %v3200, %v3200
    %v3407 = vpack.c.bf16 %v3201, %v3201
    %v3408 = vpack.c.bf16 %v3202, %v3202
    %v3409 = vpack.c.bf16 %v3203, %v3203
    %v3414 = vunpack.c.l.b16 %v3406
    %v3415 = vunpack.c.l.b16 %v3407
    %v3416 = vunpack.c.l.b16 %v3408
    %v3417 = vunpack.c.l.b16 %v3409
    %v3418 = vrot.slane %v3414, 6
    %v3419 = vrot.slane %v3415, 5
    %v3420 = vsel %vm644, %v3419, %v3418
    %v3421 = vrot.slane %v3416, 4
    %v3422 = vsel %vm647, %v3421, %v3420
    %v3423 = vrot.slane %v3417, 3
    %v3424 = vsel %vm650, %v3423, %v3422
    %v3425 = vpack.c.b16 %v3424, %v3424
    %3426 = vrot.lane.b32.xlu0 %v3425, 32
    %v3427 = vpop.permute.xlu0 %3426
    %v3429 = vsel %vm174, %v3427, 0
    %3431 = vmatpush.bf16.msra.mxu0 0
    %3432 = vmatpush.bf16.msra.mxu0 0
    %3433 = vmatpush.bf16.msra.mxu0 0
    %3434 = vmatpush.bf16.msra.mxu0 0
    %3435 = vmatpush.bf16.msra.mxu0 0
    %3436 = vmatpush.bf16.msra.mxu0 0
    %3437 = vmatpush.bf16.msra.mxu0 %v228
    %3438 = vmatpush.bf16.msra.mxu0 %v227
    %3439 = vmatmul.bf16.gmra.mxu0 %v3429
    %v3440 = vpop.f32.mrf.mxu0
    %v3441 = vadd.f32 0.0, %v3440
    %v3442 = vpop.f32.mrf.mxu0
    %3443 = vdwg.mxu0
    %v3445 = vrot.slane %v3441, 1
    %v3446 = vrot.slane %v3441, 2
    %v3447 = vrot.slane %v3441, 3
    %v3448 = vrot.slane %v3441, 4
    %v3453 = vadd.f32 %v191, %v3445
    %v3454 = vadd.f32 %v193, %v3446
    %v3455 = vadd.f32 %v196, %v3447
    %v3456 = vadd.f32 %v198, %v3448
    %v3457 = vpack.c.bf16 %v3360, %v3360
    %v3458 = vpack.c.bf16 %v3361, %v3361
    %v3459 = vpack.c.bf16 %v3362, %v3362
    %v3460 = vpack.c.bf16 %v3363, %v3363
    %v3465 = vunpack.c.l.b16 %v3457
    %v3466 = vunpack.c.l.b16 %v3458
    %v3467 = vunpack.c.l.b16 %v3459
    %v3468 = vunpack.c.l.b16 %v3460
    %v3469 = vrot.slane %v3465, 1
    %v3470 = vsel %vm644, %v3466, %v3469
    %v3471 = vrot.slane %v3467, 7
    %v3472 = vsel %vm647, %v3471, %v3470
    %v3473 = vrot.slane %v3468, 6
    %v3474 = vsel %vm650, %v3473, %v3472
    %v3475 = vpack.c.b16 %v3474, %v3474
    %3476 = vrot.lane.b32.xlu0 %v3475, 32
    %v3477 = vpop.permute.xlu0 %3476
    %v3479 = vsel %vm174, %v3477, 0
    %3481 = vmatpush.bf16.msra.mxu0 0
    %3482 = vmatpush.bf16.msra.mxu0 0
    %3483 = vmatpush.bf16.msra.mxu0 0
    %3484 = vmatpush.bf16.msra.mxu0 0
    %3485 = vmatpush.bf16.msra.mxu0 0
    %3486 = vmatpush.bf16.msra.mxu0 0
    %3487 = vmatpush.bf16.msra.mxu0 %v264
    %3488 = vmatpush.bf16.msra.mxu0 %v263
    %3489 = vmatmul.bf16.gmra.mxu0 %v3479
    %v3490 = vpop.f32.mrf.mxu0
    %v3491 = vadd.f32 0.0, %v3490
    %v3492 = vpop.f32.mrf.mxu0
    %3493 = vdwg.mxu0
    %v3495 = vrot.slane %v3491, 1
    %v3496 = vrot.slane %v3491, 2
    %v3497 = vrot.slane %v3491, 3
    %v3502 = vadd.f32 %v210, %v3491
    %v3503 = vadd.f32 %v212, %v3495
    %v3504 = vadd.f32 %v215, %v3496
    %v3505 = vadd.f32 %v217, %v3497
    %v3506 = vxor.u32 %v3453, 2147483648
    %v3507 = vxor.u32 %v3454, 2147483648
    %v3508 = vxor.u32 %v3455, 2147483648
    %v3509 = vxor.u32 %v3456, 2147483648
    %v3510 = vmul.f32 %v3506, 1.442695
    %v3511 = vpow.pop %v3510
    %v3512 = vmul.f32 %v3507, 1.442695
    %v3513 = vpow.pop %v3512
    %v3514 = vmul.f32 %v3508, 1.442695
    %v3515 = vpow.pop %v3514
    %v3516 = vmul.f32 %v3509, 1.442695
    %v3517 = vpow.pop %v3516
    %v3518 = vadd.f32 %v3511, 1.0
    %v3519 = vadd.f32 %v3513, 1.0
    %v3520 = vadd.f32 %v3515, 1.0
    %v3521 = vadd.f32 %v3517, 1.0
    %v3522 = vrcp.pop %v3518
    %v3523 = vmul.f32 %v3518, %v3522
    %v3524 = vsub.f32 1.0, %v3523
    %v3525 = vmul.f32 %v3522, %v3524
    %v3526 = vadd.f32 %v3522, %v3525
    %vm3527 = vweird.f32 %v3518
    %vm3528 = vweird.f32 %v3522
    %vm3529 = vmor %vm3527, %vm3528
    %v3530 = vsel %vm3529, %v3522, %v3526
    %v3531 = vand.u32 2147483647, %v3518
    %vm3532 = vcmp.eq.f32.partialorder %v3531, 8.507059e+37
    %v3533 = vand.u32 %v3518, 2147483648
    %v3534 = vor.u32 1.1754944e-38, %v3533
    %v3535 = vsel %vm3532, %v3534, %v3530
    %v3536 = vmul.f32 1.0, %v3535
    %v3537 = vrcp.pop %v3519
    %v3538 = vmul.f32 %v3519, %v3537
    %v3539 = vsub.f32 1.0, %v3538
    %v3540 = vmul.f32 %v3537, %v3539
    %v3541 = vadd.f32 %v3537, %v3540
    %vm3542 = vweird.f32 %v3519
    %vm3543 = vweird.f32 %v3537
    %vm3544 = vmor %vm3542, %vm3543
    %v3545 = vsel %vm3544, %v3537, %v3541
    %v3546 = vand.u32 2147483647, %v3519
    %vm3547 = vcmp.eq.f32.partialorder %v3546, 8.507059e+37
    %v3548 = vand.u32 %v3519, 2147483648
    %v3549 = vor.u32 1.1754944e-38, %v3548
    %v3550 = vsel %vm3547, %v3549, %v3545
    %v3551 = vmul.f32 1.0, %v3550
    %v3552 = vrcp.pop %v3520
    %v3553 = vmul.f32 %v3520, %v3552
    %v3554 = vsub.f32 1.0, %v3553
    %v3555 = vmul.f32 %v3552, %v3554
    %v3556 = vadd.f32 %v3552, %v3555
    %vm3557 = vweird.f32 %v3520
    %vm3558 = vweird.f32 %v3552
    %vm3559 = vmor %vm3557, %vm3558
    %v3560 = vsel %vm3559, %v3552, %v3556
    %v3561 = vand.u32 2147483647, %v3520
    %vm3562 = vcmp.eq.f32.partialorder %v3561, 8.507059e+37
    %v3563 = vand.u32 %v3520, 2147483648
    %v3564 = vor.u32 1.1754944e-38, %v3563
    %v3565 = vsel %vm3562, %v3564, %v3560
    %v3566 = vmul.f32 1.0, %v3565
    %v3567 = vrcp.pop %v3521
    %v3568 = vmul.f32 %v3521, %v3567
    %v3569 = vsub.f32 1.0, %v3568
    %v3570 = vmul.f32 %v3567, %v3569
    %v3571 = vadd.f32 %v3567, %v3570
    %vm3572 = vweird.f32 %v3521
    %vm3573 = vweird.f32 %v3567
    %vm3574 = vmor %vm3572, %vm3573
    %v3575 = vsel %vm3574, %v3567, %v3571
    %v3576 = vand.u32 2147483647, %v3521
    %vm3577 = vcmp.eq.f32.partialorder %v3576, 8.507059e+37
    %v3578 = vand.u32 %v3521, 2147483648
    %v3579 = vor.u32 1.1754944e-38, %v3578
    %v3580 = vsel %vm3577, %v3579, %v3575
    %v3581 = vmul.f32 1.0, %v3580
    %v3582 = vtanh.pop %v3453
    %v3583 = vtanh.pop %v3454
    %v3584 = vtanh.pop %v3455
    %v3585 = vtanh.pop %v3456
    %v3590 = vrot.slane %v3176, 7
    %v3591 = vrot.slane %v3177, 7
    %v3592 = vrot.slane %v3178, 7
    %v3593 = vrot.slane %v3179, 7
    %v3598 = vmul.f32 %v3536, %v3590
    %v3599 = vmul.f32 %v3551, %v3591
    %v3600 = vmul.f32 %v3566, %v3592
    %v3601 = vmul.f32 %v3581, %v3593
    %3606 = vrot.lane.b32.xlu0 %v3582, 64
    %v3607 = vpop.permute.xlu0 %3606
    %3608 = vrot.lane.b32.xlu0 %v3583, 64
    %v3609 = vpop.permute.xlu0 %3608
    %3610 = vrot.lane.b32.xlu0 %v3584, 64
    %v3611 = vpop.permute.xlu0 %3610
    %3612 = vrot.lane.b32.xlu0 %v3585, 64
    %v3613 = vpop.permute.xlu0 %3612
    %v3618 = vmul.f32 %v3536, %v3607
    %v3619 = vmul.f32 %v3551, %v3609
    %v3620 = vmul.f32 %v3566, %v3611
    %v3621 = vmul.f32 %v3581, %v3613
    %3626 = vrot.lane.b32.xlu0 %v3618, 32
    %v3627 = vpop.permute.xlu0 %3626
    %3628 = vrot.lane.b32.xlu0 %v3619, 32
    %v3629 = vpop.permute.xlu0 %3628
    %3630 = vrot.lane.b32.xlu0 %v3620, 32
    %v3631 = vpop.permute.xlu0 %3630
    %3632 = vrot.lane.b32.xlu0 %v3621, 32
    %v3633 = vpop.permute.xlu0 %3632
    %v3638 = vadd.f32 %v3598, %v3627
    %v3639 = vadd.f32 %v3599, %v3629
    %v3640 = vadd.f32 %v3600, %v3631
    %v3641 = vadd.f32 %v3601, %v3633
    %v3642 = vtanh.pop %v3638
    %v3643 = vtanh.pop %v3639
    %v3644 = vtanh.pop %v3640
    %v3645 = vtanh.pop %v3641
    %3650 = vrot.lane.b32.xlu0 %v3642, 64
    %v3651 = vpop.permute.xlu0 %3650
    %3652 = vrot.lane.b32.xlu0 %v3643, 64
    %v3653 = vpop.permute.xlu0 %3652
    %3654 = vrot.lane.b32.xlu0 %v3644, 64
    %v3655 = vpop.permute.xlu0 %3654
    %3656 = vrot.lane.b32.xlu0 %v3645, 64
    %v3657 = vpop.permute.xlu0 %3656
    %v3662 = vmul.f32 %v3536, %v3651
    %v3663 = vmul.f32 %v3551, %v3653
    %v3664 = vmul.f32 %v3566, %v3655
    %v3665 = vmul.f32 %v3581, %v3657
    %v3666 = vxor.u32 %v3502, 2147483648
    %v3667 = vxor.u32 %v3503, 2147483648
    %v3668 = vxor.u32 %v3504, 2147483648
    %v3669 = vxor.u32 %v3505, 2147483648
    %v3670 = vmul.f32 %v3666, 1.442695
    %v3671 = vpow.pop %v3670
    %v3672 = vmul.f32 %v3667, 1.442695
    %v3673 = vpow.pop %v3672
    %v3674 = vmul.f32 %v3668, 1.442695
    %v3675 = vpow.pop %v3674
    %v3676 = vmul.f32 %v3669, 1.442695
    %v3677 = vpow.pop %v3676
    %v3678 = vadd.f32 %v3671, 1.0
    %v3679 = vadd.f32 %v3673, 1.0
    %v3680 = vadd.f32 %v3675, 1.0
    %v3681 = vadd.f32 %v3677, 1.0
    %v3682 = vrcp.pop %v3678
    %v3683 = vmul.f32 %v3678, %v3682
    %v3684 = vsub.f32 1.0, %v3683
    %v3685 = vmul.f32 %v3682, %v3684
    %v3686 = vadd.f32 %v3682, %v3685
    %vm3687 = vweird.f32 %v3678
    %vm3688 = vweird.f32 %v3682
    %vm3689 = vmor %vm3687, %vm3688
    %v3690 = vsel %vm3689, %v3682, %v3686
    %v3691 = vand.u32 2147483647, %v3678
    %vm3692 = vcmp.eq.f32.partialorder %v3691, 8.507059e+37
    %v3693 = vand.u32 %v3678, 2147483648
    %v3694 = vor.u32 1.1754944e-38, %v3693
    %v3695 = vsel %vm3692, %v3694, %v3690
    %v3696 = vmul.f32 1.0, %v3695
    %v3697 = vrcp.pop %v3679
    %v3698 = vmul.f32 %v3679, %v3697
    %v3699 = vsub.f32 1.0, %v3698
    %v3700 = vmul.f32 %v3697, %v3699
    %v3701 = vadd.f32 %v3697, %v3700
    %vm3702 = vweird.f32 %v3679
    %vm3703 = vweird.f32 %v3697
    %vm3704 = vmor %vm3702, %vm3703
    %v3705 = vsel %vm3704, %v3697, %v3701
    %v3706 = vand.u32 2147483647, %v3679
    %vm3707 = vcmp.eq.f32.partialorder %v3706, 8.507059e+37
    %v3708 = vand.u32 %v3679, 2147483648
    %v3709 = vor.u32 1.1754944e-38, %v3708
    %v3710 = vsel %vm3707, %v3709, %v3705
    %v3711 = vmul.f32 1.0, %v3710
    %v3712 = vrcp.pop %v3680
    %v3713 = vmul.f32 %v3680, %v3712
    %v3714 = vsub.f32 1.0, %v3713
    %v3715 = vmul.f32 %v3712, %v3714
    %v3716 = vadd.f32 %v3712, %v3715
    %vm3717 = vweird.f32 %v3680
    %vm3718 = vweird.f32 %v3712
    %vm3719 = vmor %vm3717, %vm3718
    %v3720 = vsel %vm3719, %v3712, %v3716
    %v3721 = vand.u32 2147483647, %v3680
    %vm3722 = vcmp.eq.f32.partialorder %v3721, 8.507059e+37
    %v3723 = vand.u32 %v3680, 2147483648
    %v3724 = vor.u32 1.1754944e-38, %v3723
    %v3725 = vsel %vm3722, %v3724, %v3720
    %v3726 = vmul.f32 1.0, %v3725
    %v3727 = vrcp.pop %v3681
    %v3728 = vmul.f32 %v3681, %v3727
    %v3729 = vsub.f32 1.0, %v3728
    %v3730 = vmul.f32 %v3727, %v3729
    %v3731 = vadd.f32 %v3727, %v3730
    %vm3732 = vweird.f32 %v3681
    %vm3733 = vweird.f32 %v3727
    %vm3734 = vmor %vm3732, %vm3733
    %v3735 = vsel %vm3734, %v3727, %v3731
    %v3736 = vand.u32 2147483647, %v3681
    %vm3737 = vcmp.eq.f32.partialorder %v3736, 8.507059e+37
    %v3738 = vand.u32 %v3681, 2147483648
    %v3739 = vor.u32 1.1754944e-38, %v3738
    %v3740 = vsel %vm3737, %v3739, %v3735
    %v3741 = vmul.f32 1.0, %v3740
    %v3742 = vtanh.pop %v3502
    %v3743 = vtanh.pop %v3503
    %v3744 = vtanh.pop %v3504
    %v3745 = vtanh.pop %v3505
    %v3750 = vrot.slane %v3336, 1
    %v3751 = vrot.slane %v3337, 1
    %v3752 = vrot.slane %v3338, 1
    %v3753 = vrot.slane %v3339, 1
    %v3758 = vmul.f32 %v3696, %v3750
    %v3759 = vmul.f32 %v3711, %v3751
    %v3760 = vmul.f32 %v3726, %v3752
    %v3761 = vmul.f32 %v3741, %v3753
    %3766 = vrot.lane.b32.xlu0 %v3742, 64
    %v3767 = vpop.permute.xlu0 %3766
    %3768 = vrot.lane.b32.xlu0 %v3743, 64
    %v3769 = vpop.permute.xlu0 %3768
    %3770 = vrot.lane.b32.xlu0 %v3744, 64
    %v3771 = vpop.permute.xlu0 %3770
    %3772 = vrot.lane.b32.xlu0 %v3745, 64
    %v3773 = vpop.permute.xlu0 %3772
    %v3778 = vmul.f32 %v3696, %v3767
    %v3779 = vmul.f32 %v3711, %v3769
    %v3780 = vmul.f32 %v3726, %v3771
    %v3781 = vmul.f32 %v3741, %v3773
    %3786 = vrot.lane.b32.xlu0 %v3778, 32
    %v3787 = vpop.permute.xlu0 %3786
    %3788 = vrot.lane.b32.xlu0 %v3779, 32
    %v3789 = vpop.permute.xlu0 %3788
    %3790 = vrot.lane.b32.xlu0 %v3780, 32
    %v3791 = vpop.permute.xlu0 %3790
    %3792 = vrot.lane.b32.xlu0 %v3781, 32
    %v3793 = vpop.permute.xlu0 %3792
    %v3798 = vadd.f32 %v3758, %v3787
    %v3799 = vadd.f32 %v3759, %v3789
    %v3800 = vadd.f32 %v3760, %v3791
    %v3801 = vadd.f32 %v3761, %v3793
    %v3802 = vtanh.pop %v3798
    %v3803 = vtanh.pop %v3799
    %v3804 = vtanh.pop %v3800
    %v3805 = vtanh.pop %v3801
    %3810 = vrot.lane.b32.xlu0 %v3802, 64
    %v3811 = vpop.permute.xlu0 %3810
    %3812 = vrot.lane.b32.xlu0 %v3803, 64
    %v3813 = vpop.permute.xlu0 %3812
    %3814 = vrot.lane.b32.xlu0 %v3804, 64
    %v3815 = vpop.permute.xlu0 %3814
    %3816 = vrot.lane.b32.xlu0 %v3805, 64
    %v3817 = vpop.permute.xlu0 %3816
    %v3822 = vmul.f32 %v3696, %v3811
    %v3823 = vmul.f32 %v3711, %v3813
    %v3824 = vmul.f32 %v3726, %v3815
    %v3825 = vmul.f32 %v3741, %v3817
    %3830 = vrot.lane.b32.xlu0 %v3662, 32
    %v3831 = vpop.permute.xlu0 %3830
    %3832 = vrot.lane.b32.xlu0 %v3663, 32
    %v3833 = vpop.permute.xlu0 %3832
    %3834 = vrot.lane.b32.xlu0 %v3664, 32
    %v3835 = vpop.permute.xlu0 %3834
    %3836 = vrot.lane.b32.xlu0 %v3665, 32
    %v3837 = vpop.permute.xlu0 %3836
    %vm3842 = vcmask 261127
    %3843 = vst.msk [vmem:[#allocation2] sm:$0x80] %vm3842, %v3831
    %3844 = vst.msk [vmem:[#allocation2 + $0x8] sm:$0x80] %vm3842, %v3833
    %3845 = vst.msk [vmem:[#allocation2 + $0x10] sm:$0x80] %vm3842, %v3835
    %3846 = vst.msk [vmem:[#allocation2 + $0x18] sm:$0x80] %vm3842, %v3837
    %3851 = vrot.lane.b32.xlu0 %v3822, 64
    %v3852 = vpop.permute.xlu0 %3851
    %3853 = vrot.lane.b32.xlu0 %v3823, 64
    %v3854 = vpop.permute.xlu0 %3853
    %3855 = vrot.lane.b32.xlu0 %v3824, 64
    %v3856 = vpop.permute.xlu0 %3855
    %3857 = vrot.lane.b32.xlu0 %v3825, 64
    %v3858 = vpop.permute.xlu0 %3857
    %vm3863 = vcmask 516352
    %3864 = vst.msk [vmem:[#allocation2] sm:$0x1] %vm3863, %v3852
    %3865 = vst.msk [vmem:[#allocation2 + $0x8] sm:$0x1] %vm3863, %v3854
    %3866 = vst.msk [vmem:[#allocation2 + $0x10] sm:$0x1] %vm3863, %v3856
    %3867 = vst.msk [vmem:[#allocation2 + $0x18] sm:$0x1] %vm3863, %v3858
    %v3868 = vld [vmem:[#allocation2] sm:$0xff]
    %v3869 = vld [vmem:[#allocation2 + $0x8] sm:$0xff]
    %v3870 = vld [vmem:[#allocation2 + $0x10] sm:$0xff]
    %v3871 = vld [vmem:[#allocation2 + $0x18] sm:$0xff]
    %v3872 = vpack.c.bf16 %v3868, %v3868
    %v3873 = vpack.c.bf16 %v3869, %v3869
    %v3874 = vpack.c.bf16 %v3870, %v3870
    %v3875 = vpack.c.bf16 %v3871, %v3871
    %v3876 = vld [vmem:[%s1] sm:$0x3]
    %v3877 = vld [vmem:[%s2] sm:$0x3]
    %v3879 = vrot.slane %v3877, 1
    %v3880 = vperm.slane %v3877, 0
    %v3881 = vperm.slane %v3879, 0
    %vm3884 = vcmask 523264
    %v3886 = vsel %vm3884, %v3872, 0
    %v3889 = vsel %vm3884, %v3874, 0
    %3891 = vmatpush.bf16.xpose.msra.mxu0 0
    %3892 = vmatpush.bf16.xpose.msra.mxu0 0
    %3893 = vmatpush.bf16.xpose.msra.mxu0 0
    %3894 = vmatpush.bf16.xpose.msra.mxu0 0
    %3895 = vmatpush.bf16.xpose.msra.mxu0 0
    %3896 = vmatpush.bf16.xpose.msra.mxu0 0
    %3897 = vmatpush.bf16.xpose.msra.mxu0 0
    %3898 = vmatpush.bf16.xpose.msra.mxu0 %v3889
    %3899 = vmatmul.bf16.gmra.mxu0 %v3886
    %v3900 = vpop.f32.mrf.mxu0
    %v3901 = vadd.f32 %v3880, %v3900
    %v3902 = vpop.f32.mrf.mxu0
    %3903 = vdwg.mxu0
    %v3905 = vsel %vm3884, %v3873, 0
    %v3908 = vsel %vm3884, %v3875, 0
    %3910 = vmatpush.bf16.xpose.msra.mxu0 0
    %3911 = vmatpush.bf16.xpose.msra.mxu0 0
    %3912 = vmatpush.bf16.xpose.msra.mxu0 0
    %3913 = vmatpush.bf16.xpose.msra.mxu0 0
    %3914 = vmatpush.bf16.xpose.msra.mxu0 0
    %3915 = vmatpush.bf16.xpose.msra.mxu0 0
    %3916 = vmatpush.bf16.xpose.msra.mxu0 0
    %3917 = vmatpush.bf16.xpose.msra.mxu0 %v3908
    %3918 = vmatmul.bf16.gmra.mxu0 %v3905
    %v3919 = vpop.f32.mrf.mxu0
    %v3920 = vadd.f32 %v3881, %v3919
    %v3921 = vpop.f32.mrf.mxu0
    %3922 = vdwg.mxu0
    %vm3923 = vcmask 64512
    %v3924 = vsel %vm3923, %v3901, -inf
    %3925 = vmax.xlane.f32.xlu0 %v3924
    %v3926 = vpop.xlane.xlu0 %3925
    %v3927 = vsel %vm3923, %v3920, -inf
    %3928 = vmax.xlane.f32.xlu0 %v3927
    %v3929 = vpop.xlane.xlu0 %3928
    %v3930 = vsub.f32 %v3901, %v3926
    %v3931 = vsub.f32 %v3920, %v3929
    %v3932 = vmul.f32 %v3930, 1.442695
    %v3933 = vpow.pop %v3932
    %v3934 = vmul.f32 %v3931, 1.442695
    %v3935 = vpow.pop %v3934
    %v3936 = vsel %vm3923, %v3933, 0.0
    %3937 = vadd.xlane.f32.xlu0 %v3936
    %v3938 = vpop.xlane.xlu0 %3937
    %v3939 = vsel %vm3923, %v3935, 0.0
    %3940 = vadd.xlane.f32.xlu0 %v3939
    %v3941 = vpop.xlane.xlu0 %3940
    %v3942 = vrcp.pop %v3938
    %v3943 = vmul.f32 %v3938, %v3942
    %v3944 = vsub.f32 1.0, %v3943
    %v3945 = vmul.f32 %v3942, %v3944
    %v3946 = vadd.f32 %v3942, %v3945
    %vm3947 = vweird.f32 %v3938
    %vm3948 = vweird.f32 %v3942
    %vm3949 = vmor %vm3947, %vm3948
    %v3950 = vsel %vm3949, %v3942, %v3946
    %v3951 = vand.u32 2147483647, %v3938
    %vm3952 = vcmp.eq.f32.partialorder %v3951, 8.507059e+37
    %v3953 = vand.u32 %v3938, 2147483648
    %v3954 = vor.u32 1.1754944e-38, %v3953
    %v3955 = vsel %vm3952, %v3954, %v3950
    %v3956 = vmul.f32 %v3933, %v3955
    %v3957 = vrcp.pop %v3941
    %v3958 = vmul.f32 %v3941, %v3957
    %v3959 = vsub.f32 1.0, %v3958
    %v3960 = vmul.f32 %v3957, %v3959
    %v3961 = vadd.f32 %v3957, %v3960
    %vm3962 = vweird.f32 %v3941
    %vm3963 = vweird.f32 %v3957
    %vm3964 = vmor %vm3962, %vm3963
    %v3965 = vsel %vm3964, %v3957, %v3961
    %v3966 = vand.u32 2147483647, %v3941
    %vm3967 = vcmp.eq.f32.partialorder %v3966, 8.507059e+37
    %v3968 = vand.u32 %v3941, 2147483648
    %v3969 = vor.u32 1.1754944e-38, %v3968
    %v3970 = vsel %vm3967, %v3969, %v3965
    %v3971 = vmul.f32 %v3935, %v3970
    %v3973 = vrot.slane %v3876, 1
    %v3974 = vperm.slane %v3876, 0
    %v3975 = vperm.slane %v3973, 0
    %3978 = vmatpush.bf16.xpose.msra.mxu0 0
    %3979 = vmatpush.bf16.xpose.msra.mxu0 0
    %3980 = vmatpush.bf16.xpose.msra.mxu0 0
    %3981 = vmatpush.bf16.xpose.msra.mxu0 0
    %3982 = vmatpush.bf16.xpose.msra.mxu0 0
    %3983 = vmatpush.bf16.xpose.msra.mxu0 0
    %3984 = vmatpush.bf16.xpose.msra.mxu0 0
    %3985 = vmatpush.bf16.xpose.msra.mxu0 %v3886
    %3986 = vmatmul.bf16.gmra.mxu0 %v3889
    %v3987 = vpop.f32.mrf.mxu0
    %v3988 = vadd.f32 %v3974, %v3987
    %v3989 = vpop.f32.mrf.mxu0
    %3990 = vdwg.mxu0
    %3991 = vmatpush.bf16.xpose.msra.mxu0 0
    %3992 = vmatpush.bf16.xpose.msra.mxu0 0
    %3993 = vmatpush.bf16.xpose.msra.mxu0 0
    %3994 = vmatpush.bf16.xpose.msra.mxu0 0
    %3995 = vmatpush.bf16.xpose.msra.mxu0 0
    %3996 = vmatpush.bf16.xpose.msra.mxu0 0
    %3997 = vmatpush.bf16.xpose.msra.mxu0 0
    %3998 = vmatpush.bf16.xpose.msra.mxu0 %v3905
    %3999 = vmatmul.bf16.gmra.mxu0 %v3908
    %v4000 = vpop.f32.mrf.mxu0
    %v4001 = vadd.f32 %v3975, %v4000
    %v4002 = vpop.f32.mrf.mxu0
    %4003 = vdwg.mxu0
    %v4004 = vsel %vm3923, %v3988, -inf
    %4005 = vmax.xlane.f32.xlu0 %v4004
    %v4006 = vpop.xlane.xlu0 %4005
    %v4007 = vsel %vm3923, %v4001, -inf
    %4008 = vmax.xlane.f32.xlu0 %v4007
    %v4009 = vpop.xlane.xlu0 %4008
    %v4010 = vsub.f32 %v3988, %v4006
    %v4011 = vsub.f32 %v4001, %v4009
    %v4012 = vmul.f32 %v4010, 1.442695
    %v4013 = vpow.pop %v4012
    %v4014 = vmul.f32 %v4011, 1.442695
    %v4015 = vpow.pop %v4014
    %v4016 = vsel %vm3923, %v4013, 0.0
    %4017 = vadd.xlane.f32.xlu0 %v4016
    %v4018 = vpop.xlane.xlu0 %4017
    %v4019 = vsel %vm3923, %v4015, 0.0
    %4020 = vadd.xlane.f32.xlu0 %v4019
    %v4021 = vpop.xlane.xlu0 %4020
    %v4022 = vrcp.pop %v4018
    %v4023 = vmul.f32 %v4018, %v4022
    %v4024 = vsub.f32 1.0, %v4023
    %v4025 = vmul.f32 %v4022, %v4024
    %v4026 = vadd.f32 %v4022, %v4025
    %vm4027 = vweird.f32 %v4018
    %vm4028 = vweird.f32 %v4022
    %vm4029 = vmor %vm4027, %vm4028
    %v4030 = vsel %vm4029, %v4022, %v4026
    %v4031 = vand.u32 2147483647, %v4018
    %vm4032 = vcmp.eq.f32.partialorder %v4031, 8.507059e+37
    %v4033 = vand.u32 %v4018, 2147483648
    %v4034 = vor.u32 1.1754944e-38, %v4033
    %v4035 = vsel %vm4032, %v4034, %v4030
    %v4036 = vmul.f32 %v4013, %v4035
    %v4037 = vrcp.pop %v4021
    %v4038 = vmul.f32 %v4021, %v4037
    %v4039 = vsub.f32 1.0, %v4038
    %v4040 = vmul.f32 %v4037, %v4039
    %v4041 = vadd.f32 %v4037, %v4040
    %vm4042 = vweird.f32 %v4021
    %vm4043 = vweird.f32 %v4037
    %vm4044 = vmor %vm4042, %vm4043
    %v4045 = vsel %vm4044, %v4037, %v4041
    %v4046 = vand.u32 2147483647, %v4021
    %vm4047 = vcmp.eq.f32.partialorder %v4046, 8.507059e+37
    %v4048 = vand.u32 %v4021, 2147483648
    %v4049 = vor.u32 1.1754944e-38, %v4048
    %v4050 = vsel %vm4047, %v4049, %v4045
    %v4051 = vmul.f32 %v4015, %v4050
    %v4052 = vpack.c.bf16 %v3956, %v3956
    %v4053 = vpack.c.bf16 %v3971, %v3971
    %v4055 = vsel %vm3923, %v4052, 0
    %vm4057 = vcmask 1043456
    %v4058 = vsel %vm4057, %v3874, 0
    %4060 = vmatpush.bf16.msra.mxu0 0
    %4061 = vmatpush.bf16.msra.mxu0 0
    %4062 = vmatpush.bf16.msra.mxu0 0
    %4063 = vmatpush.bf16.msra.mxu0 0
    %4064 = vmatpush.bf16.msra.mxu0 0
    %4065 = vmatpush.bf16.msra.mxu0 0
    %4066 = vmatpush.bf16.msra.mxu0 0
    %4067 = vmatpush.bf16.msra.mxu0 %v4058
    %4068 = vmatmul.bf16.gmra.mxu0 %v4055
    %v4069 = vpop.f32.mrf.mxu0
    %v4070 = vadd.f32 0.0, %v4069
    %v4071 = vpop.f32.mrf.mxu0
    %4072 = vdwg.mxu0
    %v4074 = vsel %vm3923, %v4053, 0
    %v4076 = vsel %vm4057, %v3875, 0
    %4078 = vmatpush.bf16.msra.mxu0 0
    %4079 = vmatpush.bf16.msra.mxu0 0
    %4080 = vmatpush.bf16.msra.mxu0 0
    %4081 = vmatpush.bf16.msra.mxu0 0
    %4082 = vmatpush.bf16.msra.mxu0 0
    %4083 = vmatpush.bf16.msra.mxu0 0
    %4084 = vmatpush.bf16.msra.mxu0 0
    %4085 = vmatpush.bf16.msra.mxu0 %v4076
    %4086 = vmatmul.bf16.gmra.mxu0 %v4074
    %v4087 = vpop.f32.mrf.mxu0
    %v4088 = vadd.f32 0.0, %v4087
    %v4089 = vpop.f32.mrf.mxu0
    %4090 = vdwg.mxu0
    %v4091 = vpack.c.bf16 %v4036, %v4036
    %v4092 = vpack.c.bf16 %v4051, %v4051
    %v4094 = vsel %vm3923, %v4091, 0
    %v4096 = vsel %vm4057, %v3872, 0
    %4098 = vmatpush.bf16.msra.mxu0 0
    %4099 = vmatpush.bf16.msra.mxu0 0
    %4100 = vmatpush.bf16.msra.mxu0 0
    %4101 = vmatpush.bf16.msra.mxu0 0
    %4102 = vmatpush.bf16.msra.mxu0 0
    %4103 = vmatpush.bf16.msra.mxu0 0
    %4104 = vmatpush.bf16.msra.mxu0 0
    %4105 = vmatpush.bf16.msra.mxu0 %v4096
    %4106 = vmatmul.bf16.gmra.mxu0 %v4094
    %v4107 = vpop.f32.mrf.mxu0
    %v4108 = vadd.f32 0.0, %v4107
    %v4109 = vpop.f32.mrf.mxu0
    %4110 = vdwg.mxu0
    %v4112 = vsel %vm3923, %v4092, 0
    %v4114 = vsel %vm4057, %v3873, 0
    %4116 = vmatpush.bf16.msra.mxu0 0
    %4117 = vmatpush.bf16.msra.mxu0 0
    %4118 = vmatpush.bf16.msra.mxu0 0
    %4119 = vmatpush.bf16.msra.mxu0 0
    %4120 = vmatpush.bf16.msra.mxu0 0
    %4121 = vmatpush.bf16.msra.mxu0 0
    %4122 = vmatpush.bf16.msra.mxu0 0
    %4123 = vmatpush.bf16.msra.mxu0 %v4114
    %4124 = vmatmul.bf16.gmra.mxu0 %v4112
    %v4125 = vpop.f32.mrf.mxu0
    %v4126 = vadd.f32 0.0, %v4125
    %v4127 = vpop.f32.mrf.mxu0
    %4128 = vdwg.mxu0
    %v4129 = vsub.f32 %v3868, %v4070
    %v4130 = vsub.f32 %v3869, %v4088
    %v4131 = vmul.f32 %v3868, %v4070
    %v4132 = vmul.f32 %v3869, %v4088
    %4135 = vrot.lane.b32.xlu0 %v4070, 64
    %v4136 = vpop.permute.xlu0 %4135
    %4137 = vrot.lane.b32.xlu0 %v4088, 64
    %v4138 = vpop.permute.xlu0 %4137
    %4143 = vrot.lane.b32.xlu0 %v4131, 64
    %v4144 = vpop.permute.xlu0 %4143
    %4145 = vrot.lane.b32.xlu0 %v4132, 64
    %v4146 = vpop.permute.xlu0 %4145
    %v4149 = vsel %vm3884, %v3868, %v4136
    %v4150 = vsel %vm3884, %v3869, %v4138
    %v4151 = vsel %vm3884, %v4129, %v4144
    %v4152 = vsel %vm3884, %v4130, %v4146
    %v4153 = vsub.f32 %v3870, %v4108
    %v4154 = vsub.f32 %v3871, %v4126
    %v4155 = vmul.f32 %v3870, %v4108
    %v4156 = vmul.f32 %v3871, %v4126
    %4159 = vrot.lane.b32.xlu0 %v4108, 64
    %v4160 = vpop.permute.xlu0 %4159
    %4161 = vrot.lane.b32.xlu0 %v4126, 64
    %v4162 = vpop.permute.xlu0 %4161
    %4167 = vrot.lane.b32.xlu0 %v4155, 64
    %v4168 = vpop.permute.xlu0 %4167
    %4169 = vrot.lane.b32.xlu0 %v4156, 64
    %v4170 = vpop.permute.xlu0 %4169
    %v4173 = vsel %vm3884, %v3870, %v4160
    %v4174 = vsel %vm3884, %v3871, %v4162
    %v4175 = vsel %vm3884, %v4153, %v4168
    %v4176 = vsel %vm3884, %v4154, %v4170
    %v4177 = vld [vmem:[%s7] sm:$0xff]
    %v4178 = vld [vmem:[%s7 + $0x8] sm:$0xff]
    %v4179 = vld [vmem:[%s7 + $0x10] sm:$0xff]
    %v4180 = vld [vmem:[%s7 + $0x18] sm:$0xff]
    %v4181 = vld [vmem:[%s7 + $0x20] sm:$0xff]
    %v4182 = vld [vmem:[%s7 + $0x28] sm:$0xff]
    %v4183 = vld [vmem:[%s7 + $0x30] sm:$0xff]
    %v4184 = vld [vmem:[%s7 + $0x38] sm:$0xff]
    %v4185 = vld [vmem:[%s7 + $0x40] sm:$0xff]
    %v4186 = vld [vmem:[%s7 + $0x48] sm:$0xff]
    %v4187 = vld [vmem:[%s7 + $0x50] sm:$0xff]
    %v4188 = vld [vmem:[%s7 + $0x58] sm:$0xff]
    %v4189 = vld [vmem:[%s7 + $0x60] sm:$0xff]
    %v4190 = vld [vmem:[%s7 + $0x68] sm:$0xff]
    %v4191 = vld [vmem:[%s7 + $0x70] sm:$0xff]
    %v4192 = vld [vmem:[%s7 + $0x78] sm:$0xff]
    %v4193 = vld [vmem:[%s7 + $0x80] sm:$0xff]
    %v4194 = vld [vmem:[%s7 + $0x88] sm:$0xff]
    %v4195 = vld [vmem:[%s7 + $0x90] sm:$0xff]
    %v4196 = vld [vmem:[%s7 + $0x98] sm:$0xff]
    %v4197 = vld [vmem:[%s7 + $0xa0] sm:$0xff]
    %v4198 = vld [vmem:[%s7 + $0xa8] sm:$0xff]
    %v4199 = vld [vmem:[%s7 + $0xb0] sm:$0xff]
    %v4200 = vld [vmem:[%s7 + $0xb8] sm:$0xff]
    %v4201 = vld [vmem:[%s7 + $0xc0] sm:$0xff]
    %v4202 = vld [vmem:[%s7 + $0xc8] sm:$0xff]
    %v4203 = vld [vmem:[%s7 + $0xd0] sm:$0xff]
    %v4204 = vld [vmem:[%s7 + $0xd8] sm:$0xff]
    %v4205 = vld [vmem:[%s7 + $0xe0] sm:$0xff]
    %v4206 = vld [vmem:[%s7 + $0xe8] sm:$0xff]
    %v4207 = vld [vmem:[%s7 + $0xf0] sm:$0xff]
    %v4208 = vld [vmem:[%s7 + $0xf8] sm:$0xff]
    %v4209 = vld [vmem:[%s8] sm:$0xff]
    %v4210 = vld [vmem:[%s8 + $0x8] sm:$0xff]
    %v4211 = vld [vmem:[%s8 + $0x10] sm:$0xff]
    %v4212 = vld [vmem:[%s8 + $0x18] sm:$0xff]
    %v4213 = vld [vmem:[%s9] sm:$0x3]
    %v4214 = vpack.c.bf16 %v4150, %v4149
    %v4215 = vpack.c.bf16 %v4152, %v4151
    %v4216 = vpack.c.bf16 %v4174, %v4173
    %v4217 = vpack.c.bf16 %v4176, %v4175
    %v4219 = vperm.slane %v4213, 0
    %v4220 = vperm.slane %v4213, 1
    %v4255 = vunpack.c.l.b16 %v4177
    %v4256 = vunpack.c.h.b16 %v4177
    %v4257 = vunpack.c.l.b16 %v4178
    %v4258 = vunpack.c.h.b16 %v4178
    %v4259 = vunpack.c.l.b16 %v4179
    %v4260 = vunpack.c.h.b16 %v4179
    %v4261 = vunpack.c.l.b16 %v4180
    %v4262 = vunpack.c.h.b16 %v4180
    %v4263 = vunpack.c.l.b16 %v4181
    %v4264 = vunpack.c.h.b16 %v4181
    %v4265 = vunpack.c.l.b16 %v4182
    %v4266 = vunpack.c.h.b16 %v4182
    %v4267 = vunpack.c.l.b16 %v4183
    %v4268 = vunpack.c.h.b16 %v4183
    %v4269 = vunpack.c.l.b16 %v4184
    %v4270 = vunpack.c.h.b16 %v4184
    %v4271 = vunpack.c.l.b16 %v4185
    %v4272 = vunpack.c.h.b16 %v4185
    %v4273 = vunpack.c.l.b16 %v4186
    %v4274 = vunpack.c.h.b16 %v4186
    %v4275 = vunpack.c.l.b16 %v4187
    %v4276 = vunpack.c.h.b16 %v4187
    %v4277 = vunpack.c.l.b16 %v4188
    %v4278 = vunpack.c.h.b16 %v4188
    %v4279 = vunpack.c.l.b16 %v4189
    %v4280 = vunpack.c.h.b16 %v4189
    %v4281 = vunpack.c.l.b16 %v4190
    %v4282 = vunpack.c.h.b16 %v4190
    %v4283 = vunpack.c.l.b16 %v4191
    %v4284 = vunpack.c.h.b16 %v4191
    %v4285 = vunpack.c.l.b16 %v4192
    %v4286 = vunpack.c.h.b16 %v4192
    %v4287 = vunpack.c.l.b16 %v4193
    %v4288 = vunpack.c.h.b16 %v4193
    %v4289 = vunpack.c.l.b16 %v4194
    %v4290 = vunpack.c.h.b16 %v4194
    %v4291 = vunpack.c.l.b16 %v4195
    %v4292 = vunpack.c.h.b16 %v4195
    %v4293 = vunpack.c.l.b16 %v4196
    %v4294 = vunpack.c.h.b16 %v4196
    %v4295 = vunpack.c.l.b16 %v4197
    %v4296 = vunpack.c.h.b16 %v4197
    %v4297 = vunpack.c.l.b16 %v4198
    %v4298 = vunpack.c.h.b16 %v4198
    %v4299 = vunpack.c.l.b16 %v4199
    %v4300 = vunpack.c.h.b16 %v4199
    %v4301 = vunpack.c.l.b16 %v4200
    %v4302 = vunpack.c.h.b16 %v4200
    %v4303 = vunpack.c.l.b16 %v4201
    %v4304 = vunpack.c.h.b16 %v4201
    %v4305 = vunpack.c.l.b16 %v4202
    %v4306 = vunpack.c.h.b16 %v4202
    %v4307 = vunpack.c.l.b16 %v4203
    %v4308 = vunpack.c.h.b16 %v4203
    %v4309 = vunpack.c.l.b16 %v4204
    %v4310 = vunpack.c.h.b16 %v4204
    %v4311 = vunpack.c.l.b16 %v4205
    %v4312 = vunpack.c.h.b16 %v4205
    %v4313 = vunpack.c.l.b16 %v4206
    %v4314 = vunpack.c.h.b16 %v4206
    %v4315 = vunpack.c.l.b16 %v4207
    %v4316 = vunpack.c.h.b16 %v4207
    %v4317 = vunpack.c.l.b16 %v4208
    %v4318 = vunpack.c.h.b16 %v4208
    %v4319 = vpack.c.b16 %v4257, %v4255
    %v4320 = vpack.c.b16 %v4258, %v4256
    %v4321 = vpack.c.b16 %v4261, %v4259
    %v4322 = vpack.c.b16 %v4262, %v4260
    %v4323 = vpack.c.b16 %v4265, %v4263
    %v4324 = vpack.c.b16 %v4266, %v4264
    %v4325 = vpack.c.b16 %v4269, %v4267
    %v4326 = vpack.c.b16 %v4270, %v4268
    %v4327 = vpack.c.b16 %v4273, %v4271
    %v4328 = vpack.c.b16 %v4274, %v4272
    %v4329 = vpack.c.b16 %v4277, %v4275
    %v4330 = vpack.c.b16 %v4278, %v4276
    %v4331 = vpack.c.b16 %v4281, %v4279
    %v4332 = vpack.c.b16 %v4282, %v4280
    %v4333 = vpack.c.b16 %v4285, %v4283
    %v4334 = vpack.c.b16 %v4286, %v4284
    %v4335 = vpack.c.b16 %v4289, %v4287
    %v4336 = vpack.c.b16 %v4290, %v4288
    %v4337 = vpack.c.b16 %v4293, %v4291
    %v4338 = vpack.c.b16 %v4294, %v4292
    %v4339 = vpack.c.b16 %v4297, %v4295
    %v4340 = vpack.c.b16 %v4298, %v4296
    %v4341 = vpack.c.b16 %v4301, %v4299
    %v4342 = vpack.c.b16 %v4302, %v4300
    %v4343 = vpack.c.b16 %v4305, %v4303
    %v4344 = vpack.c.b16 %v4306, %v4304
    %v4345 = vpack.c.b16 %v4309, %v4307
    %v4346 = vpack.c.b16 %v4310, %v4308
    %v4347 = vpack.c.b16 %v4313, %v4311
    %v4348 = vpack.c.b16 %v4314, %v4312
    %v4349 = vpack.c.b16 %v4317, %v4315
    %v4350 = vpack.c.b16 %v4318, %v4316
    %4383 = vmatpush.bf16.msra.mxu0 %v4333
    %4384 = vmatpush.bf16.msra.mxu0 %v4331
    %4385 = vmatpush.bf16.msra.mxu0 %v4329
    %4386 = vmatpush.bf16.msra.mxu0 %v4327
    %4387 = vmatpush.bf16.msra.mxu0 %v4325
    %4388 = vmatpush.bf16.msra.mxu0 %v4323
    %4389 = vmatpush.bf16.msra.mxu0 %v4321
    %4390 = vmatpush.bf16.msra.mxu0 %v4319
    %4391 = vmatmul.bf16.gmra.mxu0 %v4214
    %v4392 = vpop.f32.mrf.mxu0
    %v4393 = vadd.f32 %v4219, %v4392
    %v4394 = vpop.f32.mrf.mxu0
    %v4395 = vadd.f32 %v4219, %v4394
    %4396 = vmatmul.bf16.gmra.mxu0 %v4216
    %v4397 = vpop.f32.mrf.mxu0
    %v4398 = vadd.f32 %v4219, %v4397
    %v4399 = vpop.f32.mrf.mxu0
    %v4400 = vadd.f32 %v4219, %v4399
    %4401 = vdwg.mxu0
    %4402 = vmatpush.bf16.msra.mxu0 %v4349
    %4403 = vmatpush.bf16.msra.mxu0 %v4347
    %4404 = vmatpush.bf16.msra.mxu0 %v4345
    %4405 = vmatpush.bf16.msra.mxu0 %v4343
    %4406 = vmatpush.bf16.msra.mxu0 %v4341
    %4407 = vmatpush.bf16.msra.mxu0 %v4339
    %4408 = vmatpush.bf16.msra.mxu0 %v4337
    %4409 = vmatpush.bf16.msra.mxu0 %v4335
    %4410 = vmatmul.bf16.gmra.mxu0 %v4215
    %v4411 = vpop.f32.mrf.mxu0
    %v4412 = vadd.f32 %v4393, %v4411
    %v4413 = vpop.f32.mrf.mxu0
    %v4414 = vadd.f32 %v4395, %v4413
    %4415 = vmatmul.bf16.gmra.mxu0 %v4217
    %v4416 = vpop.f32.mrf.mxu0
    %v4417 = vadd.f32 %v4398, %v4416
    %v4418 = vpop.f32.mrf.mxu0
    %v4419 = vadd.f32 %v4400, %v4418
    %4420 = vdwg.mxu0
    %4421 = vmatpush.bf16.msra.mxu0 %v4334
    %4422 = vmatpush.bf16.msra.mxu0 %v4332
    %4423 = vmatpush.bf16.msra.mxu0 %v4330
    %4424 = vmatpush.bf16.msra.mxu0 %v4328
    %4425 = vmatpush.bf16.msra.mxu0 %v4326
    %4426 = vmatpush.bf16.msra.mxu0 %v4324
    %4427 = vmatpush.bf16.msra.mxu0 %v4322
    %4428 = vmatpush.bf16.msra.mxu0 %v4320
    %4429 = vmatmul.bf16.gmra.mxu0 %v4214
    %v4430 = vpop.f32.mrf.mxu0
    %v4431 = vadd.f32 %v4220, %v4430
    %v4432 = vpop.f32.mrf.mxu0
    %v4433 = vadd.f32 %v4220, %v4432
    %4434 = vmatmul.bf16.gmra.mxu0 %v4216
    %v4435 = vpop.f32.mrf.mxu0
    %v4436 = vadd.f32 %v4220, %v4435
    %v4437 = vpop.f32.mrf.mxu0
    %v4438 = vadd.f32 %v4220, %v4437
    %4439 = vdwg.mxu0
    %4440 = vmatpush.bf16.msra.mxu0 %v4350
    %4441 = vmatpush.bf16.msra.mxu0 %v4348
    %4442 = vmatpush.bf16.msra.mxu0 %v4346
    %4443 = vmatpush.bf16.msra.mxu0 %v4344
    %4444 = vmatpush.bf16.msra.mxu0 %v4342
    %4445 = vmatpush.bf16.msra.mxu0 %v4340
    %4446 = vmatpush.bf16.msra.mxu0 %v4338
    %4447 = vmatpush.bf16.msra.mxu0 %v4336
    %4448 = vmatmul.bf16.gmra.mxu0 %v4215
    %v4449 = vpop.f32.mrf.mxu0
    %v4450 = vadd.f32 %v4431, %v4449
    %v4451 = vpop.f32.mrf.mxu0
    %v4452 = vadd.f32 %v4433, %v4451
    %4453 = vmatmul.bf16.gmra.mxu0 %v4217
    %v4454 = vpop.f32.mrf.mxu0
    %v4455 = vadd.f32 %v4436, %v4454
    %v4456 = vpop.f32.mrf.mxu0
    %v4457 = vadd.f32 %v4438, %v4456
    %4458 = vdwg.mxu0
    %v4463 = vunpack.c.l.b16 %v4209
    %v4464 = vunpack.c.l.b16 %v4210
    %v4465 = vunpack.c.l.b16 %v4211
    %v4466 = vunpack.c.l.b16 %v4212
    %v4467 = vpack.c.b16 %v4464, %v4463
    %v4468 = vpack.c.b16 %v4466, %v4465
    %4471 = vmatpush.bf16.msra.mxu0 0
    %4472 = vmatpush.bf16.msra.mxu0 0
    %4473 = vmatpush.bf16.msra.mxu0 0
    %4474 = vmatpush.bf16.msra.mxu0 0
    %4475 = vmatpush.bf16.msra.mxu0 0
    %4476 = vmatpush.bf16.msra.mxu0 0
    %4477 = vmatpush.bf16.msra.mxu0 %v4468
    %4478 = vmatpush.bf16.msra.mxu0 %v4467
    %4479 = vmatmul.bf16.gmra.mxu0 %v232
    %v4480 = vpop.f32.mrf.mxu0
    %v4481 = vadd.f32 0.0, %v4480
    %v4482 = vpop.f32.mrf.mxu0
    %4483 = vdwg.mxu0
    %v4485 = vrot.slane %v4481, 1
    %v4486 = vrot.slane %v4481, 2
    %v4487 = vrot.slane %v4481, 3
    %v4492 = vadd.f32 %v4412, %v4481
    %v4493 = vadd.f32 %v4414, %v4485
    %v4494 = vadd.f32 %v4417, %v4486
    %v4495 = vadd.f32 %v4419, %v4487
    %v4496 = vunpack.c.h.b16 %v4209
    %v4497 = vunpack.c.h.b16 %v4210
    %v4498 = vunpack.c.h.b16 %v4211
    %v4499 = vunpack.c.h.b16 %v4212
    %v4500 = vpack.c.b16 %v4497, %v4496
    %v4501 = vpack.c.b16 %v4499, %v4498
    %4504 = vmatpush.bf16.msra.mxu0 0
    %4505 = vmatpush.bf16.msra.mxu0 0
    %4506 = vmatpush.bf16.msra.mxu0 0
    %4507 = vmatpush.bf16.msra.mxu0 0
    %4508 = vmatpush.bf16.msra.mxu0 0
    %4509 = vmatpush.bf16.msra.mxu0 0
    %4510 = vmatpush.bf16.msra.mxu0 %v4501
    %4511 = vmatpush.bf16.msra.mxu0 %v4500
    %4512 = vmatmul.bf16.gmra.mxu0 %v232
    %v4513 = vpop.f32.mrf.mxu0
    %v4514 = vadd.f32 0.0, %v4513
    %v4515 = vpop.f32.mrf.mxu0
    %4516 = vdwg.mxu0
    %v4518 = vrot.slane %v4514, 1
    %v4519 = vrot.slane %v4514, 2
    %v4520 = vrot.slane %v4514, 3
    %v4521 = vrot.slane %v4514, 4
    %v4526 = vadd.f32 %v4450, %v4518
    %v4527 = vadd.f32 %v4452, %v4519
    %v4528 = vadd.f32 %v4455, %v4520
    %v4529 = vadd.f32 %v4457, %v4521
    %v4530 = vxor.u32 %v4492, 2147483648
    %v4531 = vxor.u32 %v4493, 2147483648
    %v4532 = vxor.u32 %v4494, 2147483648
    %v4533 = vxor.u32 %v4495, 2147483648
    %v4534 = vmul.f32 %v4530, 1.442695
    %v4535 = vpow.pop %v4534
    %v4536 = vmul.f32 %v4531, 1.442695
    %v4537 = vpow.pop %v4536
    %v4538 = vmul.f32 %v4532, 1.442695
    %v4539 = vpow.pop %v4538
    %v4540 = vmul.f32 %v4533, 1.442695
    %v4541 = vpow.pop %v4540
    %v4542 = vadd.f32 %v4535, 1.0
    %v4543 = vadd.f32 %v4537, 1.0
    %v4544 = vadd.f32 %v4539, 1.0
    %v4545 = vadd.f32 %v4541, 1.0
    %v4546 = vrcp.pop %v4542
    %v4547 = vmul.f32 %v4542, %v4546
    %v4548 = vsub.f32 1.0, %v4547
    %v4549 = vmul.f32 %v4546, %v4548
    %v4550 = vadd.f32 %v4546, %v4549
    %vm4551 = vweird.f32 %v4542
    %vm4552 = vweird.f32 %v4546
    %vm4553 = vmor %vm4551, %vm4552
    %v4554 = vsel %vm4553, %v4546, %v4550
    %v4555 = vand.u32 2147483647, %v4542
    %vm4556 = vcmp.eq.f32.partialorder %v4555, 8.507059e+37
    %v4557 = vand.u32 %v4542, 2147483648
    %v4558 = vor.u32 1.1754944e-38, %v4557
    %v4559 = vsel %vm4556, %v4558, %v4554
    %v4560 = vmul.f32 1.0, %v4559
    %v4561 = vrcp.pop %v4543
    %v4562 = vmul.f32 %v4543, %v4561
    %v4563 = vsub.f32 1.0, %v4562
    %v4564 = vmul.f32 %v4561, %v4563
    %v4565 = vadd.f32 %v4561, %v4564
    %vm4566 = vweird.f32 %v4543
    %vm4567 = vweird.f32 %v4561
    %vm4568 = vmor %vm4566, %vm4567
    %v4569 = vsel %vm4568, %v4561, %v4565
    %v4570 = vand.u32 2147483647, %v4543
    %vm4571 = vcmp.eq.f32.partialorder %v4570, 8.507059e+37
    %v4572 = vand.u32 %v4543, 2147483648
    %v4573 = vor.u32 1.1754944e-38, %v4572
    %v4574 = vsel %vm4571, %v4573, %v4569
    %v4575 = vmul.f32 1.0, %v4574
    %v4576 = vrcp.pop %v4544
    %v4577 = vmul.f32 %v4544, %v4576
    %v4578 = vsub.f32 1.0, %v4577
    %v4579 = vmul.f32 %v4576, %v4578
    %v4580 = vadd.f32 %v4576, %v4579
    %vm4581 = vweird.f32 %v4544
    %vm4582 = vweird.f32 %v4576
    %vm4583 = vmor %vm4581, %vm4582
    %v4584 = vsel %vm4583, %v4576, %v4580
    %v4585 = vand.u32 2147483647, %v4544
    %vm4586 = vcmp.eq.f32.partialorder %v4585, 8.507059e+37
    %v4587 = vand.u32 %v4544, 2147483648
    %v4588 = vor.u32 1.1754944e-38, %v4587
    %v4589 = vsel %vm4586, %v4588, %v4584
    %v4590 = vmul.f32 1.0, %v4589
    %v4591 = vrcp.pop %v4545
    %v4592 = vmul.f32 %v4545, %v4591
    %v4593 = vsub.f32 1.0, %v4592
    %v4594 = vmul.f32 %v4591, %v4593
    %v4595 = vadd.f32 %v4591, %v4594
    %vm4596 = vweird.f32 %v4545
    %vm4597 = vweird.f32 %v4591
    %vm4598 = vmor %vm4596, %vm4597
    %v4599 = vsel %vm4598, %v4591, %v4595
    %v4600 = vand.u32 2147483647, %v4545
    %vm4601 = vcmp.eq.f32.partialorder %v4600, 8.507059e+37
    %v4602 = vand.u32 %v4545, 2147483648
    %v4603 = vor.u32 1.1754944e-38, %v4602
    %v4604 = vsel %vm4601, %v4603, %v4599
    %v4605 = vmul.f32 1.0, %v4604
    %v4606 = vtanh.pop %v4492
    %v4607 = vtanh.pop %v4493
    %v4608 = vtanh.pop %v4494
    %v4609 = vtanh.pop %v4495
    %v4610 = vmul.f32 %v4560, 0.0
    %v4611 = vmul.f32 %v4575, 0.0
    %v4612 = vmul.f32 %v4590, 0.0
    %v4613 = vmul.f32 %v4605, 0.0
    %4618 = vrot.lane.b32.xlu0 %v4606, 64
    %v4619 = vpop.permute.xlu0 %4618
    %4620 = vrot.lane.b32.xlu0 %v4607, 64
    %v4621 = vpop.permute.xlu0 %4620
    %4622 = vrot.lane.b32.xlu0 %v4608, 64
    %v4623 = vpop.permute.xlu0 %4622
    %4624 = vrot.lane.b32.xlu0 %v4609, 64
    %v4625 = vpop.permute.xlu0 %4624
    %v4630 = vmul.f32 %v4560, %v4619
    %v4631 = vmul.f32 %v4575, %v4621
    %v4632 = vmul.f32 %v4590, %v4623
    %v4633 = vmul.f32 %v4605, %v4625
    %4638 = vrot.lane.b32.xlu0 %v4630, 32
    %v4639 = vpop.permute.xlu0 %4638
    %4640 = vrot.lane.b32.xlu0 %v4631, 32
    %v4641 = vpop.permute.xlu0 %4640
    %4642 = vrot.lane.b32.xlu0 %v4632, 32
    %v4643 = vpop.permute.xlu0 %4642
    %4644 = vrot.lane.b32.xlu0 %v4633, 32
    %v4645 = vpop.permute.xlu0 %4644
    %v4650 = vadd.f32 %v4610, %v4639
    %v4651 = vadd.f32 %v4611, %v4641
    %v4652 = vadd.f32 %v4612, %v4643
    %v4653 = vadd.f32 %v4613, %v4645
    %v4654 = vtanh.pop %v4650
    %v4655 = vtanh.pop %v4651
    %v4656 = vtanh.pop %v4652
    %v4657 = vtanh.pop %v4653
    %4662 = vrot.lane.b32.xlu0 %v4654, 64
    %v4663 = vpop.permute.xlu0 %4662
    %4664 = vrot.lane.b32.xlu0 %v4655, 64
    %v4665 = vpop.permute.xlu0 %4664
    %4666 = vrot.lane.b32.xlu0 %v4656, 64
    %v4667 = vpop.permute.xlu0 %4666
    %4668 = vrot.lane.b32.xlu0 %v4657, 64
    %v4669 = vpop.permute.xlu0 %4668
    %v4674 = vmul.f32 %v4560, %v4663
    %v4675 = vmul.f32 %v4575, %v4665
    %v4676 = vmul.f32 %v4590, %v4667
    %v4677 = vmul.f32 %v4605, %v4669
    %v4678 = vxor.u32 %v4526, 2147483648
    %v4679 = vxor.u32 %v4527, 2147483648
    %v4680 = vxor.u32 %v4528, 2147483648
    %v4681 = vxor.u32 %v4529, 2147483648
    %v4682 = vmul.f32 %v4678, 1.442695
    %v4683 = vpow.pop %v4682
    %v4684 = vmul.f32 %v4679, 1.442695
    %v4685 = vpow.pop %v4684
    %v4686 = vmul.f32 %v4680, 1.442695
    %v4687 = vpow.pop %v4686
    %v4688 = vmul.f32 %v4681, 1.442695
    %v4689 = vpow.pop %v4688
    %v4690 = vadd.f32 %v4683, 1.0
    %v4691 = vadd.f32 %v4685, 1.0
    %v4692 = vadd.f32 %v4687, 1.0
    %v4693 = vadd.f32 %v4689, 1.0
    %v4694 = vrcp.pop %v4690
    %v4695 = vmul.f32 %v4690, %v4694
    %v4696 = vsub.f32 1.0, %v4695
    %v4697 = vmul.f32 %v4694, %v4696
    %v4698 = vadd.f32 %v4694, %v4697
    %vm4699 = vweird.f32 %v4690
    %vm4700 = vweird.f32 %v4694
    %vm4701 = vmor %vm4699, %vm4700
    %v4702 = vsel %vm4701, %v4694, %v4698
    %v4703 = vand.u32 2147483647, %v4690
    %vm4704 = vcmp.eq.f32.partialorder %v4703, 8.507059e+37
    %v4705 = vand.u32 %v4690, 2147483648
    %v4706 = vor.u32 1.1754944e-38, %v4705
    %v4707 = vsel %vm4704, %v4706, %v4702
    %v4708 = vmul.f32 1.0, %v4707
    %v4709 = vrcp.pop %v4691
    %v4710 = vmul.f32 %v4691, %v4709
    %v4711 = vsub.f32 1.0, %v4710
    %v4712 = vmul.f32 %v4709, %v4711
    %v4713 = vadd.f32 %v4709, %v4712
    %vm4714 = vweird.f32 %v4691
    %vm4715 = vweird.f32 %v4709
    %vm4716 = vmor %vm4714, %vm4715
    %v4717 = vsel %vm4716, %v4709, %v4713
    %v4718 = vand.u32 2147483647, %v4691
    %vm4719 = vcmp.eq.f32.partialorder %v4718, 8.507059e+37
    %v4720 = vand.u32 %v4691, 2147483648
    %v4721 = vor.u32 1.1754944e-38, %v4720
    %v4722 = vsel %vm4719, %v4721, %v4717
    %v4723 = vmul.f32 1.0, %v4722
    %v4724 = vrcp.pop %v4692
    %v4725 = vmul.f32 %v4692, %v4724
    %v4726 = vsub.f32 1.0, %v4725
    %v4727 = vmul.f32 %v4724, %v4726
    %v4728 = vadd.f32 %v4724, %v4727
    %vm4729 = vweird.f32 %v4692
    %vm4730 = vweird.f32 %v4724
    %vm4731 = vmor %vm4729, %vm4730
    %v4732 = vsel %vm4731, %v4724, %v4728
    %v4733 = vand.u32 2147483647, %v4692
    %vm4734 = vcmp.eq.f32.partialorder %v4733, 8.507059e+37
    %v4735 = vand.u32 %v4692, 2147483648
    %v4736 = vor.u32 1.1754944e-38, %v4735
    %v4737 = vsel %vm4734, %v4736, %v4732
    %v4738 = vmul.f32 1.0, %v4737
    %v4739 = vrcp.pop %v4693
    %v4740 = vmul.f32 %v4693, %v4739
    %v4741 = vsub.f32 1.0, %v4740
    %v4742 = vmul.f32 %v4739, %v4741
    %v4743 = vadd.f32 %v4739, %v4742
    %vm4744 = vweird.f32 %v4693
    %vm4745 = vweird.f32 %v4739
    %vm4746 = vmor %vm4744, %vm4745
    %v4747 = vsel %vm4746, %v4739, %v4743
    %v4748 = vand.u32 2147483647, %v4693
    %vm4749 = vcmp.eq.f32.partialorder %v4748, 8.507059e+37
    %v4750 = vand.u32 %v4693, 2147483648
    %v4751 = vor.u32 1.1754944e-38, %v4750
    %v4752 = vsel %vm4749, %v4751, %v4747
    %v4753 = vmul.f32 1.0, %v4752
    %v4754 = vtanh.pop %v4526
    %v4755 = vtanh.pop %v4527
    %v4756 = vtanh.pop %v4528
    %v4757 = vtanh.pop %v4529
    %v4758 = vmul.f32 %v4708, 0.0
    %v4759 = vmul.f32 %v4723, 0.0
    %v4760 = vmul.f32 %v4738, 0.0
    %v4761 = vmul.f32 %v4753, 0.0
    %4766 = vrot.lane.b32.xlu0 %v4754, 64
    %v4767 = vpop.permute.xlu0 %4766
    %4768 = vrot.lane.b32.xlu0 %v4755, 64
    %v4769 = vpop.permute.xlu0 %4768
    %4770 = vrot.lane.b32.xlu0 %v4756, 64
    %v4771 = vpop.permute.xlu0 %4770
    %4772 = vrot.lane.b32.xlu0 %v4757, 64
    %v4773 = vpop.permute.xlu0 %4772
    %v4778 = vmul.f32 %v4708, %v4767
    %v4779 = vmul.f32 %v4723, %v4769
    %v4780 = vmul.f32 %v4738, %v4771
    %v4781 = vmul.f32 %v4753, %v4773
    %4786 = vrot.lane.b32.xlu0 %v4778, 32
    %v4787 = vpop.permute.xlu0 %4786
    %4788 = vrot.lane.b32.xlu0 %v4779, 32
    %v4789 = vpop.permute.xlu0 %4788
    %4790 = vrot.lane.b32.xlu0 %v4780, 32
    %v4791 = vpop.permute.xlu0 %4790
    %4792 = vrot.lane.b32.xlu0 %v4781, 32
    %v4793 = vpop.permute.xlu0 %4792
    %v4798 = vadd.f32 %v4758, %v4787
    %v4799 = vadd.f32 %v4759, %v4789
    %v4800 = vadd.f32 %v4760, %v4791
    %v4801 = vadd.f32 %v4761, %v4793
    %v4802 = vtanh.pop %v4798
    %v4803 = vtanh.pop %v4799
    %v4804 = vtanh.pop %v4800
    %v4805 = vtanh.pop %v4801
    %4810 = vrot.lane.b32.xlu0 %v4802, 64
    %v4811 = vpop.permute.xlu0 %4810
    %4812 = vrot.lane.b32.xlu0 %v4803, 64
    %v4813 = vpop.permute.xlu0 %4812
    %4814 = vrot.lane.b32.xlu0 %v4804, 64
    %v4815 = vpop.permute.xlu0 %4814
    %4816 = vrot.lane.b32.xlu0 %v4805, 64
    %v4817 = vpop.permute.xlu0 %4816
    %v4822 = vmul.f32 %v4708, %v4811
    %v4823 = vmul.f32 %v4723, %v4813
    %v4824 = vmul.f32 %v4738, %v4815
    %v4825 = vmul.f32 %v4753, %v4817
    %4830 = vrot.lane.b32.xlu0 %v4674, 32
    %v4831 = vpop.permute.xlu0 %4830
    %4832 = vrot.lane.b32.xlu0 %v4675, 32
    %v4833 = vpop.permute.xlu0 %4832
    %4834 = vrot.lane.b32.xlu0 %v4676, 32
    %v4835 = vpop.permute.xlu0 %4834
    %4836 = vrot.lane.b32.xlu0 %v4677, 32
    %v4837 = vpop.permute.xlu0 %4836
    %4842 = vst.msk [vmem:[#allocation3] sm:$0x1] %vm605, %v4831
    %4843 = vst.msk [vmem:[#allocation3 + $0x8] sm:$0x1] %vm605, %v4833
    %4844 = vst.msk [vmem:[#allocation3 + $0x10] sm:$0x1] %vm605, %v4835
    %4845 = vst.msk [vmem:[#allocation3 + $0x18] sm:$0x1] %vm605, %v4837
    %4850 = vrot.lane.b32.xlu0 %v4822, 64
    %v4851 = vpop.permute.xlu0 %4850
    %4852 = vrot.lane.b32.xlu0 %v4823, 64
    %v4853 = vpop.permute.xlu0 %4852
    %4854 = vrot.lane.b32.xlu0 %v4824, 64
    %v4855 = vpop.permute.xlu0 %4854
    %4856 = vrot.lane.b32.xlu0 %v4825, 64
    %v4857 = vpop.permute.xlu0 %4856
    %4862 = vst.msk [vmem:[#allocation3] sm:$0x80] %vm626, %v4851
    %4863 = vst.msk [vmem:[#allocation3 + $0x8] sm:$0x80] %vm626, %v4853
    %4864 = vst.msk [vmem:[#allocation3 + $0x10] sm:$0x80] %vm626, %v4855
    %4865 = vst.msk [vmem:[#allocation3 + $0x18] sm:$0x80] %vm626, %v4857
    %v4866 = vpack.c.bf16 %v4674, %v4674
    %v4867 = vpack.c.bf16 %v4675, %v4675
    %v4868 = vpack.c.bf16 %v4676, %v4676
    %v4869 = vpack.c.bf16 %v4677, %v4677
    %v4874 = vunpack.c.l.b16 %v4866
    %v4875 = vunpack.c.l.b16 %v4867
    %v4876 = vunpack.c.l.b16 %v4868
    %v4877 = vunpack.c.l.b16 %v4869
    %v4878 = vrot.slane %v4875, 7
    %v4879 = vsel %vm644, %v4878, %v4874
    %v4880 = vrot.slane %v4876, 6
    %v4881 = vsel %vm647, %v4880, %v4879
    %v4882 = vrot.slane %v4877, 5
    %v4883 = vsel %vm650, %v4882, %v4881
    %v4884 = vpack.c.b16 %v4883, %v4883
    %4885 = vrot.lane.b32.xlu0 %v4884, 32
    %v4886 = vpop.permute.xlu0 %4885
    %v4888 = vsel %vm174, %v4886, 0
    %4890 = vmatpush.bf16.msra.mxu0 0
    %4891 = vmatpush.bf16.msra.mxu0 0
    %4892 = vmatpush.bf16.msra.mxu0 0
    %4893 = vmatpush.bf16.msra.mxu0 0
    %4894 = vmatpush.bf16.msra.mxu0 0
    %4895 = vmatpush.bf16.msra.mxu0 0
    %4896 = vmatpush.bf16.msra.mxu0 %v4468
    %4897 = vmatpush.bf16.msra.mxu0 %v4467
    %4898 = vmatmul.bf16.gmra.mxu0 %v4888
    %v4899 = vpop.f32.mrf.mxu0
    %v4900 = vadd.f32 0.0, %v4899
    %v4901 = vpop.f32.mrf.mxu0
    %4902 = vdwg.mxu0
    %v4904 = vrot.slane %v4900, 7
    %v4905 = vrot.slane %v4900, 1
    %v4906 = vrot.slane %v4900, 2
    %v4911 = vadd.f32 %v4412, %v4904
    %v4912 = vadd.f32 %v4414, %v4900
    %v4913 = vadd.f32 %v4417, %v4905
    %v4914 = vadd.f32 %v4419, %v4906
    %v4915 = vpack.c.bf16 %v4822, %v4822
    %v4916 = vpack.c.bf16 %v4823, %v4823
    %v4917 = vpack.c.bf16 %v4824, %v4824
    %v4918 = vpack.c.bf16 %v4825, %v4825
    %v4923 = vunpack.c.l.b16 %v4915
    %v4924 = vunpack.c.l.b16 %v4916
    %v4925 = vunpack.c.l.b16 %v4917
    %v4926 = vunpack.c.l.b16 %v4918
    %v4927 = vrot.slane %v4923, 7
    %v4928 = vrot.slane %v4924, 6
    %v4929 = vsel %vm644, %v4928, %v4927
    %v4930 = vrot.slane %v4925, 5
    %v4931 = vsel %vm647, %v4930, %v4929
    %v4932 = vrot.slane %v4926, 4
    %v4933 = vsel %vm650, %v4932, %v4931
    %v4934 = vpack.c.b16 %v4933, %v4933
    %4935 = vrot.lane.b32.xlu0 %v4934, 32
    %v4936 = vpop.permute.xlu0 %4935
    %v4938 = vsel %vm174, %v4936, 0
    %4940 = vmatpush.bf16.msra.mxu0 0
    %4941 = vmatpush.bf16.msra.mxu0 0
    %4942 = vmatpush.bf16.msra.mxu0 0
    %4943 = vmatpush.bf16.msra.mxu0 0
    %4944 = vmatpush.bf16.msra.mxu0 0
    %4945 = vmatpush.bf16.msra.mxu0 0
    %4946 = vmatpush.bf16.msra.mxu0 %v4501
    %4947 = vmatpush.bf16.msra.mxu0 %v4500
    %4948 = vmatmul.bf16.gmra.mxu0 %v4938
    %v4949 = vpop.f32.mrf.mxu0
    %v4950 = vadd.f32 0.0, %v4949
    %v4951 = vpop.f32.mrf.mxu0
    %4952 = vdwg.mxu0
    %v4954 = vrot.slane %v4950, 2
    %v4955 = vrot.slane %v4950, 3
    %v4956 = vrot.slane %v4950, 4
    %v4957 = vrot.slane %v4950, 5
    %v4962 = vadd.f32 %v4450, %v4954
    %v4963 = vadd.f32 %v4452, %v4955
    %v4964 = vadd.f32 %v4455, %v4956
    %v4965 = vadd.f32 %v4457, %v4957
    %v4966 = vxor.u32 %v4911, 2147483648
    %v4967 = vxor.u32 %v4912, 2147483648
    %v4968 = vxor.u32 %v4913, 2147483648
    %v4969 = vxor.u32 %v4914, 2147483648
    %v4970 = vmul.f32 %v4966, 1.442695
    %v4971 = vpow.pop %v4970
    %v4972 = vmul.f32 %v4967, 1.442695
    %v4973 = vpow.pop %v4972
    %v4974 = vmul.f32 %v4968, 1.442695
    %v4975 = vpow.pop %v4974
    %v4976 = vmul.f32 %v4969, 1.442695
    %v4977 = vpow.pop %v4976
    %v4978 = vadd.f32 %v4971, 1.0
    %v4979 = vadd.f32 %v4973, 1.0
    %v4980 = vadd.f32 %v4975, 1.0
    %v4981 = vadd.f32 %v4977, 1.0
    %v4982 = vrcp.pop %v4978
    %v4983 = vmul.f32 %v4978, %v4982
    %v4984 = vsub.f32 1.0, %v4983
    %v4985 = vmul.f32 %v4982, %v4984
    %v4986 = vadd.f32 %v4982, %v4985
    %vm4987 = vweird.f32 %v4978
    %vm4988 = vweird.f32 %v4982
    %vm4989 = vmor %vm4987, %vm4988
    %v4990 = vsel %vm4989, %v4982, %v4986
    %v4991 = vand.u32 2147483647, %v4978
    %vm4992 = vcmp.eq.f32.partialorder %v4991, 8.507059e+37
    %v4993 = vand.u32 %v4978, 2147483648
    %v4994 = vor.u32 1.1754944e-38, %v4993
    %v4995 = vsel %vm4992, %v4994, %v4990
    %v4996 = vmul.f32 1.0, %v4995
    %v4997 = vrcp.pop %v4979
    %v4998 = vmul.f32 %v4979, %v4997
    %v4999 = vsub.f32 1.0, %v4998
    %v5000 = vmul.f32 %v4997, %v4999
    %v5001 = vadd.f32 %v4997, %v5000
    %vm5002 = vweird.f32 %v4979
    %vm5003 = vweird.f32 %v4997
    %vm5004 = vmor %vm5002, %vm5003
    %v5005 = vsel %vm5004, %v4997, %v5001
    %v5006 = vand.u32 2147483647, %v4979
    %vm5007 = vcmp.eq.f32.partialorder %v5006, 8.507059e+37
    %v5008 = vand.u32 %v4979, 2147483648
    %v5009 = vor.u32 1.1754944e-38, %v5008
    %v5010 = vsel %vm5007, %v5009, %v5005
    %v5011 = vmul.f32 1.0, %v5010
    %v5012 = vrcp.pop %v4980
    %v5013 = vmul.f32 %v4980, %v5012
    %v5014 = vsub.f32 1.0, %v5013
    %v5015 = vmul.f32 %v5012, %v5014
    %v5016 = vadd.f32 %v5012, %v5015
    %vm5017 = vweird.f32 %v4980
    %vm5018 = vweird.f32 %v5012
    %vm5019 = vmor %vm5017, %vm5018
    %v5020 = vsel %vm5019, %v5012, %v5016
    %v5021 = vand.u32 2147483647, %v4980
    %vm5022 = vcmp.eq.f32.partialorder %v5021, 8.507059e+37
    %v5023 = vand.u32 %v4980, 2147483648
    %v5024 = vor.u32 1.1754944e-38, %v5023
    %v5025 = vsel %vm5022, %v5024, %v5020
    %v5026 = vmul.f32 1.0, %v5025
    %v5027 = vrcp.pop %v4981
    %v5028 = vmul.f32 %v4981, %v5027
    %v5029 = vsub.f32 1.0, %v5028
    %v5030 = vmul.f32 %v5027, %v5029
    %v5031 = vadd.f32 %v5027, %v5030
    %vm5032 = vweird.f32 %v4981
    %vm5033 = vweird.f32 %v5027
    %vm5034 = vmor %vm5032, %vm5033
    %v5035 = vsel %vm5034, %v5027, %v5031
    %v5036 = vand.u32 2147483647, %v4981
    %vm5037 = vcmp.eq.f32.partialorder %v5036, 8.507059e+37
    %v5038 = vand.u32 %v4981, 2147483648
    %v5039 = vor.u32 1.1754944e-38, %v5038
    %v5040 = vsel %vm5037, %v5039, %v5035
    %v5041 = vmul.f32 1.0, %v5040
    %v5042 = vtanh.pop %v4911
    %v5043 = vtanh.pop %v4912
    %v5044 = vtanh.pop %v4913
    %v5045 = vtanh.pop %v4914
    %v5050 = vrot.slane %v4650, 7
    %v5051 = vrot.slane %v4651, 7
    %v5052 = vrot.slane %v4652, 7
    %v5053 = vrot.slane %v4653, 7
    %v5058 = vmul.f32 %v4996, %v5050
    %v5059 = vmul.f32 %v5011, %v5051
    %v5060 = vmul.f32 %v5026, %v5052
    %v5061 = vmul.f32 %v5041, %v5053
    %5066 = vrot.lane.b32.xlu0 %v5042, 64
    %v5067 = vpop.permute.xlu0 %5066
    %5068 = vrot.lane.b32.xlu0 %v5043, 64
    %v5069 = vpop.permute.xlu0 %5068
    %5070 = vrot.lane.b32.xlu0 %v5044, 64
    %v5071 = vpop.permute.xlu0 %5070
    %5072 = vrot.lane.b32.xlu0 %v5045, 64
    %v5073 = vpop.permute.xlu0 %5072
    %v5078 = vmul.f32 %v4996, %v5067
    %v5079 = vmul.f32 %v5011, %v5069
    %v5080 = vmul.f32 %v5026, %v5071
    %v5081 = vmul.f32 %v5041, %v5073
    %5086 = vrot.lane.b32.xlu0 %v5078, 32
    %v5087 = vpop.permute.xlu0 %5086
    %5088 = vrot.lane.b32.xlu0 %v5079, 32
    %v5089 = vpop.permute.xlu0 %5088
    %5090 = vrot.lane.b32.xlu0 %v5080, 32
    %v5091 = vpop.permute.xlu0 %5090
    %5092 = vrot.lane.b32.xlu0 %v5081, 32
    %v5093 = vpop.permute.xlu0 %5092
    %v5098 = vadd.f32 %v5058, %v5087
    %v5099 = vadd.f32 %v5059, %v5089
    %v5100 = vadd.f32 %v5060, %v5091
    %v5101 = vadd.f32 %v5061, %v5093
    %v5102 = vtanh.pop %v5098
    %v5103 = vtanh.pop %v5099
    %v5104 = vtanh.pop %v5100
    %v5105 = vtanh.pop %v5101
    %5110 = vrot.lane.b32.xlu0 %v5102, 64
    %v5111 = vpop.permute.xlu0 %5110
    %5112 = vrot.lane.b32.xlu0 %v5103, 64
    %v5113 = vpop.permute.xlu0 %5112
    %5114 = vrot.lane.b32.xlu0 %v5104, 64
    %v5115 = vpop.permute.xlu0 %5114
    %5116 = vrot.lane.b32.xlu0 %v5105, 64
    %v5117 = vpop.permute.xlu0 %5116
    %v5122 = vmul.f32 %v4996, %v5111
    %v5123 = vmul.f32 %v5011, %v5113
    %v5124 = vmul.f32 %v5026, %v5115
    %v5125 = vmul.f32 %v5041, %v5117
    %v5126 = vxor.u32 %v4962, 2147483648
    %v5127 = vxor.u32 %v4963, 2147483648
    %v5128 = vxor.u32 %v4964, 2147483648
    %v5129 = vxor.u32 %v4965, 2147483648
    %v5130 = vmul.f32 %v5126, 1.442695
    %v5131 = vpow.pop %v5130
    %v5132 = vmul.f32 %v5127, 1.442695
    %v5133 = vpow.pop %v5132
    %v5134 = vmul.f32 %v5128, 1.442695
    %v5135 = vpow.pop %v5134
    %v5136 = vmul.f32 %v5129, 1.442695
    %v5137 = vpow.pop %v5136
    %v5138 = vadd.f32 %v5131, 1.0
    %v5139 = vadd.f32 %v5133, 1.0
    %v5140 = vadd.f32 %v5135, 1.0
    %v5141 = vadd.f32 %v5137, 1.0
    %v5142 = vrcp.pop %v5138
    %v5143 = vmul.f32 %v5138, %v5142
    %v5144 = vsub.f32 1.0, %v5143
    %v5145 = vmul.f32 %v5142, %v5144
    %v5146 = vadd.f32 %v5142, %v5145
    %vm5147 = vweird.f32 %v5138
    %vm5148 = vweird.f32 %v5142
    %vm5149 = vmor %vm5147, %vm5148
    %v5150 = vsel %vm5149, %v5142, %v5146
    %v5151 = vand.u32 2147483647, %v5138
    %vm5152 = vcmp.eq.f32.partialorder %v5151, 8.507059e+37
    %v5153 = vand.u32 %v5138, 2147483648
    %v5154 = vor.u32 1.1754944e-38, %v5153
    %v5155 = vsel %vm5152, %v5154, %v5150
    %v5156 = vmul.f32 1.0, %v5155
    %v5157 = vrcp.pop %v5139
    %v5158 = vmul.f32 %v5139, %v5157
    %v5159 = vsub.f32 1.0, %v5158
    %v5160 = vmul.f32 %v5157, %v5159
    %v5161 = vadd.f32 %v5157, %v5160
    %vm5162 = vweird.f32 %v5139
    %vm5163 = vweird.f32 %v5157
    %vm5164 = vmor %vm5162, %vm5163
    %v5165 = vsel %vm5164, %v5157, %v5161
    %v5166 = vand.u32 2147483647, %v5139
    %vm5167 = vcmp.eq.f32.partialorder %v5166, 8.507059e+37
    %v5168 = vand.u32 %v5139, 2147483648
    %v5169 = vor.u32 1.1754944e-38, %v5168
    %v5170 = vsel %vm5167, %v5169, %v5165
    %v5171 = vmul.f32 1.0, %v5170
    %v5172 = vrcp.pop %v5140
    %v5173 = vmul.f32 %v5140, %v5172
    %v5174 = vsub.f32 1.0, %v5173
    %v5175 = vmul.f32 %v5172, %v5174
    %v5176 = vadd.f32 %v5172, %v5175
    %vm5177 = vweird.f32 %v5140
    %vm5178 = vweird.f32 %v5172
    %vm5179 = vmor %vm5177, %vm5178
    %v5180 = vsel %vm5179, %v5172, %v5176
    %v5181 = vand.u32 2147483647, %v5140
    %vm5182 = vcmp.eq.f32.partialorder %v5181, 8.507059e+37
    %v5183 = vand.u32 %v5140, 2147483648
    %v5184 = vor.u32 1.1754944e-38, %v5183
    %v5185 = vsel %vm5182, %v5184, %v5180
    %v5186 = vmul.f32 1.0, %v5185
    %v5187 = vrcp.pop %v5141
    %v5188 = vmul.f32 %v5141, %v5187
    %v5189 = vsub.f32 1.0, %v5188
    %v5190 = vmul.f32 %v5187, %v5189
    %v5191 = vadd.f32 %v5187, %v5190
    %vm5192 = vweird.f32 %v5141
    %vm5193 = vweird.f32 %v5187
    %vm5194 = vmor %vm5192, %vm5193
    %v5195 = vsel %vm5194, %v5187, %v5191
    %v5196 = vand.u32 2147483647, %v5141
    %vm5197 = vcmp.eq.f32.partialorder %v5196, 8.507059e+37
    %v5198 = vand.u32 %v5141, 2147483648
    %v5199 = vor.u32 1.1754944e-38, %v5198
    %v5200 = vsel %vm5197, %v5199, %v5195
    %v5201 = vmul.f32 1.0, %v5200
    %v5202 = vtanh.pop %v4962
    %v5203 = vtanh.pop %v4963
    %v5204 = vtanh.pop %v4964
    %v5205 = vtanh.pop %v4965
    %v5210 = vrot.slane %v4798, 1
    %v5211 = vrot.slane %v4799, 1
    %v5212 = vrot.slane %v4800, 1
    %v5213 = vrot.slane %v4801, 1
    %v5218 = vmul.f32 %v5156, %v5210
    %v5219 = vmul.f32 %v5171, %v5211
    %v5220 = vmul.f32 %v5186, %v5212
    %v5221 = vmul.f32 %v5201, %v5213
    %5226 = vrot.lane.b32.xlu0 %v5202, 64
    %v5227 = vpop.permute.xlu0 %5226
    %5228 = vrot.lane.b32.xlu0 %v5203, 64
    %v5229 = vpop.permute.xlu0 %5228
    %5230 = vrot.lane.b32.xlu0 %v5204, 64
    %v5231 = vpop.permute.xlu0 %5230
    %5232 = vrot.lane.b32.xlu0 %v5205, 64
    %v5233 = vpop.permute.xlu0 %5232
    %v5238 = vmul.f32 %v5156, %v5227
    %v5239 = vmul.f32 %v5171, %v5229
    %v5240 = vmul.f32 %v5186, %v5231
    %v5241 = vmul.f32 %v5201, %v5233
    %5246 = vrot.lane.b32.xlu0 %v5238, 32
    %v5247 = vpop.permute.xlu0 %5246
    %5248 = vrot.lane.b32.xlu0 %v5239, 32
    %v5249 = vpop.permute.xlu0 %5248
    %5250 = vrot.lane.b32.xlu0 %v5240, 32
    %v5251 = vpop.permute.xlu0 %5250
    %5252 = vrot.lane.b32.xlu0 %v5241, 32
    %v5253 = vpop.permute.xlu0 %5252
    %v5258 = vadd.f32 %v5218, %v5247
    %v5259 = vadd.f32 %v5219, %v5249
    %v5260 = vadd.f32 %v5220, %v5251
    %v5261 = vadd.f32 %v5221, %v5253
    %v5262 = vtanh.pop %v5258
    %v5263 = vtanh.pop %v5259
    %v5264 = vtanh.pop %v5260
    %v5265 = vtanh.pop %v5261
    %5270 = vrot.lane.b32.xlu0 %v5262, 64
    %v5271 = vpop.permute.xlu0 %5270
    %5272 = vrot.lane.b32.xlu0 %v5263, 64
    %v5273 = vpop.permute.xlu0 %5272
    %5274 = vrot.lane.b32.xlu0 %v5264, 64
    %v5275 = vpop.permute.xlu0 %5274
    %5276 = vrot.lane.b32.xlu0 %v5265, 64
    %v5277 = vpop.permute.xlu0 %5276
    %v5282 = vmul.f32 %v5156, %v5271
    %v5283 = vmul.f32 %v5171, %v5273
    %v5284 = vmul.f32 %v5186, %v5275
    %v5285 = vmul.f32 %v5201, %v5277
    %5290 = vrot.lane.b32.xlu0 %v5122, 32
    %v5291 = vpop.permute.xlu0 %5290
    %5292 = vrot.lane.b32.xlu0 %v5123, 32
    %v5293 = vpop.permute.xlu0 %5292
    %5294 = vrot.lane.b32.xlu0 %v5124, 32
    %v5295 = vpop.permute.xlu0 %5294
    %5296 = vrot.lane.b32.xlu0 %v5125, 32
    %v5297 = vpop.permute.xlu0 %5296
    %5302 = vst.msk [vmem:[#allocation3] sm:$0x2] %vm1070, %v5291
    %5303 = vst.msk [vmem:[#allocation3 + $0x8] sm:$0x2] %vm1070, %v5293
    %5304 = vst.msk [vmem:[#allocation3 + $0x10] sm:$0x2] %vm1070, %v5295
    %5305 = vst.msk [vmem:[#allocation3 + $0x18] sm:$0x2] %vm1070, %v5297
    %5310 = vrot.lane.b32.xlu0 %v5282, 64
    %v5311 = vpop.permute.xlu0 %5310
    %5312 = vrot.lane.b32.xlu0 %v5283, 64
    %v5313 = vpop.permute.xlu0 %5312
    %5314 = vrot.lane.b32.xlu0 %v5284, 64
    %v5315 = vpop.permute.xlu0 %5314
    %5316 = vrot.lane.b32.xlu0 %v5285, 64
    %v5317 = vpop.permute.xlu0 %5316
    %5322 = vst.msk [vmem:[#allocation3] sm:$0x40] %vm1091, %v5311
    %5323 = vst.msk [vmem:[#allocation3 + $0x8] sm:$0x40] %vm1091, %v5313
    %5324 = vst.msk [vmem:[#allocation3 + $0x10] sm:$0x40] %vm1091, %v5315
    %5325 = vst.msk [vmem:[#allocation3 + $0x18] sm:$0x40] %vm1091, %v5317
    %v5326 = vpack.c.bf16 %v5122, %v5122
    %v5327 = vpack.c.bf16 %v5123, %v5123
    %v5328 = vpack.c.bf16 %v5124, %v5124
    %v5329 = vpack.c.bf16 %v5125, %v5125
    %v5334 = vunpack.c.l.b16 %v5326
    %v5335 = vunpack.c.l.b16 %v5327
    %v5336 = vunpack.c.l.b16 %v5328
    %v5337 = vunpack.c.l.b16 %v5329
    %v5338 = vrot.slane %v5334, 1
    %v5339 = vsel %vm644, %v5335, %v5338
    %v5340 = vrot.slane %v5336, 7
    %v5341 = vsel %vm647, %v5340, %v5339
    %v5342 = vrot.slane %v5337, 6
    %v5343 = vsel %vm650, %v5342, %v5341
    %v5344 = vpack.c.b16 %v5343, %v5343
    %5345 = vrot.lane.b32.xlu0 %v5344, 32
    %v5346 = vpop.permute.xlu0 %5345
    %v5348 = vsel %vm174, %v5346, 0
    %5350 = vmatpush.bf16.msra.mxu0 0
    %5351 = vmatpush.bf16.msra.mxu0 0
    %5352 = vmatpush.bf16.msra.mxu0 0
    %5353 = vmatpush.bf16.msra.mxu0 0
    %5354 = vmatpush.bf16.msra.mxu0 0
    %5355 = vmatpush.bf16.msra.mxu0 0
    %5356 = vmatpush.bf16.msra.mxu0 %v4468
    %5357 = vmatpush.bf16.msra.mxu0 %v4467
    %5358 = vmatmul.bf16.gmra.mxu0 %v5348
    %v5359 = vpop.f32.mrf.mxu0
    %v5360 = vadd.f32 0.0, %v5359
    %v5361 = vpop.f32.mrf.mxu0
    %5362 = vdwg.mxu0
    %v5364 = vrot.slane %v5360, 6
    %v5365 = vrot.slane %v5360, 7
    %v5366 = vrot.slane %v5360, 1
    %v5371 = vadd.f32 %v4412, %v5364
    %v5372 = vadd.f32 %v4414, %v5365
    %v5373 = vadd.f32 %v4417, %v5360
    %v5374 = vadd.f32 %v4419, %v5366
    %v5375 = vpack.c.bf16 %v5282, %v5282
    %v5376 = vpack.c.bf16 %v5283, %v5283
    %v5377 = vpack.c.bf16 %v5284, %v5284
    %v5378 = vpack.c.bf16 %v5285, %v5285
    %v5383 = vunpack.c.l.b16 %v5375
    %v5384 = vunpack.c.l.b16 %v5376
    %v5385 = vunpack.c.l.b16 %v5377
    %v5386 = vunpack.c.l.b16 %v5378
    %v5387 = vrot.slane %v5383, 6
    %v5388 = vrot.slane %v5384, 5
    %v5389 = vsel %vm644, %v5388, %v5387
    %v5390 = vrot.slane %v5385, 4
    %v5391 = vsel %vm647, %v5390, %v5389
    %v5392 = vrot.slane %v5386, 3
    %v5393 = vsel %vm650, %v5392, %v5391
    %v5394 = vpack.c.b16 %v5393, %v5393
    %5395 = vrot.lane.b32.xlu0 %v5394, 32
    %v5396 = vpop.permute.xlu0 %5395
    %v5398 = vsel %vm174, %v5396, 0
    %5400 = vmatpush.bf16.msra.mxu0 0
    %5401 = vmatpush.bf16.msra.mxu0 0
    %5402 = vmatpush.bf16.msra.mxu0 0
    %5403 = vmatpush.bf16.msra.mxu0 0
    %5404 = vmatpush.bf16.msra.mxu0 0
    %5405 = vmatpush.bf16.msra.mxu0 0
    %5406 = vmatpush.bf16.msra.mxu0 %v4501
    %5407 = vmatpush.bf16.msra.mxu0 %v4500
    %5408 = vmatmul.bf16.gmra.mxu0 %v5398
    %v5409 = vpop.f32.mrf.mxu0
    %v5410 = vadd.f32 0.0, %v5409
    %v5411 = vpop.f32.mrf.mxu0
    %5412 = vdwg.mxu0
    %v5414 = vrot.slane %v5410, 3
    %v5415 = vrot.slane %v5410, 4
    %v5416 = vrot.slane %v5410, 5
    %v5417 = vrot.slane %v5410, 6
    %v5422 = vadd.f32 %v4450, %v5414
    %v5423 = vadd.f32 %v4452, %v5415
    %v5424 = vadd.f32 %v4455, %v5416
    %v5425 = vadd.f32 %v4457, %v5417
    %v5426 = vxor.u32 %v5371, 2147483648
    %v5427 = vxor.u32 %v5372, 2147483648
    %v5428 = vxor.u32 %v5373, 2147483648
    %v5429 = vxor.u32 %v5374, 2147483648
    %v5430 = vmul.f32 %v5426, 1.442695
    %v5431 = vpow.pop %v5430
    %v5432 = vmul.f32 %v5427, 1.442695
    %v5433 = vpow.pop %v5432
    %v5434 = vmul.f32 %v5428, 1.442695
    %v5435 = vpow.pop %v5434
    %v5436 = vmul.f32 %v5429, 1.442695
    %v5437 = vpow.pop %v5436
    %v5438 = vadd.f32 %v5431, 1.0
    %v5439 = vadd.f32 %v5433, 1.0
    %v5440 = vadd.f32 %v5435, 1.0
    %v5441 = vadd.f32 %v5437, 1.0
    %v5442 = vrcp.pop %v5438
    %v5443 = vmul.f32 %v5438, %v5442
    %v5444 = vsub.f32 1.0, %v5443
    %v5445 = vmul.f32 %v5442, %v5444
    %v5446 = vadd.f32 %v5442, %v5445
    %vm5447 = vweird.f32 %v5438
    %vm5448 = vweird.f32 %v5442
    %vm5449 = vmor %vm5447, %vm5448
    %v5450 = vsel %vm5449, %v5442, %v5446
    %v5451 = vand.u32 2147483647, %v5438
    %vm5452 = vcmp.eq.f32.partialorder %v5451, 8.507059e+37
    %v5453 = vand.u32 %v5438, 2147483648
    %v5454 = vor.u32 1.1754944e-38, %v5453
    %v5455 = vsel %vm5452, %v5454, %v5450
    %v5456 = vmul.f32 1.0, %v5455
    %v5457 = vrcp.pop %v5439
    %v5458 = vmul.f32 %v5439, %v5457
    %v5459 = vsub.f32 1.0, %v5458
    %v5460 = vmul.f32 %v5457, %v5459
    %v5461 = vadd.f32 %v5457, %v5460
    %vm5462 = vweird.f32 %v5439
    %vm5463 = vweird.f32 %v5457
    %vm5464 = vmor %vm5462, %vm5463
    %v5465 = vsel %vm5464, %v5457, %v5461
    %v5466 = vand.u32 2147483647, %v5439
    %vm5467 = vcmp.eq.f32.partialorder %v5466, 8.507059e+37
    %v5468 = vand.u32 %v5439, 2147483648
    %v5469 = vor.u32 1.1754944e-38, %v5468
    %v5470 = vsel %vm5467, %v5469, %v5465
    %v5471 = vmul.f32 1.0, %v5470
    %v5472 = vrcp.pop %v5440
    %v5473 = vmul.f32 %v5440, %v5472
    %v5474 = vsub.f32 1.0, %v5473
    %v5475 = vmul.f32 %v5472, %v5474
    %v5476 = vadd.f32 %v5472, %v5475
    %vm5477 = vweird.f32 %v5440
    %vm5478 = vweird.f32 %v5472
    %vm5479 = vmor %vm5477, %vm5478
    %v5480 = vsel %vm5479, %v5472, %v5476
    %v5481 = vand.u32 2147483647, %v5440
    %vm5482 = vcmp.eq.f32.partialorder %v5481, 8.507059e+37
    %v5483 = vand.u32 %v5440, 2147483648
    %v5484 = vor.u32 1.1754944e-38, %v5483
    %v5485 = vsel %vm5482, %v5484, %v5480
    %v5486 = vmul.f32 1.0, %v5485
    %v5487 = vrcp.pop %v5441
    %v5488 = vmul.f32 %v5441, %v5487
    %v5489 = vsub.f32 1.0, %v5488
    %v5490 = vmul.f32 %v5487, %v5489
    %v5491 = vadd.f32 %v5487, %v5490
    %vm5492 = vweird.f32 %v5441
    %vm5493 = vweird.f32 %v5487
    %vm5494 = vmor %vm5492, %vm5493
    %v5495 = vsel %vm5494, %v5487, %v5491
    %v5496 = vand.u32 2147483647, %v5441
    %vm5497 = vcmp.eq.f32.partialorder %v5496, 8.507059e+37
    %v5498 = vand.u32 %v5441, 2147483648
    %v5499 = vor.u32 1.1754944e-38, %v5498
    %v5500 = vsel %vm5497, %v5499, %v5495
    %v5501 = vmul.f32 1.0, %v5500
    %v5502 = vtanh.pop %v5371
    %v5503 = vtanh.pop %v5372
    %v5504 = vtanh.pop %v5373
    %v5505 = vtanh.pop %v5374
    %v5510 = vrot.slane %v5098, 7
    %v5511 = vrot.slane %v5099, 7
    %v5512 = vrot.slane %v5100, 7
    %v5513 = vrot.slane %v5101, 7
    %v5518 = vmul.f32 %v5456, %v5510
    %v5519 = vmul.f32 %v5471, %v5511
    %v5520 = vmul.f32 %v5486, %v5512
    %v5521 = vmul.f32 %v5501, %v5513
    %5526 = vrot.lane.b32.xlu0 %v5502, 64
    %v5527 = vpop.permute.xlu0 %5526
    %5528 = vrot.lane.b32.xlu0 %v5503, 64
    %v5529 = vpop.permute.xlu0 %5528
    %5530 = vrot.lane.b32.xlu0 %v5504, 64
    %v5531 = vpop.permute.xlu0 %5530
    %5532 = vrot.lane.b32.xlu0 %v5505, 64
    %v5533 = vpop.permute.xlu0 %5532
    %v5538 = vmul.f32 %v5456, %v5527
    %v5539 = vmul.f32 %v5471, %v5529
    %v5540 = vmul.f32 %v5486, %v5531
    %v5541 = vmul.f32 %v5501, %v5533
    %5546 = vrot.lane.b32.xlu0 %v5538, 32
    %v5547 = vpop.permute.xlu0 %5546
    %5548 = vrot.lane.b32.xlu0 %v5539, 32
    %v5549 = vpop.permute.xlu0 %5548
    %5550 = vrot.lane.b32.xlu0 %v5540, 32
    %v5551 = vpop.permute.xlu0 %5550
    %5552 = vrot.lane.b32.xlu0 %v5541, 32
    %v5553 = vpop.permute.xlu0 %5552
    %v5558 = vadd.f32 %v5518, %v5547
    %v5559 = vadd.f32 %v5519, %v5549
    %v5560 = vadd.f32 %v5520, %v5551
    %v5561 = vadd.f32 %v5521, %v5553
    %v5562 = vtanh.pop %v5558
    %v5563 = vtanh.pop %v5559
    %v5564 = vtanh.pop %v5560
    %v5565 = vtanh.pop %v5561
    %5570 = vrot.lane.b32.xlu0 %v5562, 64
    %v5571 = vpop.permute.xlu0 %5570
    %5572 = vrot.lane.b32.xlu0 %v5563, 64
    %v5573 = vpop.permute.xlu0 %5572
    %5574 = vrot.lane.b32.xlu0 %v5564, 64
    %v5575 = vpop.permute.xlu0 %5574
    %5576 = vrot.lane.b32.xlu0 %v5565, 64
    %v5577 = vpop.permute.xlu0 %5576
    %v5582 = vmul.f32 %v5456, %v5571
    %v5583 = vmul.f32 %v5471, %v5573
    %v5584 = vmul.f32 %v5486, %v5575
    %v5585 = vmul.f32 %v5501, %v5577
    %v5586 = vxor.u32 %v5422, 2147483648
    %v5587 = vxor.u32 %v5423, 2147483648
    %v5588 = vxor.u32 %v5424, 2147483648
    %v5589 = vxor.u32 %v5425, 2147483648
    %v5590 = vmul.f32 %v5586, 1.442695
    %v5591 = vpow.pop %v5590
    %v5592 = vmul.f32 %v5587, 1.442695
    %v5593 = vpow.pop %v5592
    %v5594 = vmul.f32 %v5588, 1.442695
    %v5595 = vpow.pop %v5594
    %v5596 = vmul.f32 %v5589, 1.442695
    %v5597 = vpow.pop %v5596
    %v5598 = vadd.f32 %v5591, 1.0
    %v5599 = vadd.f32 %v5593, 1.0
    %v5600 = vadd.f32 %v5595, 1.0
    %v5601 = vadd.f32 %v5597, 1.0
    %v5602 = vrcp.pop %v5598
    %v5603 = vmul.f32 %v5598, %v5602
    %v5604 = vsub.f32 1.0, %v5603
    %v5605 = vmul.f32 %v5602, %v5604
    %v5606 = vadd.f32 %v5602, %v5605
    %vm5607 = vweird.f32 %v5598
    %vm5608 = vweird.f32 %v5602
    %vm5609 = vmor %vm5607, %vm5608
    %v5610 = vsel %vm5609, %v5602, %v5606
    %v5611 = vand.u32 2147483647, %v5598
    %vm5612 = vcmp.eq.f32.partialorder %v5611, 8.507059e+37
    %v5613 = vand.u32 %v5598, 2147483648
    %v5614 = vor.u32 1.1754944e-38, %v5613
    %v5615 = vsel %vm5612, %v5614, %v5610
    %v5616 = vmul.f32 1.0, %v5615
    %v5617 = vrcp.pop %v5599
    %v5618 = vmul.f32 %v5599, %v5617
    %v5619 = vsub.f32 1.0, %v5618
    %v5620 = vmul.f32 %v5617, %v5619
    %v5621 = vadd.f32 %v5617, %v5620
    %vm5622 = vweird.f32 %v5599
    %vm5623 = vweird.f32 %v5617
    %vm5624 = vmor %vm5622, %vm5623
    %v5625 = vsel %vm5624, %v5617, %v5621
    %v5626 = vand.u32 2147483647, %v5599
    %vm5627 = vcmp.eq.f32.partialorder %v5626, 8.507059e+37
    %v5628 = vand.u32 %v5599, 2147483648
    %v5629 = vor.u32 1.1754944e-38, %v5628
    %v5630 = vsel %vm5627, %v5629, %v5625
    %v5631 = vmul.f32 1.0, %v5630
    %v5632 = vrcp.pop %v5600
    %v5633 = vmul.f32 %v5600, %v5632
    %v5634 = vsub.f32 1.0, %v5633
    %v5635 = vmul.f32 %v5632, %v5634
    %v5636 = vadd.f32 %v5632, %v5635
    %vm5637 = vweird.f32 %v5600
    %vm5638 = vweird.f32 %v5632
    %vm5639 = vmor %vm5637, %vm5638
    %v5640 = vsel %vm5639, %v5632, %v5636
    %v5641 = vand.u32 2147483647, %v5600
    %vm5642 = vcmp.eq.f32.partialorder %v5641, 8.507059e+37
    %v5643 = vand.u32 %v5600, 2147483648
    %v5644 = vor.u32 1.1754944e-38, %v5643
    %v5645 = vsel %vm5642, %v5644, %v5640
    %v5646 = vmul.f32 1.0, %v5645
    %v5647 = vrcp.pop %v5601
    %v5648 = vmul.f32 %v5601, %v5647
    %v5649 = vsub.f32 1.0, %v5648
    %v5650 = vmul.f32 %v5647, %v5649
    %v5651 = vadd.f32 %v5647, %v5650
    %vm5652 = vweird.f32 %v5601
    %vm5653 = vweird.f32 %v5647
    %vm5654 = vmor %vm5652, %vm5653
    %v5655 = vsel %vm5654, %v5647, %v5651
    %v5656 = vand.u32 2147483647, %v5601
    %vm5657 = vcmp.eq.f32.partialorder %v5656, 8.507059e+37
    %v5658 = vand.u32 %v5601, 2147483648
    %v5659 = vor.u32 1.1754944e-38, %v5658
    %v5660 = vsel %vm5657, %v5659, %v5655
    %v5661 = vmul.f32 1.0, %v5660
    %v5662 = vtanh.pop %v5422
    %v5663 = vtanh.pop %v5423
    %v5664 = vtanh.pop %v5424
    %v5665 = vtanh.pop %v5425
    %v5670 = vrot.slane %v5258, 1
    %v5671 = vrot.slane %v5259, 1
    %v5672 = vrot.slane %v5260, 1
    %v5673 = vrot.slane %v5261, 1
    %v5678 = vmul.f32 %v5616, %v5670
    %v5679 = vmul.f32 %v5631, %v5671
    %v5680 = vmul.f32 %v5646, %v5672
    %v5681 = vmul.f32 %v5661, %v5673
    %5686 = vrot.lane.b32.xlu0 %v5662, 64
    %v5687 = vpop.permute.xlu0 %5686
    %5688 = vrot.lane.b32.xlu0 %v5663, 64
    %v5689 = vpop.permute.xlu0 %5688
    %5690 = vrot.lane.b32.xlu0 %v5664, 64
    %v5691 = vpop.permute.xlu0 %5690
    %5692 = vrot.lane.b32.xlu0 %v5665, 64
    %v5693 = vpop.permute.xlu0 %5692
    %v5698 = vmul.f32 %v5616, %v5687
    %v5699 = vmul.f32 %v5631, %v5689
    %v5700 = vmul.f32 %v5646, %v5691
    %v5701 = vmul.f32 %v5661, %v5693
    %5706 = vrot.lane.b32.xlu0 %v5698, 32
    %v5707 = vpop.permute.xlu0 %5706
    %5708 = vrot.lane.b32.xlu0 %v5699, 32
    %v5709 = vpop.permute.xlu0 %5708
    %5710 = vrot.lane.b32.xlu0 %v5700, 32
    %v5711 = vpop.permute.xlu0 %5710
    %5712 = vrot.lane.b32.xlu0 %v5701, 32
    %v5713 = vpop.permute.xlu0 %5712
    %v5718 = vadd.f32 %v5678, %v5707
    %v5719 = vadd.f32 %v5679, %v5709
    %v5720 = vadd.f32 %v5680, %v5711
    %v5721 = vadd.f32 %v5681, %v5713
    %v5722 = vtanh.pop %v5718
    %v5723 = vtanh.pop %v5719
    %v5724 = vtanh.pop %v5720
    %v5725 = vtanh.pop %v5721
    %5730 = vrot.lane.b32.xlu0 %v5722, 64
    %v5731 = vpop.permute.xlu0 %5730
    %5732 = vrot.lane.b32.xlu0 %v5723, 64
    %v5733 = vpop.permute.xlu0 %5732
    %5734 = vrot.lane.b32.xlu0 %v5724, 64
    %v5735 = vpop.permute.xlu0 %5734
    %5736 = vrot.lane.b32.xlu0 %v5725, 64
    %v5737 = vpop.permute.xlu0 %5736
    %v5742 = vmul.f32 %v5616, %v5731
    %v5743 = vmul.f32 %v5631, %v5733
    %v5744 = vmul.f32 %v5646, %v5735
    %v5745 = vmul.f32 %v5661, %v5737
    %5750 = vrot.lane.b32.xlu0 %v5582, 32
    %v5751 = vpop.permute.xlu0 %5750
    %5752 = vrot.lane.b32.xlu0 %v5583, 32
    %v5753 = vpop.permute.xlu0 %5752
    %5754 = vrot.lane.b32.xlu0 %v5584, 32
    %v5755 = vpop.permute.xlu0 %5754
    %5756 = vrot.lane.b32.xlu0 %v5585, 32
    %v5757 = vpop.permute.xlu0 %5756
    %5762 = vst.msk [vmem:[#allocation3] sm:$0x4] %vm1532, %v5751
    %5763 = vst.msk [vmem:[#allocation3 + $0x8] sm:$0x4] %vm1532, %v5753
    %5764 = vst.msk [vmem:[#allocation3 + $0x10] sm:$0x4] %vm1532, %v5755
    %5765 = vst.msk [vmem:[#allocation3 + $0x18] sm:$0x4] %vm1532, %v5757
    %5770 = vrot.lane.b32.xlu0 %v5742, 64
    %v5771 = vpop.permute.xlu0 %5770
    %5772 = vrot.lane.b32.xlu0 %v5743, 64
    %v5773 = vpop.permute.xlu0 %5772
    %5774 = vrot.lane.b32.xlu0 %v5744, 64
    %v5775 = vpop.permute.xlu0 %5774
    %5776 = vrot.lane.b32.xlu0 %v5745, 64
    %v5777 = vpop.permute.xlu0 %5776
    %5782 = vst.msk [vmem:[#allocation3] sm:$0x20] %vm1553, %v5771
    %5783 = vst.msk [vmem:[#allocation3 + $0x8] sm:$0x20] %vm1553, %v5773
    %5784 = vst.msk [vmem:[#allocation3 + $0x10] sm:$0x20] %vm1553, %v5775
    %5785 = vst.msk [vmem:[#allocation3 + $0x18] sm:$0x20] %vm1553, %v5777
    %v5786 = vpack.c.bf16 %v5582, %v5582
    %v5787 = vpack.c.bf16 %v5583, %v5583
    %v5788 = vpack.c.bf16 %v5584, %v5584
    %v5789 = vpack.c.bf16 %v5585, %v5585
    %v5794 = vunpack.c.l.b16 %v5786
    %v5795 = vunpack.c.l.b16 %v5787
    %v5796 = vunpack.c.l.b16 %v5788
    %v5797 = vunpack.c.l.b16 %v5789
    %v5798 = vrot.slane %v5794, 2
    %v5799 = vrot.slane %v5795, 1
    %v5800 = vsel %vm644, %v5799, %v5798
    %v5801 = vsel %vm647, %v5796, %v5800
    %v5802 = vrot.slane %v5797, 7
    %v5803 = vsel %vm650, %v5802, %v5801
    %v5804 = vpack.c.b16 %v5803, %v5803
    %5805 = vrot.lane.b32.xlu0 %v5804, 32
    %v5806 = vpop.permute.xlu0 %5805
    %v5808 = vsel %vm174, %v5806, 0
    %5810 = vmatpush.bf16.msra.mxu0 0
    %5811 = vmatpush.bf16.msra.mxu0 0
    %5812 = vmatpush.bf16.msra.mxu0 0
    %5813 = vmatpush.bf16.msra.mxu0 0
    %5814 = vmatpush.bf16.msra.mxu0 0
    %5815 = vmatpush.bf16.msra.mxu0 0
    %5816 = vmatpush.bf16.msra.mxu0 %v4468
    %5817 = vmatpush.bf16.msra.mxu0 %v4467
    %5818 = vmatmul.bf16.gmra.mxu0 %v5808
    %v5819 = vpop.f32.mrf.mxu0
    %v5820 = vadd.f32 0.0, %v5819
    %v5821 = vpop.f32.mrf.mxu0
    %5822 = vdwg.mxu0
    %v5824 = vrot.slane %v5820, 5
    %v5825 = vrot.slane %v5820, 6
    %v5826 = vrot.slane %v5820, 7
    %v5831 = vadd.f32 %v4412, %v5824
    %v5832 = vadd.f32 %v4414, %v5825
    %v5833 = vadd.f32 %v4417, %v5826
    %v5834 = vadd.f32 %v4419, %v5820
    %v5835 = vpack.c.bf16 %v5742, %v5742
    %v5836 = vpack.c.bf16 %v5743, %v5743
    %v5837 = vpack.c.bf16 %v5744, %v5744
    %v5838 = vpack.c.bf16 %v5745, %v5745
    %v5843 = vunpack.c.l.b16 %v5835
    %v5844 = vunpack.c.l.b16 %v5836
    %v5845 = vunpack.c.l.b16 %v5837
    %v5846 = vunpack.c.l.b16 %v5838
    %v5847 = vrot.slane %v5843, 5
    %v5848 = vrot.slane %v5844, 4
    %v5849 = vsel %vm644, %v5848, %v5847
    %v5850 = vrot.slane %v5845, 3
    %v5851 = vsel %vm647, %v5850, %v5849
    %v5852 = vrot.slane %v5846, 2
    %v5853 = vsel %vm650, %v5852, %v5851
    %v5854 = vpack.c.b16 %v5853, %v5853
    %5855 = vrot.lane.b32.xlu0 %v5854, 32
    %v5856 = vpop.permute.xlu0 %5855
    %v5858 = vsel %vm174, %v5856, 0
    %5860 = vmatpush.bf16.msra.mxu0 0
    %5861 = vmatpush.bf16.msra.mxu0 0
    %5862 = vmatpush.bf16.msra.mxu0 0
    %5863 = vmatpush.bf16.msra.mxu0 0
    %5864 = vmatpush.bf16.msra.mxu0 0
    %5865 = vmatpush.bf16.msra.mxu0 0
    %5866 = vmatpush.bf16.msra.mxu0 %v4501
    %5867 = vmatpush.bf16.msra.mxu0 %v4500
    %5868 = vmatmul.bf16.gmra.mxu0 %v5858
    %v5869 = vpop.f32.mrf.mxu0
    %v5870 = vadd.f32 0.0, %v5869
    %v5871 = vpop.f32.mrf.mxu0
    %5872 = vdwg.mxu0
    %v5874 = vrot.slane %v5870, 4
    %v5875 = vrot.slane %v5870, 5
    %v5876 = vrot.slane %v5870, 6
    %v5877 = vrot.slane %v5870, 7
    %v5882 = vadd.f32 %v4450, %v5874
    %v5883 = vadd.f32 %v4452, %v5875
    %v5884 = vadd.f32 %v4455, %v5876
    %v5885 = vadd.f32 %v4457, %v5877
    %v5886 = vxor.u32 %v5831, 2147483648
    %v5887 = vxor.u32 %v5832, 2147483648
    %v5888 = vxor.u32 %v5833, 2147483648
    %v5889 = vxor.u32 %v5834, 2147483648
    %v5890 = vmul.f32 %v5886, 1.442695
    %v5891 = vpow.pop %v5890
    %v5892 = vmul.f32 %v5887, 1.442695
    %v5893 = vpow.pop %v5892
    %v5894 = vmul.f32 %v5888, 1.442695
    %v5895 = vpow.pop %v5894
    %v5896 = vmul.f32 %v5889, 1.442695
    %v5897 = vpow.pop %v5896
    %v5898 = vadd.f32 %v5891, 1.0
    %v5899 = vadd.f32 %v5893, 1.0
    %v5900 = vadd.f32 %v5895, 1.0
    %v5901 = vadd.f32 %v5897, 1.0
    %v5902 = vrcp.pop %v5898
    %v5903 = vmul.f32 %v5898, %v5902
    %v5904 = vsub.f32 1.0, %v5903
    %v5905 = vmul.f32 %v5902, %v5904
    %v5906 = vadd.f32 %v5902, %v5905
    %vm5907 = vweird.f32 %v5898
    %vm5908 = vweird.f32 %v5902
    %vm5909 = vmor %vm5907, %vm5908
    %v5910 = vsel %vm5909, %v5902, %v5906
    %v5911 = vand.u32 2147483647, %v5898
    %vm5912 = vcmp.eq.f32.partialorder %v5911, 8.507059e+37
    %v5913 = vand.u32 %v5898, 2147483648
    %v5914 = vor.u32 1.1754944e-38, %v5913
    %v5915 = vsel %vm5912, %v5914, %v5910
    %v5916 = vmul.f32 1.0, %v5915
    %v5917 = vrcp.pop %v5899
    %v5918 = vmul.f32 %v5899, %v5917
    %v5919 = vsub.f32 1.0, %v5918
    %v5920 = vmul.f32 %v5917, %v5919
    %v5921 = vadd.f32 %v5917, %v5920
    %vm5922 = vweird.f32 %v5899
    %vm5923 = vweird.f32 %v5917
    %vm5924 = vmor %vm5922, %vm5923
    %v5925 = vsel %vm5924, %v5917, %v5921
    %v5926 = vand.u32 2147483647, %v5899
    %vm5927 = vcmp.eq.f32.partialorder %v5926, 8.507059e+37
    %v5928 = vand.u32 %v5899, 2147483648
    %v5929 = vor.u32 1.1754944e-38, %v5928
    %v5930 = vsel %vm5927, %v5929, %v5925
    %v5931 = vmul.f32 1.0, %v5930
    %v5932 = vrcp.pop %v5900
    %v5933 = vmul.f32 %v5900, %v5932
    %v5934 = vsub.f32 1.0, %v5933
    %v5935 = vmul.f32 %v5932, %v5934
    %v5936 = vadd.f32 %v5932, %v5935
    %vm5937 = vweird.f32 %v5900
    %vm5938 = vweird.f32 %v5932
    %vm5939 = vmor %vm5937, %vm5938
    %v5940 = vsel %vm5939, %v5932, %v5936
    %v5941 = vand.u32 2147483647, %v5900
    %vm5942 = vcmp.eq.f32.partialorder %v5941, 8.507059e+37
    %v5943 = vand.u32 %v5900, 2147483648
    %v5944 = vor.u32 1.1754944e-38, %v5943
    %v5945 = vsel %vm5942, %v5944, %v5940
    %v5946 = vmul.f32 1.0, %v5945
    %v5947 = vrcp.pop %v5901
    %v5948 = vmul.f32 %v5901, %v5947
    %v5949 = vsub.f32 1.0, %v5948
    %v5950 = vmul.f32 %v5947, %v5949
    %v5951 = vadd.f32 %v5947, %v5950
    %vm5952 = vweird.f32 %v5901
    %vm5953 = vweird.f32 %v5947
    %vm5954 = vmor %vm5952, %vm5953
    %v5955 = vsel %vm5954, %v5947, %v5951
    %v5956 = vand.u32 2147483647, %v5901
    %vm5957 = vcmp.eq.f32.partialorder %v5956, 8.507059e+37
    %v5958 = vand.u32 %v5901, 2147483648
    %v5959 = vor.u32 1.1754944e-38, %v5958
    %v5960 = vsel %vm5957, %v5959, %v5955
    %v5961 = vmul.f32 1.0, %v5960
    %v5962 = vtanh.pop %v5831
    %v5963 = vtanh.pop %v5832
    %v5964 = vtanh.pop %v5833
    %v5965 = vtanh.pop %v5834
    %v5970 = vrot.slane %v5558, 7
    %v5971 = vrot.slane %v5559, 7
    %v5972 = vrot.slane %v5560, 7
    %v5973 = vrot.slane %v5561, 7
    %v5978 = vmul.f32 %v5916, %v5970
    %v5979 = vmul.f32 %v5931, %v5971
    %v5980 = vmul.f32 %v5946, %v5972
    %v5981 = vmul.f32 %v5961, %v5973
    %5986 = vrot.lane.b32.xlu0 %v5962, 64
    %v5987 = vpop.permute.xlu0 %5986
    %5988 = vrot.lane.b32.xlu0 %v5963, 64
    %v5989 = vpop.permute.xlu0 %5988
    %5990 = vrot.lane.b32.xlu0 %v5964, 64
    %v5991 = vpop.permute.xlu0 %5990
    %5992 = vrot.lane.b32.xlu0 %v5965, 64
    %v5993 = vpop.permute.xlu0 %5992
    %v5998 = vmul.f32 %v5916, %v5987
    %v5999 = vmul.f32 %v5931, %v5989
    %v6000 = vmul.f32 %v5946, %v5991
    %v6001 = vmul.f32 %v5961, %v5993
    %6006 = vrot.lane.b32.xlu0 %v5998, 32
    %v6007 = vpop.permute.xlu0 %6006
    %6008 = vrot.lane.b32.xlu0 %v5999, 32
    %v6009 = vpop.permute.xlu0 %6008
    %6010 = vrot.lane.b32.xlu0 %v6000, 32
    %v6011 = vpop.permute.xlu0 %6010
    %6012 = vrot.lane.b32.xlu0 %v6001, 32
    %v6013 = vpop.permute.xlu0 %6012
    %v6018 = vadd.f32 %v5978, %v6007
    %v6019 = vadd.f32 %v5979, %v6009
    %v6020 = vadd.f32 %v5980, %v6011
    %v6021 = vadd.f32 %v5981, %v6013
    %v6022 = vtanh.pop %v6018
    %v6023 = vtanh.pop %v6019
    %v6024 = vtanh.pop %v6020
    %v6025 = vtanh.pop %v6021
    %6030 = vrot.lane.b32.xlu0 %v6022, 64
    %v6031 = vpop.permute.xlu0 %6030
    %6032 = vrot.lane.b32.xlu0 %v6023, 64
    %v6033 = vpop.permute.xlu0 %6032
    %6034 = vrot.lane.b32.xlu0 %v6024, 64
    %v6035 = vpop.permute.xlu0 %6034
    %6036 = vrot.lane.b32.xlu0 %v6025, 64
    %v6037 = vpop.permute.xlu0 %6036
    %v6042 = vmul.f32 %v5916, %v6031
    %v6043 = vmul.f32 %v5931, %v6033
    %v6044 = vmul.f32 %v5946, %v6035
    %v6045 = vmul.f32 %v5961, %v6037
    %v6046 = vxor.u32 %v5882, 2147483648
    %v6047 = vxor.u32 %v5883, 2147483648
    %v6048 = vxor.u32 %v5884, 2147483648
    %v6049 = vxor.u32 %v5885, 2147483648
    %v6050 = vmul.f32 %v6046, 1.442695
    %v6051 = vpow.pop %v6050
    %v6052 = vmul.f32 %v6047, 1.442695
    %v6053 = vpow.pop %v6052
    %v6054 = vmul.f32 %v6048, 1.442695
    %v6055 = vpow.pop %v6054
    %v6056 = vmul.f32 %v6049, 1.442695
    %v6057 = vpow.pop %v6056
    %v6058 = vadd.f32 %v6051, 1.0
    %v6059 = vadd.f32 %v6053, 1.0
    %v6060 = vadd.f32 %v6055, 1.0
    %v6061 = vadd.f32 %v6057, 1.0
    %v6062 = vrcp.pop %v6058
    %v6063 = vmul.f32 %v6058, %v6062
    %v6064 = vsub.f32 1.0, %v6063
    %v6065 = vmul.f32 %v6062, %v6064
    %v6066 = vadd.f32 %v6062, %v6065
    %vm6067 = vweird.f32 %v6058
    %vm6068 = vweird.f32 %v6062
    %vm6069 = vmor %vm6067, %vm6068
    %v6070 = vsel %vm6069, %v6062, %v6066
    %v6071 = vand.u32 2147483647, %v6058
    %vm6072 = vcmp.eq.f32.partialorder %v6071, 8.507059e+37
    %v6073 = vand.u32 %v6058, 2147483648
    %v6074 = vor.u32 1.1754944e-38, %v6073
    %v6075 = vsel %vm6072, %v6074, %v6070
    %v6076 = vmul.f32 1.0, %v6075
    %v6077 = vrcp.pop %v6059
    %v6078 = vmul.f32 %v6059, %v6077
    %v6079 = vsub.f32 1.0, %v6078
    %v6080 = vmul.f32 %v6077, %v6079
    %v6081 = vadd.f32 %v6077, %v6080
    %vm6082 = vweird.f32 %v6059
    %vm6083 = vweird.f32 %v6077
    %vm6084 = vmor %vm6082, %vm6083
    %v6085 = vsel %vm6084, %v6077, %v6081
    %v6086 = vand.u32 2147483647, %v6059
    %vm6087 = vcmp.eq.f32.partialorder %v6086, 8.507059e+37
    %v6088 = vand.u32 %v6059, 2147483648
    %v6089 = vor.u32 1.1754944e-38, %v6088
    %v6090 = vsel %vm6087, %v6089, %v6085
    %v6091 = vmul.f32 1.0, %v6090
    %v6092 = vrcp.pop %v6060
    %v6093 = vmul.f32 %v6060, %v6092
    %v6094 = vsub.f32 1.0, %v6093
    %v6095 = vmul.f32 %v6092, %v6094
    %v6096 = vadd.f32 %v6092, %v6095
    %vm6097 = vweird.f32 %v6060
    %vm6098 = vweird.f32 %v6092
    %vm6099 = vmor %vm6097, %vm6098
    %v6100 = vsel %vm6099, %v6092, %v6096
    %v6101 = vand.u32 2147483647, %v6060
    %vm6102 = vcmp.eq.f32.partialorder %v6101, 8.507059e+37
    %v6103 = vand.u32 %v6060, 2147483648
    %v6104 = vor.u32 1.1754944e-38, %v6103
    %v6105 = vsel %vm6102, %v6104, %v6100
    %v6106 = vmul.f32 1.0, %v6105
    %v6107 = vrcp.pop %v6061
    %v6108 = vmul.f32 %v6061, %v6107
    %v6109 = vsub.f32 1.0, %v6108
    %v6110 = vmul.f32 %v6107, %v6109
    %v6111 = vadd.f32 %v6107, %v6110
    %vm6112 = vweird.f32 %v6061
    %vm6113 = vweird.f32 %v6107
    %vm6114 = vmor %vm6112, %vm6113
    %v6115 = vsel %vm6114, %v6107, %v6111
    %v6116 = vand.u32 2147483647, %v6061
    %vm6117 = vcmp.eq.f32.partialorder %v6116, 8.507059e+37
    %v6118 = vand.u32 %v6061, 2147483648
    %v6119 = vor.u32 1.1754944e-38, %v6118
    %v6120 = vsel %vm6117, %v6119, %v6115
    %v6121 = vmul.f32 1.0, %v6120
    %v6122 = vtanh.pop %v5882
    %v6123 = vtanh.pop %v5883
    %v6124 = vtanh.pop %v5884
    %v6125 = vtanh.pop %v5885
    %v6130 = vrot.slane %v5718, 1
    %v6131 = vrot.slane %v5719, 1
    %v6132 = vrot.slane %v5720, 1
    %v6133 = vrot.slane %v5721, 1
    %v6138 = vmul.f32 %v6076, %v6130
    %v6139 = vmul.f32 %v6091, %v6131
    %v6140 = vmul.f32 %v6106, %v6132
    %v6141 = vmul.f32 %v6121, %v6133
    %6146 = vrot.lane.b32.xlu0 %v6122, 64
    %v6147 = vpop.permute.xlu0 %6146
    %6148 = vrot.lane.b32.xlu0 %v6123, 64
    %v6149 = vpop.permute.xlu0 %6148
    %6150 = vrot.lane.b32.xlu0 %v6124, 64
    %v6151 = vpop.permute.xlu0 %6150
    %6152 = vrot.lane.b32.xlu0 %v6125, 64
    %v6153 = vpop.permute.xlu0 %6152
    %v6158 = vmul.f32 %v6076, %v6147
    %v6159 = vmul.f32 %v6091, %v6149
    %v6160 = vmul.f32 %v6106, %v6151
    %v6161 = vmul.f32 %v6121, %v6153
    %6166 = vrot.lane.b32.xlu0 %v6158, 32
    %v6167 = vpop.permute.xlu0 %6166
    %6168 = vrot.lane.b32.xlu0 %v6159, 32
    %v6169 = vpop.permute.xlu0 %6168
    %6170 = vrot.lane.b32.xlu0 %v6160, 32
    %v6171 = vpop.permute.xlu0 %6170
    %6172 = vrot.lane.b32.xlu0 %v6161, 32
    %v6173 = vpop.permute.xlu0 %6172
    %v6178 = vadd.f32 %v6138, %v6167
    %v6179 = vadd.f32 %v6139, %v6169
    %v6180 = vadd.f32 %v6140, %v6171
    %v6181 = vadd.f32 %v6141, %v6173
    %v6182 = vtanh.pop %v6178
    %v6183 = vtanh.pop %v6179
    %v6184 = vtanh.pop %v6180
    %v6185 = vtanh.pop %v6181
    %6190 = vrot.lane.b32.xlu0 %v6182, 64
    %v6191 = vpop.permute.xlu0 %6190
    %6192 = vrot.lane.b32.xlu0 %v6183, 64
    %v6193 = vpop.permute.xlu0 %6192
    %6194 = vrot.lane.b32.xlu0 %v6184, 64
    %v6195 = vpop.permute.xlu0 %6194
    %6196 = vrot.lane.b32.xlu0 %v6185, 64
    %v6197 = vpop.permute.xlu0 %6196
    %v6202 = vmul.f32 %v6076, %v6191
    %v6203 = vmul.f32 %v6091, %v6193
    %v6204 = vmul.f32 %v6106, %v6195
    %v6205 = vmul.f32 %v6121, %v6197
    %6210 = vrot.lane.b32.xlu0 %v6042, 32
    %v6211 = vpop.permute.xlu0 %6210
    %6212 = vrot.lane.b32.xlu0 %v6043, 32
    %v6213 = vpop.permute.xlu0 %6212
    %6214 = vrot.lane.b32.xlu0 %v6044, 32
    %v6215 = vpop.permute.xlu0 %6214
    %6216 = vrot.lane.b32.xlu0 %v6045, 32
    %v6217 = vpop.permute.xlu0 %6216
    %6222 = vst.msk [vmem:[#allocation3] sm:$0x8] %vm1994, %v6211
    %6223 = vst.msk [vmem:[#allocation3 + $0x8] sm:$0x8] %vm1994, %v6213
    %6224 = vst.msk [vmem:[#allocation3 + $0x10] sm:$0x8] %vm1994, %v6215
    %6225 = vst.msk [vmem:[#allocation3 + $0x18] sm:$0x8] %vm1994, %v6217
    %6230 = vrot.lane.b32.xlu0 %v6202, 64
    %v6231 = vpop.permute.xlu0 %6230
    %6232 = vrot.lane.b32.xlu0 %v6203, 64
    %v6233 = vpop.permute.xlu0 %6232
    %6234 = vrot.lane.b32.xlu0 %v6204, 64
    %v6235 = vpop.permute.xlu0 %6234
    %6236 = vrot.lane.b32.xlu0 %v6205, 64
    %v6237 = vpop.permute.xlu0 %6236
    %6242 = vst.msk [vmem:[#allocation3] sm:$0x10] %vm2015, %v6231
    %6243 = vst.msk [vmem:[#allocation3 + $0x8] sm:$0x10] %vm2015, %v6233
    %6244 = vst.msk [vmem:[#allocation3 + $0x10] sm:$0x10] %vm2015, %v6235
    %6245 = vst.msk [vmem:[#allocation3 + $0x18] sm:$0x10] %vm2015, %v6237
    %v6246 = vpack.c.bf16 %v6042, %v6042
    %v6247 = vpack.c.bf16 %v6043, %v6043
    %v6248 = vpack.c.bf16 %v6044, %v6044
    %v6249 = vpack.c.bf16 %v6045, %v6045
    %v6254 = vunpack.c.l.b16 %v6246
    %v6255 = vunpack.c.l.b16 %v6247
    %v6256 = vunpack.c.l.b16 %v6248
    %v6257 = vunpack.c.l.b16 %v6249
    %v6258 = vrot.slane %v6254, 3
    %v6259 = vrot.slane %v6255, 2
    %v6260 = vsel %vm644, %v6259, %v6258
    %v6261 = vrot.slane %v6256, 1
    %v6262 = vsel %vm647, %v6261, %v6260
    %v6263 = vsel %vm650, %v6257, %v6262
    %v6264 = vpack.c.b16 %v6263, %v6263
    %6265 = vrot.lane.b32.xlu0 %v6264, 32
    %v6266 = vpop.permute.xlu0 %6265
    %v6268 = vsel %vm174, %v6266, 0
    %6270 = vmatpush.bf16.msra.mxu0 0
    %6271 = vmatpush.bf16.msra.mxu0 0
    %6272 = vmatpush.bf16.msra.mxu0 0
    %6273 = vmatpush.bf16.msra.mxu0 0
    %6274 = vmatpush.bf16.msra.mxu0 0
    %6275 = vmatpush.bf16.msra.mxu0 0
    %6276 = vmatpush.bf16.msra.mxu0 %v4468
    %6277 = vmatpush.bf16.msra.mxu0 %v4467
    %6278 = vmatmul.bf16.gmra.mxu0 %v6268
    %v6279 = vpop.f32.mrf.mxu0
    %v6280 = vadd.f32 0.0, %v6279
    %v6281 = vpop.f32.mrf.mxu0
    %6282 = vdwg.mxu0
    %v6284 = vrot.slane %v6280, 4
    %v6285 = vrot.slane %v6280, 5
    %v6286 = vrot.slane %v6280, 6
    %v6287 = vrot.slane %v6280, 7
    %v6292 = vadd.f32 %v4412, %v6284
    %v6293 = vadd.f32 %v4414, %v6285
    %v6294 = vadd.f32 %v4417, %v6286
    %v6295 = vadd.f32 %v4419, %v6287
    %v6296 = vpack.c.bf16 %v6202, %v6202
    %v6297 = vpack.c.bf16 %v6203, %v6203
    %v6298 = vpack.c.bf16 %v6204, %v6204
    %v6299 = vpack.c.bf16 %v6205, %v6205
    %v6304 = vunpack.c.l.b16 %v6296
    %v6305 = vunpack.c.l.b16 %v6297
    %v6306 = vunpack.c.l.b16 %v6298
    %v6307 = vunpack.c.l.b16 %v6299
    %v6308 = vrot.slane %v6304, 4
    %v6309 = vrot.slane %v6305, 3
    %v6310 = vsel %vm644, %v6309, %v6308
    %v6311 = vrot.slane %v6306, 2
    %v6312 = vsel %vm647, %v6311, %v6310
    %v6313 = vrot.slane %v6307, 1
    %v6314 = vsel %vm650, %v6313, %v6312
    %v6315 = vpack.c.b16 %v6314, %v6314
    %6316 = vrot.lane.b32.xlu0 %v6315, 32
    %v6317 = vpop.permute.xlu0 %6316
    %v6319 = vsel %vm174, %v6317, 0
    %6321 = vmatpush.bf16.msra.mxu0 0
    %6322 = vmatpush.bf16.msra.mxu0 0
    %6323 = vmatpush.bf16.msra.mxu0 0
    %6324 = vmatpush.bf16.msra.mxu0 0
    %6325 = vmatpush.bf16.msra.mxu0 0
    %6326 = vmatpush.bf16.msra.mxu0 0
    %6327 = vmatpush.bf16.msra.mxu0 %v4501
    %6328 = vmatpush.bf16.msra.mxu0 %v4500
    %6329 = vmatmul.bf16.gmra.mxu0 %v6319
    %v6330 = vpop.f32.mrf.mxu0
    %v6331 = vadd.f32 0.0, %v6330
    %v6332 = vpop.f32.mrf.mxu0
    %6333 = vdwg.mxu0
    %v6335 = vrot.slane %v6331, 5
    %v6336 = vrot.slane %v6331, 6
    %v6337 = vrot.slane %v6331, 7
    %v6342 = vadd.f32 %v4450, %v6335
    %v6343 = vadd.f32 %v4452, %v6336
    %v6344 = vadd.f32 %v4455, %v6337
    %v6345 = vadd.f32 %v4457, %v6331
    %v6346 = vxor.u32 %v6292, 2147483648
    %v6347 = vxor.u32 %v6293, 2147483648
    %v6348 = vxor.u32 %v6294, 2147483648
    %v6349 = vxor.u32 %v6295, 2147483648
    %v6350 = vmul.f32 %v6346, 1.442695
    %v6351 = vpow.pop %v6350
    %v6352 = vmul.f32 %v6347, 1.442695
    %v6353 = vpow.pop %v6352
    %v6354 = vmul.f32 %v6348, 1.442695
    %v6355 = vpow.pop %v6354
    %v6356 = vmul.f32 %v6349, 1.442695
    %v6357 = vpow.pop %v6356
    %v6358 = vadd.f32 %v6351, 1.0
    %v6359 = vadd.f32 %v6353, 1.0
    %v6360 = vadd.f32 %v6355, 1.0
    %v6361 = vadd.f32 %v6357, 1.0
    %v6362 = vrcp.pop %v6358
    %v6363 = vmul.f32 %v6358, %v6362
    %v6364 = vsub.f32 1.0, %v6363
    %v6365 = vmul.f32 %v6362, %v6364
    %v6366 = vadd.f32 %v6362, %v6365
    %vm6367 = vweird.f32 %v6358
    %vm6368 = vweird.f32 %v6362
    %vm6369 = vmor %vm6367, %vm6368
    %v6370 = vsel %vm6369, %v6362, %v6366
    %v6371 = vand.u32 2147483647, %v6358
    %vm6372 = vcmp.eq.f32.partialorder %v6371, 8.507059e+37
    %v6373 = vand.u32 %v6358, 2147483648
    %v6374 = vor.u32 1.1754944e-38, %v6373
    %v6375 = vsel %vm6372, %v6374, %v6370
    %v6376 = vmul.f32 1.0, %v6375
    %v6377 = vrcp.pop %v6359
    %v6378 = vmul.f32 %v6359, %v6377
    %v6379 = vsub.f32 1.0, %v6378
    %v6380 = vmul.f32 %v6377, %v6379
    %v6381 = vadd.f32 %v6377, %v6380
    %vm6382 = vweird.f32 %v6359
    %vm6383 = vweird.f32 %v6377
    %vm6384 = vmor %vm6382, %vm6383
    %v6385 = vsel %vm6384, %v6377, %v6381
    %v6386 = vand.u32 2147483647, %v6359
    %vm6387 = vcmp.eq.f32.partialorder %v6386, 8.507059e+37
    %v6388 = vand.u32 %v6359, 2147483648
    %v6389 = vor.u32 1.1754944e-38, %v6388
    %v6390 = vsel %vm6387, %v6389, %v6385
    %v6391 = vmul.f32 1.0, %v6390
    %v6392 = vrcp.pop %v6360
    %v6393 = vmul.f32 %v6360, %v6392
    %v6394 = vsub.f32 1.0, %v6393
    %v6395 = vmul.f32 %v6392, %v6394
    %v6396 = vadd.f32 %v6392, %v6395
    %vm6397 = vweird.f32 %v6360
    %vm6398 = vweird.f32 %v6392
    %vm6399 = vmor %vm6397, %vm6398
    %v6400 = vsel %vm6399, %v6392, %v6396
    %v6401 = vand.u32 2147483647, %v6360
    %vm6402 = vcmp.eq.f32.partialorder %v6401, 8.507059e+37
    %v6403 = vand.u32 %v6360, 2147483648
    %v6404 = vor.u32 1.1754944e-38, %v6403
    %v6405 = vsel %vm6402, %v6404, %v6400
    %v6406 = vmul.f32 1.0, %v6405
    %v6407 = vrcp.pop %v6361
    %v6408 = vmul.f32 %v6361, %v6407
    %v6409 = vsub.f32 1.0, %v6408
    %v6410 = vmul.f32 %v6407, %v6409
    %v6411 = vadd.f32 %v6407, %v6410
    %vm6412 = vweird.f32 %v6361
    %vm6413 = vweird.f32 %v6407
    %vm6414 = vmor %vm6412, %vm6413
    %v6415 = vsel %vm6414, %v6407, %v6411
    %v6416 = vand.u32 2147483647, %v6361
    %vm6417 = vcmp.eq.f32.partialorder %v6416, 8.507059e+37
    %v6418 = vand.u32 %v6361, 2147483648
    %v6419 = vor.u32 1.1754944e-38, %v6418
    %v6420 = vsel %vm6417, %v6419, %v6415
    %v6421 = vmul.f32 1.0, %v6420
    %v6422 = vtanh.pop %v6292
    %v6423 = vtanh.pop %v6293
    %v6424 = vtanh.pop %v6294
    %v6425 = vtanh.pop %v6295
    %v6430 = vrot.slane %v6018, 7
    %v6431 = vrot.slane %v6019, 7
    %v6432 = vrot.slane %v6020, 7
    %v6433 = vrot.slane %v6021, 7
    %v6438 = vmul.f32 %v6376, %v6430
    %v6439 = vmul.f32 %v6391, %v6431
    %v6440 = vmul.f32 %v6406, %v6432
    %v6441 = vmul.f32 %v6421, %v6433
    %6446 = vrot.lane.b32.xlu0 %v6422, 64
    %v6447 = vpop.permute.xlu0 %6446
    %6448 = vrot.lane.b32.xlu0 %v6423, 64
    %v6449 = vpop.permute.xlu0 %6448
    %6450 = vrot.lane.b32.xlu0 %v6424, 64
    %v6451 = vpop.permute.xlu0 %6450
    %6452 = vrot.lane.b32.xlu0 %v6425, 64
    %v6453 = vpop.permute.xlu0 %6452
    %v6458 = vmul.f32 %v6376, %v6447
    %v6459 = vmul.f32 %v6391, %v6449
    %v6460 = vmul.f32 %v6406, %v6451
    %v6461 = vmul.f32 %v6421, %v6453
    %6466 = vrot.lane.b32.xlu0 %v6458, 32
    %v6467 = vpop.permute.xlu0 %6466
    %6468 = vrot.lane.b32.xlu0 %v6459, 32
    %v6469 = vpop.permute.xlu0 %6468
    %6470 = vrot.lane.b32.xlu0 %v6460, 32
    %v6471 = vpop.permute.xlu0 %6470
    %6472 = vrot.lane.b32.xlu0 %v6461, 32
    %v6473 = vpop.permute.xlu0 %6472
    %v6478 = vadd.f32 %v6438, %v6467
    %v6479 = vadd.f32 %v6439, %v6469
    %v6480 = vadd.f32 %v6440, %v6471
    %v6481 = vadd.f32 %v6441, %v6473
    %v6482 = vtanh.pop %v6478
    %v6483 = vtanh.pop %v6479
    %v6484 = vtanh.pop %v6480
    %v6485 = vtanh.pop %v6481
    %6490 = vrot.lane.b32.xlu0 %v6482, 64
    %v6491 = vpop.permute.xlu0 %6490
    %6492 = vrot.lane.b32.xlu0 %v6483, 64
    %v6493 = vpop.permute.xlu0 %6492
    %6494 = vrot.lane.b32.xlu0 %v6484, 64
    %v6495 = vpop.permute.xlu0 %6494
    %6496 = vrot.lane.b32.xlu0 %v6485, 64
    %v6497 = vpop.permute.xlu0 %6496
    %v6502 = vmul.f32 %v6376, %v6491
    %v6503 = vmul.f32 %v6391, %v6493
    %v6504 = vmul.f32 %v6406, %v6495
    %v6505 = vmul.f32 %v6421, %v6497
    %v6506 = vxor.u32 %v6342, 2147483648
    %v6507 = vxor.u32 %v6343, 2147483648
    %v6508 = vxor.u32 %v6344, 2147483648
    %v6509 = vxor.u32 %v6345, 2147483648
    %v6510 = vmul.f32 %v6506, 1.442695
    %v6511 = vpow.pop %v6510
    %v6512 = vmul.f32 %v6507, 1.442695
    %v6513 = vpow.pop %v6512
    %v6514 = vmul.f32 %v6508, 1.442695
    %v6515 = vpow.pop %v6514
    %v6516 = vmul.f32 %v6509, 1.442695
    %v6517 = vpow.pop %v6516
    %v6518 = vadd.f32 %v6511, 1.0
    %v6519 = vadd.f32 %v6513, 1.0
    %v6520 = vadd.f32 %v6515, 1.0
    %v6521 = vadd.f32 %v6517, 1.0
    %v6522 = vrcp.pop %v6518
    %v6523 = vmul.f32 %v6518, %v6522
    %v6524 = vsub.f32 1.0, %v6523
    %v6525 = vmul.f32 %v6522, %v6524
    %v6526 = vadd.f32 %v6522, %v6525
    %vm6527 = vweird.f32 %v6518
    %vm6528 = vweird.f32 %v6522
    %vm6529 = vmor %vm6527, %vm6528
    %v6530 = vsel %vm6529, %v6522, %v6526
    %v6531 = vand.u32 2147483647, %v6518
    %vm6532 = vcmp.eq.f32.partialorder %v6531, 8.507059e+37
    %v6533 = vand.u32 %v6518, 2147483648
    %v6534 = vor.u32 1.1754944e-38, %v6533
    %v6535 = vsel %vm6532, %v6534, %v6530
    %v6536 = vmul.f32 1.0, %v6535
    %v6537 = vrcp.pop %v6519
    %v6538 = vmul.f32 %v6519, %v6537
    %v6539 = vsub.f32 1.0, %v6538
    %v6540 = vmul.f32 %v6537, %v6539
    %v6541 = vadd.f32 %v6537, %v6540
    %vm6542 = vweird.f32 %v6519
    %vm6543 = vweird.f32 %v6537
    %vm6544 = vmor %vm6542, %vm6543
    %v6545 = vsel %vm6544, %v6537, %v6541
    %v6546 = vand.u32 2147483647, %v6519
    %vm6547 = vcmp.eq.f32.partialorder %v6546, 8.507059e+37
    %v6548 = vand.u32 %v6519, 2147483648
    %v6549 = vor.u32 1.1754944e-38, %v6548
    %v6550 = vsel %vm6547, %v6549, %v6545
    %v6551 = vmul.f32 1.0, %v6550
    %v6552 = vrcp.pop %v6520
    %v6553 = vmul.f32 %v6520, %v6552
    %v6554 = vsub.f32 1.0, %v6553
    %v6555 = vmul.f32 %v6552, %v6554
    %v6556 = vadd.f32 %v6552, %v6555
    %vm6557 = vweird.f32 %v6520
    %vm6558 = vweird.f32 %v6552
    %vm6559 = vmor %vm6557, %vm6558
    %v6560 = vsel %vm6559, %v6552, %v6556
    %v6561 = vand.u32 2147483647, %v6520
    %vm6562 = vcmp.eq.f32.partialorder %v6561, 8.507059e+37
    %v6563 = vand.u32 %v6520, 2147483648
    %v6564 = vor.u32 1.1754944e-38, %v6563
    %v6565 = vsel %vm6562, %v6564, %v6560
    %v6566 = vmul.f32 1.0, %v6565
    %v6567 = vrcp.pop %v6521
    %v6568 = vmul.f32 %v6521, %v6567
    %v6569 = vsub.f32 1.0, %v6568
    %v6570 = vmul.f32 %v6567, %v6569
    %v6571 = vadd.f32 %v6567, %v6570
    %vm6572 = vweird.f32 %v6521
    %vm6573 = vweird.f32 %v6567
    %vm6574 = vmor %vm6572, %vm6573
    %v6575 = vsel %vm6574, %v6567, %v6571
    %v6576 = vand.u32 2147483647, %v6521
    %vm6577 = vcmp.eq.f32.partialorder %v6576, 8.507059e+37
    %v6578 = vand.u32 %v6521, 2147483648
    %v6579 = vor.u32 1.1754944e-38, %v6578
    %v6580 = vsel %vm6577, %v6579, %v6575
    %v6581 = vmul.f32 1.0, %v6580
    %v6582 = vtanh.pop %v6342
    %v6583 = vtanh.pop %v6343
    %v6584 = vtanh.pop %v6344
    %v6585 = vtanh.pop %v6345
    %v6590 = vrot.slane %v6178, 1
    %v6591 = vrot.slane %v6179, 1
    %v6592 = vrot.slane %v6180, 1
    %v6593 = vrot.slane %v6181, 1
    %v6598 = vmul.f32 %v6536, %v6590
    %v6599 = vmul.f32 %v6551, %v6591
    %v6600 = vmul.f32 %v6566, %v6592
    %v6601 = vmul.f32 %v6581, %v6593
    %6606 = vrot.lane.b32.xlu0 %v6582, 64
    %v6607 = vpop.permute.xlu0 %6606
    %6608 = vrot.lane.b32.xlu0 %v6583, 64
    %v6609 = vpop.permute.xlu0 %6608
    %6610 = vrot.lane.b32.xlu0 %v6584, 64
    %v6611 = vpop.permute.xlu0 %6610
    %6612 = vrot.lane.b32.xlu0 %v6585, 64
    %v6613 = vpop.permute.xlu0 %6612
    %v6618 = vmul.f32 %v6536, %v6607
    %v6619 = vmul.f32 %v6551, %v6609
    %v6620 = vmul.f32 %v6566, %v6611
    %v6621 = vmul.f32 %v6581, %v6613
    %6626 = vrot.lane.b32.xlu0 %v6618, 32
    %v6627 = vpop.permute.xlu0 %6626
    %6628 = vrot.lane.b32.xlu0 %v6619, 32
    %v6629 = vpop.permute.xlu0 %6628
    %6630 = vrot.lane.b32.xlu0 %v6620, 32
    %v6631 = vpop.permute.xlu0 %6630
    %6632 = vrot.lane.b32.xlu0 %v6621, 32
    %v6633 = vpop.permute.xlu0 %6632
    %v6638 = vadd.f32 %v6598, %v6627
    %v6639 = vadd.f32 %v6599, %v6629
    %v6640 = vadd.f32 %v6600, %v6631
    %v6641 = vadd.f32 %v6601, %v6633
    %v6642 = vtanh.pop %v6638
    %v6643 = vtanh.pop %v6639
    %v6644 = vtanh.pop %v6640
    %v6645 = vtanh.pop %v6641
    %6650 = vrot.lane.b32.xlu0 %v6642, 64
    %v6651 = vpop.permute.xlu0 %6650
    %6652 = vrot.lane.b32.xlu0 %v6643, 64
    %v6653 = vpop.permute.xlu0 %6652
    %6654 = vrot.lane.b32.xlu0 %v6644, 64
    %v6655 = vpop.permute.xlu0 %6654
    %6656 = vrot.lane.b32.xlu0 %v6645, 64
    %v6657 = vpop.permute.xlu0 %6656
    %v6662 = vmul.f32 %v6536, %v6651
    %v6663 = vmul.f32 %v6551, %v6653
    %v6664 = vmul.f32 %v6566, %v6655
    %v6665 = vmul.f32 %v6581, %v6657
    %6670 = vrot.lane.b32.xlu0 %v6502, 32
    %v6671 = vpop.permute.xlu0 %6670
    %6672 = vrot.lane.b32.xlu0 %v6503, 32
    %v6673 = vpop.permute.xlu0 %6672
    %6674 = vrot.lane.b32.xlu0 %v6504, 32
    %v6675 = vpop.permute.xlu0 %6674
    %6676 = vrot.lane.b32.xlu0 %v6505, 32
    %v6677 = vpop.permute.xlu0 %6676
    %6682 = vst.msk [vmem:[#allocation3] sm:$0x10] %vm2456, %v6671
    %6683 = vst.msk [vmem:[#allocation3 + $0x8] sm:$0x10] %vm2456, %v6673
    %6684 = vst.msk [vmem:[#allocation3 + $0x10] sm:$0x10] %vm2456, %v6675
    %6685 = vst.msk [vmem:[#allocation3 + $0x18] sm:$0x10] %vm2456, %v6677
    %6690 = vrot.lane.b32.xlu0 %v6662, 64
    %v6691 = vpop.permute.xlu0 %6690
    %6692 = vrot.lane.b32.xlu0 %v6663, 64
    %v6693 = vpop.permute.xlu0 %6692
    %6694 = vrot.lane.b32.xlu0 %v6664, 64
    %v6695 = vpop.permute.xlu0 %6694
    %6696 = vrot.lane.b32.xlu0 %v6665, 64
    %v6697 = vpop.permute.xlu0 %6696
    %6702 = vst.msk [vmem:[#allocation3] sm:$0x8] %vm2477, %v6691
    %6703 = vst.msk [vmem:[#allocation3 + $0x8] sm:$0x8] %vm2477, %v6693
    %6704 = vst.msk [vmem:[#allocation3 + $0x10] sm:$0x8] %vm2477, %v6695
    %6705 = vst.msk [vmem:[#allocation3 + $0x18] sm:$0x8] %vm2477, %v6697
    %v6706 = vpack.c.bf16 %v6502, %v6502
    %v6707 = vpack.c.bf16 %v6503, %v6503
    %v6708 = vpack.c.bf16 %v6504, %v6504
    %v6709 = vpack.c.bf16 %v6505, %v6505
    %v6714 = vunpack.c.l.b16 %v6706
    %v6715 = vunpack.c.l.b16 %v6707
    %v6716 = vunpack.c.l.b16 %v6708
    %v6717 = vunpack.c.l.b16 %v6709
    %v6718 = vrot.slane %v6714, 4
    %v6719 = vrot.slane %v6715, 3
    %v6720 = vsel %vm644, %v6719, %v6718
    %v6721 = vrot.slane %v6716, 2
    %v6722 = vsel %vm647, %v6721, %v6720
    %v6723 = vrot.slane %v6717, 1
    %v6724 = vsel %vm650, %v6723, %v6722
    %v6725 = vpack.c.b16 %v6724, %v6724
    %6726 = vrot.lane.b32.xlu0 %v6725, 32
    %v6727 = vpop.permute.xlu0 %6726
    %v6729 = vsel %vm174, %v6727, 0
    %6731 = vmatpush.bf16.msra.mxu0 0
    %6732 = vmatpush.bf16.msra.mxu0 0
    %6733 = vmatpush.bf16.msra.mxu0 0
    %6734 = vmatpush.bf16.msra.mxu0 0
    %6735 = vmatpush.bf16.msra.mxu0 0
    %6736 = vmatpush.bf16.msra.mxu0 0
    %6737 = vmatpush.bf16.msra.mxu0 %v4468
    %6738 = vmatpush.bf16.msra.mxu0 %v4467
    %6739 = vmatmul.bf16.gmra.mxu0 %v6729
    %v6740 = vpop.f32.mrf.mxu0
    %v6741 = vadd.f32 0.0, %v6740
    %v6742 = vpop.f32.mrf.mxu0
    %6743 = vdwg.mxu0
    %v6745 = vrot.slane %v6741, 3
    %v6746 = vrot.slane %v6741, 4
    %v6747 = vrot.slane %v6741, 5
    %v6748 = vrot.slane %v6741, 6
    %v6753 = vadd.f32 %v4412, %v6745
    %v6754 = vadd.f32 %v4414, %v6746
    %v6755 = vadd.f32 %v4417, %v6747
    %v6756 = vadd.f32 %v4419, %v6748
    %v6757 = vpack.c.bf16 %v6662, %v6662
    %v6758 = vpack.c.bf16 %v6663, %v6663
    %v6759 = vpack.c.bf16 %v6664, %v6664
    %v6760 = vpack.c.bf16 %v6665, %v6665
    %v6765 = vunpack.c.l.b16 %v6757
    %v6766 = vunpack.c.l.b16 %v6758
    %v6767 = vunpack.c.l.b16 %v6759
    %v6768 = vunpack.c.l.b16 %v6760
    %v6769 = vrot.slane %v6765, 3
    %v6770 = vrot.slane %v6766, 2
    %v6771 = vsel %vm644, %v6770, %v6769
    %v6772 = vrot.slane %v6767, 1
    %v6773 = vsel %vm647, %v6772, %v6771
    %v6774 = vsel %vm650, %v6768, %v6773
    %v6775 = vpack.c.b16 %v6774, %v6774
    %6776 = vrot.lane.b32.xlu0 %v6775, 32
    %v6777 = vpop.permute.xlu0 %6776
    %v6779 = vsel %vm174, %v6777, 0
    %6781 = vmatpush.bf16.msra.mxu0 0
    %6782 = vmatpush.bf16.msra.mxu0 0
    %6783 = vmatpush.bf16.msra.mxu0 0
    %6784 = vmatpush.bf16.msra.mxu0 0
    %6785 = vmatpush.bf16.msra.mxu0 0
    %6786 = vmatpush.bf16.msra.mxu0 0
    %6787 = vmatpush.bf16.msra.mxu0 %v4501
    %6788 = vmatpush.bf16.msra.mxu0 %v4500
    %6789 = vmatmul.bf16.gmra.mxu0 %v6779
    %v6790 = vpop.f32.mrf.mxu0
    %v6791 = vadd.f32 0.0, %v6790
    %v6792 = vpop.f32.mrf.mxu0
    %6793 = vdwg.mxu0
    %v6795 = vrot.slane %v6791, 6
    %v6796 = vrot.slane %v6791, 7
    %v6797 = vrot.slane %v6791, 1
    %v6802 = vadd.f32 %v4450, %v6795
    %v6803 = vadd.f32 %v4452, %v6796
    %v6804 = vadd.f32 %v4455, %v6791
    %v6805 = vadd.f32 %v4457, %v6797
    %v6806 = vxor.u32 %v6753, 2147483648
    %v6807 = vxor.u32 %v6754, 2147483648
    %v6808 = vxor.u32 %v6755, 2147483648
    %v6809 = vxor.u32 %v6756, 2147483648
    %v6810 = vmul.f32 %v6806, 1.442695
    %v6811 = vpow.pop %v6810
    %v6812 = vmul.f32 %v6807, 1.442695
    %v6813 = vpow.pop %v6812
    %v6814 = vmul.f32 %v6808, 1.442695
    %v6815 = vpow.pop %v6814
    %v6816 = vmul.f32 %v6809, 1.442695
    %v6817 = vpow.pop %v6816
    %v6818 = vadd.f32 %v6811, 1.0
    %v6819 = vadd.f32 %v6813, 1.0
    %v6820 = vadd.f32 %v6815, 1.0
    %v6821 = vadd.f32 %v6817, 1.0
    %v6822 = vrcp.pop %v6818
    %v6823 = vmul.f32 %v6818, %v6822
    %v6824 = vsub.f32 1.0, %v6823
    %v6825 = vmul.f32 %v6822, %v6824
    %v6826 = vadd.f32 %v6822, %v6825
    %vm6827 = vweird.f32 %v6818
    %vm6828 = vweird.f32 %v6822
    %vm6829 = vmor %vm6827, %vm6828
    %v6830 = vsel %vm6829, %v6822, %v6826
    %v6831 = vand.u32 2147483647, %v6818
    %vm6832 = vcmp.eq.f32.partialorder %v6831, 8.507059e+37
    %v6833 = vand.u32 %v6818, 2147483648
    %v6834 = vor.u32 1.1754944e-38, %v6833
    %v6835 = vsel %vm6832, %v6834, %v6830
    %v6836 = vmul.f32 1.0, %v6835
    %v6837 = vrcp.pop %v6819
    %v6838 = vmul.f32 %v6819, %v6837
    %v6839 = vsub.f32 1.0, %v6838
    %v6840 = vmul.f32 %v6837, %v6839
    %v6841 = vadd.f32 %v6837, %v6840
    %vm6842 = vweird.f32 %v6819
    %vm6843 = vweird.f32 %v6837
    %vm6844 = vmor %vm6842, %vm6843
    %v6845 = vsel %vm6844, %v6837, %v6841
    %v6846 = vand.u32 2147483647, %v6819
    %vm6847 = vcmp.eq.f32.partialorder %v6846, 8.507059e+37
    %v6848 = vand.u32 %v6819, 2147483648
    %v6849 = vor.u32 1.1754944e-38, %v6848
    %v6850 = vsel %vm6847, %v6849, %v6845
    %v6851 = vmul.f32 1.0, %v6850
    %v6852 = vrcp.pop %v6820
    %v6853 = vmul.f32 %v6820, %v6852
    %v6854 = vsub.f32 1.0, %v6853
    %v6855 = vmul.f32 %v6852, %v6854
    %v6856 = vadd.f32 %v6852, %v6855
    %vm6857 = vweird.f32 %v6820
    %vm6858 = vweird.f32 %v6852
    %vm6859 = vmor %vm6857, %vm6858
    %v6860 = vsel %vm6859, %v6852, %v6856
    %v6861 = vand.u32 2147483647, %v6820
    %vm6862 = vcmp.eq.f32.partialorder %v6861, 8.507059e+37
    %v6863 = vand.u32 %v6820, 2147483648
    %v6864 = vor.u32 1.1754944e-38, %v6863
    %v6865 = vsel %vm6862, %v6864, %v6860
    %v6866 = vmul.f32 1.0, %v6865
    %v6867 = vrcp.pop %v6821
    %v6868 = vmul.f32 %v6821, %v6867
    %v6869 = vsub.f32 1.0, %v6868
    %v6870 = vmul.f32 %v6867, %v6869
    %v6871 = vadd.f32 %v6867, %v6870
    %vm6872 = vweird.f32 %v6821
    %vm6873 = vweird.f32 %v6867
    %vm6874 = vmor %vm6872, %vm6873
    %v6875 = vsel %vm6874, %v6867, %v6871
    %v6876 = vand.u32 2147483647, %v6821
    %vm6877 = vcmp.eq.f32.partialorder %v6876, 8.507059e+37
    %v6878 = vand.u32 %v6821, 2147483648
    %v6879 = vor.u32 1.1754944e-38, %v6878
    %v6880 = vsel %vm6877, %v6879, %v6875
    %v6881 = vmul.f32 1.0, %v6880
    %v6882 = vtanh.pop %v6753
    %v6883 = vtanh.pop %v6754
    %v6884 = vtanh.pop %v6755
    %v6885 = vtanh.pop %v6756
    %v6890 = vrot.slane %v6478, 7
    %v6891 = vrot.slane %v6479, 7
    %v6892 = vrot.slane %v6480, 7
    %v6893 = vrot.slane %v6481, 7
    %v6898 = vmul.f32 %v6836, %v6890
    %v6899 = vmul.f32 %v6851, %v6891
    %v6900 = vmul.f32 %v6866, %v6892
    %v6901 = vmul.f32 %v6881, %v6893
    %6906 = vrot.lane.b32.xlu0 %v6882, 64
    %v6907 = vpop.permute.xlu0 %6906
    %6908 = vrot.lane.b32.xlu0 %v6883, 64
    %v6909 = vpop.permute.xlu0 %6908
    %6910 = vrot.lane.b32.xlu0 %v6884, 64
    %v6911 = vpop.permute.xlu0 %6910
    %6912 = vrot.lane.b32.xlu0 %v6885, 64
    %v6913 = vpop.permute.xlu0 %6912
    %v6918 = vmul.f32 %v6836, %v6907
    %v6919 = vmul.f32 %v6851, %v6909
    %v6920 = vmul.f32 %v6866, %v6911
    %v6921 = vmul.f32 %v6881, %v6913
    %6926 = vrot.lane.b32.xlu0 %v6918, 32
    %v6927 = vpop.permute.xlu0 %6926
    %6928 = vrot.lane.b32.xlu0 %v6919, 32
    %v6929 = vpop.permute.xlu0 %6928
    %6930 = vrot.lane.b32.xlu0 %v6920, 32
    %v6931 = vpop.permute.xlu0 %6930
    %6932 = vrot.lane.b32.xlu0 %v6921, 32
    %v6933 = vpop.permute.xlu0 %6932
    %v6938 = vadd.f32 %v6898, %v6927
    %v6939 = vadd.f32 %v6899, %v6929
    %v6940 = vadd.f32 %v6900, %v6931
    %v6941 = vadd.f32 %v6901, %v6933
    %v6942 = vtanh.pop %v6938
    %v6943 = vtanh.pop %v6939
    %v6944 = vtanh.pop %v6940
    %v6945 = vtanh.pop %v6941
    %6950 = vrot.lane.b32.xlu0 %v6942, 64
    %v6951 = vpop.permute.xlu0 %6950
    %6952 = vrot.lane.b32.xlu0 %v6943, 64
    %v6953 = vpop.permute.xlu0 %6952
    %6954 = vrot.lane.b32.xlu0 %v6944, 64
    %v6955 = vpop.permute.xlu0 %6954
    %6956 = vrot.lane.b32.xlu0 %v6945, 64
    %v6957 = vpop.permute.xlu0 %6956
    %v6962 = vmul.f32 %v6836, %v6951
    %v6963 = vmul.f32 %v6851, %v6953
    %v6964 = vmul.f32 %v6866, %v6955
    %v6965 = vmul.f32 %v6881, %v6957
    %v6966 = vxor.u32 %v6802, 2147483648
    %v6967 = vxor.u32 %v6803, 2147483648
    %v6968 = vxor.u32 %v6804, 2147483648
    %v6969 = vxor.u32 %v6805, 2147483648
    %v6970 = vmul.f32 %v6966, 1.442695
    %v6971 = vpow.pop %v6970
    %v6972 = vmul.f32 %v6967, 1.442695
    %v6973 = vpow.pop %v6972
    %v6974 = vmul.f32 %v6968, 1.442695
    %v6975 = vpow.pop %v6974
    %v6976 = vmul.f32 %v6969, 1.442695
    %v6977 = vpow.pop %v6976
    %v6978 = vadd.f32 %v6971, 1.0
    %v6979 = vadd.f32 %v6973, 1.0
    %v6980 = vadd.f32 %v6975, 1.0
    %v6981 = vadd.f32 %v6977, 1.0
    %v6982 = vrcp.pop %v6978
    %v6983 = vmul.f32 %v6978, %v6982
    %v6984 = vsub.f32 1.0, %v6983
    %v6985 = vmul.f32 %v6982, %v6984
    %v6986 = vadd.f32 %v6982, %v6985
    %vm6987 = vweird.f32 %v6978
    %vm6988 = vweird.f32 %v6982
    %vm6989 = vmor %vm6987, %vm6988
    %v6990 = vsel %vm6989, %v6982, %v6986
    %v6991 = vand.u32 2147483647, %v6978
    %vm6992 = vcmp.eq.f32.partialorder %v6991, 8.507059e+37
    %v6993 = vand.u32 %v6978, 2147483648
    %v6994 = vor.u32 1.1754944e-38, %v6993
    %v6995 = vsel %vm6992, %v6994, %v6990
    %v6996 = vmul.f32 1.0, %v6995
    %v6997 = vrcp.pop %v6979
    %v6998 = vmul.f32 %v6979, %v6997
    %v6999 = vsub.f32 1.0, %v6998
    %v7000 = vmul.f32 %v6997, %v6999
    %v7001 = vadd.f32 %v6997, %v7000
    %vm7002 = vweird.f32 %v6979
    %vm7003 = vweird.f32 %v6997
    %vm7004 = vmor %vm7002, %vm7003
    %v7005 = vsel %vm7004, %v6997, %v7001
    %v7006 = vand.u32 2147483647, %v6979
    %vm7007 = vcmp.eq.f32.partialorder %v7006, 8.507059e+37
    %v7008 = vand.u32 %v6979, 2147483648
    %v7009 = vor.u32 1.1754944e-38, %v7008
    %v7010 = vsel %vm7007, %v7009, %v7005
    %v7011 = vmul.f32 1.0, %v7010
    %v7012 = vrcp.pop %v6980
    %v7013 = vmul.f32 %v6980, %v7012
    %v7014 = vsub.f32 1.0, %v7013
    %v7015 = vmul.f32 %v7012, %v7014
    %v7016 = vadd.f32 %v7012, %v7015
    %vm7017 = vweird.f32 %v6980
    %vm7018 = vweird.f32 %v7012
    %vm7019 = vmor %vm7017, %vm7018
    %v7020 = vsel %vm7019, %v7012, %v7016
    %v7021 = vand.u32 2147483647, %v6980
    %vm7022 = vcmp.eq.f32.partialorder %v7021, 8.507059e+37
    %v7023 = vand.u32 %v6980, 2147483648
    %v7024 = vor.u32 1.1754944e-38, %v7023
    %v7025 = vsel %vm7022, %v7024, %v7020
    %v7026 = vmul.f32 1.0, %v7025
    %v7027 = vrcp.pop %v6981
    %v7028 = vmul.f32 %v6981, %v7027
    %v7029 = vsub.f32 1.0, %v7028
    %v7030 = vmul.f32 %v7027, %v7029
    %v7031 = vadd.f32 %v7027, %v7030
    %vm7032 = vweird.f32 %v6981
    %vm7033 = vweird.f32 %v7027
    %vm7034 = vmor %vm7032, %vm7033
    %v7035 = vsel %vm7034, %v7027, %v7031
    %v7036 = vand.u32 2147483647, %v6981
    %vm7037 = vcmp.eq.f32.partialorder %v7036, 8.507059e+37
    %v7038 = vand.u32 %v6981, 2147483648
    %v7039 = vor.u32 1.1754944e-38, %v7038
    %v7040 = vsel %vm7037, %v7039, %v7035
    %v7041 = vmul.f32 1.0, %v7040
    %v7042 = vtanh.pop %v6802
    %v7043 = vtanh.pop %v6803
    %v7044 = vtanh.pop %v6804
    %v7045 = vtanh.pop %v6805
    %v7050 = vrot.slane %v6638, 1
    %v7051 = vrot.slane %v6639, 1
    %v7052 = vrot.slane %v6640, 1
    %v7053 = vrot.slane %v6641, 1
    %v7058 = vmul.f32 %v6996, %v7050
    %v7059 = vmul.f32 %v7011, %v7051
    %v7060 = vmul.f32 %v7026, %v7052
    %v7061 = vmul.f32 %v7041, %v7053
    %7066 = vrot.lane.b32.xlu0 %v7042, 64
    %v7067 = vpop.permute.xlu0 %7066
    %7068 = vrot.lane.b32.xlu0 %v7043, 64
    %v7069 = vpop.permute.xlu0 %7068
    %7070 = vrot.lane.b32.xlu0 %v7044, 64
    %v7071 = vpop.permute.xlu0 %7070
    %7072 = vrot.lane.b32.xlu0 %v7045, 64
    %v7073 = vpop.permute.xlu0 %7072
    %v7078 = vmul.f32 %v6996, %v7067
    %v7079 = vmul.f32 %v7011, %v7069
    %v7080 = vmul.f32 %v7026, %v7071
    %v7081 = vmul.f32 %v7041, %v7073
    %7086 = vrot.lane.b32.xlu0 %v7078, 32
    %v7087 = vpop.permute.xlu0 %7086
    %7088 = vrot.lane.b32.xlu0 %v7079, 32
    %v7089 = vpop.permute.xlu0 %7088
    %7090 = vrot.lane.b32.xlu0 %v7080, 32
    %v7091 = vpop.permute.xlu0 %7090
    %7092 = vrot.lane.b32.xlu0 %v7081, 32
    %v7093 = vpop.permute.xlu0 %7092
    %v7098 = vadd.f32 %v7058, %v7087
    %v7099 = vadd.f32 %v7059, %v7089
    %v7100 = vadd.f32 %v7060, %v7091
    %v7101 = vadd.f32 %v7061, %v7093
    %v7102 = vtanh.pop %v7098
    %v7103 = vtanh.pop %v7099
    %v7104 = vtanh.pop %v7100
    %v7105 = vtanh.pop %v7101
    %7110 = vrot.lane.b32.xlu0 %v7102, 64
    %v7111 = vpop.permute.xlu0 %7110
    %7112 = vrot.lane.b32.xlu0 %v7103, 64
    %v7113 = vpop.permute.xlu0 %7112
    %7114 = vrot.lane.b32.xlu0 %v7104, 64
    %v7115 = vpop.permute.xlu0 %7114
    %7116 = vrot.lane.b32.xlu0 %v7105, 64
    %v7117 = vpop.permute.xlu0 %7116
    %v7122 = vmul.f32 %v6996, %v7111
    %v7123 = vmul.f32 %v7011, %v7113
    %v7124 = vmul.f32 %v7026, %v7115
    %v7125 = vmul.f32 %v7041, %v7117
    %7130 = vrot.lane.b32.xlu0 %v6962, 32
    %v7131 = vpop.permute.xlu0 %7130
    %7132 = vrot.lane.b32.xlu0 %v6963, 32
    %v7133 = vpop.permute.xlu0 %7132
    %7134 = vrot.lane.b32.xlu0 %v6964, 32
    %v7135 = vpop.permute.xlu0 %7134
    %7136 = vrot.lane.b32.xlu0 %v6965, 32
    %v7137 = vpop.permute.xlu0 %7136
    %7142 = vst.msk [vmem:[#allocation3] sm:$0x20] %vm2918, %v7131
    %7143 = vst.msk [vmem:[#allocation3 + $0x8] sm:$0x20] %vm2918, %v7133
    %7144 = vst.msk [vmem:[#allocation3 + $0x10] sm:$0x20] %vm2918, %v7135
    %7145 = vst.msk [vmem:[#allocation3 + $0x18] sm:$0x20] %vm2918, %v7137
    %7150 = vrot.lane.b32.xlu0 %v7122, 64
    %v7151 = vpop.permute.xlu0 %7150
    %7152 = vrot.lane.b32.xlu0 %v7123, 64
    %v7153 = vpop.permute.xlu0 %7152
    %7154 = vrot.lane.b32.xlu0 %v7124, 64
    %v7155 = vpop.permute.xlu0 %7154
    %7156 = vrot.lane.b32.xlu0 %v7125, 64
    %v7157 = vpop.permute.xlu0 %7156
    %7162 = vst.msk [vmem:[#allocation3] sm:$0x4] %vm2939, %v7151
    %7163 = vst.msk [vmem:[#allocation3 + $0x8] sm:$0x4] %vm2939, %v7153
    %7164 = vst.msk [vmem:[#allocation3 + $0x10] sm:$0x4] %vm2939, %v7155
    %7165 = vst.msk [vmem:[#allocation3 + $0x18] sm:$0x4] %vm2939, %v7157
    %v7166 = vpack.c.bf16 %v6962, %v6962
    %v7167 = vpack.c.bf16 %v6963, %v6963
    %v7168 = vpack.c.bf16 %v6964, %v6964
    %v7169 = vpack.c.bf16 %v6965, %v6965
    %v7174 = vunpack.c.l.b16 %v7166
    %v7175 = vunpack.c.l.b16 %v7167
    %v7176 = vunpack.c.l.b16 %v7168
    %v7177 = vunpack.c.l.b16 %v7169
    %v7178 = vrot.slane %v7174, 5
    %v7179 = vrot.slane %v7175, 4
    %v7180 = vsel %vm644, %v7179, %v7178
    %v7181 = vrot.slane %v7176, 3
    %v7182 = vsel %vm647, %v7181, %v7180
    %v7183 = vrot.slane %v7177, 2
    %v7184 = vsel %vm650, %v7183, %v7182
    %v7185 = vpack.c.b16 %v7184, %v7184
    %7186 = vrot.lane.b32.xlu0 %v7185, 32
    %v7187 = vpop.permute.xlu0 %7186
    %v7189 = vsel %vm174, %v7187, 0
    %7191 = vmatpush.bf16.msra.mxu0 0
    %7192 = vmatpush.bf16.msra.mxu0 0
    %7193 = vmatpush.bf16.msra.mxu0 0
    %7194 = vmatpush.bf16.msra.mxu0 0
    %7195 = vmatpush.bf16.msra.mxu0 0
    %7196 = vmatpush.bf16.msra.mxu0 0
    %7197 = vmatpush.bf16.msra.mxu0 %v4468
    %7198 = vmatpush.bf16.msra.mxu0 %v4467
    %7199 = vmatmul.bf16.gmra.mxu0 %v7189
    %v7200 = vpop.f32.mrf.mxu0
    %v7201 = vadd.f32 0.0, %v7200
    %v7202 = vpop.f32.mrf.mxu0
    %7203 = vdwg.mxu0
    %v7205 = vrot.slane %v7201, 2
    %v7206 = vrot.slane %v7201, 3
    %v7207 = vrot.slane %v7201, 4
    %v7208 = vrot.slane %v7201, 5
    %v7213 = vadd.f32 %v4412, %v7205
    %v7214 = vadd.f32 %v4414, %v7206
    %v7215 = vadd.f32 %v4417, %v7207
    %v7216 = vadd.f32 %v4419, %v7208
    %v7217 = vpack.c.bf16 %v7122, %v7122
    %v7218 = vpack.c.bf16 %v7123, %v7123
    %v7219 = vpack.c.bf16 %v7124, %v7124
    %v7220 = vpack.c.bf16 %v7125, %v7125
    %v7225 = vunpack.c.l.b16 %v7217
    %v7226 = vunpack.c.l.b16 %v7218
    %v7227 = vunpack.c.l.b16 %v7219
    %v7228 = vunpack.c.l.b16 %v7220
    %v7229 = vrot.slane %v7225, 2
    %v7230 = vrot.slane %v7226, 1
    %v7231 = vsel %vm644, %v7230, %v7229
    %v7232 = vsel %vm647, %v7227, %v7231
    %v7233 = vrot.slane %v7228, 7
    %v7234 = vsel %vm650, %v7233, %v7232
    %v7235 = vpack.c.b16 %v7234, %v7234
    %7236 = vrot.lane.b32.xlu0 %v7235, 32
    %v7237 = vpop.permute.xlu0 %7236
    %v7239 = vsel %vm174, %v7237, 0
    %7241 = vmatpush.bf16.msra.mxu0 0
    %7242 = vmatpush.bf16.msra.mxu0 0
    %7243 = vmatpush.bf16.msra.mxu0 0
    %7244 = vmatpush.bf16.msra.mxu0 0
    %7245 = vmatpush.bf16.msra.mxu0 0
    %7246 = vmatpush.bf16.msra.mxu0 0
    %7247 = vmatpush.bf16.msra.mxu0 %v4501
    %7248 = vmatpush.bf16.msra.mxu0 %v4500
    %7249 = vmatmul.bf16.gmra.mxu0 %v7239
    %v7250 = vpop.f32.mrf.mxu0
    %v7251 = vadd.f32 0.0, %v7250
    %v7252 = vpop.f32.mrf.mxu0
    %7253 = vdwg.mxu0
    %v7255 = vrot.slane %v7251, 7
    %v7256 = vrot.slane %v7251, 1
    %v7257 = vrot.slane %v7251, 2
    %v7262 = vadd.f32 %v4450, %v7255
    %v7263 = vadd.f32 %v4452, %v7251
    %v7264 = vadd.f32 %v4455, %v7256
    %v7265 = vadd.f32 %v4457, %v7257
    %v7266 = vxor.u32 %v7213, 2147483648
    %v7267 = vxor.u32 %v7214, 2147483648
    %v7268 = vxor.u32 %v7215, 2147483648
    %v7269 = vxor.u32 %v7216, 2147483648
    %v7270 = vmul.f32 %v7266, 1.442695
    %v7271 = vpow.pop %v7270
    %v7272 = vmul.f32 %v7267, 1.442695
    %v7273 = vpow.pop %v7272
    %v7274 = vmul.f32 %v7268, 1.442695
    %v7275 = vpow.pop %v7274
    %v7276 = vmul.f32 %v7269, 1.442695
    %v7277 = vpow.pop %v7276
    %v7278 = vadd.f32 %v7271, 1.0
    %v7279 = vadd.f32 %v7273, 1.0
    %v7280 = vadd.f32 %v7275, 1.0
    %v7281 = vadd.f32 %v7277, 1.0
    %v7282 = vrcp.pop %v7278
    %v7283 = vmul.f32 %v7278, %v7282
    %v7284 = vsub.f32 1.0, %v7283
    %v7285 = vmul.f32 %v7282, %v7284
    %v7286 = vadd.f32 %v7282, %v7285
    %vm7287 = vweird.f32 %v7278
    %vm7288 = vweird.f32 %v7282
    %vm7289 = vmor %vm7287, %vm7288
    %v7290 = vsel %vm7289, %v7282, %v7286
    %v7291 = vand.u32 2147483647, %v7278
    %vm7292 = vcmp.eq.f32.partialorder %v7291, 8.507059e+37
    %v7293 = vand.u32 %v7278, 2147483648
    %v7294 = vor.u32 1.1754944e-38, %v7293
    %v7295 = vsel %vm7292, %v7294, %v7290
    %v7296 = vmul.f32 1.0, %v7295
    %v7297 = vrcp.pop %v7279
    %v7298 = vmul.f32 %v7279, %v7297
    %v7299 = vsub.f32 1.0, %v7298
    %v7300 = vmul.f32 %v7297, %v7299
    %v7301 = vadd.f32 %v7297, %v7300
    %vm7302 = vweird.f32 %v7279
    %vm7303 = vweird.f32 %v7297
    %vm7304 = vmor %vm7302, %vm7303
    %v7305 = vsel %vm7304, %v7297, %v7301
    %v7306 = vand.u32 2147483647, %v7279
    %vm7307 = vcmp.eq.f32.partialorder %v7306, 8.507059e+37
    %v7308 = vand.u32 %v7279, 2147483648
    %v7309 = vor.u32 1.1754944e-38, %v7308
    %v7310 = vsel %vm7307, %v7309, %v7305
    %v7311 = vmul.f32 1.0, %v7310
    %v7312 = vrcp.pop %v7280
    %v7313 = vmul.f32 %v7280, %v7312
    %v7314 = vsub.f32 1.0, %v7313
    %v7315 = vmul.f32 %v7312, %v7314
    %v7316 = vadd.f32 %v7312, %v7315
    %vm7317 = vweird.f32 %v7280
    %vm7318 = vweird.f32 %v7312
    %vm7319 = vmor %vm7317, %vm7318
    %v7320 = vsel %vm7319, %v7312, %v7316
    %v7321 = vand.u32 2147483647, %v7280
    %vm7322 = vcmp.eq.f32.partialorder %v7321, 8.507059e+37
    %v7323 = vand.u32 %v7280, 2147483648
    %v7324 = vor.u32 1.1754944e-38, %v7323
    %v7325 = vsel %vm7322, %v7324, %v7320
    %v7326 = vmul.f32 1.0, %v7325
    %v7327 = vrcp.pop %v7281
    %v7328 = vmul.f32 %v7281, %v7327
    %v7329 = vsub.f32 1.0, %v7328
    %v7330 = vmul.f32 %v7327, %v7329
    %v7331 = vadd.f32 %v7327, %v7330
    %vm7332 = vweird.f32 %v7281
    %vm7333 = vweird.f32 %v7327
    %vm7334 = vmor %vm7332, %vm7333
    %v7335 = vsel %vm7334, %v7327, %v7331
    %v7336 = vand.u32 2147483647, %v7281
    %vm7337 = vcmp.eq.f32.partialorder %v7336, 8.507059e+37
    %v7338 = vand.u32 %v7281, 2147483648
    %v7339 = vor.u32 1.1754944e-38, %v7338
    %v7340 = vsel %vm7337, %v7339, %v7335
    %v7341 = vmul.f32 1.0, %v7340
    %v7342 = vtanh.pop %v7213
    %v7343 = vtanh.pop %v7214
    %v7344 = vtanh.pop %v7215
    %v7345 = vtanh.pop %v7216
    %v7350 = vrot.slane %v6938, 7
    %v7351 = vrot.slane %v6939, 7
    %v7352 = vrot.slane %v6940, 7
    %v7353 = vrot.slane %v6941, 7
    %v7358 = vmul.f32 %v7296, %v7350
    %v7359 = vmul.f32 %v7311, %v7351
    %v7360 = vmul.f32 %v7326, %v7352
    %v7361 = vmul.f32 %v7341, %v7353
    %7366 = vrot.lane.b32.xlu0 %v7342, 64
    %v7367 = vpop.permute.xlu0 %7366
    %7368 = vrot.lane.b32.xlu0 %v7343, 64
    %v7369 = vpop.permute.xlu0 %7368
    %7370 = vrot.lane.b32.xlu0 %v7344, 64
    %v7371 = vpop.permute.xlu0 %7370
    %7372 = vrot.lane.b32.xlu0 %v7345, 64
    %v7373 = vpop.permute.xlu0 %7372
    %v7378 = vmul.f32 %v7296, %v7367
    %v7379 = vmul.f32 %v7311, %v7369
    %v7380 = vmul.f32 %v7326, %v7371
    %v7381 = vmul.f32 %v7341, %v7373
    %7386 = vrot.lane.b32.xlu0 %v7378, 32
    %v7387 = vpop.permute.xlu0 %7386
    %7388 = vrot.lane.b32.xlu0 %v7379, 32
    %v7389 = vpop.permute.xlu0 %7388
    %7390 = vrot.lane.b32.xlu0 %v7380, 32
    %v7391 = vpop.permute.xlu0 %7390
    %7392 = vrot.lane.b32.xlu0 %v7381, 32
    %v7393 = vpop.permute.xlu0 %7392
    %v7398 = vadd.f32 %v7358, %v7387
    %v7399 = vadd.f32 %v7359, %v7389
    %v7400 = vadd.f32 %v7360, %v7391
    %v7401 = vadd.f32 %v7361, %v7393
    %v7402 = vtanh.pop %v7398
    %v7403 = vtanh.pop %v7399
    %v7404 = vtanh.pop %v7400
    %v7405 = vtanh.pop %v7401
    %7410 = vrot.lane.b32.xlu0 %v7402, 64
    %v7411 = vpop.permute.xlu0 %7410
    %7412 = vrot.lane.b32.xlu0 %v7403, 64
    %v7413 = vpop.permute.xlu0 %7412
    %7414 = vrot.lane.b32.xlu0 %v7404, 64
    %v7415 = vpop.permute.xlu0 %7414
    %7416 = vrot.lane.b32.xlu0 %v7405, 64
    %v7417 = vpop.permute.xlu0 %7416
    %v7422 = vmul.f32 %v7296, %v7411
    %v7423 = vmul.f32 %v7311, %v7413
    %v7424 = vmul.f32 %v7326, %v7415
    %v7425 = vmul.f32 %v7341, %v7417
    %v7426 = vxor.u32 %v7262, 2147483648
    %v7427 = vxor.u32 %v7263, 2147483648
    %v7428 = vxor.u32 %v7264, 2147483648
    %v7429 = vxor.u32 %v7265, 2147483648
    %v7430 = vmul.f32 %v7426, 1.442695
    %v7431 = vpow.pop %v7430
    %v7432 = vmul.f32 %v7427, 1.442695
    %v7433 = vpow.pop %v7432
    %v7434 = vmul.f32 %v7428, 1.442695
    %v7435 = vpow.pop %v7434
    %v7436 = vmul.f32 %v7429, 1.442695
    %v7437 = vpow.pop %v7436
    %v7438 = vadd.f32 %v7431, 1.0
    %v7439 = vadd.f32 %v7433, 1.0
    %v7440 = vadd.f32 %v7435, 1.0
    %v7441 = vadd.f32 %v7437, 1.0
    %v7442 = vrcp.pop %v7438
    %v7443 = vmul.f32 %v7438, %v7442
    %v7444 = vsub.f32 1.0, %v7443
    %v7445 = vmul.f32 %v7442, %v7444
    %v7446 = vadd.f32 %v7442, %v7445
    %vm7447 = vweird.f32 %v7438
    %vm7448 = vweird.f32 %v7442
    %vm7449 = vmor %vm7447, %vm7448
    %v7450 = vsel %vm7449, %v7442, %v7446
    %v7451 = vand.u32 2147483647, %v7438
    %vm7452 = vcmp.eq.f32.partialorder %v7451, 8.507059e+37
    %v7453 = vand.u32 %v7438, 2147483648
    %v7454 = vor.u32 1.1754944e-38, %v7453
    %v7455 = vsel %vm7452, %v7454, %v7450
    %v7456 = vmul.f32 1.0, %v7455
    %v7457 = vrcp.pop %v7439
    %v7458 = vmul.f32 %v7439, %v7457
    %v7459 = vsub.f32 1.0, %v7458
    %v7460 = vmul.f32 %v7457, %v7459
    %v7461 = vadd.f32 %v7457, %v7460
    %vm7462 = vweird.f32 %v7439
    %vm7463 = vweird.f32 %v7457
    %vm7464 = vmor %vm7462, %vm7463
    %v7465 = vsel %vm7464, %v7457, %v7461
    %v7466 = vand.u32 2147483647, %v7439
    %vm7467 = vcmp.eq.f32.partialorder %v7466, 8.507059e+37
    %v7468 = vand.u32 %v7439, 2147483648
    %v7469 = vor.u32 1.1754944e-38, %v7468
    %v7470 = vsel %vm7467, %v7469, %v7465
    %v7471 = vmul.f32 1.0, %v7470
    %v7472 = vrcp.pop %v7440
    %v7473 = vmul.f32 %v7440, %v7472
    %v7474 = vsub.f32 1.0, %v7473
    %v7475 = vmul.f32 %v7472, %v7474
    %v7476 = vadd.f32 %v7472, %v7475
    %vm7477 = vweird.f32 %v7440
    %vm7478 = vweird.f32 %v7472
    %vm7479 = vmor %vm7477, %vm7478
    %v7480 = vsel %vm7479, %v7472, %v7476
    %v7481 = vand.u32 2147483647, %v7440
    %vm7482 = vcmp.eq.f32.partialorder %v7481, 8.507059e+37
    %v7483 = vand.u32 %v7440, 2147483648
    %v7484 = vor.u32 1.1754944e-38, %v7483
    %v7485 = vsel %vm7482, %v7484, %v7480
    %v7486 = vmul.f32 1.0, %v7485
    %v7487 = vrcp.pop %v7441
    %v7488 = vmul.f32 %v7441, %v7487
    %v7489 = vsub.f32 1.0, %v7488
    %v7490 = vmul.f32 %v7487, %v7489
    %v7491 = vadd.f32 %v7487, %v7490
    %vm7492 = vweird.f32 %v7441
    %vm7493 = vweird.f32 %v7487
    %vm7494 = vmor %vm7492, %vm7493
    %v7495 = vsel %vm7494, %v7487, %v7491
    %v7496 = vand.u32 2147483647, %v7441
    %vm7497 = vcmp.eq.f32.partialorder %v7496, 8.507059e+37
    %v7498 = vand.u32 %v7441, 2147483648
    %v7499 = vor.u32 1.1754944e-38, %v7498
    %v7500 = vsel %vm7497, %v7499, %v7495
    %v7501 = vmul.f32 1.0, %v7500
    %v7502 = vtanh.pop %v7262
    %v7503 = vtanh.pop %v7263
    %v7504 = vtanh.pop %v7264
    %v7505 = vtanh.pop %v7265
    %v7510 = vrot.slane %v7098, 1
    %v7511 = vrot.slane %v7099, 1
    %v7512 = vrot.slane %v7100, 1
    %v7513 = vrot.slane %v7101, 1
    %v7518 = vmul.f32 %v7456, %v7510
    %v7519 = vmul.f32 %v7471, %v7511
    %v7520 = vmul.f32 %v7486, %v7512
    %v7521 = vmul.f32 %v7501, %v7513
    %7526 = vrot.lane.b32.xlu0 %v7502, 64
    %v7527 = vpop.permute.xlu0 %7526
    %7528 = vrot.lane.b32.xlu0 %v7503, 64
    %v7529 = vpop.permute.xlu0 %7528
    %7530 = vrot.lane.b32.xlu0 %v7504, 64
    %v7531 = vpop.permute.xlu0 %7530
    %7532 = vrot.lane.b32.xlu0 %v7505, 64
    %v7533 = vpop.permute.xlu0 %7532
    %v7538 = vmul.f32 %v7456, %v7527
    %v7539 = vmul.f32 %v7471, %v7529
    %v7540 = vmul.f32 %v7486, %v7531
    %v7541 = vmul.f32 %v7501, %v7533
    %7546 = vrot.lane.b32.xlu0 %v7538, 32
    %v7547 = vpop.permute.xlu0 %7546
    %7548 = vrot.lane.b32.xlu0 %v7539, 32
    %v7549 = vpop.permute.xlu0 %7548
    %7550 = vrot.lane.b32.xlu0 %v7540, 32
    %v7551 = vpop.permute.xlu0 %7550
    %7552 = vrot.lane.b32.xlu0 %v7541, 32
    %v7553 = vpop.permute.xlu0 %7552
    %v7558 = vadd.f32 %v7518, %v7547
    %v7559 = vadd.f32 %v7519, %v7549
    %v7560 = vadd.f32 %v7520, %v7551
    %v7561 = vadd.f32 %v7521, %v7553
    %v7562 = vtanh.pop %v7558
    %v7563 = vtanh.pop %v7559
    %v7564 = vtanh.pop %v7560
    %v7565 = vtanh.pop %v7561
    %7570 = vrot.lane.b32.xlu0 %v7562, 64
    %v7571 = vpop.permute.xlu0 %7570
    %7572 = vrot.lane.b32.xlu0 %v7563, 64
    %v7573 = vpop.permute.xlu0 %7572
    %7574 = vrot.lane.b32.xlu0 %v7564, 64
    %v7575 = vpop.permute.xlu0 %7574
    %7576 = vrot.lane.b32.xlu0 %v7565, 64
    %v7577 = vpop.permute.xlu0 %7576
    %v7582 = vmul.f32 %v7456, %v7571
    %v7583 = vmul.f32 %v7471, %v7573
    %v7584 = vmul.f32 %v7486, %v7575
    %v7585 = vmul.f32 %v7501, %v7577
    %7590 = vrot.lane.b32.xlu0 %v7422, 32
    %v7591 = vpop.permute.xlu0 %7590
    %7592 = vrot.lane.b32.xlu0 %v7423, 32
    %v7593 = vpop.permute.xlu0 %7592
    %7594 = vrot.lane.b32.xlu0 %v7424, 32
    %v7595 = vpop.permute.xlu0 %7594
    %7596 = vrot.lane.b32.xlu0 %v7425, 32
    %v7597 = vpop.permute.xlu0 %7596
    %7602 = vst.msk [vmem:[#allocation3] sm:$0x40] %vm3380, %v7591
    %7603 = vst.msk [vmem:[#allocation3 + $0x8] sm:$0x40] %vm3380, %v7593
    %7604 = vst.msk [vmem:[#allocation3 + $0x10] sm:$0x40] %vm3380, %v7595
    %7605 = vst.msk [vmem:[#allocation3 + $0x18] sm:$0x40] %vm3380, %v7597
    %7610 = vrot.lane.b32.xlu0 %v7582, 64
    %v7611 = vpop.permute.xlu0 %7610
    %7612 = vrot.lane.b32.xlu0 %v7583, 64
    %v7613 = vpop.permute.xlu0 %7612
    %7614 = vrot.lane.b32.xlu0 %v7584, 64
    %v7615 = vpop.permute.xlu0 %7614
    %7616 = vrot.lane.b32.xlu0 %v7585, 64
    %v7617 = vpop.permute.xlu0 %7616
    %7622 = vst.msk [vmem:[#allocation3] sm:$0x2] %vm3401, %v7611
    %7623 = vst.msk [vmem:[#allocation3 + $0x8] sm:$0x2] %vm3401, %v7613
    %7624 = vst.msk [vmem:[#allocation3 + $0x10] sm:$0x2] %vm3401, %v7615
    %7625 = vst.msk [vmem:[#allocation3 + $0x18] sm:$0x2] %vm3401, %v7617
    %v7626 = vpack.c.bf16 %v7422, %v7422
    %v7627 = vpack.c.bf16 %v7423, %v7423
    %v7628 = vpack.c.bf16 %v7424, %v7424
    %v7629 = vpack.c.bf16 %v7425, %v7425
    %v7634 = vunpack.c.l.b16 %v7626
    %v7635 = vunpack.c.l.b16 %v7627
    %v7636 = vunpack.c.l.b16 %v7628
    %v7637 = vunpack.c.l.b16 %v7629
    %v7638 = vrot.slane %v7634, 6
    %v7639 = vrot.slane %v7635, 5
    %v7640 = vsel %vm644, %v7639, %v7638
    %v7641 = vrot.slane %v7636, 4
    %v7642 = vsel %vm647, %v7641, %v7640
    %v7643 = vrot.slane %v7637, 3
    %v7644 = vsel %vm650, %v7643, %v7642
    %v7645 = vpack.c.b16 %v7644, %v7644
    %7646 = vrot.lane.b32.xlu0 %v7645, 32
    %v7647 = vpop.permute.xlu0 %7646
    %v7649 = vsel %vm174, %v7647, 0
    %7651 = vmatpush.bf16.msra.mxu0 0
    %7652 = vmatpush.bf16.msra.mxu0 0
    %7653 = vmatpush.bf16.msra.mxu0 0
    %7654 = vmatpush.bf16.msra.mxu0 0
    %7655 = vmatpush.bf16.msra.mxu0 0
    %7656 = vmatpush.bf16.msra.mxu0 0
    %7657 = vmatpush.bf16.msra.mxu0 %v4468
    %7658 = vmatpush.bf16.msra.mxu0 %v4467
    %7659 = vmatmul.bf16.gmra.mxu0 %v7649
    %v7660 = vpop.f32.mrf.mxu0
    %v7661 = vadd.f32 0.0, %v7660
    %v7662 = vpop.f32.mrf.mxu0
    %7663 = vdwg.mxu0
    %v7665 = vrot.slane %v7661, 1
    %v7666 = vrot.slane %v7661, 2
    %v7667 = vrot.slane %v7661, 3
    %v7668 = vrot.slane %v7661, 4
    %v7673 = vadd.f32 %v4412, %v7665
    %v7674 = vadd.f32 %v4414, %v7666
    %v7675 = vadd.f32 %v4417, %v7667
    %v7676 = vadd.f32 %v4419, %v7668
    %v7677 = vpack.c.bf16 %v7582, %v7582
    %v7678 = vpack.c.bf16 %v7583, %v7583
    %v7679 = vpack.c.bf16 %v7584, %v7584
    %v7680 = vpack.c.bf16 %v7585, %v7585
    %v7685 = vunpack.c.l.b16 %v7677
    %v7686 = vunpack.c.l.b16 %v7678
    %v7687 = vunpack.c.l.b16 %v7679
    %v7688 = vunpack.c.l.b16 %v7680
    %v7689 = vrot.slane %v7685, 1
    %v7690 = vsel %vm644, %v7686, %v7689
    %v7691 = vrot.slane %v7687, 7
    %v7692 = vsel %vm647, %v7691, %v7690
    %v7693 = vrot.slane %v7688, 6
    %v7694 = vsel %vm650, %v7693, %v7692
    %v7695 = vpack.c.b16 %v7694, %v7694
    %7696 = vrot.lane.b32.xlu0 %v7695, 32
    %v7697 = vpop.permute.xlu0 %7696
    %v7699 = vsel %vm174, %v7697, 0
    %7701 = vmatpush.bf16.msra.mxu0 0
    %7702 = vmatpush.bf16.msra.mxu0 0
    %7703 = vmatpush.bf16.msra.mxu0 0
    %7704 = vmatpush.bf16.msra.mxu0 0
    %7705 = vmatpush.bf16.msra.mxu0 0
    %7706 = vmatpush.bf16.msra.mxu0 0
    %7707 = vmatpush.bf16.msra.mxu0 %v4501
    %7708 = vmatpush.bf16.msra.mxu0 %v4500
    %7709 = vmatmul.bf16.gmra.mxu0 %v7699
    %v7710 = vpop.f32.mrf.mxu0
    %v7711 = vadd.f32 0.0, %v7710
    %v7712 = vpop.f32.mrf.mxu0
    %7713 = vdwg.mxu0
    %v7715 = vrot.slane %v7711, 1
    %v7716 = vrot.slane %v7711, 2
    %v7717 = vrot.slane %v7711, 3
    %v7722 = vadd.f32 %v4450, %v7711
    %v7723 = vadd.f32 %v4452, %v7715
    %v7724 = vadd.f32 %v4455, %v7716
    %v7725 = vadd.f32 %v4457, %v7717
    %v7726 = vxor.u32 %v7673, 2147483648
    %v7727 = vxor.u32 %v7674, 2147483648
    %v7728 = vxor.u32 %v7675, 2147483648
    %v7729 = vxor.u32 %v7676, 2147483648
    %v7730 = vmul.f32 %v7726, 1.442695
    %v7731 = vpow.pop %v7730
    %v7732 = vmul.f32 %v7727, 1.442695
    %v7733 = vpow.pop %v7732
    %v7734 = vmul.f32 %v7728, 1.442695
    %v7735 = vpow.pop %v7734
    %v7736 = vmul.f32 %v7729, 1.442695
    %v7737 = vpow.pop %v7736
    %v7738 = vadd.f32 %v7731, 1.0
    %v7739 = vadd.f32 %v7733, 1.0
    %v7740 = vadd.f32 %v7735, 1.0
    %v7741 = vadd.f32 %v7737, 1.0
    %v7742 = vrcp.pop %v7738
    %v7743 = vmul.f32 %v7738, %v7742
    %v7744 = vsub.f32 1.0, %v7743
    %v7745 = vmul.f32 %v7742, %v7744
    %v7746 = vadd.f32 %v7742, %v7745
    %vm7747 = vweird.f32 %v7738
    %vm7748 = vweird.f32 %v7742
    %vm7749 = vmor %vm7747, %vm7748
    %v7750 = vsel %vm7749, %v7742, %v7746
    %v7751 = vand.u32 2147483647, %v7738
    %vm7752 = vcmp.eq.f32.partialorder %v7751, 8.507059e+37
    %v7753 = vand.u32 %v7738, 2147483648
    %v7754 = vor.u32 1.1754944e-38, %v7753
    %v7755 = vsel %vm7752, %v7754, %v7750
    %v7756 = vmul.f32 1.0, %v7755
    %v7757 = vrcp.pop %v7739
    %v7758 = vmul.f32 %v7739, %v7757
    %v7759 = vsub.f32 1.0, %v7758
    %v7760 = vmul.f32 %v7757, %v7759
    %v7761 = vadd.f32 %v7757, %v7760
    %vm7762 = vweird.f32 %v7739
    %vm7763 = vweird.f32 %v7757
    %vm7764 = vmor %vm7762, %vm7763
    %v7765 = vsel %vm7764, %v7757, %v7761
    %v7766 = vand.u32 2147483647, %v7739
    %vm7767 = vcmp.eq.f32.partialorder %v7766, 8.507059e+37
    %v7768 = vand.u32 %v7739, 2147483648
    %v7769 = vor.u32 1.1754944e-38, %v7768
    %v7770 = vsel %vm7767, %v7769, %v7765
    %v7771 = vmul.f32 1.0, %v7770
    %v7772 = vrcp.pop %v7740
    %v7773 = vmul.f32 %v7740, %v7772
    %v7774 = vsub.f32 1.0, %v7773
    %v7775 = vmul.f32 %v7772, %v7774
    %v7776 = vadd.f32 %v7772, %v7775
    %vm7777 = vweird.f32 %v7740
    %vm7778 = vweird.f32 %v7772
    %vm7779 = vmor %vm7777, %vm7778
    %v7780 = vsel %vm7779, %v7772, %v7776
    %v7781 = vand.u32 2147483647, %v7740
    %vm7782 = vcmp.eq.f32.partialorder %v7781, 8.507059e+37
    %v7783 = vand.u32 %v7740, 2147483648
    %v7784 = vor.u32 1.1754944e-38, %v7783
    %v7785 = vsel %vm7782, %v7784, %v7780
    %v7786 = vmul.f32 1.0, %v7785
    %v7787 = vrcp.pop %v7741
    %v7788 = vmul.f32 %v7741, %v7787
    %v7789 = vsub.f32 1.0, %v7788
    %v7790 = vmul.f32 %v7787, %v7789
    %v7791 = vadd.f32 %v7787, %v7790
    %vm7792 = vweird.f32 %v7741
    %vm7793 = vweird.f32 %v7787
    %vm7794 = vmor %vm7792, %vm7793
    %v7795 = vsel %vm7794, %v7787, %v7791
    %v7796 = vand.u32 2147483647, %v7741
    %vm7797 = vcmp.eq.f32.partialorder %v7796, 8.507059e+37
    %v7798 = vand.u32 %v7741, 2147483648
    %v7799 = vor.u32 1.1754944e-38, %v7798
    %v7800 = vsel %vm7797, %v7799, %v7795
    %v7801 = vmul.f32 1.0, %v7800
    %v7802 = vtanh.pop %v7673
    %v7803 = vtanh.pop %v7674
    %v7804 = vtanh.pop %v7675
    %v7805 = vtanh.pop %v7676
    %v7810 = vrot.slane %v7398, 7
    %v7811 = vrot.slane %v7399, 7
    %v7812 = vrot.slane %v7400, 7
    %v7813 = vrot.slane %v7401, 7
    %v7818 = vmul.f32 %v7756, %v7810
    %v7819 = vmul.f32 %v7771, %v7811
    %v7820 = vmul.f32 %v7786, %v7812
    %v7821 = vmul.f32 %v7801, %v7813
    %7826 = vrot.lane.b32.xlu0 %v7802, 64
    %v7827 = vpop.permute.xlu0 %7826
    %7828 = vrot.lane.b32.xlu0 %v7803, 64
    %v7829 = vpop.permute.xlu0 %7828
    %7830 = vrot.lane.b32.xlu0 %v7804, 64
    %v7831 = vpop.permute.xlu0 %7830
    %7832 = vrot.lane.b32.xlu0 %v7805, 64
    %v7833 = vpop.permute.xlu0 %7832
    %v7838 = vmul.f32 %v7756, %v7827
    %v7839 = vmul.f32 %v7771, %v7829
    %v7840 = vmul.f32 %v7786, %v7831
    %v7841 = vmul.f32 %v7801, %v7833
    %7846 = vrot.lane.b32.xlu0 %v7838, 32
    %v7847 = vpop.permute.xlu0 %7846
    %7848 = vrot.lane.b32.xlu0 %v7839, 32
    %v7849 = vpop.permute.xlu0 %7848
    %7850 = vrot.lane.b32.xlu0 %v7840, 32
    %v7851 = vpop.permute.xlu0 %7850
    %7852 = vrot.lane.b32.xlu0 %v7841, 32
    %v7853 = vpop.permute.xlu0 %7852
    %v7858 = vadd.f32 %v7818, %v7847
    %v7859 = vadd.f32 %v7819, %v7849
    %v7860 = vadd.f32 %v7820, %v7851
    %v7861 = vadd.f32 %v7821, %v7853
    %v7862 = vtanh.pop %v7858
    %v7863 = vtanh.pop %v7859
    %v7864 = vtanh.pop %v7860
    %v7865 = vtanh.pop %v7861
    %7870 = vrot.lane.b32.xlu0 %v7862, 64
    %v7871 = vpop.permute.xlu0 %7870
    %7872 = vrot.lane.b32.xlu0 %v7863, 64
    %v7873 = vpop.permute.xlu0 %7872
    %7874 = vrot.lane.b32.xlu0 %v7864, 64
    %v7875 = vpop.permute.xlu0 %7874
    %7876 = vrot.lane.b32.xlu0 %v7865, 64
    %v7877 = vpop.permute.xlu0 %7876
    %v7882 = vmul.f32 %v7756, %v7871
    %v7883 = vmul.f32 %v7771, %v7873
    %v7884 = vmul.f32 %v7786, %v7875
    %v7885 = vmul.f32 %v7801, %v7877
    %v7886 = vxor.u32 %v7722, 2147483648
    %v7887 = vxor.u32 %v7723, 2147483648
    %v7888 = vxor.u32 %v7724, 2147483648
    %v7889 = vxor.u32 %v7725, 2147483648
    %v7890 = vmul.f32 %v7886, 1.442695
    %v7891 = vpow.pop %v7890
    %v7892 = vmul.f32 %v7887, 1.442695
    %v7893 = vpow.pop %v7892
    %v7894 = vmul.f32 %v7888, 1.442695
    %v7895 = vpow.pop %v7894
    %v7896 = vmul.f32 %v7889, 1.442695
    %v7897 = vpow.pop %v7896
    %v7898 = vadd.f32 %v7891, 1.0
    %v7899 = vadd.f32 %v7893, 1.0
    %v7900 = vadd.f32 %v7895, 1.0
    %v7901 = vadd.f32 %v7897, 1.0
    %v7902 = vrcp.pop %v7898
    %v7903 = vmul.f32 %v7898, %v7902
    %v7904 = vsub.f32 1.0, %v7903
    %v7905 = vmul.f32 %v7902, %v7904
    %v7906 = vadd.f32 %v7902, %v7905
    %vm7907 = vweird.f32 %v7898
    %vm7908 = vweird.f32 %v7902
    %vm7909 = vmor %vm7907, %vm7908
    %v7910 = vsel %vm7909, %v7902, %v7906
    %v7911 = vand.u32 2147483647, %v7898
    %vm7912 = vcmp.eq.f32.partialorder %v7911, 8.507059e+37
    %v7913 = vand.u32 %v7898, 2147483648
    %v7914 = vor.u32 1.1754944e-38, %v7913
    %v7915 = vsel %vm7912, %v7914, %v7910
    %v7916 = vmul.f32 1.0, %v7915
    %v7917 = vrcp.pop %v7899
    %v7918 = vmul.f32 %v7899, %v7917
    %v7919 = vsub.f32 1.0, %v7918
    %v7920 = vmul.f32 %v7917, %v7919
    %v7921 = vadd.f32 %v7917, %v7920
    %vm7922 = vweird.f32 %v7899
    %vm7923 = vweird.f32 %v7917
    %vm7924 = vmor %vm7922, %vm7923
    %v7925 = vsel %vm7924, %v7917, %v7921
    %v7926 = vand.u32 2147483647, %v7899
    %vm7927 = vcmp.eq.f32.partialorder %v7926, 8.507059e+37
    %v7928 = vand.u32 %v7899, 2147483648
    %v7929 = vor.u32 1.1754944e-38, %v7928
    %v7930 = vsel %vm7927, %v7929, %v7925
    %v7931 = vmul.f32 1.0, %v7930
    %v7932 = vrcp.pop %v7900
    %v7933 = vmul.f32 %v7900, %v7932
    %v7934 = vsub.f32 1.0, %v7933
    %v7935 = vmul.f32 %v7932, %v7934
    %v7936 = vadd.f32 %v7932, %v7935
    %vm7937 = vweird.f32 %v7900
    %vm7938 = vweird.f32 %v7932
    %vm7939 = vmor %vm7937, %vm7938
    %v7940 = vsel %vm7939, %v7932, %v7936
    %v7941 = vand.u32 2147483647, %v7900
    %vm7942 = vcmp.eq.f32.partialorder %v7941, 8.507059e+37
    %v7943 = vand.u32 %v7900, 2147483648
    %v7944 = vor.u32 1.1754944e-38, %v7943
    %v7945 = vsel %vm7942, %v7944, %v7940
    %v7946 = vmul.f32 1.0, %v7945
    %v7947 = vrcp.pop %v7901
    %v7948 = vmul.f32 %v7901, %v7947
    %v7949 = vsub.f32 1.0, %v7948
    %v7950 = vmul.f32 %v7947, %v7949
    %v7951 = vadd.f32 %v7947, %v7950
    %vm7952 = vweird.f32 %v7901
    %vm7953 = vweird.f32 %v7947
    %vm7954 = vmor %vm7952, %vm7953
    %v7955 = vsel %vm7954, %v7947, %v7951
    %v7956 = vand.u32 2147483647, %v7901
    %vm7957 = vcmp.eq.f32.partialorder %v7956, 8.507059e+37
    %v7958 = vand.u32 %v7901, 2147483648
    %v7959 = vor.u32 1.1754944e-38, %v7958
    %v7960 = vsel %vm7957, %v7959, %v7955
    %v7961 = vmul.f32 1.0, %v7960
    %v7962 = vtanh.pop %v7722
    %v7963 = vtanh.pop %v7723
    %v7964 = vtanh.pop %v7724
    %v7965 = vtanh.pop %v7725
    %v7970 = vrot.slane %v7558, 1
    %v7971 = vrot.slane %v7559, 1
    %v7972 = vrot.slane %v7560, 1
    %v7973 = vrot.slane %v7561, 1
    %v7978 = vmul.f32 %v7916, %v7970
    %v7979 = vmul.f32 %v7931, %v7971
    %v7980 = vmul.f32 %v7946, %v7972
    %v7981 = vmul.f32 %v7961, %v7973
    %7986 = vrot.lane.b32.xlu0 %v7962, 64
    %v7987 = vpop.permute.xlu0 %7986
    %7988 = vrot.lane.b32.xlu0 %v7963, 64
    %v7989 = vpop.permute.xlu0 %7988
    %7990 = vrot.lane.b32.xlu0 %v7964, 64
    %v7991 = vpop.permute.xlu0 %7990
    %7992 = vrot.lane.b32.xlu0 %v7965, 64
    %v7993 = vpop.permute.xlu0 %7992
    %v7998 = vmul.f32 %v7916, %v7987
    %v7999 = vmul.f32 %v7931, %v7989
    %v8000 = vmul.f32 %v7946, %v7991
    %v8001 = vmul.f32 %v7961, %v7993
    %8006 = vrot.lane.b32.xlu0 %v7998, 32
    %v8007 = vpop.permute.xlu0 %8006
    %8008 = vrot.lane.b32.xlu0 %v7999, 32
    %v8009 = vpop.permute.xlu0 %8008
    %8010 = vrot.lane.b32.xlu0 %v8000, 32
    %v8011 = vpop.permute.xlu0 %8010
    %8012 = vrot.lane.b32.xlu0 %v8001, 32
    %v8013 = vpop.permute.xlu0 %8012
    %v8018 = vadd.f32 %v7978, %v8007
    %v8019 = vadd.f32 %v7979, %v8009
    %v8020 = vadd.f32 %v7980, %v8011
    %v8021 = vadd.f32 %v7981, %v8013
    %v8022 = vtanh.pop %v8018
    %v8023 = vtanh.pop %v8019
    %v8024 = vtanh.pop %v8020
    %v8025 = vtanh.pop %v8021
    %8030 = vrot.lane.b32.xlu0 %v8022, 64
    %v8031 = vpop.permute.xlu0 %8030
    %8032 = vrot.lane.b32.xlu0 %v8023, 64
    %v8033 = vpop.permute.xlu0 %8032
    %8034 = vrot.lane.b32.xlu0 %v8024, 64
    %v8035 = vpop.permute.xlu0 %8034
    %8036 = vrot.lane.b32.xlu0 %v8025, 64
    %v8037 = vpop.permute.xlu0 %8036
    %v8042 = vmul.f32 %v7916, %v8031
    %v8043 = vmul.f32 %v7931, %v8033
    %v8044 = vmul.f32 %v7946, %v8035
    %v8045 = vmul.f32 %v7961, %v8037
    %8050 = vrot.lane.b32.xlu0 %v7882, 32
    %v8051 = vpop.permute.xlu0 %8050
    %8052 = vrot.lane.b32.xlu0 %v7883, 32
    %v8053 = vpop.permute.xlu0 %8052
    %8054 = vrot.lane.b32.xlu0 %v7884, 32
    %v8055 = vpop.permute.xlu0 %8054
    %8056 = vrot.lane.b32.xlu0 %v7885, 32
    %v8057 = vpop.permute.xlu0 %8056
    %8062 = vst.msk [vmem:[#allocation3] sm:$0x80] %vm3842, %v8051
    %8063 = vst.msk [vmem:[#allocation3 + $0x8] sm:$0x80] %vm3842, %v8053
    %8064 = vst.msk [vmem:[#allocation3 + $0x10] sm:$0x80] %vm3842, %v8055
    %8065 = vst.msk [vmem:[#allocation3 + $0x18] sm:$0x80] %vm3842, %v8057
    %8070 = vrot.lane.b32.xlu0 %v8042, 64
    %v8071 = vpop.permute.xlu0 %8070
    %8072 = vrot.lane.b32.xlu0 %v8043, 64
    %v8073 = vpop.permute.xlu0 %8072
    %8074 = vrot.lane.b32.xlu0 %v8044, 64
    %v8075 = vpop.permute.xlu0 %8074
    %8076 = vrot.lane.b32.xlu0 %v8045, 64
    %v8077 = vpop.permute.xlu0 %8076
    %8082 = vst.msk [vmem:[#allocation3] sm:$0x1] %vm3863, %v8071
    %8083 = vst.msk [vmem:[#allocation3 + $0x8] sm:$0x1] %vm3863, %v8073
    %8084 = vst.msk [vmem:[#allocation3 + $0x10] sm:$0x1] %vm3863, %v8075
    %8085 = vst.msk [vmem:[#allocation3 + $0x18] sm:$0x1] %vm3863, %v8077
    %v8086 = vld [vmem:[#allocation3] sm:$0xff]
    %v8087 = vld [vmem:[#allocation3 + $0x8] sm:$0xff]
    %v8088 = vld [vmem:[#allocation3 + $0x10] sm:$0xff]
    %v8089 = vld [vmem:[#allocation3 + $0x18] sm:$0xff]
    %v8090 = vsel %vm3884, %v8086, 0.0
    %v8091 = vrot.slane %v8090, 4
    %v8092 = vadd.f32 %v8090, %v8091
    %v8093 = vrot.slane %v8092, 2
    %v8094 = vadd.f32 %v8092, %v8093
    %v8095 = vrot.slane %v8094, 1
    %v8096 = vadd.f32 %v8094, %v8095
    %v8097 = vsel %vm3884, %v8087, 0.0
    %v8098 = vrot.slane %v8097, 4
    %v8099 = vadd.f32 %v8097, %v8098
    %v8100 = vrot.slane %v8099, 2
    %v8101 = vadd.f32 %v8099, %v8100
    %v8102 = vrot.slane %v8101, 1
    %v8103 = vadd.f32 %v8101, %v8102
    %v8104 = vrcp.pop 8.0
    %v8105 = vmul.f32 8.0, %v8104
    %v8106 = vsub.f32 1.0, %v8105
    %v8107 = vmul.f32 %v8104, %v8106
    %v8108 = vadd.f32 %v8104, %v8107
    %vm8109 = vweird.f32 %v8104
    %v8110 = vsel %vm8109, %v8104, %v8108
    %v8111 = vmul.f32 %v8096, %v8110
    %v8112 = vmul.f32 %v8103, %v8110
    %v8113 = vsel %vm3884, %v8086, -inf
    %v8114 = vrot.slane %v8113, 4
    %v8115 = vmax.f32 %v8113, %v8114
    %v8116 = vrot.slane %v8115, 2
    %v8117 = vmax.f32 %v8115, %v8116
    %v8118 = vrot.slane %v8117, 1
    %v8119 = vmax.f32 %v8117, %v8118
    %v8120 = vsel %vm3884, %v8087, -inf
    %v8121 = vrot.slane %v8120, 4
    %v8122 = vmax.f32 %v8120, %v8121
    %v8123 = vrot.slane %v8122, 2
    %v8124 = vmax.f32 %v8122, %v8123
    %v8125 = vrot.slane %v8124, 1
    %v8126 = vmax.f32 %v8124, %v8125
    %v8127 = vsel %vm3884, %v8088, 0.0
    %v8128 = vrot.slane %v8127, 4
    %v8129 = vadd.f32 %v8127, %v8128
    %v8130 = vrot.slane %v8129, 2
    %v8131 = vadd.f32 %v8129, %v8130
    %v8132 = vrot.slane %v8131, 1
    %v8133 = vadd.f32 %v8131, %v8132
    %v8134 = vsel %vm3884, %v8089, 0.0
    %v8135 = vrot.slane %v8134, 4
    %v8136 = vadd.f32 %v8134, %v8135
    %v8137 = vrot.slane %v8136, 2
    %v8138 = vadd.f32 %v8136, %v8137
    %v8139 = vrot.slane %v8138, 1
    %v8140 = vadd.f32 %v8138, %v8139
    %v8141 = vmul.f32 %v8133, %v8110
    %v8142 = vmul.f32 %v8140, %v8110
    %v8143 = vsel %vm3884, %v8088, -inf
    %v8144 = vrot.slane %v8143, 4
    %v8145 = vmax.f32 %v8143, %v8144
    %v8146 = vrot.slane %v8145, 2
    %v8147 = vmax.f32 %v8145, %v8146
    %v8148 = vrot.slane %v8147, 1
    %v8149 = vmax.f32 %v8147, %v8148
    %v8150 = vsel %vm3884, %v8089, -inf
    %v8151 = vrot.slane %v8150, 4
    %v8152 = vmax.f32 %v8150, %v8151
    %v8153 = vrot.slane %v8152, 2
    %v8154 = vmax.f32 %v8152, %v8153
    %v8155 = vrot.slane %v8154, 1
    %v8156 = vmax.f32 %v8154, %v8155
    %v8159 = vsel %vm644, %v8112, %v8111
    %v8163 = vsel %vm644, %v8126, %v8119
    %8164 = vrot.lane.b32.xlu0 %v8163, 64
    %v8165 = vpop.permute.xlu0 %8164
    %v8169 = vsel %vm644, %v8142, %v8141
    %v8173 = vsel %vm644, %v8156, %v8149
    %8174 = vrot.lane.b32.xlu0 %v8173, 64
    %v8175 = vpop.permute.xlu0 %8174
    %v8177 = vsel %vm3884, %v8159, %v8165
    %v8178 = vsel %vm3884, %v8169, %v8175
    %v8179 = vld [vmem:[%s10] sm:$0xff]
    %v8180 = vld [vmem:[%s10 + $0x8] sm:$0xff]
    %v8181 = vld [vmem:[%s10 + $0x10] sm:$0xff]
    %v8182 = vld [vmem:[%s10 + $0x18] sm:$0xff]
    %v8183 = vld [vmem:[%s10 + $0x20] sm:$0xff]
    %v8184 = vld [vmem:[%s10 + $0x28] sm:$0xff]
    %v8185 = vld [vmem:[%s10 + $0x30] sm:$0xff]
    %v8186 = vld [vmem:[%s10 + $0x38] sm:$0xff]
    %v8187 = vld [vmem:[%s10 + $0x40] sm:$0xff]
    %v8188 = vld [vmem:[%s10 + $0x48] sm:$0xff]
    %v8189 = vld [vmem:[%s10 + $0x50] sm:$0xff]
    %v8190 = vld [vmem:[%s10 + $0x58] sm:$0xff]
    %v8191 = vld [vmem:[%s10 + $0x60] sm:$0xff]
    %v8192 = vld [vmem:[%s10 + $0x68] sm:$0xff]
    %v8193 = vld [vmem:[%s10 + $0x70] sm:$0xff]
    %v8194 = vld [vmem:[%s10 + $0x78] sm:$0xff]
    %v8195 = vld [vmem:[%s10 + $0x80] sm:$0xff]
    %v8196 = vld [vmem:[%s10 + $0x88] sm:$0xff]
    %v8197 = vld [vmem:[%s10 + $0x90] sm:$0xff]
    %v8198 = vld [vmem:[%s10 + $0x98] sm:$0xff]
    %v8199 = vld [vmem:[%s10 + $0xa0] sm:$0xff]
    %v8200 = vld [vmem:[%s10 + $0xa8] sm:$0xff]
    %v8201 = vld [vmem:[%s10 + $0xb0] sm:$0xff]
    %v8202 = vld [vmem:[%s10 + $0xb8] sm:$0xff]
    %v8203 = vld [vmem:[%s10 + $0xc0] sm:$0xff]
    %v8204 = vld [vmem:[%s10 + $0xc8] sm:$0xff]
    %v8205 = vld [vmem:[%s10 + $0xd0] sm:$0xff]
    %v8206 = vld [vmem:[%s10 + $0xd8] sm:$0xff]
    %v8207 = vld [vmem:[%s10 + $0xe0] sm:$0xff]
    %v8208 = vld [vmem:[%s10 + $0xe8] sm:$0xff]
    %v8209 = vld [vmem:[%s10 + $0xf0] sm:$0xff]
    %v8210 = vld [vmem:[%s10 + $0xf8] sm:$0xff]
    %v8211 = vld [vmem:[%s11] sm:$0x1]
    %v8213 = vperm.slane %v8211, 0
    %8215 = vmatpush.msra.mxu0 %v8194
    %8216 = vmatpush.msra.mxu0 %v8193
    %8217 = vmatpush.msra.mxu0 %v8192
    %8218 = vmatpush.msra.mxu0 %v8191
    %8219 = vmatpush.msra.mxu0 %v8190
    %8220 = vmatpush.msra.mxu0 %v8189
    %8221 = vmatpush.msra.mxu0 %v8188
    %8222 = vmatpush.msra.mxu0 %v8187
    %8223 = vmatpush.msra.mxu0 %v8186
    %8224 = vmatpush.msra.mxu0 %v8185
    %8225 = vmatpush.msra.mxu0 %v8184
    %8226 = vmatpush.msra.mxu0 %v8183
    %8227 = vmatpush.msra.mxu0 %v8182
    %8228 = vmatpush.msra.mxu0 %v8181
    %8229 = vmatpush.msra.mxu0 %v8180
    %8230 = vmatpush.msra.mxu0 %v8179
    %8231 = vmatmul.f32.gmra.mxu0 %v8177
    %v8232 = vpop.f32.mrf.mxu0
    %v8233 = vadd.f32 %v8213, %v8232
    %8234 = vdwg.mxu0
    %8235 = vmatpush.msra.mxu0 %v8210
    %8236 = vmatpush.msra.mxu0 %v8209
    %8237 = vmatpush.msra.mxu0 %v8208
    %8238 = vmatpush.msra.mxu0 %v8207
    %8239 = vmatpush.msra.mxu0 %v8206
    %8240 = vmatpush.msra.mxu0 %v8205
    %8241 = vmatpush.msra.mxu0 %v8204
    %8242 = vmatpush.msra.mxu0 %v8203
    %8243 = vmatpush.msra.mxu0 %v8202
    %8244 = vmatpush.msra.mxu0 %v8201
    %8245 = vmatpush.msra.mxu0 %v8200
    %8246 = vmatpush.msra.mxu0 %v8199
    %8247 = vmatpush.msra.mxu0 %v8198
    %8248 = vmatpush.msra.mxu0 %v8197
    %8249 = vmatpush.msra.mxu0 %v8196
    %8250 = vmatpush.msra.mxu0 %v8195
    %8251 = vmatmul.f32.gmra.mxu0 %v8178
    %v8252 = vpop.f32.mrf.mxu0
    %v8253 = vadd.f32 %v8233, %v8252
    %8254 = vdwg.mxu0
    %vm8255 = vcmp.gt.f32.partialorder %v8253, 0.0
    %v8256 = vmin.f32 %v8253, 0.0
    %v8257 = vmul.f32 %v8256, 1.442695
    %v8258 = vpow.pop %v8257
    %v8259 = vsub.f32 %v8258, 1.0
    %v8260 = vsel %vm8255, %v8253, %v8259
    %v8261 = vld [vmem:[%s12] sm:$0xff]
    %v8262 = vld [vmem:[%s12 + $0x8] sm:$0xff]
    %v8263 = vld [vmem:[%s12 + $0x10] sm:$0xff]
    %v8264 = vld [vmem:[%s12 + $0x18] sm:$0xff]
    %v8265 = vld [vmem:[%s12 + $0x20] sm:$0xff]
    %v8266 = vld [vmem:[%s12 + $0x28] sm:$0xff]
    %v8267 = vld [vmem:[%s12 + $0x30] sm:$0xff]
    %v8268 = vld [vmem:[%s12 + $0x38] sm:$0xff]
    %v8269 = vld [vmem:[%s13] sm:$0x1]
    %v8271 = vperm.slane %v8269, 0
    %v8274 = vsel %vm3884, %v8260, 0
    %8276 = vmatpush.msra.mxu0 0.0
    %8277 = vmatpush.msra.mxu0 0.0
    %8278 = vmatpush.msra.mxu0 0.0
    %8279 = vmatpush.msra.mxu0 0.0
    %8280 = vmatpush.msra.mxu0 0.0
    %8281 = vmatpush.msra.mxu0 0.0
    %8282 = vmatpush.msra.mxu0 0.0
    %8283 = vmatpush.msra.mxu0 0.0
    %8284 = vmatpush.msra.mxu0 %v8268
    %8285 = vmatpush.msra.mxu0 %v8267
    %8286 = vmatpush.msra.mxu0 %v8266
    %8287 = vmatpush.msra.mxu0 %v8265
    %8288 = vmatpush.msra.mxu0 %v8264
    %8289 = vmatpush.msra.mxu0 %v8263
    %8290 = vmatpush.msra.mxu0 %v8262
    %8291 = vmatpush.msra.mxu0 %v8261
    %8292 = vmatmul.f32.gmra.mxu0 %v8274
    %v8293 = vpop.f32.mrf.mxu0
    %v8294 = vadd.f32 %v8271, %v8293
    %8295 = vdwg.mxu0
    %vm8296 = vcmp.gt.f32.partialorder %v8294, 0.0
    %v8297 = vmin.f32 %v8294, 0.0
    %v8298 = vmul.f32 %v8297, 1.442695
    %v8299 = vpow.pop %v8298
    %v8300 = vsub.f32 %v8299, 1.0
    %v8301 = vsel %vm8296, %v8294, %v8300
    %v8302 = vld [vmem:[%s14] sm:$0xff]
    %v8303 = vld [vmem:[%s14 + $0x8] sm:$0xff]
    %v8304 = vld [vmem:[%s14 + $0x10] sm:$0xff]
    %v8305 = vld [vmem:[%s14 + $0x18] sm:$0xff]
    %v8306 = vld [vmem:[%s14 + $0x20] sm:$0xff]
    %v8307 = vld [vmem:[%s14 + $0x28] sm:$0xff]
    %v8308 = vld [vmem:[%s14 + $0x30] sm:$0xff]
    %v8309 = vld [vmem:[%s14 + $0x38] sm:$0xff]
    %v8310 = vld [vmem:[%s15] sm:$0x1]
    %v8312 = vperm.slane %v8310, 0
    %v8315 = vsel %vm3884, %v8301, 0
    %8317 = vmatpush.msra.mxu0 0.0
    %8318 = vmatpush.msra.mxu0 0.0
    %8319 = vmatpush.msra.mxu0 0.0
    %8320 = vmatpush.msra.mxu0 0.0
    %8321 = vmatpush.msra.mxu0 0.0
    %8322 = vmatpush.msra.mxu0 0.0
    %8323 = vmatpush.msra.mxu0 0.0
    %8324 = vmatpush.msra.mxu0 0.0
    %8325 = vmatpush.msra.mxu0 %v8309
    %8326 = vmatpush.msra.mxu0 %v8308
    %8327 = vmatpush.msra.mxu0 %v8307
    %8328 = vmatpush.msra.mxu0 %v8306
    %8329 = vmatpush.msra.mxu0 %v8305
    %8330 = vmatpush.msra.mxu0 %v8304
    %8331 = vmatpush.msra.mxu0 %v8303
    %8332 = vmatpush.msra.mxu0 %v8302
    %8333 = vmatmul.f32.gmra.mxu0 %v8315
    %v8334 = vpop.f32.mrf.mxu0
    %v8335 = vadd.f32 %v8312, %v8334
    %8336 = vdwg.mxu0
    %vm8337 = vcmask 17408
    %v8338 = vsel %vm8337, %v8335, -inf
    %8339 = vmax.xlane.f32.xlu0 %v8338
    %v8340 = vpop.xlane.xlu0 %8339
    %v8341 = vsub.f32 %v8335, %v8340
    %v8342 = vmul.f32 %v8341, 1.442695
    %v8343 = vpow.pop %v8342
    %v8344 = vsel %vm8337, %v8343, 0.0
    %8345 = vadd.xlane.f32.xlu0 %v8344
    %v8346 = vpop.xlane.xlu0 %8345
    %v8347 = vrcp.pop %v8346
    %v8348 = vmul.f32 %v8346, %v8347
    %v8349 = vsub.f32 1.0, %v8348
    %v8350 = vmul.f32 %v8347, %v8349
    %v8351 = vadd.f32 %v8347, %v8350
    %vm8352 = vweird.f32 %v8346
    %vm8353 = vweird.f32 %v8347
    %vm8354 = vmor %vm8352, %vm8353
    %v8355 = vsel %vm8354, %v8347, %v8351
    %v8356 = vand.u32 2147483647, %v8346
    %vm8357 = vcmp.eq.f32.partialorder %v8356, 8.507059e+37
    %v8358 = vand.u32 %v8346, 2147483648
    %v8359 = vor.u32 1.1754944e-38, %v8358
    %v8360 = vsel %vm8357, %v8359, %v8355
    %v8361 = vmul.f32 %v8343, %v8360
    %8362 = vst.msk [vmem:[#allocation4] sm:$0x3] %vm8337, %v8361
    // Predicated region
    $region66: #{esim_forward.1} parent=1 // pred_check
      _
    $region67: #{esim_forward.1} parent=1 // pred_check_branch
      %8364 = sbr.rel (0) target = $region69
    $region68: #{esim_forward.1} parent=1 // pred_region
      %8366 = vsyncadd [#allocation5], 0
      %s8368 = sshll.u32 [#allocation4], 4
      %s8369 = int_to_ptr.vmem [resolvable:$true] %s8368
      %s8370 = sshll.u32 %s16, 4
      %s8371 = int_to_ptr.hbm [resolvable:$true] %s8370
      %8373 = dma.vmem_to_hbm [thread:$0]  %s8369, 32, %s8371, [#allocation5]
    $region69: #{esim_forward.1} parent=1 // pred_fallthru
      _
    // Predicated region
    $region70: #{esim_forward.1} parent=1 // pred_check
      _
    $region71: #{esim_forward.1} parent=1 // pred_check_branch
      %8375 = sbr.rel (0) target = $region73
    $region72: #{esim_forward.1} parent=1 // pred_region
      %8377 = dma.done [#allocation5], 32
    $region73: #{esim_forward.1} parent=1 // pred_fallthru
      _
    %8378 = vsyncpa [#allocation5], 1

</llo_original>
